<compile_context>
chip_gen: v7x
topology: tpu7x:2x2x1
jax: 0.10.0
libtpu: 0.0.40
codegen_flags: <defaults>
</compile_context>

<pallas_src>
import math

import jax
import jax.numpy as jnp
from jax.experimental import pallas as pl
from jax.experimental.pallas import tpu as pltpu


# ----------------------------------------------------------------------------- kernel
def _nice_mlp_kernel(p_ref, c_ref, fB_ref,
                     w0_ref, w1_ref, w2_ref, w3a_ref, w3b_ref, w4_ref,
                     bpts_ref, fcw_ref, fcb_ref, wout_ref, bout_ref,
                     out_ref):
    f32 = jnp.float32
    x = p_ref[...]                                   # (tn, 3)
    c = c_ref[...]                                   # (tn, c_dim)

    # Gaussian Fourier feature transform: sin(x @ B)
    emb = jnp.sin(jnp.dot(x, fB_ref[...], preferred_element_type=f32))   # (tn, 93)

    def fc_c(i):
        return jnp.dot(c, fcw_ref[i], preferred_element_type=f32) + fcb_ref[i]

    # layer 0
    h = jnp.maximum(jnp.dot(emb, w0_ref[...], preferred_element_type=f32) + bpts_ref[0], 0.0)
    h = h + fc_c(0)
    # layer 1
    h = jnp.maximum(jnp.dot(h, w1_ref[...], preferred_element_type=f32) + bpts_ref[1], 0.0)
    h = h + fc_c(1)
    # layer 2 (skip connection inserted after this block)
    h = jnp.maximum(jnp.dot(h, w2_ref[...], preferred_element_type=f32) + bpts_ref[2], 0.0)
    h = h + fc_c(2)
    # layer 3: cat([emb, h]) @ W3  ==  emb @ W3a + h @ W3b  (no lane concat needed)
    h = jnp.maximum(
        jnp.dot(emb, w3a_ref[...], preferred_element_type=f32)
        + jnp.dot(h, w3b_ref[...], preferred_element_type=f32)
        + bpts_ref[3], 0.0)
    h = h + fc_c(3)
    # layer 4
    h = jnp.maximum(jnp.dot(h, w4_ref[...], preferred_element_type=f32) + bpts_ref[4], 0.0)
    h = h + fc_c(4)

    # output head (color=False -> 1 channel), then raw2 = [0, 0, 0, occ]
    occ = jnp.dot(h, wout_ref[...], preferred_element_type=f32) + bout_ref[...]   # (tn, 1)
    lane = jax.lax.broadcasted_iota(jnp.int32, out_ref.shape, 1)
    out_ref[...] = jnp.where(lane == (out_ref.shape[-1] - 1), occ, 0.0).astype(out_ref.dtype)


# ----------------------------------------------------------------------------- wrapper
def nice_forward(p, decoder_input, voxel_mask, params, stage="middle", *, tile_n=256):
    """NICE.forward for stage='middle'.

    p: (1, N, dim) query points; decoder_input: (N, c_dim) interpolated grid features
    (stand-in for dense_map.interpolate_point); voxel_mask: (N,) bool, passed through.
    Returns (raw2 (N, 4) float32, voxel_mask).
    """
    assert stage == "middle"
    n, dim = p.shape[1], p.shape[2]

    # squeeze(0) is a pure metadata reshape -- zero bytes moved (no copy kernel).
    x = p.reshape(n, dim).astype(jnp.float32)
    c = decoder_input.astype(jnp.float32)

    fB = params["B"]
    emb_size = fB.shape[1]
    hidden = params["pts_w"][0].shape[1]
    c_dim = params["fc_w"].shape[1]

    # pad point count up to a tile multiple (tile rows divisible by 8)
    n_pad = pl.cdiv(n, tile_n) * tile_n
    if n_pad != n:
        x = jnp.pad(x, ((0, n_pad - n), (0, 0)))
        c = jnp.pad(c, ((0, n_pad - n), (0, 0)))

    w0, w1, w2, w3, w4 = params["pts_w"]
    w3a, w3b = w3[:emb_size], w3[emb_size:]

    grid = (n_pad // tile_n,)

    def full(shape):
        return pl.BlockSpec(shape, lambda i, _s=shape: (0,) * len(_s))

    in_specs = [
        pl.BlockSpec((tile_n, dim), lambda i: (i, 0)),     # points tile
        pl.BlockSpec((tile_n, c_dim), lambda i: (i, 0)),   # feature tile
        full(fB.shape),
        full(w0.shape), full(w1.shape), full(w2.shape),
        full(w3a.shape), full(w3b.shape), full(w4.shape),
        full(params["pts_b"].shape),
        full(params["fc_w"].shape),
        full(params["fc_b"].shape),
        full(params["out_w"].shape),
        full(params["out_b"].shape),
    ]
    out_specs = pl.BlockSpec((tile_n, 4), lambda i: (i, 0))

    # advisory cost hint so XLA can overlap this call with surrounding graph
    flops_per_pt = 2 * (dim * emb_size + emb_size * hidden + 3 * hidden * hidden
                        + (emb_size + hidden) * hidden + 5 * c_dim * hidden + hidden)
    weight_bytes = 4 * sum(int(a.size) for a in jax.tree_util.tree_leaves(params))
    cost = pl.CostEstimate(
        flops=int(n_pad) * flops_per_pt,
        transcendentals=int(n_pad) * emb_size,
        bytes_accessed=4 * (int(x.size) + int(c.size) + int(n_pad) * 4) + weight_bytes,
    )

    raw2 = pl.pallas_call(
        _nice_mlp_kernel,
        out_shape=jax.ShapeDtypeStruct((n_pad, 4), jnp.float32),
        grid_spec=pltpu.PrefetchScalarGridSpec(
            num_scalar_prefetch=0,
            grid=grid,
            in_specs=in_specs,
            out_specs=out_specs,
        ),
        compiler_params=pltpu.CompilerParams(
            dimension_semantics=("parallel",),   # shard point tiles across TCs (v7x)
        ),
        cost_estimate=cost,
    )(x, c, fB, w0, w1, w2, w3a, w3b, w4,
      params["pts_b"], params["fc_w"], params["fc_b"],
      params["out_w"], params["out_b"])

    return raw2[:n], voxel_mask


# ----------------------------------------------------------------------------- params / reference
def init_params(key, dim=3, c_dim=32, hidden=32, emb=93, n_blocks=5, skips=(2,), scale=25.0):
    keys = jax.random.split(key, 3 + n_blocks)
    fB = jax.random.normal(keys[0], (dim, emb), jnp.float32) * scale
    fan_ins = [emb] + [hidden if i not in skips else hidden + emb for i in range(n_blocks - 1)]
    pts_w = []
    for i, fan_in in enumerate(fan_ins):
        std = math.sqrt(2.0) * math.sqrt(2.0 / (fan_in + hidden))   # xavier w/ relu gain
        pts_w.append(jax.random.normal(keys[1 + i], (fan_in, hidden), jnp.float32) * std)
    pts_b = jnp.zeros((n_blocks, 1, hidden), jnp.float32)
    fc_w = jax.random.normal(keys[1 + n_blocks], (n_blocks, c_dim, hidden), jnp.float32) \
        * math.sqrt(2.0 / (c_dim + hidden))
    fc_b = jnp.zeros((n_blocks, 1, hidden), jnp.float32)
    out_w = jax.random.normal(keys[2 + n_blocks], (hidden, 1), jnp.float32) \
        * math.sqrt(2.0 / (hidden + 1))
    out_b = jnp.zeros((1, 1), jnp.float32)
    return dict(B=fB, pts_w=pts_w, pts_b=pts_b, fc_w=fc_w, fc_b=fc_b,
                out_w=out_w, out_b=out_b)


def ref_forward(p, decoder_input, params, skips=(2,)):
    x = jnp.squeeze(p, axis=0).astype(jnp.float32)
    c = decoder_input.astype(jnp.float32)
    emb = jnp.sin(x @ params["B"])
    h = emb
    for i in range(len(params["pts_w"])):
        h = jnp.maximum(h @ params["pts_w"][i] + params["pts_b"][i][0], 0.0)
        h = h + c @ params["fc_w"][i] + params["fc_b"][i][0]
        if i in skips:
            h = jnp.concatenate([emb, h], axis=-1)
    occ = (h @ params["out_w"] + params["out_b"])[:, 0]
    raw2 = jnp.zeros((x.shape[0], 4), jnp.float32).at[:, -1].set(occ)
    return raw2


# ----------------------------------------------------------------------------- demo
if __name__ == "__main__":
    key = jax.random.PRNGKey(0)
    k_p, k_c, k_w = jax.random.split(key, 3)

    n_pts, dim, c_dim = 512, 3, 32
    p = jax.random.normal(k_p, (1, n_pts, dim), jnp.float32)
    decoder_input = jax.random.normal(k_c, (n_pts, c_dim), jnp.float32)   # stand-in grid features
    voxel_mask = jnp.ones((n_pts,), jnp.bool_)
    params = init_params(k_w, dim=dim, c_dim=c_dim, hidden=32, emb=93)

    raw2, vm = nice_forward(p, decoder_input, voxel_mask, params, stage="middle", tile_n=256)
    raw2 = jax.block_until_ready(raw2)

    ref = ref_forward(p, decoder_input, params)
    assert raw2.shape == (n_pts, 4) and raw2.dtype == jnp.float32
    assert vm.shape == (n_pts,)
    err = float(jnp.max(jnp.abs(raw2 - ref)))
    scale = float(jnp.max(jnp.abs(ref))) + 1e-6
    assert err / scale < 5e-2, f"relative error too large: {err / scale}"
    # first 3 channels of raw2 must be exactly zero
    assert float(jnp.max(jnp.abs(raw2[:, :3]))) == 0.0

    print("KERNEL_OK")
</pallas_src>

<mosaic_0001>
module attributes {stable_mosaic.version = 11 : i64} {
  func.func @_nice_mlp_kernel(%arg0: i32, %arg1: memref<256x3xf32, #tpu.memory_space<vmem>>, %arg2: memref<256x32xf32, #tpu.memory_space<vmem>>, %arg3: memref<3x93xf32, #tpu.memory_space<vmem>>, %arg4: memref<93x32xf32, #tpu.memory_space<vmem>>, %arg5: memref<32x32xf32, #tpu.memory_space<vmem>>, %arg6: memref<32x32xf32, #tpu.memory_space<vmem>>, %arg7: memref<93x32xf32, #tpu.memory_space<vmem>>, %arg8: memref<32x32xf32, #tpu.memory_space<vmem>>, %arg9: memref<32x32xf32, #tpu.memory_space<vmem>>, %arg10: memref<5x1x32xf32, #tpu.memory_space<vmem>>, %arg11: memref<5x32x32xf32, #tpu.memory_space<vmem>>, %arg12: memref<5x1x32xf32, #tpu.memory_space<vmem>>, %arg13: memref<32x1xf32, #tpu.memory_space<vmem>>, %arg14: memref<1x1xf32, #tpu.memory_space<vmem>>, %arg15: memref<256x4xf32, #tpu.memory_space<vmem>>) attributes {dimension_semantics = [#tpu.dimension_semantics<parallel>], iteration_bounds = array<i64: 2>, scalar_prefetch = 0 : i64, scratch_operands = 0 : i64, tpu.core_type = #tpu.core_type<tc>, window_params = [{transform_indices = @transform_0, window_bounds = array<i64: 256, 3>}, {transform_indices = @transform_1, window_bounds = array<i64: 256, 32>}, {pipeline_mode = #tpu.pipeline_mode<synchronous>, transform_indices = @transform_2, window_bounds = array<i64: 3, 93>}, {pipeline_mode = #tpu.pipeline_mode<synchronous>, transform_indices = @transform_3, window_bounds = array<i64: 93, 32>}, {pipeline_mode = #tpu.pipeline_mode<synchronous>, transform_indices = @transform_4, window_bounds = array<i64: 32, 32>}, {pipeline_mode = #tpu.pipeline_mode<synchronous>, transform_indices = @transform_5, window_bounds = array<i64: 32, 32>}, {pipeline_mode = #tpu.pipeline_mode<synchronous>, transform_indices = @transform_6, window_bounds = array<i64: 93, 32>}, {pipeline_mode = #tpu.pipeline_mode<synchronous>, transform_indices = @transform_7, window_bounds = array<i64: 32, 32>}, {pipeline_mode = #tpu.pipeline_mode<synchronous>, transform_indices = @transform_8, window_bounds = array<i64: 32, 32>}, {pipeline_mode = #tpu.pipeline_mode<synchronous>, transform_indices = @transform_9, window_bounds = array<i64: 5, 1, 32>}, {pipeline_mode = #tpu.pipeline_mode<synchronous>, transform_indices = @transform_10, window_bounds = array<i64: 5, 32, 32>}, {pipeline_mode = #tpu.pipeline_mode<synchronous>, transform_indices = @transform_11, window_bounds = array<i64: 5, 1, 32>}, {pipeline_mode = #tpu.pipeline_mode<synchronous>, transform_indices = @transform_12, window_bounds = array<i64: 32, 1>}, {pipeline_mode = #tpu.pipeline_mode<synchronous>, transform_indices = @transform_13, window_bounds = array<i64: 1, 1>}, {transform_indices = @transform_14, window_bounds = array<i64: 256, 4>}]} {
    %c0 = arith.constant 0 : index
    %c0_0 = arith.constant 0 : index
    %0 = vector.load %arg1[%c0, %c0_0] : memref<256x3xf32, #tpu.memory_space<vmem>>, vector<256x3xf32>
    %c0_1 = arith.constant 0 : index
    %c0_2 = arith.constant 0 : index
    %1 = vector.load %arg2[%c0_1, %c0_2] : memref<256x32xf32, #tpu.memory_space<vmem>>, vector<256x32xf32>
    %c0_3 = arith.constant 0 : index
    %c0_4 = arith.constant 0 : index
    %2 = vector.load %arg3[%c0_3, %c0_4] : memref<3x93xf32, #tpu.memory_space<vmem>>, vector<3x93xf32>
    %cst = arith.constant dense<0.000000e+00> : vector<256x93xf32>
    %3 = tpu.matmul %0, %2, %cst {dimension_numbers = #tpu.dot_dimension_numbers<[1], [0], [0], [1], [0, 0, 1, 1], [], []>} : vector<256x3xf32>, vector<3x93xf32>, vector<256x93xf32> -> vector<256x93xf32>
    %4 = math.sin %3 : vector<256x93xf32>
    %c0_5 = arith.constant 0 : index
    %c0_6 = arith.constant 0 : index
    %5 = vector.load %arg4[%c0_5, %c0_6] : memref<93x32xf32, #tpu.memory_space<vmem>>, vector<93x32xf32>
    %cst_7 = arith.constant dense<0.000000e+00> : vector<256x32xf32>
    %6 = tpu.matmul %4, %5, %cst_7 {dimension_numbers = #tpu.dot_dimension_numbers<[1], [0], [0], [1], [0, 0, 1, 1], [], []>} : vector<256x93xf32>, vector<93x32xf32>, vector<256x32xf32> -> vector<256x32xf32>
    %c0_8 = arith.constant 0 : index
    %c0_9 = arith.constant 0 : index
    %c0_10 = arith.constant 0 : index
    %7 = vector.load %arg10[%c0_8, %c0_9, %c0_10] : memref<5x1x32xf32, #tpu.memory_space<vmem>>, vector<1x1x32xf32>
    %8 = vector.shape_cast %7 : vector<1x1x32xf32> to vector<1x32xf32>
    %9 = vector.broadcast %8 : vector<1x32xf32> to vector<256x32xf32>
    %10 = arith.addf %6, %9 : vector<256x32xf32>
    %cst_11 = arith.constant 0.000000e+00 : f32
    %11 = vector.broadcast %cst_11 : f32 to vector<256x32xf32>
    %12 = arith.maximumf %10, %11 : vector<256x32xf32>
    %c0_12 = arith.constant 0 : index
    %c0_13 = arith.constant 0 : index
    %c0_14 = arith.constant 0 : index
    %13 = vector.load %arg11[%c0_12, %c0_13, %c0_14] : memref<5x32x32xf32, #tpu.memory_space<vmem>>, vector<1x32x32xf32>
    %14 = vector.shape_cast %13 : vector<1x32x32xf32> to vector<32x32xf32>
    %cst_15 = arith.constant dense<0.000000e+00> : vector<256x32xf32>
    %15 = tpu.matmul %1, %14, %cst_15 {dimension_numbers = #tpu.dot_dimension_numbers<[1], [0], [0], [1], [0, 0, 1, 1], [], []>} : vector<256x32xf32>, vector<32x32xf32>, vector<256x32xf32> -> vector<256x32xf32>
    %c0_16 = arith.constant 0 : index
    %c0_17 = arith.constant 0 : index
    %c0_18 = arith.constant 0 : index
    %16 = vector.load %arg12[%c0_16, %c0_17, %c0_18] : memref<5x1x32xf32, #tpu.memory_space<vmem>>, vector<1x1x32xf32>
    %17 = vector.shape_cast %16 : vector<1x1x32xf32> to vector<1x32xf32>
    %18 = vector.broadcast %17 : vector<1x32xf32> to vector<256x32xf32>
    %19 = arith.addf %15, %18 : vector<256x32xf32>
    %20 = arith.addf %12, %19 : vector<256x32xf32>
    %c0_19 = arith.constant 0 : index
    %c0_20 = arith.constant 0 : index
    %21 = vector.load %arg5[%c0_19, %c0_20] : memref<32x32xf32, #tpu.memory_space<vmem>>, vector<32x32xf32>
    %cst_21 = arith.constant dense<0.000000e+00> : vector<256x32xf32>
    %22 = tpu.matmul %20, %21, %cst_21 {dimension_numbers = #tpu.dot_dimension_numbers<[1], [0], [0], [1], [0, 0, 1, 1], [], []>} : vector<256x32xf32>, vector<32x32xf32>, vector<256x32xf32> -> vector<256x32xf32>
    %c1 = arith.constant 1 : index
    %c0_22 = arith.constant 0 : index
    %c0_23 = arith.constant 0 : index
    %23 = vector.load %arg10[%c1, %c0_22, %c0_23] : memref<5x1x32xf32, #tpu.memory_space<vmem>>, vector<1x1x32xf32>
    %24 = vector.shape_cast %23 : vector<1x1x32xf32> to vector<1x32xf32>
    %25 = vector.broadcast %24 : vector<1x32xf32> to vector<256x32xf32>
    %26 = arith.addf %22, %25 : vector<256x32xf32>
    %cst_24 = arith.constant 0.000000e+00 : f32
    %27 = vector.broadcast %cst_24 : f32 to vector<256x32xf32>
    %28 = arith.maximumf %26, %27 : vector<256x32xf32>
    %c1_25 = arith.constant 1 : index
    %c0_26 = arith.constant 0 : index
    %c0_27 = arith.constant 0 : index
    %29 = vector.load %arg11[%c1_25, %c0_26, %c0_27] : memref<5x32x32xf32, #tpu.memory_space<vmem>>, vector<1x32x32xf32>
    %30 = vector.shape_cast %29 : vector<1x32x32xf32> to vector<32x32xf32>
    %cst_28 = arith.constant dense<0.000000e+00> : vector<256x32xf32>
    %31 = tpu.matmul %1, %30, %cst_28 {dimension_numbers = #tpu.dot_dimension_numbers<[1], [0], [0], [1], [0, 0, 1, 1], [], []>} : vector<256x32xf32>, vector<32x32xf32>, vector<256x32xf32> -> vector<256x32xf32>
    %c1_29 = arith.constant 1 : index
    %c0_30 = arith.constant 0 : index
    %c0_31 = arith.constant 0 : index
    %32 = vector.load %arg12[%c1_29, %c0_30, %c0_31] : memref<5x1x32xf32, #tpu.memory_space<vmem>>, vector<1x1x32xf32>
    %33 = vector.shape_cast %32 : vector<1x1x32xf32> to vector<1x32xf32>
    %34 = vector.broadcast %33 : vector<1x32xf32> to vector<256x32xf32>
    %35 = arith.addf %31, %34 : vector<256x32xf32>
    %36 = arith.addf %28, %35 : vector<256x32xf32>
    %c0_32 = arith.constant 0 : index
    %c0_33 = arith.constant 0 : index
    %37 = vector.load %arg6[%c0_32, %c0_33] : memref<32x32xf32, #tpu.memory_space<vmem>>, vector<32x32xf32>
    %cst_34 = arith.constant dense<0.000000e+00> : vector<256x32xf32>
    %38 = tpu.matmul %36, %37, %cst_34 {dimension_numbers = #tpu.dot_dimension_numbers<[1], [0], [0], [1], [0, 0, 1, 1], [], []>} : vector<256x32xf32>, vector<32x32xf32>, vector<256x32xf32> -> vector<256x32xf32>
    %c2 = arith.constant 2 : index
    %c0_35 = arith.constant 0 : index
    %c0_36 = arith.constant 0 : index
    %39 = vector.load %arg10[%c2, %c0_35, %c0_36] : memref<5x1x32xf32, #tpu.memory_space<vmem>>, vector<1x1x32xf32>
    %40 = vector.shape_cast %39 : vector<1x1x32xf32> to vector<1x32xf32>
    %41 = vector.broadcast %40 : vector<1x32xf32> to vector<256x32xf32>
    %42 = arith.addf %38, %41 : vector<256x32xf32>
    %cst_37 = arith.constant 0.000000e+00 : f32
    %43 = vector.broadcast %cst_37 : f32 to vector<256x32xf32>
    %44 = arith.maximumf %42, %43 : vector<256x32xf32>
    %c2_38 = arith.constant 2 : index
    %c0_39 = arith.constant 0 : index
    %c0_40 = arith.constant 0 : index
    %45 = vector.load %arg11[%c2_38, %c0_39, %c0_40] : memref<5x32x32xf32, #tpu.memory_space<vmem>>, vector<1x32x32xf32>
    %46 = vector.shape_cast %45 : vector<1x32x32xf32> to vector<32x32xf32>
    %cst_41 = arith.constant dense<0.000000e+00> : vector<256x32xf32>
    %47 = tpu.matmul %1, %46, %cst_41 {dimension_numbers = #tpu.dot_dimension_numbers<[1], [0], [0], [1], [0, 0, 1, 1], [], []>} : vector<256x32xf32>, vector<32x32xf32>, vector<256x32xf32> -> vector<256x32xf32>
    %c2_42 = arith.constant 2 : index
    %c0_43 = arith.constant 0 : index
    %c0_44 = arith.constant 0 : index
    %48 = vector.load %arg12[%c2_42, %c0_43, %c0_44] : memref<5x1x32xf32, #tpu.memory_space<vmem>>, vector<1x1x32xf32>
    %49 = vector.shape_cast %48 : vector<1x1x32xf32> to vector<1x32xf32>
    %50 = vector.broadcast %49 : vector<1x32xf32> to vector<256x32xf32>
    %51 = arith.addf %47, %50 : vector<256x32xf32>
    %52 = arith.addf %44, %51 : vector<256x32xf32>
    %c0_45 = arith.constant 0 : index
    %c0_46 = arith.constant 0 : index
    %53 = vector.load %arg7[%c0_45, %c0_46] : memref<93x32xf32, #tpu.memory_space<vmem>>, vector<93x32xf32>
    %cst_47 = arith.constant dense<0.000000e+00> : vector<256x32xf32>
    %54 = tpu.matmul %4, %53, %cst_47 {dimension_numbers = #tpu.dot_dimension_numbers<[1], [0], [0], [1], [0, 0, 1, 1], [], []>} : vector<256x93xf32>, vector<93x32xf32>, vector<256x32xf32> -> vector<256x32xf32>
    %c0_48 = arith.constant 0 : index
    %c0_49 = arith.constant 0 : index
    %55 = vector.load %arg8[%c0_48, %c0_49] : memref<32x32xf32, #tpu.memory_space<vmem>>, vector<32x32xf32>
    %cst_50 = arith.constant dense<0.000000e+00> : vector<256x32xf32>
    %56 = tpu.matmul %52, %55, %cst_50 {dimension_numbers = #tpu.dot_dimension_numbers<[1], [0], [0], [1], [0, 0, 1, 1], [], []>} : vector<256x32xf32>, vector<32x32xf32>, vector<256x32xf32> -> vector<256x32xf32>
    %57 = arith.addf %54, %56 : vector<256x32xf32>
    %c3 = arith.constant 3 : index
    %c0_51 = arith.constant 0 : index
    %c0_52 = arith.constant 0 : index
    %58 = vector.load %arg10[%c3, %c0_51, %c0_52] : memref<5x1x32xf32, #tpu.memory_space<vmem>>, vector<1x1x32xf32>
    %59 = vector.shape_cast %58 : vector<1x1x32xf32> to vector<1x32xf32>
    %60 = vector.broadcast %59 : vector<1x32xf32> to vector<256x32xf32>
    %61 = arith.addf %57, %60 : vector<256x32xf32>
    %cst_53 = arith.constant 0.000000e+00 : f32
    %62 = vector.broadcast %cst_53 : f32 to vector<256x32xf32>
    %63 = arith.maximumf %61, %62 : vector<256x32xf32>
    %c3_54 = arith.constant 3 : index
    %c0_55 = arith.constant 0 : index
    %c0_56 = arith.constant 0 : index
    %64 = vector.load %arg11[%c3_54, %c0_55, %c0_56] : memref<5x32x32xf32, #tpu.memory_space<vmem>>, vector<1x32x32xf32>
    %65 = vector.shape_cast %64 : vector<1x32x32xf32> to vector<32x32xf32>
    %cst_57 = arith.constant dense<0.000000e+00> : vector<256x32xf32>
    %66 = tpu.matmul %1, %65, %cst_57 {dimension_numbers = #tpu.dot_dimension_numbers<[1], [0], [0], [1], [0, 0, 1, 1], [], []>} : vector<256x32xf32>, vector<32x32xf32>, vector<256x32xf32> -> vector<256x32xf32>
    %c3_58 = arith.constant 3 : index
    %c0_59 = arith.constant 0 : index
    %c0_60 = arith.constant 0 : index
    %67 = vector.load %arg12[%c3_58, %c0_59, %c0_60] : memref<5x1x32xf32, #tpu.memory_space<vmem>>, vector<1x1x32xf32>
    %68 = vector.shape_cast %67 : vector<1x1x32xf32> to vector<1x32xf32>
    %69 = vector.broadcast %68 : vector<1x32xf32> to vector<256x32xf32>
    %70 = arith.addf %66, %69 : vector<256x32xf32>
    %71 = arith.addf %63, %70 : vector<256x32xf32>
    %c0_61 = arith.constant 0 : index
    %c0_62 = arith.constant 0 : index
    %72 = vector.load %arg9[%c0_61, %c0_62] : memref<32x32xf32, #tpu.memory_space<vmem>>, vector<32x32xf32>
    %cst_63 = arith.constant dense<0.000000e+00> : vector<256x32xf32>
    %73 = tpu.matmul %71, %72, %cst_63 {dimension_numbers = #tpu.dot_dimension_numbers<[1], [0], [0], [1], [0, 0, 1, 1], [], []>} : vector<256x32xf32>, vector<32x32xf32>, vector<256x32xf32> -> vector<256x32xf32>
    %c4 = arith.constant 4 : index
    %c0_64 = arith.constant 0 : index
    %c0_65 = arith.constant 0 : index
    %74 = vector.load %arg10[%c4, %c0_64, %c0_65] : memref<5x1x32xf32, #tpu.memory_space<vmem>>, vector<1x1x32xf32>
    %75 = vector.shape_cast %74 : vector<1x1x32xf32> to vector<1x32xf32>
    %76 = vector.broadcast %75 : vector<1x32xf32> to vector<256x32xf32>
    %77 = arith.addf %73, %76 : vector<256x32xf32>
    %cst_66 = arith.constant 0.000000e+00 : f32
    %78 = vector.broadcast %cst_66 : f32 to vector<256x32xf32>
    %79 = arith.maximumf %77, %78 : vector<256x32xf32>
    %c4_67 = arith.constant 4 : index
    %c0_68 = arith.constant 0 : index
    %c0_69 = arith.constant 0 : index
    %80 = vector.load %arg11[%c4_67, %c0_68, %c0_69] : memref<5x32x32xf32, #tpu.memory_space<vmem>>, vector<1x32x32xf32>
    %81 = vector.shape_cast %80 : vector<1x32x32xf32> to vector<32x32xf32>
    %cst_70 = arith.constant dense<0.000000e+00> : vector<256x32xf32>
    %82 = tpu.matmul %1, %81, %cst_70 {dimension_numbers = #tpu.dot_dimension_numbers<[1], [0], [0], [1], [0, 0, 1, 1], [], []>} : vector<256x32xf32>, vector<32x32xf32>, vector<256x32xf32> -> vector<256x32xf32>
    %c4_71 = arith.constant 4 : index
    %c0_72 = arith.constant 0 : index
    %c0_73 = arith.constant 0 : index
    %83 = vector.load %arg12[%c4_71, %c0_72, %c0_73] : memref<5x1x32xf32, #tpu.memory_space<vmem>>, vector<1x1x32xf32>
    %84 = vector.shape_cast %83 : vector<1x1x32xf32> to vector<1x32xf32>
    %85 = vector.broadcast %84 : vector<1x32xf32> to vector<256x32xf32>
    %86 = arith.addf %82, %85 : vector<256x32xf32>
    %87 = arith.addf %79, %86 : vector<256x32xf32>
    %c0_74 = arith.constant 0 : index
    %c0_75 = arith.constant 0 : index
    %88 = vector.load %arg13[%c0_74, %c0_75] : memref<32x1xf32, #tpu.memory_space<vmem>>, vector<32x1xf32>
    %cst_76 = arith.constant dense<0.000000e+00> : vector<256x1xf32>
    %89 = tpu.matmul %87, %88, %cst_76 {dimension_numbers = #tpu.dot_dimension_numbers<[1], [0], [0], [1], [0, 0, 1, 1], [], []>} : vector<256x32xf32>, vector<32x1xf32>, vector<256x1xf32> -> vector<256x1xf32>
    %c0_77 = arith.constant 0 : index
    %c0_78 = arith.constant 0 : index
    %90 = vector.load %arg14[%c0_77, %c0_78] : memref<1x1xf32, #tpu.memory_space<vmem>>, vector<1x1xf32>
    %91 = vector.broadcast %90 : vector<1x1xf32> to vector<256x1xf32>
    %92 = arith.addf %89, %91 : vector<256x1xf32>
    %93 = tpu.iota {dimensions = array<i32: 1>} : vector<256x4xi32>
    %c3_i32 = arith.constant 3 : i32
    %94 = vector.broadcast %c3_i32 : i32 to vector<256x4xi32>
    %95 = arith.cmpi eq, %93, %94 : vector<256x4xi32>
    %cst_79 = arith.constant 0.000000e+00 : f32
    %96 = vector.shape_cast %92 : vector<256x1xf32> to vector<256x1xf32>
    %97 = vector.broadcast %96 : vector<256x1xf32> to vector<256x4xf32>
    %98 = vector.broadcast %cst_79 : f32 to vector<256x4xf32>
    %99 = arith.select %95, %97, %98 : vector<256x4xi1>, vector<256x4xf32>
    %c0_80 = arith.constant 0 : index
    %c0_81 = arith.constant 0 : index
    %100 = vector.load %arg15[%c0_80, %c0_81] : memref<256x4xf32, #tpu.memory_space<vmem>>, vector<256x4xf32>
    tpu.vector_store %arg15[%c0_80, %c0_81], %99 {strides = array<i32>} : memref<256x4xf32, #tpu.memory_space<vmem>>, vector<256x4xf32>,
    return
  }
  func.func @transform_0(%arg0: i32) -> (i32, i32) {
    %c0_i32 = arith.constant 0 : i32
    %c0_i32_0 = arith.constant 0 : i32
    return %arg0, %c0_i32 : i32, i32
  }
  func.func @transform_1(%arg0: i32) -> (i32, i32) {
    %c0_i32 = arith.constant 0 : i32
    %c0_i32_0 = arith.constant 0 : i32
    return %arg0, %c0_i32 : i32, i32
  }
  func.func @transform_2(%arg0: i32) -> (i32, i32) {
    %c0_i32 = arith.constant 0 : i32
    %c0_i32_0 = arith.constant 0 : i32
    %c0_i32_1 = arith.constant 0 : i32
    return %c0_i32, %c0_i32_0 : i32, i32
  }
  func.func @transform_3(%arg0: i32) -> (i32, i32) {
    %c0_i32 = arith.constant 0 : i32
    %c0_i32_0 = arith.constant 0 : i32
    %c0_i32_1 = arith.constant 0 : i32
    return %c0_i32, %c0_i32_0 : i32, i32
  }
  func.func @transform_4(%arg0: i32) -> (i32, i32) {
    %c0_i32 = arith.constant 0 : i32
    %c0_i32_0 = arith.constant 0 : i32
    %c0_i32_1 = arith.constant 0 : i32
    return %c0_i32, %c0_i32_0 : i32, i32
  }
  func.func @transform_5(%arg0: i32) -> (i32, i32) {
    %c0_i32 = arith.constant 0 : i32
    %c0_i32_0 = arith.constant 0 : i32
    %c0_i32_1 = arith.constant 0 : i32
    return %c0_i32, %c0_i32_0 : i32, i32
  }
  func.func @transform_6(%arg0: i32) -> (i32, i32) {
    %c0_i32 = arith.constant 0 : i32
    %c0_i32_0 = arith.constant 0 : i32
    %c0_i32_1 = arith.constant 0 : i32
    return %c0_i32, %c0_i32_0 : i32, i32
  }
  func.func @transform_7(%arg0: i32) -> (i32, i32) {
    %c0_i32 = arith.constant 0 : i32
    %c0_i32_0 = arith.constant 0 : i32
    %c0_i32_1 = arith.constant 0 : i32
    return %c0_i32, %c0_i32_0 : i32, i32
  }
  func.func @transform_8(%arg0: i32) -> (i32, i32) {
    %c0_i32 = arith.constant 0 : i32
    %c0_i32_0 = arith.constant 0 : i32
    %c0_i32_1 = arith.constant 0 : i32
    return %c0_i32, %c0_i32_0 : i32, i32
  }
  func.func @transform_9(%arg0: i32) -> (i32, i32, i32) {
    %c0_i32 = arith.constant 0 : i32
    %c0_i32_0 = arith.constant 0 : i32
    %c0_i32_1 = arith.constant 0 : i32
    %c0_i32_2 = arith.constant 0 : i32
    return %c0_i32, %c0_i32_0, %c0_i32_1 : i32, i32, i32
  }
  func.func @transform_10(%arg0: i32) -> (i32, i32, i32) {
    %c0_i32 = arith.constant 0 : i32
    %c0_i32_0 = arith.constant 0 : i32
    %c0_i32_1 = arith.constant 0 : i32
    %c0_i32_2 = arith.constant 0 : i32
    return %c0_i32, %c0_i32_0, %c0_i32_1 : i32, i32, i32
  }
  func.func @transform_11(%arg0: i32) -> (i32, i32, i32) {
    %c0_i32 = arith.constant 0 : i32
    %c0_i32_0 = arith.constant 0 : i32
    %c0_i32_1 = arith.constant 0 : i32
    %c0_i32_2 = arith.constant 0 : i32
    return %c0_i32, %c0_i32_0, %c0_i32_1 : i32, i32, i32
  }
  func.func @transform_12(%arg0: i32) -> (i32, i32) {
    %c0_i32 = arith.constant 0 : i32
    %c0_i32_0 = arith.constant 0 : i32
    %c0_i32_1 = arith.constant 0 : i32
    return %c0_i32, %c0_i32_0 : i32, i32
  }
  func.func @transform_13(%arg0: i32) -> (i32, i32) {
    %c0_i32 = arith.constant 0 : i32
    %c0_i32_0 = arith.constant 0 : i32
    %c0_i32_1 = arith.constant 0 : i32
    return %c0_i32, %c0_i32_0 : i32, i32
  }
  func.func @transform_14(%arg0: i32) -> (i32, i32) {
    %c0_i32 = arith.constant 0 : i32
    %c0_i32_0 = arith.constant 0 : i32
    return %arg0, %c0_i32 : i32, i32
  }
}

</mosaic_0001>

<llo_original>
// kernel: tpu_custom_call.1
$region0: #{tpu_custom_call.1}
  #allocation0 [shape = 'u32[]', space=smem, size = 0x4, offset = 0x4, fixed_abs, tag = 'smem constant byte address 0x4 - core index']
  #allocation1 [shape = 'u32[144,128]{1,0:T(1,128)}', space=vmem, size = 0x12000, scoped, tag = 'internal scratch']
  #allocation2 [shape = 'f32[1,1]{1,0:T(1,128)S(1)}', space=vmem, size = 0x200, scoped, tag = 'scoped memory for tpu_custom_call.1']
  %s0 = inlined_call_operand.vmem [shape: f32[512,3], index: 0, kind: input, shape index: {}]
  %s1 = inlined_call_operand.vmem [shape: f32[512,32], index: 1, kind: input, shape index: {}]
  %s2 = inlined_call_operand.vmem [shape: f32[3,93], index: 2, kind: input, shape index: {}]
  %s3 = inlined_call_operand.vmem [shape: f32[93,32], index: 3, kind: input, shape index: {}]
  %s4 = inlined_call_operand.vmem [shape: f32[32,32], index: 4, kind: input, shape index: {}]
  %s5 = inlined_call_operand.vmem [shape: f32[32,32], index: 5, kind: input, shape index: {}]
  %s6 = inlined_call_operand.vmem [shape: f32[93,32], index: 6, kind: input, shape index: {}]
  %s7 = inlined_call_operand.vmem [shape: f32[32,32], index: 7, kind: input, shape index: {}]
  %s8 = inlined_call_operand.vmem [shape: f32[32,32], index: 8, kind: input, shape index: {}]
  %s9 = inlined_call_operand.vmem [shape: f32[5,1,32], index: 9, kind: input, shape index: {}]
  %s10 = inlined_call_operand.vmem [shape: f32[5,32,32], index: 10, kind: input, shape index: {}]
  %s11 = inlined_call_operand.vmem [shape: f32[5,1,32], index: 11, kind: input, shape index: {}]
  %s12 = inlined_call_operand.vmem [shape: f32[32,1], index: 12, kind: input, shape index: {}]
  %s13 = inlined_call_operand.<no memory space> [shape: f32[1,1], index: 13, kind: input, shape index: {}]
  %s14 = inlined_call_operand.vmem [shape: f32[512,4], index: 14, kind: output, shape index: {}]
  %s15 = sld [smem:[#allocation0]]
  $region89: #{tpu_custom_call.1} parent=0
    _
  %s17 = ssub.s32 1, %s15
  %s18 = scalar_select 0, %s17, %s15
  %v19 = vstv %s13
  %20 = vst [vmem:[#allocation2] sm:$0x1] %v19
  loop: start=0, step=1, limit=4
  $region2: #{tpu_custom_call.1} parent=0 // loop_pre_header
    _
  $region3: #{tpu_custom_call.1} parent=0 // loop_header
    %s22 = sphi 0, %s26
    %p23 = scmp.ge.s32.totalorder %s22, 4
    %s32 = sphi 0, %s34
    %s35 = sphi 0, %s32
    %s36 = sphi 0, %s35
    %s52 = sphi 0, %s36
    %s58 = sphi 0, %s60
    %s61 = sphi 0, %s58
    %s62 = sphi 0, %s61
    %s78 = sphi 0, %s62
    %s82 = sphi 0, %s82
    %s84 = sphi 0, %s82
    %s85 = sphi 0, %s84
    %s99 = sphi 0, %s85
    %s103 = sphi 0, %s103
    %s105 = sphi 0, %s103
    %s106 = sphi 0, %s105
    %s120 = sphi 0, %s106
    %s124 = sphi 0, %s124
    %s126 = sphi 0, %s124
    %s127 = sphi 0, %s126
    %s141 = sphi 0, %s127
    %s145 = sphi 0, %s145
    %s147 = sphi 0, %s145
    %s148 = sphi 0, %s147
    %s162 = sphi 0, %s148
    %s166 = sphi 0, %s166
    %s168 = sphi 0, %s166
    %s169 = sphi 0, %s168
    %s183 = sphi 0, %s169
    %s187 = sphi 0, %s187
    %s189 = sphi 0, %s187
    %s190 = sphi 0, %s189
    %s204 = sphi 0, %s190
    %s208 = sphi 0, %s208
    %s210 = sphi 0, %s208
    %s211 = sphi 0, %s210
    %s225 = sphi 0, %s211
    %s229 = sphi 0, %s229
    %s231 = sphi 0, %s229
    %s232 = sphi 0, %s231
    %s246 = sphi 0, %s232
    %s250 = sphi 0, %s250
    %s252 = sphi 0, %s250
    %s253 = sphi 0, %s252
    %s267 = sphi 0, %s253
    %s271 = sphi 0, %s271
    %s273 = sphi 0, %s271
    %s274 = sphi 0, %s273
    %s288 = sphi 0, %s274
    %s292 = sphi 0, %s292
    %s294 = sphi 0, %s292
    %s295 = sphi 0, %s294
    %s309 = sphi 0, %s295
    %s313 = sphi 0, %s313
    %s315 = sphi 0, %s313
    %s316 = sphi 0, %s315
    %s330 = sphi 0, %s316
    %s336 = sphi 0, %s338
    %s339 = sphi 0, %s336
    %s340 = sphi 0, %s339
    %s356 = sphi 0, %s340
  $region4: #{tpu_custom_call.1} parent=0 // loop_header_branch
    %25 = sbr.rel (%p23) target = $region8
  $region5: #{tpu_custom_call.1} parent=0 // loop_body
    %s27 = ssub.s32 %s22, 1
    %s28 = ssub.s32 %s22, 2
    %s29 = sadd.s32 %s22, 1
    %s30 = ssub.s32 %s22, %s29
    %p31 = scmp.eq.s32.totalorder %s30, 0
    %s33 = sadd.s32 %s32, 1
    %s34 = scalar_select %p31, %s32, %s33
    %p37 = pneg %p31
    %p38 = scmp.eq.s32.totalorder %s22, 1
    %p39 = por %p37, %p38
    %p40 = scmp.ne.s32.totalorder %s32, %s35
    %p41 = scmp.eq.s32.totalorder %s22, 0
    %p42 = por %p40, %p41
    %p43 = scmp.ne.s32.totalorder %s32, %s35
    %p44 = scmp.eq.s32.totalorder %s27, 1
    %p45 = por %p43, %p44
    %p46 = scmp.ne.s32.totalorder %s35, %s36
    %p47 = scmp.eq.s32.totalorder %s27, 0
    %p48 = por %p46, %p47
    %p49 = scmp.ne.s32.totalorder %s35, %s36
    %p50 = scmp.eq.s32.totalorder %s28, 1
    %p51 = por %p49, %p50
    %p53 = scmp.ne.s32.totalorder %s36, %s52
    %p54 = scmp.eq.s32.totalorder %s28, 0
    %p55 = por %p53, %p54
    %s56 = ssub.s32 %s22, %s29
    %p57 = scmp.eq.s32.totalorder %s56, 0
    %s59 = sadd.s32 %s58, 1
    %s60 = scalar_select %p57, %s58, %s59
    %p63 = pneg %p57
    %p64 = scmp.eq.s32.totalorder %s22, 1
    %p65 = por %p63, %p64
    %p66 = scmp.ne.s32.totalorder %s58, %s61
    %p67 = scmp.eq.s32.totalorder %s22, 0
    %p68 = por %p66, %p67
    %p69 = scmp.ne.s32.totalorder %s58, %s61
    %p70 = scmp.eq.s32.totalorder %s27, 1
    %p71 = por %p69, %p70
    %p72 = scmp.ne.s32.totalorder %s61, %s62
    %p73 = scmp.eq.s32.totalorder %s27, 0
    %p74 = por %p72, %p73
    %p75 = scmp.ne.s32.totalorder %s61, %s62
    %p76 = scmp.eq.s32.totalorder %s28, 1
    %p77 = por %p75, %p76
    %p79 = scmp.ne.s32.totalorder %s62, %s78
    %p80 = scmp.eq.s32.totalorder %s28, 0
    %p81 = por %p79, %p80
    %s83 = sadd.s32 %s82, 1
    %p86 = scmp.eq.s32.totalorder %s22, 1
    %p87 = scmp.ne.s32.totalorder %s82, %s84
    %p88 = scmp.eq.s32.totalorder %s22, 0
    %p89 = por %p87, %p88
    %p90 = scmp.ne.s32.totalorder %s82, %s84
    %p91 = scmp.eq.s32.totalorder %s27, 1
    %p92 = por %p90, %p91
    %p93 = scmp.ne.s32.totalorder %s84, %s85
    %p94 = scmp.eq.s32.totalorder %s27, 0
    %p95 = por %p93, %p94
    %p96 = scmp.ne.s32.totalorder %s84, %s85
    %p97 = scmp.eq.s32.totalorder %s28, 1
    %p98 = por %p96, %p97
    %p100 = scmp.ne.s32.totalorder %s85, %s99
    %p101 = scmp.eq.s32.totalorder %s28, 0
    %p102 = por %p100, %p101
    %s104 = sadd.s32 %s103, 1
    %p107 = scmp.eq.s32.totalorder %s22, 1
    %p108 = scmp.ne.s32.totalorder %s103, %s105
    %p109 = scmp.eq.s32.totalorder %s22, 0
    %p110 = por %p108, %p109
    %p111 = scmp.ne.s32.totalorder %s103, %s105
    %p112 = scmp.eq.s32.totalorder %s27, 1
    %p113 = por %p111, %p112
    %p114 = scmp.ne.s32.totalorder %s105, %s106
    %p115 = scmp.eq.s32.totalorder %s27, 0
    %p116 = por %p114, %p115
    %p117 = scmp.ne.s32.totalorder %s105, %s106
    %p118 = scmp.eq.s32.totalorder %s28, 1
    %p119 = por %p117, %p118
    %p121 = scmp.ne.s32.totalorder %s106, %s120
    %p122 = scmp.eq.s32.totalorder %s28, 0
    %p123 = por %p121, %p122
    %s125 = sadd.s32 %s124, 1
    %p128 = scmp.eq.s32.totalorder %s22, 1
    %p129 = scmp.ne.s32.totalorder %s124, %s126
    %p130 = scmp.eq.s32.totalorder %s22, 0
    %p131 = por %p129, %p130
    %p132 = scmp.ne.s32.totalorder %s124, %s126
    %p133 = scmp.eq.s32.totalorder %s27, 1
    %p134 = por %p132, %p133
    %p135 = scmp.ne.s32.totalorder %s126, %s127
    %p136 = scmp.eq.s32.totalorder %s27, 0
    %p137 = por %p135, %p136
    %p138 = scmp.ne.s32.totalorder %s126, %s127
    %p139 = scmp.eq.s32.totalorder %s28, 1
    %p140 = por %p138, %p139
    %p142 = scmp.ne.s32.totalorder %s127, %s141
    %p143 = scmp.eq.s32.totalorder %s28, 0
    %p144 = por %p142, %p143
    %s146 = sadd.s32 %s145, 1
    %p149 = scmp.eq.s32.totalorder %s22, 1
    %p150 = scmp.ne.s32.totalorder %s145, %s147
    %p151 = scmp.eq.s32.totalorder %s22, 0
    %p152 = por %p150, %p151
    %p153 = scmp.ne.s32.totalorder %s145, %s147
    %p154 = scmp.eq.s32.totalorder %s27, 1
    %p155 = por %p153, %p154
    %p156 = scmp.ne.s32.totalorder %s147, %s148
    %p157 = scmp.eq.s32.totalorder %s27, 0
    %p158 = por %p156, %p157
    %p159 = scmp.ne.s32.totalorder %s147, %s148
    %p160 = scmp.eq.s32.totalorder %s28, 1
    %p161 = por %p159, %p160
    %p163 = scmp.ne.s32.totalorder %s148, %s162
    %p164 = scmp.eq.s32.totalorder %s28, 0
    %p165 = por %p163, %p164
    %s167 = sadd.s32 %s166, 1
    %p170 = scmp.eq.s32.totalorder %s22, 1
    %p171 = scmp.ne.s32.totalorder %s166, %s168
    %p172 = scmp.eq.s32.totalorder %s22, 0
    %p173 = por %p171, %p172
    %p174 = scmp.ne.s32.totalorder %s166, %s168
    %p175 = scmp.eq.s32.totalorder %s27, 1
    %p176 = por %p174, %p175
    %p177 = scmp.ne.s32.totalorder %s168, %s169
    %p178 = scmp.eq.s32.totalorder %s27, 0
    %p179 = por %p177, %p178
    %p180 = scmp.ne.s32.totalorder %s168, %s169
    %p181 = scmp.eq.s32.totalorder %s28, 1
    %p182 = por %p180, %p181
    %p184 = scmp.ne.s32.totalorder %s169, %s183
    %p185 = scmp.eq.s32.totalorder %s28, 0
    %p186 = por %p184, %p185
    %s188 = sadd.s32 %s187, 1
    %p191 = scmp.eq.s32.totalorder %s22, 1
    %p192 = scmp.ne.s32.totalorder %s187, %s189
    %p193 = scmp.eq.s32.totalorder %s22, 0
    %p194 = por %p192, %p193
    %p195 = scmp.ne.s32.totalorder %s187, %s189
    %p196 = scmp.eq.s32.totalorder %s27, 1
    %p197 = por %p195, %p196
    %p198 = scmp.ne.s32.totalorder %s189, %s190
    %p199 = scmp.eq.s32.totalorder %s27, 0
    %p200 = por %p198, %p199
    %p201 = scmp.ne.s32.totalorder %s189, %s190
    %p202 = scmp.eq.s32.totalorder %s28, 1
    %p203 = por %p201, %p202
    %p205 = scmp.ne.s32.totalorder %s190, %s204
    %p206 = scmp.eq.s32.totalorder %s28, 0
    %p207 = por %p205, %p206
    %s209 = sadd.s32 %s208, 1
    %p212 = scmp.eq.s32.totalorder %s22, 1
    %p213 = scmp.ne.s32.totalorder %s208, %s210
    %p214 = scmp.eq.s32.totalorder %s22, 0
    %p215 = por %p213, %p214
    %p216 = scmp.ne.s32.totalorder %s208, %s210
    %p217 = scmp.eq.s32.totalorder %s27, 1
    %p218 = por %p216, %p217
    %p219 = scmp.ne.s32.totalorder %s210, %s211
    %p220 = scmp.eq.s32.totalorder %s27, 0
    %p221 = por %p219, %p220
    %p222 = scmp.ne.s32.totalorder %s210, %s211
    %p223 = scmp.eq.s32.totalorder %s28, 1
    %p224 = por %p222, %p223
    %p226 = scmp.ne.s32.totalorder %s211, %s225
    %p227 = scmp.eq.s32.totalorder %s28, 0
    %p228 = por %p226, %p227
    %s230 = sadd.s32 %s229, 1
    %p233 = scmp.eq.s32.totalorder %s22, 1
    %p234 = scmp.ne.s32.totalorder %s229, %s231
    %p235 = scmp.eq.s32.totalorder %s22, 0
    %p236 = por %p234, %p235
    %p237 = scmp.ne.s32.totalorder %s229, %s231
    %p238 = scmp.eq.s32.totalorder %s27, 1
    %p239 = por %p237, %p238
    %p240 = scmp.ne.s32.totalorder %s231, %s232
    %p241 = scmp.eq.s32.totalorder %s27, 0
    %p242 = por %p240, %p241
    %p243 = scmp.ne.s32.totalorder %s231, %s232
    %p244 = scmp.eq.s32.totalorder %s28, 1
    %p245 = por %p243, %p244
    %p247 = scmp.ne.s32.totalorder %s232, %s246
    %p248 = scmp.eq.s32.totalorder %s28, 0
    %p249 = por %p247, %p248
    %s251 = sadd.s32 %s250, 1
    %p254 = scmp.eq.s32.totalorder %s22, 1
    %p255 = scmp.ne.s32.totalorder %s250, %s252
    %p256 = scmp.eq.s32.totalorder %s22, 0
    %p257 = por %p255, %p256
    %p258 = scmp.ne.s32.totalorder %s250, %s252
    %p259 = scmp.eq.s32.totalorder %s27, 1
    %p260 = por %p258, %p259
    %p261 = scmp.ne.s32.totalorder %s252, %s253
    %p262 = scmp.eq.s32.totalorder %s27, 0
    %p263 = por %p261, %p262
    %p264 = scmp.ne.s32.totalorder %s252, %s253
    %p265 = scmp.eq.s32.totalorder %s28, 1
    %p266 = por %p264, %p265
    %p268 = scmp.ne.s32.totalorder %s253, %s267
    %p269 = scmp.eq.s32.totalorder %s28, 0
    %p270 = por %p268, %p269
    %s272 = sadd.s32 %s271, 1
    %p275 = scmp.eq.s32.totalorder %s22, 1
    %p276 = scmp.ne.s32.totalorder %s271, %s273
    %p277 = scmp.eq.s32.totalorder %s22, 0
    %p278 = por %p276, %p277
    %p279 = scmp.ne.s32.totalorder %s271, %s273
    %p280 = scmp.eq.s32.totalorder %s27, 1
    %p281 = por %p279, %p280
    %p282 = scmp.ne.s32.totalorder %s273, %s274
    %p283 = scmp.eq.s32.totalorder %s27, 0
    %p284 = por %p282, %p283
    %p285 = scmp.ne.s32.totalorder %s273, %s274
    %p286 = scmp.eq.s32.totalorder %s28, 1
    %p287 = por %p285, %p286
    %p289 = scmp.ne.s32.totalorder %s274, %s288
    %p290 = scmp.eq.s32.totalorder %s28, 0
    %p291 = por %p289, %p290
    %s293 = sadd.s32 %s292, 1
    %p296 = scmp.eq.s32.totalorder %s22, 1
    %p297 = scmp.ne.s32.totalorder %s292, %s294
    %p298 = scmp.eq.s32.totalorder %s22, 0
    %p299 = por %p297, %p298
    %p300 = scmp.ne.s32.totalorder %s292, %s294
    %p301 = scmp.eq.s32.totalorder %s27, 1
    %p302 = por %p300, %p301
    %p303 = scmp.ne.s32.totalorder %s294, %s295
    %p304 = scmp.eq.s32.totalorder %s27, 0
    %p305 = por %p303, %p304
    %p306 = scmp.ne.s32.totalorder %s294, %s295
    %p307 = scmp.eq.s32.totalorder %s28, 1
    %p308 = por %p306, %p307
    %p310 = scmp.ne.s32.totalorder %s295, %s309
    %p311 = scmp.eq.s32.totalorder %s28, 0
    %p312 = por %p310, %p311
    %s314 = sadd.s32 %s313, 1
    %p317 = scmp.eq.s32.totalorder %s22, 1
    %p318 = scmp.ne.s32.totalorder %s313, %s315
    %p319 = scmp.eq.s32.totalorder %s22, 0
    %p320 = por %p318, %p319
    %p321 = scmp.ne.s32.totalorder %s313, %s315
    %p322 = scmp.eq.s32.totalorder %s27, 1
    %p323 = por %p321, %p322
    %p324 = scmp.ne.s32.totalorder %s315, %s316
    %p325 = scmp.eq.s32.totalorder %s27, 0
    %p326 = por %p324, %p325
    %p327 = scmp.ne.s32.totalorder %s315, %s316
    %p328 = scmp.eq.s32.totalorder %s28, 1
    %p329 = por %p327, %p328
    %p331 = scmp.ne.s32.totalorder %s316, %s330
    %p332 = scmp.eq.s32.totalorder %s28, 0
    %p333 = por %p331, %p332
    %s334 = ssub.s32 %s22, %s29
    %p335 = scmp.eq.s32.totalorder %s334, 0
    %s337 = sadd.s32 %s336, 1
    %s338 = scalar_select %p335, %s336, %s337
    %p341 = pneg %p335
    %p342 = scmp.eq.s32.totalorder %s22, 1
    %p343 = por %p341, %p342
    %p344 = scmp.ne.s32.totalorder %s336, %s339
    %p345 = scmp.eq.s32.totalorder %s22, 0
    %p346 = por %p344, %p345
    %p347 = scmp.ne.s32.totalorder %s336, %s339
    %p348 = scmp.eq.s32.totalorder %s27, 1
    %p349 = por %p347, %p348
    %p350 = scmp.ne.s32.totalorder %s339, %s340
    %p351 = scmp.eq.s32.totalorder %s27, 0
    %p352 = por %p350, %p351
    %p353 = scmp.ne.s32.totalorder %s339, %s340
    %p354 = scmp.eq.s32.totalorder %s28, 1
    %p355 = por %p353, %p354
    %p357 = scmp.ne.s32.totalorder %s340, %s356
    %p358 = scmp.eq.s32.totalorder %s28, 0
    %p359 = por %p357, %p358
    %p360 = scmp.le.s32.totalorder 1, %s22
    %p361 = scmp.lt.s32.totalorder %s22, 3
    %p362 = pnand %p360, %p361
    %p363 = pneg %p362
    // Predicated region
    $region9: #{tpu_custom_call.1} parent=5 // pred_check
      _
    $region10: #{tpu_custom_call.1} parent=5 // pred_check_branch
      %365 = sbr.rel (%p362) target = $region12
    $region11: #{tpu_custom_call.1} parent=5 // pred_region
      %s366 = ssub.s32 %s22, 1
      // Predicated region
      $region13: #{tpu_custom_call.1} parent=11 // pred_check
        %p367 = pneg %p95
      $region14: #{tpu_custom_call.1} parent=11 // pred_check_branch
        %369 = sbr.rel (%p367) target = $region16
      $region15: #{tpu_custom_call.1} parent=11 // pred_region
        _
      $region16: #{tpu_custom_call.1} parent=11 // pred_fallthru
        _
      // Predicated region
      $region17: #{tpu_custom_call.1} parent=11 // pred_check
        %p370 = pneg %p116
      $region18: #{tpu_custom_call.1} parent=11 // pred_check_branch
        %372 = sbr.rel (%p370) target = $region20
      $region19: #{tpu_custom_call.1} parent=11 // pred_region
        _
      $region20: #{tpu_custom_call.1} parent=11 // pred_fallthru
        _
      // Predicated region
      $region21: #{tpu_custom_call.1} parent=11 // pred_check
        %p373 = pneg %p137
      $region22: #{tpu_custom_call.1} parent=11 // pred_check_branch
        %375 = sbr.rel (%p373) target = $region24
      $region23: #{tpu_custom_call.1} parent=11 // pred_region
        _
      $region24: #{tpu_custom_call.1} parent=11 // pred_fallthru
        _
      // Predicated region
      $region25: #{tpu_custom_call.1} parent=11 // pred_check
        %p376 = pneg %p158
      $region26: #{tpu_custom_call.1} parent=11 // pred_check_branch
        %378 = sbr.rel (%p376) target = $region28
      $region27: #{tpu_custom_call.1} parent=11 // pred_region
        _
      $region28: #{tpu_custom_call.1} parent=11 // pred_fallthru
        _
      // Predicated region
      $region29: #{tpu_custom_call.1} parent=11 // pred_check
        %p379 = pneg %p179
      $region30: #{tpu_custom_call.1} parent=11 // pred_check_branch
        %381 = sbr.rel (%p379) target = $region32
      $region31: #{tpu_custom_call.1} parent=11 // pred_region
        _
      $region32: #{tpu_custom_call.1} parent=11 // pred_fallthru
        _
      // Predicated region
      $region33: #{tpu_custom_call.1} parent=11 // pred_check
        %p382 = pneg %p200
      $region34: #{tpu_custom_call.1} parent=11 // pred_check_branch
        %384 = sbr.rel (%p382) target = $region36
      $region35: #{tpu_custom_call.1} parent=11 // pred_region
        _
      $region36: #{tpu_custom_call.1} parent=11 // pred_fallthru
        _
      // Predicated region
      $region37: #{tpu_custom_call.1} parent=11 // pred_check
        %p385 = pneg %p221
      $region38: #{tpu_custom_call.1} parent=11 // pred_check_branch
        %387 = sbr.rel (%p385) target = $region40
      $region39: #{tpu_custom_call.1} parent=11 // pred_region
        _
      $region40: #{tpu_custom_call.1} parent=11 // pred_fallthru
        _
      // Predicated region
      $region41: #{tpu_custom_call.1} parent=11 // pred_check
        %p388 = pneg %p242
      $region42: #{tpu_custom_call.1} parent=11 // pred_check_branch
        %390 = sbr.rel (%p388) target = $region44
      $region43: #{tpu_custom_call.1} parent=11 // pred_region
        _
      $region44: #{tpu_custom_call.1} parent=11 // pred_fallthru
        _
      // Predicated region
      $region45: #{tpu_custom_call.1} parent=11 // pred_check
        %p391 = pneg %p263
      $region46: #{tpu_custom_call.1} parent=11 // pred_check_branch
        %393 = sbr.rel (%p391) target = $region48
      $region47: #{tpu_custom_call.1} parent=11 // pred_region
        _
      $region48: #{tpu_custom_call.1} parent=11 // pred_fallthru
        _
      // Predicated region
      $region49: #{tpu_custom_call.1} parent=11 // pred_check
        %p394 = pneg %p284
      $region50: #{tpu_custom_call.1} parent=11 // pred_check_branch
        %396 = sbr.rel (%p394) target = $region52
      $region51: #{tpu_custom_call.1} parent=11 // pred_region
        _
      $region52: #{tpu_custom_call.1} parent=11 // pred_fallthru
        _
      // Predicated region
      $region53: #{tpu_custom_call.1} parent=11 // pred_check
        %p397 = pneg %p305
      $region54: #{tpu_custom_call.1} parent=11 // pred_check_branch
        %399 = sbr.rel (%p397) target = $region56
      $region55: #{tpu_custom_call.1} parent=11 // pred_region
        _
      $region56: #{tpu_custom_call.1} parent=11 // pred_fallthru
        _
      // Predicated region
      $region57: #{tpu_custom_call.1} parent=11 // pred_check
        %p400 = pneg %p326
      $region58: #{tpu_custom_call.1} parent=11 // pred_check_branch
        %402 = sbr.rel (%p400) target = $region60
      $region59: #{tpu_custom_call.1} parent=11 // pred_region
        _
      $region60: #{tpu_custom_call.1} parent=11 // pred_fallthru
        _
    $region12: #{tpu_custom_call.1} parent=5 // pred_fallthru
      _
    %p403 = scmp.lt.s32.totalorder %s22, 2
    // Predicated region
    $region61: #{tpu_custom_call.1} parent=5 // pred_check
      %p404 = pneg %p403
    $region62: #{tpu_custom_call.1} parent=5 // pred_check_branch
      %406 = sbr.rel (%p404) target = $region64
    $region63: #{tpu_custom_call.1} parent=5 // pred_region
      // Predicated region
      $region65: #{tpu_custom_call.1} parent=63 // pred_check
        %p407 = pneg %p42
      $region66: #{tpu_custom_call.1} parent=63 // pred_check_branch
        %409 = sbr.rel (%p407) target = $region68
      $region67: #{tpu_custom_call.1} parent=63 // pred_region
        %s410 = smul.u32 32, %s22
        %p411 = scmp.lt.s32.totalorder %s410, 63
        %s412 = scalar_select %p411, %s410, 63
        %s413 = smul.addr %s412, 8
        %s414 = scalar_lea.vmem %s0, %s413
        %s415 = smul.u32 32, %s22
      $region68: #{tpu_custom_call.1} parent=63 // pred_fallthru
        _
      // Predicated region
      $region69: #{tpu_custom_call.1} parent=63 // pred_check
        %p416 = pneg %p68
      $region70: #{tpu_custom_call.1} parent=63 // pred_check_branch
        %418 = sbr.rel (%p416) target = $region72
      $region71: #{tpu_custom_call.1} parent=63 // pred_region
        %s419 = smul.u32 32, %s22
        %p420 = scmp.lt.s32.totalorder %s419, 63
        %s421 = scalar_select %p420, %s419, 63
        %s422 = smul.addr %s421, 8
        %s423 = scalar_lea.vmem %s1, %s422
        %s424 = smul.u32 32, %s22
      $region72: #{tpu_custom_call.1} parent=63 // pred_fallthru
        _
    $region64: #{tpu_custom_call.1} parent=5 // pred_fallthru
      _
    %p425 = scmp.le.s32.totalorder 1, %s22
    %p426 = scmp.lt.s32.totalorder %s22, 3
    %p427 = pnand %p425, %p426
    %p428 = pneg %p427
    // Predicated region
    $region73: #{tpu_custom_call.1} parent=5 // pred_check
      _
    $region74: #{tpu_custom_call.1} parent=5 // pred_check_branch
      %430 = sbr.rel (%p427) target = $region76
    $region75: #{tpu_custom_call.1} parent=5 // pred_region
      %s431 = ssub.s32 %s22, 1
      %s432 = smul.u32 32, %s27
      %p433 = scmp.lt.s32.totalorder %s432, 63
      %s434 = scalar_select %p433, %s432, 63
      %s435 = smul.addr %s434, 8
      %s436 = scalar_lea.vmem %s0, %s435
      %p437 = pneg %p48
      %p438 = pneg %p45
      %s439 = smul.u32 32, %s27
      %p440 = scmp.lt.s32.totalorder %s439, 63
      %s441 = scalar_select %p440, %s439, 63
      %s442 = smul.addr %s441, 8
      %s443 = scalar_lea.vmem %s1, %s442
      %p444 = pneg %p74
      %p445 = pneg %p71
      %p446 = pneg %p95
      %p447 = pneg %p92
      %p448 = pneg %p116
      %p449 = pneg %p113
      %p450 = pneg %p137
      %p451 = pneg %p134
      %p452 = pneg %p158
      %p453 = pneg %p155
      %p454 = pneg %p179
      %p455 = pneg %p176
      %p456 = pneg %p200
      %p457 = pneg %p197
      %p458 = pneg %p221
      %p459 = pneg %p218
      %p460 = pneg %p242
      %p461 = pneg %p239
      %p462 = pneg %p263
      %p463 = pneg %p260
      %p464 = pneg %p284
      %p465 = pneg %p281
      %p466 = pneg %p305
      %p467 = pneg %p302
      %p468 = pneg %p326
      %p469 = pneg %p323
      %p470 = pneg %p352
      %p471 = pneg %p349
      %s472 = smul.u32 32, %s27
      %p473 = scmp.lt.s32.totalorder %s472, 63
      %s474 = scalar_select %p473, %s472, 63
      %s475 = smul.addr %s474, 8
      %s476 = scalar_lea.vmem %s14, %s475
      %s477 = smul.u32 32, %s27
      %p478 = scmp.lt.s32.totalorder %s477, 63
      %s479 = scalar_select %p478, %s477, 63
      %s480 = smul.addr %s479, 8
      %s481 = scalar_lea.vmem %s0, %s480
      %s482 = smul.u32 32, %s27
      %s483 = smul.u32 32, %s27
      %p484 = scmp.lt.s32.totalorder %s483, 63
      %s485 = scalar_select %p484, %s483, 63
      %s486 = smul.addr %s485, 8
      %s487 = scalar_lea.vmem %s1, %s486
      %s488 = smul.u32 32, %s27
      %s489 = smul.u32 32, %s27
      %p490 = scmp.lt.s32.totalorder %s489, 63
      %s491 = scalar_select %p490, %s489, 63
      %s492 = smul.addr %s491, 8
      %s493 = scalar_lea.vmem %s14, %s492
      %s494 = smul.u32 32, %s27
      %v495 = vld [vmem:[%s481] sm:$0xff]
      %v496 = vld [vmem:[%s481 + $0x8] sm:$0xff]
      %v497 = vld [vmem:[%s481 + $0x10] sm:$0xff]
      %v498 = vld [vmem:[%s481 + $0x18] sm:$0xff]
      %v499 = vld [vmem:[%s481 + $0x20] sm:$0xff]
      %v500 = vld [vmem:[%s481 + $0x28] sm:$0xff]
      %v501 = vld [vmem:[%s481 + $0x30] sm:$0xff]
      %v502 = vld [vmem:[%s481 + $0x38] sm:$0xff]
      %v503 = vld [vmem:[%s481 + $0x40] sm:$0xff]
      %v504 = vld [vmem:[%s481 + $0x48] sm:$0xff]
      %v505 = vld [vmem:[%s481 + $0x50] sm:$0xff]
      %v506 = vld [vmem:[%s481 + $0x58] sm:$0xff]
      %v507 = vld [vmem:[%s481 + $0x60] sm:$0xff]
      %v508 = vld [vmem:[%s481 + $0x68] sm:$0xff]
      %v509 = vld [vmem:[%s481 + $0x70] sm:$0xff]
      %v510 = vld [vmem:[%s481 + $0x78] sm:$0xff]
      %v511 = vld [vmem:[%s481 + $0x80] sm:$0xff]
      %v512 = vld [vmem:[%s481 + $0x88] sm:$0xff]
      %v513 = vld [vmem:[%s481 + $0x90] sm:$0xff]
      %v514 = vld [vmem:[%s481 + $0x98] sm:$0xff]
      %v515 = vld [vmem:[%s481 + $0xa0] sm:$0xff]
      %v516 = vld [vmem:[%s481 + $0xa8] sm:$0xff]
      %v517 = vld [vmem:[%s481 + $0xb0] sm:$0xff]
      %v518 = vld [vmem:[%s481 + $0xb8] sm:$0xff]
      %v519 = vld [vmem:[%s481 + $0xc0] sm:$0xff]
      %v520 = vld [vmem:[%s481 + $0xc8] sm:$0xff]
      %v521 = vld [vmem:[%s481 + $0xd0] sm:$0xff]
      %v522 = vld [vmem:[%s481 + $0xd8] sm:$0xff]
      %v523 = vld [vmem:[%s481 + $0xe0] sm:$0xff]
      %v524 = vld [vmem:[%s481 + $0xe8] sm:$0xff]
      %v525 = vld [vmem:[%s481 + $0xf0] sm:$0xff]
      %v526 = vld [vmem:[%s481 + $0xf8] sm:$0xff]
      %v527 = vld [vmem:[%s487] sm:$0xff]
      %v528 = vld [vmem:[%s487 + $0x8] sm:$0xff]
      %v529 = vld [vmem:[%s487 + $0x10] sm:$0xff]
      %v530 = vld [vmem:[%s487 + $0x18] sm:$0xff]
      %v531 = vld [vmem:[%s487 + $0x20] sm:$0xff]
      %v532 = vld [vmem:[%s487 + $0x28] sm:$0xff]
      %v533 = vld [vmem:[%s487 + $0x30] sm:$0xff]
      %v534 = vld [vmem:[%s487 + $0x38] sm:$0xff]
      %v535 = vld [vmem:[%s487 + $0x40] sm:$0xff]
      %v536 = vld [vmem:[%s487 + $0x48] sm:$0xff]
      %v537 = vld [vmem:[%s487 + $0x50] sm:$0xff]
      %v538 = vld [vmem:[%s487 + $0x58] sm:$0xff]
      %v539 = vld [vmem:[%s487 + $0x60] sm:$0xff]
      %v540 = vld [vmem:[%s487 + $0x68] sm:$0xff]
      %v541 = vld [vmem:[%s487 + $0x70] sm:$0xff]
      %v542 = vld [vmem:[%s487 + $0x78] sm:$0xff]
      %v543 = vld [vmem:[%s487 + $0x80] sm:$0xff]
      %v544 = vld [vmem:[%s487 + $0x88] sm:$0xff]
      %v545 = vld [vmem:[%s487 + $0x90] sm:$0xff]
      %v546 = vld [vmem:[%s487 + $0x98] sm:$0xff]
      %v547 = vld [vmem:[%s487 + $0xa0] sm:$0xff]
      %v548 = vld [vmem:[%s487 + $0xa8] sm:$0xff]
      %v549 = vld [vmem:[%s487 + $0xb0] sm:$0xff]
      %v550 = vld [vmem:[%s487 + $0xb8] sm:$0xff]
      %v551 = vld [vmem:[%s487 + $0xc0] sm:$0xff]
      %v552 = vld [vmem:[%s487 + $0xc8] sm:$0xff]
      %v553 = vld [vmem:[%s487 + $0xd0] sm:$0xff]
      %v554 = vld [vmem:[%s487 + $0xd8] sm:$0xff]
      %v555 = vld [vmem:[%s487 + $0xe0] sm:$0xff]
      %v556 = vld [vmem:[%s487 + $0xe8] sm:$0xff]
      %v557 = vld [vmem:[%s487 + $0xf0] sm:$0xff]
      %v558 = vld [vmem:[%s487 + $0xf8] sm:$0xff]
      %v559 = vld [vmem:[%s2] sm:$0x7]
      %vm560 = vcmask 23552
      %v562 = vsel %vm560, %v495, 0
      %v565 = vsel %vm560, %v496, 0
      %v568 = vsel %vm560, %v497, 0
      %v571 = vsel %vm560, %v498, 0
      %v574 = vsel %vm560, %v499, 0
      %v577 = vsel %vm560, %v500, 0
      %v580 = vsel %vm560, %v501, 0
      %v583 = vsel %vm560, %v502, 0
      %v586 = vsel %vm560, %v503, 0
      %v589 = vsel %vm560, %v504, 0
      %v592 = vsel %vm560, %v505, 0
      %v595 = vsel %vm560, %v506, 0
      %v598 = vsel %vm560, %v507, 0
      %v601 = vsel %vm560, %v508, 0
      %v604 = vsel %vm560, %v509, 0
      %v607 = vsel %vm560, %v510, 0
      %v610 = vsel %vm560, %v511, 0
      %v613 = vsel %vm560, %v512, 0
      %v616 = vsel %vm560, %v513, 0
      %v619 = vsel %vm560, %v514, 0
      %v622 = vsel %vm560, %v515, 0
      %v625 = vsel %vm560, %v516, 0
      %v628 = vsel %vm560, %v517, 0
      %v631 = vsel %vm560, %v518, 0
      %v634 = vsel %vm560, %v519, 0
      %v637 = vsel %vm560, %v520, 0
      %v640 = vsel %vm560, %v521, 0
      %v643 = vsel %vm560, %v522, 0
      %v646 = vsel %vm560, %v523, 0
      %v649 = vsel %vm560, %v524, 0
      %v652 = vsel %vm560, %v525, 0
      %v655 = vsel %vm560, %v526, 0
      %vm657 = vcmask 1042432
      %v659 = vsel %vm657, %v559, 0
      %661 = vmatprep.subr.mxu0 0.0
      %662 = vmatpush1.msra.mxu0 %v659
      %663 = vmatprep.subr.mxu0 0.0
      %664 = vmatpush1.msra.mxu0 0.0
      %665 = vmatprep.subr.mxu0 0.0
      %666 = vmatpush1.msra.mxu0 0.0
      %667 = vmatprep.subr.mxu0 0.0
      %668 = vmatpush1.msra.mxu0 0.0
      %669 = vmatprep.subr.mxu0 0.0
      %670 = vmatpush1.msra.mxu0 0.0
      %671 = vmatprep.subr.mxu0 0.0
      %672 = vmatpush1.msra.mxu0 0.0
      %673 = vmatprep.subr.mxu0 0.0
      %674 = vmatpush1.msra.mxu0 0.0
      %675 = vmatprep.subr.mxu0 0.0
      %676 = vmatpush1.msra.mxu0 0.0
      %677 = vmatprep.subr.mxu0 0.0
      %678 = vmatpush1.msra.mxu0 0.0
      %679 = vmatprep.subr.mxu0 0.0
      %680 = vmatpush1.msra.mxu0 0.0
      %681 = vmatprep.subr.mxu0 0.0
      %682 = vmatpush1.msra.mxu0 0.0
      %683 = vmatprep.subr.mxu0 0.0
      %684 = vmatpush1.msra.mxu0 0.0
      %685 = vmatprep.subr.mxu0 0.0
      %686 = vmatpush1.msra.mxu0 0.0
      %687 = vmatprep.subr.mxu0 0.0
      %688 = vmatpush1.msra.mxu0 0.0
      %689 = vmatprep.subr.mxu0 0.0
      %690 = vmatpush1.msra.mxu0 0.0
      %691 = vmatprep.subr.mxu0 0.0
      %692 = vmatpush1.msra.mxu0 0.0
      %693 = vmatprep.subr.mxu0 0.0
      %694 = vmatpush1.msra.mxu0 0.0
      %695 = vmatprep.subr.mxu0 0.0
      %696 = vmatpush1.msra.mxu0 0.0
      %697 = vmatprep.subr.mxu0 0.0
      %698 = vmatpush1.msra.mxu0 0.0
      %699 = vmatprep.subr.mxu0 0.0
      %700 = vmatpush1.msra.mxu0 0.0
      %701 = vmatprep.subr.mxu0 0.0
      %702 = vmatpush1.msra.mxu0 0.0
      %703 = vmatprep.subr.mxu0 0.0
      %704 = vmatpush1.msra.mxu0 0.0
      %705 = vmatprep.subr.mxu0 0.0
      %706 = vmatpush1.msra.mxu0 0.0
      %707 = vmatprep.subr.mxu0 0.0
      %708 = vmatpush1.msra.mxu0 0.0
      %709 = vmatprep.subr.mxu0 0.0
      %710 = vmatpush1.msra.mxu0 0.0
      %711 = vmatprep.subr.mxu0 0.0
      %712 = vmatpush1.msra.mxu0 0.0
      %713 = vmatprep.subr.mxu0 0.0
      %714 = vmatpush1.msra.mxu0 0.0
      %715 = vmatprep.subr.mxu0 0.0
      %716 = vmatpush1.msra.mxu0 0.0
      %717 = vmatprep.subr.mxu0 0.0
      %718 = vmatpush1.msra.mxu0 0.0
      %719 = vmatprep.subr.mxu0 0.0
      %720 = vmatpush1.msra.mxu0 0.0
      %721 = vmatprep.subr.mxu0 0.0
      %722 = vmatpush1.msra.mxu0 0.0
      %723 = vmatprep.subr.mxu0 0.0
      %724 = vmatpush1.msra.mxu0 0.0
      %725 = vmatprep.mubr.f32.mxu0 0.0
      %726 = vmatmul.mubr.f32.gmra.mrb[0].mxu0 %v562
      %v727 = vpop.f32.mrb[0].mxu0
      %v728 = vadd.f32 0.0, %v727
      %v729 = vpop.f32.mrb[0].mxu0
      %730 = vmatprep.mubr.f32.mxu0 0.0
      %731 = vmatmul.mubr.f32.gmra.mrb[0].mxu0 %v565
      %v732 = vpop.f32.mrb[0].mxu0
      %v733 = vadd.f32 0.0, %v732
      %v734 = vpop.f32.mrb[0].mxu0
      %735 = vmatprep.mubr.f32.mxu0 0.0
      %736 = vmatmul.mubr.f32.gmra.mrb[0].mxu0 %v568
      %v737 = vpop.f32.mrb[0].mxu0
      %v738 = vadd.f32 0.0, %v737
      %v739 = vpop.f32.mrb[0].mxu0
      %740 = vmatprep.mubr.f32.mxu0 0.0
      %741 = vmatmul.mubr.f32.gmra.mrb[0].mxu0 %v571
      %v742 = vpop.f32.mrb[0].mxu0
      %v743 = vadd.f32 0.0, %v742
      %v744 = vpop.f32.mrb[0].mxu0
      %745 = vmatprep.mubr.f32.mxu0 0.0
      %746 = vmatmul.mubr.f32.gmra.mrb[0].mxu0 %v574
      %v747 = vpop.f32.mrb[0].mxu0
      %v748 = vadd.f32 0.0, %v747
      %v749 = vpop.f32.mrb[0].mxu0
      %750 = vmatprep.mubr.f32.mxu0 0.0
      %751 = vmatmul.mubr.f32.gmra.mrb[0].mxu0 %v577
      %v752 = vpop.f32.mrb[0].mxu0
      %v753 = vadd.f32 0.0, %v752
      %v754 = vpop.f32.mrb[0].mxu0
      %755 = vmatprep.mubr.f32.mxu0 0.0
      %756 = vmatmul.mubr.f32.gmra.mrb[0].mxu0 %v580
      %v757 = vpop.f32.mrb[0].mxu0
      %v758 = vadd.f32 0.0, %v757
      %v759 = vpop.f32.mrb[0].mxu0
      %760 = vmatprep.mubr.f32.mxu0 0.0
      %761 = vmatmul.mubr.f32.gmra.mrb[0].mxu0 %v583
      %v762 = vpop.f32.mrb[0].mxu0
      %v763 = vadd.f32 0.0, %v762
      %v764 = vpop.f32.mrb[0].mxu0
      %765 = vmatprep.mubr.f32.mxu0 0.0
      %766 = vmatmul.mubr.f32.gmra.mrb[0].mxu0 %v586
      %v767 = vpop.f32.mrb[0].mxu0
      %v768 = vadd.f32 0.0, %v767
      %v769 = vpop.f32.mrb[0].mxu0
      %770 = vmatprep.mubr.f32.mxu0 0.0
      %771 = vmatmul.mubr.f32.gmra.mrb[0].mxu0 %v589
      %v772 = vpop.f32.mrb[0].mxu0
      %v773 = vadd.f32 0.0, %v772
      %v774 = vpop.f32.mrb[0].mxu0
      %775 = vmatprep.mubr.f32.mxu0 0.0
      %776 = vmatmul.mubr.f32.gmra.mrb[0].mxu0 %v592
      %v777 = vpop.f32.mrb[0].mxu0
      %v778 = vadd.f32 0.0, %v777
      %v779 = vpop.f32.mrb[0].mxu0
      %780 = vmatprep.mubr.f32.mxu0 0.0
      %781 = vmatmul.mubr.f32.gmra.mrb[0].mxu0 %v595
      %v782 = vpop.f32.mrb[0].mxu0
      %v783 = vadd.f32 0.0, %v782
      %v784 = vpop.f32.mrb[0].mxu0
      %785 = vmatprep.mubr.f32.mxu0 0.0
      %786 = vmatmul.mubr.f32.gmra.mrb[0].mxu0 %v598
      %v787 = vpop.f32.mrb[0].mxu0
      %v788 = vadd.f32 0.0, %v787
      %v789 = vpop.f32.mrb[0].mxu0
      %790 = vmatprep.mubr.f32.mxu0 0.0
      %791 = vmatmul.mubr.f32.gmra.mrb[0].mxu0 %v601
      %v792 = vpop.f32.mrb[0].mxu0
      %v793 = vadd.f32 0.0, %v792
      %v794 = vpop.f32.mrb[0].mxu0
      %795 = vmatprep.mubr.f32.mxu0 0.0
      %796 = vmatmul.mubr.f32.gmra.mrb[0].mxu0 %v604
      %v797 = vpop.f32.mrb[0].mxu0
      %v798 = vadd.f32 0.0, %v797
      %v799 = vpop.f32.mrb[0].mxu0
      %800 = vmatprep.mubr.f32.mxu0 0.0
      %801 = vmatmul.mubr.f32.gmra.mrb[0].mxu0 %v607
      %v802 = vpop.f32.mrb[0].mxu0
      %v803 = vadd.f32 0.0, %v802
      %v804 = vpop.f32.mrb[0].mxu0
      %805 = vmatprep.mubr.f32.mxu0 0.0
      %806 = vmatmul.mubr.f32.gmra.mrb[0].mxu0 %v610
      %v807 = vpop.f32.mrb[0].mxu0
      %v808 = vadd.f32 0.0, %v807
      %v809 = vpop.f32.mrb[0].mxu0
      %810 = vmatprep.mubr.f32.mxu0 0.0
      %811 = vmatmul.mubr.f32.gmra.mrb[0].mxu0 %v613
      %v812 = vpop.f32.mrb[0].mxu0
      %v813 = vadd.f32 0.0, %v812
      %v814 = vpop.f32.mrb[0].mxu0
      %815 = vmatprep.mubr.f32.mxu0 0.0
      %816 = vmatmul.mubr.f32.gmra.mrb[0].mxu0 %v616
      %v817 = vpop.f32.mrb[0].mxu0
      %v818 = vadd.f32 0.0, %v817
      %v819 = vpop.f32.mrb[0].mxu0
      %820 = vmatprep.mubr.f32.mxu0 0.0
      %821 = vmatmul.mubr.f32.gmra.mrb[0].mxu0 %v619
      %v822 = vpop.f32.mrb[0].mxu0
      %v823 = vadd.f32 0.0, %v822
      %v824 = vpop.f32.mrb[0].mxu0
      %825 = vmatprep.mubr.f32.mxu0 0.0
      %826 = vmatmul.mubr.f32.gmra.mrb[0].mxu0 %v622
      %v827 = vpop.f32.mrb[0].mxu0
      %v828 = vadd.f32 0.0, %v827
      %v829 = vpop.f32.mrb[0].mxu0
      %830 = vmatprep.mubr.f32.mxu0 0.0
      %831 = vmatmul.mubr.f32.gmra.mrb[0].mxu0 %v625
      %v832 = vpop.f32.mrb[0].mxu0
      %v833 = vadd.f32 0.0, %v832
      %v834 = vpop.f32.mrb[0].mxu0
      %835 = vmatprep.mubr.f32.mxu0 0.0
      %836 = vmatmul.mubr.f32.gmra.mrb[0].mxu0 %v628
      %v837 = vpop.f32.mrb[0].mxu0
      %v838 = vadd.f32 0.0, %v837
      %v839 = vpop.f32.mrb[0].mxu0
      %840 = vmatprep.mubr.f32.mxu0 0.0
      %841 = vmatmul.mubr.f32.gmra.mrb[0].mxu0 %v631
      %v842 = vpop.f32.mrb[0].mxu0
      %v843 = vadd.f32 0.0, %v842
      %v844 = vpop.f32.mrb[0].mxu0
      %845 = vmatprep.mubr.f32.mxu0 0.0
      %846 = vmatmul.mubr.f32.gmra.mrb[0].mxu0 %v634
      %v847 = vpop.f32.mrb[0].mxu0
      %v848 = vadd.f32 0.0, %v847
      %v849 = vpop.f32.mrb[0].mxu0
      %850 = vmatprep.mubr.f32.mxu0 0.0
      %851 = vmatmul.mubr.f32.gmra.mrb[0].mxu0 %v637
      %v852 = vpop.f32.mrb[0].mxu0
      %v853 = vadd.f32 0.0, %v852
      %v854 = vpop.f32.mrb[0].mxu0
      %855 = vmatprep.mubr.f32.mxu0 0.0
      %856 = vmatmul.mubr.f32.gmra.mrb[0].mxu0 %v640
      %v857 = vpop.f32.mrb[0].mxu0
      %v858 = vadd.f32 0.0, %v857
      %v859 = vpop.f32.mrb[0].mxu0
      %860 = vmatprep.mubr.f32.mxu0 0.0
      %861 = vmatmul.mubr.f32.gmra.mrb[0].mxu0 %v643
      %v862 = vpop.f32.mrb[0].mxu0
      %v863 = vadd.f32 0.0, %v862
      %v864 = vpop.f32.mrb[0].mxu0
      %865 = vmatprep.mubr.f32.mxu0 0.0
      %866 = vmatmul.mubr.f32.gmra.mrb[0].mxu0 %v646
      %v867 = vpop.f32.mrb[0].mxu0
      %v868 = vadd.f32 0.0, %v867
      %v869 = vpop.f32.mrb[0].mxu0
      %870 = vmatprep.mubr.f32.mxu0 0.0
      %871 = vmatmul.mubr.f32.gmra.mrb[0].mxu0 %v649
      %v872 = vpop.f32.mrb[0].mxu0
      %v873 = vadd.f32 0.0, %v872
      %v874 = vpop.f32.mrb[0].mxu0
      %875 = vmatprep.mubr.f32.mxu0 0.0
      %876 = vmatmul.mubr.f32.gmra.mrb[0].mxu0 %v652
      %v877 = vpop.f32.mrb[0].mxu0
      %v878 = vadd.f32 0.0, %v877
      %v879 = vpop.f32.mrb[0].mxu0
      %880 = vmatprep.mubr.f32.mxu0 0.0
      %881 = vmatmul.mubr.f32.gmra.mrb[0].mxu0 %v655
      %v882 = vpop.f32.mrb[0].mxu0
      %v883 = vadd.f32 0.0, %v882
      %v884 = vpop.f32.mrb[0].mxu0
      %885 = vdwg.mxu0
      %v886 = vand.u32 2147483647, %v728
      %vm887 = vcmp.le.f32.partialorder %v886, 0.7853982
      %vm888 = vcmp.lt.s32.totalorder %v728, 0
      %v889 = vand.u32 %v728, 2139095040
      %v890 = vshrl.u32 %v889, 23
      %v891 = vsub.s32 %v890, 127
      %v892 = vand.u32 2147483647, %v728
      %v893 = vand.u32 %v892, 8388607
      %v894 = vor.u32 %v893, 8388608
      %v895 = vsub.s32 0, %v894
      %v896 = vadd.s32 %v891, 1
      %vm897 = vcmp.gt.s32.totalorder %v896, 0
      %v898 = vsel %vm897, %v896, 0
      %v899 = vshrl.u32 %v898, 5
      %v900 = vand.u32 %v898, 31
      %v901 = vsub.s32 32, %v900
      %v902 = vshrl.u32 683565275, %v901
      %v903 = vshll.u32 683565275, %v900
      %v904 = vshrl.u32 2475754826, %v901
      %v905 = vor.u32 %v903, %v904
      %v906 = vshll.u32 2475754826, %v900
      %v907 = vshrl.u32 2131351028, %v901
      %v908 = vor.u32 %v906, %v907
      %v909 = vshll.u32 2131351028, %v900
      %v910 = vshrl.u32 2102212464, %v901
      %v911 = vor.u32 %v909, %v910
      %v912 = vshll.u32 2102212464, %v900
      %v913 = vshrl.u32 920167782, %v901
      %v914 = vor.u32 %v912, %v913
      %v915 = vshll.u32 920167782, %v900
      %v916 = vshrl.u32 1326507024, %v901
      %v917 = vor.u32 %v915, %v916
      %vm918 = vcmp.lt.s32.totalorder %v899, 1
      %vm919 = vcmp.lt.s32.totalorder %v899, 2
      %vm920 = vcmp.lt.s32.totalorder %v899, 3
      %vm921 = vcmp.lt.s32.totalorder %v899, 4
      %v922 = vsel %vm918, %v902, %v905
      %v923 = vsel %vm921, %v911, 2102212464
      %v924 = vsel %vm920, %v908, %v923
      %v925 = vsel %vm919, %v922, %v924
      %v926 = vsel %vm918, %v905, %v908
      %v927 = vsel %vm921, %v914, 920167782
      %v928 = vsel %vm920, %v911, %v927
      %v929 = vsel %vm919, %v926, %v928
      %v930 = vsel %vm918, %v908, %v911
      %v931 = vsel %vm921, %v917, 1326507024
      %v932 = vsel %vm920, %v914, %v931
      %v933 = vsel %vm919, %v930, %v932
      %v934 = vshll.u32 %v894, 8
      %v935 = vmul.u32.u64.compose %v934, %v933
      %v936 = vextract.low.u32 %v935
      %v937 = vextract.high.u32 %v935
      %v938 = vmul.u32.u64.compose %v934, %v929
      %v939 = vextract.low.u32 %v938
      %v940 = vextract.high.u32 %v938
      %v941 = vmul.u32 %v934, %v925
      %v942 = vadd.s32 %v937, %v939
      %vm943 = vc.u32 %v937, %v939
      %v944 = vadd.s32 %v940, 1
      %v945 = vsel %vm943, %v944, %v940
      %v946 = vadd.s32 %v941, %v945
      %v947 = vadd.s32 %v946, 536870912
      %v948 = vshrl.u32 %v947, 30
      %v949 = vshll.u32 %v948, 30
      %v950 = vsub.s32 %v946, %v949
      %vm951 = vcmp.lt.s32.totalorder %v950, 0
      %v952 = vsub.s32 0, %v950
      %v953 = vsel %vm951, %v952, %v950
      %v954 = vclz %v953
      %v955 = vsub.s32 %v954, 2
      %vm956 = vcmp.gt.s32.totalorder 0, %v955
      %v957 = vsel %vm956, 0, %v955
      %v958 = vsub.s32 32, %v957
      %v959 = vshll.u32 %v950, %v957
      %v960 = vshrl.u32 %v942, %v958
      %v961 = vor.u32 %v959, %v960
      %v962 = vsub.s32 4294967266, %v957
      %v963 = vadd.s32 %v962, 127
      %v964 = vshll.u32 %v963, 23
      %v965 = vor.u32 4788187, %v964
      %v966 = vand.u32 2147483647, %v965
      %v968 = vcvt.s32.f32 %v961
      %v969 = vmul.f32 %v968, %v966
      %v970 = vxor.u32 %v969, 2147483648
      %v971 = vsel %vm888, %v970, %v969
      %v972 = vsub.s32 4, %v948
      %v973 = vsel %vm888, %v972, %v948
      %v974 = vsel %vm887, %v728, %v971
      %v975 = vsel %vm887, 0, %v973
      %v976 = vcosq.f32.pop %v974
      %v977 = vsinq.f32.pop %v974
      %vm978 = vweird.f32 %v728
      %v979 = vadd.s32 %v975, 3
      %v980 = vand.u32 %v979, 3
      %vm981 = vcmp.lt.s32.totalorder %v980, 2
      %vm982 = vcmp.eq.s32.totalorder %v980, 0
      %v983 = vxor.u32 %v977, 2147483648
      %v984 = vsel %vm982, %v976, %v983
      %vm985 = vcmp.eq.s32.totalorder %v980, 2
      %v986 = vxor.u32 %v976, 2147483648
      %v987 = vsel %vm985, %v986, %v977
      %v988 = vsel %vm981, %v984, %v987
      %v989 = vsel %vm978, nan, %v988
      %v990 = vand.u32 2147483647, %v733
      %vm991 = vcmp.le.f32.partialorder %v990, 0.7853982
      %vm992 = vcmp.lt.s32.totalorder %v733, 0
      %v993 = vand.u32 %v733, 2139095040
      %v994 = vshrl.u32 %v993, 23
      %v995 = vsub.s32 %v994, 127
      %v996 = vand.u32 2147483647, %v733
      %v997 = vand.u32 %v996, 8388607
      %v998 = vor.u32 %v997, 8388608
      %v999 = vsub.s32 0, %v998
      %v1000 = vadd.s32 %v995, 1
      %vm1001 = vcmp.gt.s32.totalorder %v1000, 0
      %v1002 = vsel %vm1001, %v1000, 0
      %v1003 = vshrl.u32 %v1002, 5
      %v1004 = vand.u32 %v1002, 31
      %v1005 = vsub.s32 32, %v1004
      %v1006 = vshrl.u32 683565275, %v1005
      %v1007 = vshll.u32 683565275, %v1004
      %v1008 = vshrl.u32 2475754826, %v1005
      %v1009 = vor.u32 %v1007, %v1008
      %v1010 = vshll.u32 2475754826, %v1004
      %v1011 = vshrl.u32 2131351028, %v1005
      %v1012 = vor.u32 %v1010, %v1011
      %v1013 = vshll.u32 2131351028, %v1004
      %v1014 = vshrl.u32 2102212464, %v1005
      %v1015 = vor.u32 %v1013, %v1014
      %v1016 = vshll.u32 2102212464, %v1004
      %v1017 = vshrl.u32 920167782, %v1005
      %v1018 = vor.u32 %v1016, %v1017
      %v1019 = vshll.u32 920167782, %v1004
      %v1020 = vshrl.u32 1326507024, %v1005
      %v1021 = vor.u32 %v1019, %v1020
      %vm1022 = vcmp.lt.s32.totalorder %v1003, 1
      %vm1023 = vcmp.lt.s32.totalorder %v1003, 2
      %vm1024 = vcmp.lt.s32.totalorder %v1003, 3
      %vm1025 = vcmp.lt.s32.totalorder %v1003, 4
      %v1026 = vsel %vm1022, %v1006, %v1009
      %v1027 = vsel %vm1025, %v1015, 2102212464
      %v1028 = vsel %vm1024, %v1012, %v1027
      %v1029 = vsel %vm1023, %v1026, %v1028
      %v1030 = vsel %vm1022, %v1009, %v1012
      %v1031 = vsel %vm1025, %v1018, 920167782
      %v1032 = vsel %vm1024, %v1015, %v1031
      %v1033 = vsel %vm1023, %v1030, %v1032
      %v1034 = vsel %vm1022, %v1012, %v1015
      %v1035 = vsel %vm1025, %v1021, 1326507024
      %v1036 = vsel %vm1024, %v1018, %v1035
      %v1037 = vsel %vm1023, %v1034, %v1036
      %v1038 = vshll.u32 %v998, 8
      %v1039 = vmul.u32.u64.compose %v1038, %v1037
      %v1040 = vextract.low.u32 %v1039
      %v1041 = vextract.high.u32 %v1039
      %v1042 = vmul.u32.u64.compose %v1038, %v1033
      %v1043 = vextract.low.u32 %v1042
      %v1044 = vextract.high.u32 %v1042
      %v1045 = vmul.u32 %v1038, %v1029
      %v1046 = vadd.s32 %v1041, %v1043
      %vm1047 = vc.u32 %v1041, %v1043
      %v1048 = vadd.s32 %v1044, 1
      %v1049 = vsel %vm1047, %v1048, %v1044
      %v1050 = vadd.s32 %v1045, %v1049
      %v1051 = vadd.s32 %v1050, 536870912
      %v1052 = vshrl.u32 %v1051, 30
      %v1053 = vshll.u32 %v1052, 30
      %v1054 = vsub.s32 %v1050, %v1053
      %vm1055 = vcmp.lt.s32.totalorder %v1054, 0
      %v1056 = vsub.s32 0, %v1054
      %v1057 = vsel %vm1055, %v1056, %v1054
      %v1058 = vclz %v1057
      %v1059 = vsub.s32 %v1058, 2
      %vm1060 = vcmp.gt.s32.totalorder 0, %v1059
      %v1061 = vsel %vm1060, 0, %v1059
      %v1062 = vsub.s32 32, %v1061
      %v1063 = vshll.u32 %v1054, %v1061
      %v1064 = vshrl.u32 %v1046, %v1062
      %v1065 = vor.u32 %v1063, %v1064
      %v1066 = vsub.s32 4294967266, %v1061
      %v1067 = vadd.s32 %v1066, 127
      %v1068 = vshll.u32 %v1067, 23
      %v1069 = vor.u32 4788187, %v1068
      %v1070 = vand.u32 2147483647, %v1069
      %v1072 = vcvt.s32.f32 %v1065
      %v1073 = vmul.f32 %v1072, %v1070
      %v1074 = vxor.u32 %v1073, 2147483648
      %v1075 = vsel %vm992, %v1074, %v1073
      %v1076 = vsub.s32 4, %v1052
      %v1077 = vsel %vm992, %v1076, %v1052
      %v1078 = vsel %vm991, %v733, %v1075
      %v1079 = vsel %vm991, 0, %v1077
      %v1080 = vcosq.f32.pop %v1078
      %v1081 = vsinq.f32.pop %v1078
      %vm1082 = vweird.f32 %v733
      %v1083 = vadd.s32 %v1079, 3
      %v1084 = vand.u32 %v1083, 3
      %vm1085 = vcmp.lt.s32.totalorder %v1084, 2
      %vm1086 = vcmp.eq.s32.totalorder %v1084, 0
      %v1087 = vxor.u32 %v1081, 2147483648
      %v1088 = vsel %vm1086, %v1080, %v1087
      %vm1089 = vcmp.eq.s32.totalorder %v1084, 2
      %v1090 = vxor.u32 %v1080, 2147483648
      %v1091 = vsel %vm1089, %v1090, %v1081
      %v1092 = vsel %vm1085, %v1088, %v1091
      %v1093 = vsel %vm1082, nan, %v1092
      %v1094 = vand.u32 2147483647, %v738
      %vm1095 = vcmp.le.f32.partialorder %v1094, 0.7853982
      %vm1096 = vcmp.lt.s32.totalorder %v738, 0
      %v1097 = vand.u32 %v738, 2139095040
      %v1098 = vshrl.u32 %v1097, 23
      %v1099 = vsub.s32 %v1098, 127
      %v1100 = vand.u32 2147483647, %v738
      %v1101 = vand.u32 %v1100, 8388607
      %v1102 = vor.u32 %v1101, 8388608
      %v1103 = vsub.s32 0, %v1102
      %v1104 = vadd.s32 %v1099, 1
      %vm1105 = vcmp.gt.s32.totalorder %v1104, 0
      %v1106 = vsel %vm1105, %v1104, 0
      %v1107 = vshrl.u32 %v1106, 5
      %v1108 = vand.u32 %v1106, 31
      %v1109 = vsub.s32 32, %v1108
      %v1110 = vshrl.u32 683565275, %v1109
      %v1111 = vshll.u32 683565275, %v1108
      %v1112 = vshrl.u32 2475754826, %v1109
      %v1113 = vor.u32 %v1111, %v1112
      %v1114 = vshll.u32 2475754826, %v1108
      %v1115 = vshrl.u32 2131351028, %v1109
      %v1116 = vor.u32 %v1114, %v1115
      %v1117 = vshll.u32 2131351028, %v1108
      %v1118 = vshrl.u32 2102212464, %v1109
      %v1119 = vor.u32 %v1117, %v1118
      %v1120 = vshll.u32 2102212464, %v1108
      %v1121 = vshrl.u32 920167782, %v1109
      %v1122 = vor.u32 %v1120, %v1121
      %v1123 = vshll.u32 920167782, %v1108
      %v1124 = vshrl.u32 1326507024, %v1109
      %v1125 = vor.u32 %v1123, %v1124
      %vm1126 = vcmp.lt.s32.totalorder %v1107, 1
      %vm1127 = vcmp.lt.s32.totalorder %v1107, 2
      %vm1128 = vcmp.lt.s32.totalorder %v1107, 3
      %vm1129 = vcmp.lt.s32.totalorder %v1107, 4
      %v1130 = vsel %vm1126, %v1110, %v1113
      %v1131 = vsel %vm1129, %v1119, 2102212464
      %v1132 = vsel %vm1128, %v1116, %v1131
      %v1133 = vsel %vm1127, %v1130, %v1132
      %v1134 = vsel %vm1126, %v1113, %v1116
      %v1135 = vsel %vm1129, %v1122, 920167782
      %v1136 = vsel %vm1128, %v1119, %v1135
      %v1137 = vsel %vm1127, %v1134, %v1136
      %v1138 = vsel %vm1126, %v1116, %v1119
      %v1139 = vsel %vm1129, %v1125, 1326507024
      %v1140 = vsel %vm1128, %v1122, %v1139
      %v1141 = vsel %vm1127, %v1138, %v1140
      %v1142 = vshll.u32 %v1102, 8
      %v1143 = vmul.u32.u64.compose %v1142, %v1141
      %v1144 = vextract.low.u32 %v1143
      %v1145 = vextract.high.u32 %v1143
      %v1146 = vmul.u32.u64.compose %v1142, %v1137
      %v1147 = vextract.low.u32 %v1146
      %v1148 = vextract.high.u32 %v1146
      %v1149 = vmul.u32 %v1142, %v1133
      %v1150 = vadd.s32 %v1145, %v1147
      %vm1151 = vc.u32 %v1145, %v1147
      %v1152 = vadd.s32 %v1148, 1
      %v1153 = vsel %vm1151, %v1152, %v1148
      %v1154 = vadd.s32 %v1149, %v1153
      %v1155 = vadd.s32 %v1154, 536870912
      %v1156 = vshrl.u32 %v1155, 30
      %v1157 = vshll.u32 %v1156, 30
      %v1158 = vsub.s32 %v1154, %v1157
      %vm1159 = vcmp.lt.s32.totalorder %v1158, 0
      %v1160 = vsub.s32 0, %v1158
      %v1161 = vsel %vm1159, %v1160, %v1158
      %v1162 = vclz %v1161
      %v1163 = vsub.s32 %v1162, 2
      %vm1164 = vcmp.gt.s32.totalorder 0, %v1163
      %v1165 = vsel %vm1164, 0, %v1163
      %v1166 = vsub.s32 32, %v1165
      %v1167 = vshll.u32 %v1158, %v1165
      %v1168 = vshrl.u32 %v1150, %v1166
      %v1169 = vor.u32 %v1167, %v1168
      %v1170 = vsub.s32 4294967266, %v1165
      %v1171 = vadd.s32 %v1170, 127
      %v1172 = vshll.u32 %v1171, 23
      %v1173 = vor.u32 4788187, %v1172
      %v1174 = vand.u32 2147483647, %v1173
      %v1176 = vcvt.s32.f32 %v1169
      %v1177 = vmul.f32 %v1176, %v1174
      %v1178 = vxor.u32 %v1177, 2147483648
      %v1179 = vsel %vm1096, %v1178, %v1177
      %v1180 = vsub.s32 4, %v1156
      %v1181 = vsel %vm1096, %v1180, %v1156
      %v1182 = vsel %vm1095, %v738, %v1179
      %v1183 = vsel %vm1095, 0, %v1181
      %v1184 = vcosq.f32.pop %v1182
      %v1185 = vsinq.f32.pop %v1182
      %vm1186 = vweird.f32 %v738
      %v1187 = vadd.s32 %v1183, 3
      %v1188 = vand.u32 %v1187, 3
      %vm1189 = vcmp.lt.s32.totalorder %v1188, 2
      %vm1190 = vcmp.eq.s32.totalorder %v1188, 0
      %v1191 = vxor.u32 %v1185, 2147483648
      %v1192 = vsel %vm1190, %v1184, %v1191
      %vm1193 = vcmp.eq.s32.totalorder %v1188, 2
      %v1194 = vxor.u32 %v1184, 2147483648
      %v1195 = vsel %vm1193, %v1194, %v1185
      %v1196 = vsel %vm1189, %v1192, %v1195
      %v1197 = vsel %vm1186, nan, %v1196
      %v1198 = vand.u32 2147483647, %v743
      %vm1199 = vcmp.le.f32.partialorder %v1198, 0.7853982
      %vm1200 = vcmp.lt.s32.totalorder %v743, 0
      %v1201 = vand.u32 %v743, 2139095040
      %v1202 = vshrl.u32 %v1201, 23
      %v1203 = vsub.s32 %v1202, 127
      %v1204 = vand.u32 2147483647, %v743
      %v1205 = vand.u32 %v1204, 8388607
      %v1206 = vor.u32 %v1205, 8388608
      %v1207 = vsub.s32 0, %v1206
      %v1208 = vadd.s32 %v1203, 1
      %vm1209 = vcmp.gt.s32.totalorder %v1208, 0
      %v1210 = vsel %vm1209, %v1208, 0
      %v1211 = vshrl.u32 %v1210, 5
      %v1212 = vand.u32 %v1210, 31
      %v1213 = vsub.s32 32, %v1212
      %v1214 = vshrl.u32 683565275, %v1213
      %v1215 = vshll.u32 683565275, %v1212
      %v1216 = vshrl.u32 2475754826, %v1213
      %v1217 = vor.u32 %v1215, %v1216
      %v1218 = vshll.u32 2475754826, %v1212
      %v1219 = vshrl.u32 2131351028, %v1213
      %v1220 = vor.u32 %v1218, %v1219
      %v1221 = vshll.u32 2131351028, %v1212
      %v1222 = vshrl.u32 2102212464, %v1213
      %v1223 = vor.u32 %v1221, %v1222
      %v1224 = vshll.u32 2102212464, %v1212
      %v1225 = vshrl.u32 920167782, %v1213
      %v1226 = vor.u32 %v1224, %v1225
      %v1227 = vshll.u32 920167782, %v1212
      %v1228 = vshrl.u32 1326507024, %v1213
      %v1229 = vor.u32 %v1227, %v1228
      %vm1230 = vcmp.lt.s32.totalorder %v1211, 1
      %vm1231 = vcmp.lt.s32.totalorder %v1211, 2
      %vm1232 = vcmp.lt.s32.totalorder %v1211, 3
      %vm1233 = vcmp.lt.s32.totalorder %v1211, 4
      %v1234 = vsel %vm1230, %v1214, %v1217
      %v1235 = vsel %vm1233, %v1223, 2102212464
      %v1236 = vsel %vm1232, %v1220, %v1235
      %v1237 = vsel %vm1231, %v1234, %v1236
      %v1238 = vsel %vm1230, %v1217, %v1220
      %v1239 = vsel %vm1233, %v1226, 920167782
      %v1240 = vsel %vm1232, %v1223, %v1239
      %v1241 = vsel %vm1231, %v1238, %v1240
      %v1242 = vsel %vm1230, %v1220, %v1223
      %v1243 = vsel %vm1233, %v1229, 1326507024
      %v1244 = vsel %vm1232, %v1226, %v1243
      %v1245 = vsel %vm1231, %v1242, %v1244
      %v1246 = vshll.u32 %v1206, 8
      %v1247 = vmul.u32.u64.compose %v1246, %v1245
      %v1248 = vextract.low.u32 %v1247
      %v1249 = vextract.high.u32 %v1247
      %v1250 = vmul.u32.u64.compose %v1246, %v1241
      %v1251 = vextract.low.u32 %v1250
      %v1252 = vextract.high.u32 %v1250
      %v1253 = vmul.u32 %v1246, %v1237
      %v1254 = vadd.s32 %v1249, %v1251
      %vm1255 = vc.u32 %v1249, %v1251
      %v1256 = vadd.s32 %v1252, 1
      %v1257 = vsel %vm1255, %v1256, %v1252
      %v1258 = vadd.s32 %v1253, %v1257
      %v1259 = vadd.s32 %v1258, 536870912
      %v1260 = vshrl.u32 %v1259, 30
      %v1261 = vshll.u32 %v1260, 30
      %v1262 = vsub.s32 %v1258, %v1261
      %vm1263 = vcmp.lt.s32.totalorder %v1262, 0
      %v1264 = vsub.s32 0, %v1262
      %v1265 = vsel %vm1263, %v1264, %v1262
      %v1266 = vclz %v1265
      %v1267 = vsub.s32 %v1266, 2
      %vm1268 = vcmp.gt.s32.totalorder 0, %v1267
      %v1269 = vsel %vm1268, 0, %v1267
      %v1270 = vsub.s32 32, %v1269
      %v1271 = vshll.u32 %v1262, %v1269
      %v1272 = vshrl.u32 %v1254, %v1270
      %v1273 = vor.u32 %v1271, %v1272
      %v1274 = vsub.s32 4294967266, %v1269
      %v1275 = vadd.s32 %v1274, 127
      %v1276 = vshll.u32 %v1275, 23
      %v1277 = vor.u32 4788187, %v1276
      %v1278 = vand.u32 2147483647, %v1277
      %v1280 = vcvt.s32.f32 %v1273
      %v1281 = vmul.f32 %v1280, %v1278
      %v1282 = vxor.u32 %v1281, 2147483648
      %v1283 = vsel %vm1200, %v1282, %v1281
      %v1284 = vsub.s32 4, %v1260
      %v1285 = vsel %vm1200, %v1284, %v1260
      %v1286 = vsel %vm1199, %v743, %v1283
      %v1287 = vsel %vm1199, 0, %v1285
      %v1288 = vcosq.f32.pop %v1286
      %v1289 = vsinq.f32.pop %v1286
      %vm1290 = vweird.f32 %v743
      %v1291 = vadd.s32 %v1287, 3
      %v1292 = vand.u32 %v1291, 3
      %vm1293 = vcmp.lt.s32.totalorder %v1292, 2
      %vm1294 = vcmp.eq.s32.totalorder %v1292, 0
      %v1295 = vxor.u32 %v1289, 2147483648
      %v1296 = vsel %vm1294, %v1288, %v1295
      %vm1297 = vcmp.eq.s32.totalorder %v1292, 2
      %v1298 = vxor.u32 %v1288, 2147483648
      %v1299 = vsel %vm1297, %v1298, %v1289
      %v1300 = vsel %vm1293, %v1296, %v1299
      %v1301 = vsel %vm1290, nan, %v1300
      %v1302 = vand.u32 2147483647, %v748
      %vm1303 = vcmp.le.f32.partialorder %v1302, 0.7853982
      %vm1304 = vcmp.lt.s32.totalorder %v748, 0
      %v1305 = vand.u32 %v748, 2139095040
      %v1306 = vshrl.u32 %v1305, 23
      %v1307 = vsub.s32 %v1306, 127
      %v1308 = vand.u32 2147483647, %v748
      %v1309 = vand.u32 %v1308, 8388607
      %v1310 = vor.u32 %v1309, 8388608
      %v1311 = vsub.s32 0, %v1310
      %v1312 = vadd.s32 %v1307, 1
      %vm1313 = vcmp.gt.s32.totalorder %v1312, 0
      %v1314 = vsel %vm1313, %v1312, 0
      %v1315 = vshrl.u32 %v1314, 5
      %v1316 = vand.u32 %v1314, 31
      %v1317 = vsub.s32 32, %v1316
      %v1318 = vshrl.u32 683565275, %v1317
      %v1319 = vshll.u32 683565275, %v1316
      %v1320 = vshrl.u32 2475754826, %v1317
      %v1321 = vor.u32 %v1319, %v1320
      %v1322 = vshll.u32 2475754826, %v1316
      %v1323 = vshrl.u32 2131351028, %v1317
      %v1324 = vor.u32 %v1322, %v1323
      %v1325 = vshll.u32 2131351028, %v1316
      %v1326 = vshrl.u32 2102212464, %v1317
      %v1327 = vor.u32 %v1325, %v1326
      %v1328 = vshll.u32 2102212464, %v1316
      %v1329 = vshrl.u32 920167782, %v1317
      %v1330 = vor.u32 %v1328, %v1329
      %v1331 = vshll.u32 920167782, %v1316
      %v1332 = vshrl.u32 1326507024, %v1317
      %v1333 = vor.u32 %v1331, %v1332
      %vm1334 = vcmp.lt.s32.totalorder %v1315, 1
      %vm1335 = vcmp.lt.s32.totalorder %v1315, 2
      %vm1336 = vcmp.lt.s32.totalorder %v1315, 3
      %vm1337 = vcmp.lt.s32.totalorder %v1315, 4
      %v1338 = vsel %vm1334, %v1318, %v1321
      %v1339 = vsel %vm1337, %v1327, 2102212464
      %v1340 = vsel %vm1336, %v1324, %v1339
      %v1341 = vsel %vm1335, %v1338, %v1340
      %v1342 = vsel %vm1334, %v1321, %v1324
      %v1343 = vsel %vm1337, %v1330, 920167782
      %v1344 = vsel %vm1336, %v1327, %v1343
      %v1345 = vsel %vm1335, %v1342, %v1344
      %v1346 = vsel %vm1334, %v1324, %v1327
      %v1347 = vsel %vm1337, %v1333, 1326507024
      %v1348 = vsel %vm1336, %v1330, %v1347
      %v1349 = vsel %vm1335, %v1346, %v1348
      %v1350 = vshll.u32 %v1310, 8
      %v1351 = vmul.u32.u64.compose %v1350, %v1349
      %v1352 = vextract.low.u32 %v1351
      %v1353 = vextract.high.u32 %v1351
      %v1354 = vmul.u32.u64.compose %v1350, %v1345
      %v1355 = vextract.low.u32 %v1354
      %v1356 = vextract.high.u32 %v1354
      %v1357 = vmul.u32 %v1350, %v1341
      %v1358 = vadd.s32 %v1353, %v1355
      %vm1359 = vc.u32 %v1353, %v1355
      %v1360 = vadd.s32 %v1356, 1
      %v1361 = vsel %vm1359, %v1360, %v1356
      %v1362 = vadd.s32 %v1357, %v1361
      %v1363 = vadd.s32 %v1362, 536870912
      %v1364 = vshrl.u32 %v1363, 30
      %v1365 = vshll.u32 %v1364, 30
      %v1366 = vsub.s32 %v1362, %v1365
      %vm1367 = vcmp.lt.s32.totalorder %v1366, 0
      %v1368 = vsub.s32 0, %v1366
      %v1369 = vsel %vm1367, %v1368, %v1366
      %v1370 = vclz %v1369
      %v1371 = vsub.s32 %v1370, 2
      %vm1372 = vcmp.gt.s32.totalorder 0, %v1371
      %v1373 = vsel %vm1372, 0, %v1371
      %v1374 = vsub.s32 32, %v1373
      %v1375 = vshll.u32 %v1366, %v1373
      %v1376 = vshrl.u32 %v1358, %v1374
      %v1377 = vor.u32 %v1375, %v1376
      %v1378 = vsub.s32 4294967266, %v1373
      %v1379 = vadd.s32 %v1378, 127
      %v1380 = vshll.u32 %v1379, 23
      %v1381 = vor.u32 4788187, %v1380
      %v1382 = vand.u32 2147483647, %v1381
      %v1384 = vcvt.s32.f32 %v1377
      %v1385 = vmul.f32 %v1384, %v1382
      %v1386 = vxor.u32 %v1385, 2147483648
      %v1387 = vsel %vm1304, %v1386, %v1385
      %v1388 = vsub.s32 4, %v1364
      %v1389 = vsel %vm1304, %v1388, %v1364
      %v1390 = vsel %vm1303, %v748, %v1387
      %v1391 = vsel %vm1303, 0, %v1389
      %v1392 = vcosq.f32.pop %v1390
      %v1393 = vsinq.f32.pop %v1390
      %vm1394 = vweird.f32 %v748
      %v1395 = vadd.s32 %v1391, 3
      %v1396 = vand.u32 %v1395, 3
      %vm1397 = vcmp.lt.s32.totalorder %v1396, 2
      %vm1398 = vcmp.eq.s32.totalorder %v1396, 0
      %v1399 = vxor.u32 %v1393, 2147483648
      %v1400 = vsel %vm1398, %v1392, %v1399
      %vm1401 = vcmp.eq.s32.totalorder %v1396, 2
      %v1402 = vxor.u32 %v1392, 2147483648
      %v1403 = vsel %vm1401, %v1402, %v1393
      %v1404 = vsel %vm1397, %v1400, %v1403
      %v1405 = vsel %vm1394, nan, %v1404
      %v1406 = vand.u32 2147483647, %v753
      %vm1407 = vcmp.le.f32.partialorder %v1406, 0.7853982
      %vm1408 = vcmp.lt.s32.totalorder %v753, 0
      %v1409 = vand.u32 %v753, 2139095040
      %v1410 = vshrl.u32 %v1409, 23
      %v1411 = vsub.s32 %v1410, 127
      %v1412 = vand.u32 2147483647, %v753
      %v1413 = vand.u32 %v1412, 8388607
      %v1414 = vor.u32 %v1413, 8388608
      %v1415 = vsub.s32 0, %v1414
      %v1416 = vadd.s32 %v1411, 1
      %vm1417 = vcmp.gt.s32.totalorder %v1416, 0
      %v1418 = vsel %vm1417, %v1416, 0
      %v1419 = vshrl.u32 %v1418, 5
      %v1420 = vand.u32 %v1418, 31
      %v1421 = vsub.s32 32, %v1420
      %v1422 = vshrl.u32 683565275, %v1421
      %v1423 = vshll.u32 683565275, %v1420
      %v1424 = vshrl.u32 2475754826, %v1421
      %v1425 = vor.u32 %v1423, %v1424
      %v1426 = vshll.u32 2475754826, %v1420
      %v1427 = vshrl.u32 2131351028, %v1421
      %v1428 = vor.u32 %v1426, %v1427
      %v1429 = vshll.u32 2131351028, %v1420
      %v1430 = vshrl.u32 2102212464, %v1421
      %v1431 = vor.u32 %v1429, %v1430
      %v1432 = vshll.u32 2102212464, %v1420
      %v1433 = vshrl.u32 920167782, %v1421
      %v1434 = vor.u32 %v1432, %v1433
      %v1435 = vshll.u32 920167782, %v1420
      %v1436 = vshrl.u32 1326507024, %v1421
      %v1437 = vor.u32 %v1435, %v1436
      %vm1438 = vcmp.lt.s32.totalorder %v1419, 1
      %vm1439 = vcmp.lt.s32.totalorder %v1419, 2
      %vm1440 = vcmp.lt.s32.totalorder %v1419, 3
      %vm1441 = vcmp.lt.s32.totalorder %v1419, 4
      %v1442 = vsel %vm1438, %v1422, %v1425
      %v1443 = vsel %vm1441, %v1431, 2102212464
      %v1444 = vsel %vm1440, %v1428, %v1443
      %v1445 = vsel %vm1439, %v1442, %v1444
      %v1446 = vsel %vm1438, %v1425, %v1428
      %v1447 = vsel %vm1441, %v1434, 920167782
      %v1448 = vsel %vm1440, %v1431, %v1447
      %v1449 = vsel %vm1439, %v1446, %v1448
      %v1450 = vsel %vm1438, %v1428, %v1431
      %v1451 = vsel %vm1441, %v1437, 1326507024
      %v1452 = vsel %vm1440, %v1434, %v1451
      %v1453 = vsel %vm1439, %v1450, %v1452
      %v1454 = vshll.u32 %v1414, 8
      %v1455 = vmul.u32.u64.compose %v1454, %v1453
      %v1456 = vextract.low.u32 %v1455
      %v1457 = vextract.high.u32 %v1455
      %v1458 = vmul.u32.u64.compose %v1454, %v1449
      %v1459 = vextract.low.u32 %v1458
      %v1460 = vextract.high.u32 %v1458
      %v1461 = vmul.u32 %v1454, %v1445
      %v1462 = vadd.s32 %v1457, %v1459
      %vm1463 = vc.u32 %v1457, %v1459
      %v1464 = vadd.s32 %v1460, 1
      %v1465 = vsel %vm1463, %v1464, %v1460
      %v1466 = vadd.s32 %v1461, %v1465
      %v1467 = vadd.s32 %v1466, 536870912
      %v1468 = vshrl.u32 %v1467, 30
      %v1469 = vshll.u32 %v1468, 30
      %v1470 = vsub.s32 %v1466, %v1469
      %vm1471 = vcmp.lt.s32.totalorder %v1470, 0
      %v1472 = vsub.s32 0, %v1470
      %v1473 = vsel %vm1471, %v1472, %v1470
      %v1474 = vclz %v1473
      %v1475 = vsub.s32 %v1474, 2
      %vm1476 = vcmp.gt.s32.totalorder 0, %v1475
      %v1477 = vsel %vm1476, 0, %v1475
      %v1478 = vsub.s32 32, %v1477
      %v1479 = vshll.u32 %v1470, %v1477
      %v1480 = vshrl.u32 %v1462, %v1478
      %v1481 = vor.u32 %v1479, %v1480
      %v1482 = vsub.s32 4294967266, %v1477
      %v1483 = vadd.s32 %v1482, 127
      %v1484 = vshll.u32 %v1483, 23
      %v1485 = vor.u32 4788187, %v1484
      %v1486 = vand.u32 2147483647, %v1485
      %v1488 = vcvt.s32.f32 %v1481
      %v1489 = vmul.f32 %v1488, %v1486
      %v1490 = vxor.u32 %v1489, 2147483648
      %v1491 = vsel %vm1408, %v1490, %v1489
      %v1492 = vsub.s32 4, %v1468
      %v1493 = vsel %vm1408, %v1492, %v1468
      %v1494 = vsel %vm1407, %v753, %v1491
      %v1495 = vsel %vm1407, 0, %v1493
      %v1496 = vcosq.f32.pop %v1494
      %v1497 = vsinq.f32.pop %v1494
      %vm1498 = vweird.f32 %v753
      %v1499 = vadd.s32 %v1495, 3
      %v1500 = vand.u32 %v1499, 3
      %vm1501 = vcmp.lt.s32.totalorder %v1500, 2
      %vm1502 = vcmp.eq.s32.totalorder %v1500, 0
      %v1503 = vxor.u32 %v1497, 2147483648
      %v1504 = vsel %vm1502, %v1496, %v1503
      %vm1505 = vcmp.eq.s32.totalorder %v1500, 2
      %v1506 = vxor.u32 %v1496, 2147483648
      %v1507 = vsel %vm1505, %v1506, %v1497
      %v1508 = vsel %vm1501, %v1504, %v1507
      %v1509 = vsel %vm1498, nan, %v1508
      %v1510 = vand.u32 2147483647, %v758
      %vm1511 = vcmp.le.f32.partialorder %v1510, 0.7853982
      %vm1512 = vcmp.lt.s32.totalorder %v758, 0
      %v1513 = vand.u32 %v758, 2139095040
      %v1514 = vshrl.u32 %v1513, 23
      %v1515 = vsub.s32 %v1514, 127
      %v1516 = vand.u32 2147483647, %v758
      %v1517 = vand.u32 %v1516, 8388607
      %v1518 = vor.u32 %v1517, 8388608
      %v1519 = vsub.s32 0, %v1518
      %v1520 = vadd.s32 %v1515, 1
      %vm1521 = vcmp.gt.s32.totalorder %v1520, 0
      %v1522 = vsel %vm1521, %v1520, 0
      %v1523 = vshrl.u32 %v1522, 5
      %v1524 = vand.u32 %v1522, 31
      %v1525 = vsub.s32 32, %v1524
      %v1526 = vshrl.u32 683565275, %v1525
      %v1527 = vshll.u32 683565275, %v1524
      %v1528 = vshrl.u32 2475754826, %v1525
      %v1529 = vor.u32 %v1527, %v1528
      %v1530 = vshll.u32 2475754826, %v1524
      %v1531 = vshrl.u32 2131351028, %v1525
      %v1532 = vor.u32 %v1530, %v1531
      %v1533 = vshll.u32 2131351028, %v1524
      %v1534 = vshrl.u32 2102212464, %v1525
      %v1535 = vor.u32 %v1533, %v1534
      %v1536 = vshll.u32 2102212464, %v1524
      %v1537 = vshrl.u32 920167782, %v1525
      %v1538 = vor.u32 %v1536, %v1537
      %v1539 = vshll.u32 920167782, %v1524
      %v1540 = vshrl.u32 1326507024, %v1525
      %v1541 = vor.u32 %v1539, %v1540
      %vm1542 = vcmp.lt.s32.totalorder %v1523, 1
      %vm1543 = vcmp.lt.s32.totalorder %v1523, 2
      %vm1544 = vcmp.lt.s32.totalorder %v1523, 3
      %vm1545 = vcmp.lt.s32.totalorder %v1523, 4
      %v1546 = vsel %vm1542, %v1526, %v1529
      %v1547 = vsel %vm1545, %v1535, 2102212464
      %v1548 = vsel %vm1544, %v1532, %v1547
      %v1549 = vsel %vm1543, %v1546, %v1548
      %v1550 = vsel %vm1542, %v1529, %v1532
      %v1551 = vsel %vm1545, %v1538, 920167782
      %v1552 = vsel %vm1544, %v1535, %v1551
      %v1553 = vsel %vm1543, %v1550, %v1552
      %v1554 = vsel %vm1542, %v1532, %v1535
      %v1555 = vsel %vm1545, %v1541, 1326507024
      %v1556 = vsel %vm1544, %v1538, %v1555
      %v1557 = vsel %vm1543, %v1554, %v1556
      %v1558 = vshll.u32 %v1518, 8
      %v1559 = vmul.u32.u64.compose %v1558, %v1557
      %v1560 = vextract.low.u32 %v1559
      %v1561 = vextract.high.u32 %v1559
      %v1562 = vmul.u32.u64.compose %v1558, %v1553
      %v1563 = vextract.low.u32 %v1562
      %v1564 = vextract.high.u32 %v1562
      %v1565 = vmul.u32 %v1558, %v1549
      %v1566 = vadd.s32 %v1561, %v1563
      %vm1567 = vc.u32 %v1561, %v1563
      %v1568 = vadd.s32 %v1564, 1
      %v1569 = vsel %vm1567, %v1568, %v1564
      %v1570 = vadd.s32 %v1565, %v1569
      %v1571 = vadd.s32 %v1570, 536870912
      %v1572 = vshrl.u32 %v1571, 30
      %v1573 = vshll.u32 %v1572, 30
      %v1574 = vsub.s32 %v1570, %v1573
      %vm1575 = vcmp.lt.s32.totalorder %v1574, 0
      %v1576 = vsub.s32 0, %v1574
      %v1577 = vsel %vm1575, %v1576, %v1574
      %v1578 = vclz %v1577
      %v1579 = vsub.s32 %v1578, 2
      %vm1580 = vcmp.gt.s32.totalorder 0, %v1579
      %v1581 = vsel %vm1580, 0, %v1579
      %v1582 = vsub.s32 32, %v1581
      %v1583 = vshll.u32 %v1574, %v1581
      %v1584 = vshrl.u32 %v1566, %v1582
      %v1585 = vor.u32 %v1583, %v1584
      %v1586 = vsub.s32 4294967266, %v1581
      %v1587 = vadd.s32 %v1586, 127
      %v1588 = vshll.u32 %v1587, 23
      %v1589 = vor.u32 4788187, %v1588
      %v1590 = vand.u32 2147483647, %v1589
      %v1592 = vcvt.s32.f32 %v1585
      %v1593 = vmul.f32 %v1592, %v1590
      %v1594 = vxor.u32 %v1593, 2147483648
      %v1595 = vsel %vm1512, %v1594, %v1593
      %v1596 = vsub.s32 4, %v1572
      %v1597 = vsel %vm1512, %v1596, %v1572
      %v1598 = vsel %vm1511, %v758, %v1595
      %v1599 = vsel %vm1511, 0, %v1597
      %v1600 = vcosq.f32.pop %v1598
      %v1601 = vsinq.f32.pop %v1598
      %vm1602 = vweird.f32 %v758
      %v1603 = vadd.s32 %v1599, 3
      %v1604 = vand.u32 %v1603, 3
      %vm1605 = vcmp.lt.s32.totalorder %v1604, 2
      %vm1606 = vcmp.eq.s32.totalorder %v1604, 0
      %v1607 = vxor.u32 %v1601, 2147483648
      %v1608 = vsel %vm1606, %v1600, %v1607
      %vm1609 = vcmp.eq.s32.totalorder %v1604, 2
      %v1610 = vxor.u32 %v1600, 2147483648
      %v1611 = vsel %vm1609, %v1610, %v1601
      %v1612 = vsel %vm1605, %v1608, %v1611
      %v1613 = vsel %vm1602, nan, %v1612
      %v1614 = vand.u32 2147483647, %v763
      %vm1615 = vcmp.le.f32.partialorder %v1614, 0.7853982
      %vm1616 = vcmp.lt.s32.totalorder %v763, 0
      %v1617 = vand.u32 %v763, 2139095040
      %v1618 = vshrl.u32 %v1617, 23
      %v1619 = vsub.s32 %v1618, 127
      %v1620 = vand.u32 2147483647, %v763
      %v1621 = vand.u32 %v1620, 8388607
      %v1622 = vor.u32 %v1621, 8388608
      %v1623 = vsub.s32 0, %v1622
      %v1624 = vadd.s32 %v1619, 1
      %vm1625 = vcmp.gt.s32.totalorder %v1624, 0
      %v1626 = vsel %vm1625, %v1624, 0
      %v1627 = vshrl.u32 %v1626, 5
      %v1628 = vand.u32 %v1626, 31
      %v1629 = vsub.s32 32, %v1628
      %v1630 = vshrl.u32 683565275, %v1629
      %v1631 = vshll.u32 683565275, %v1628
      %v1632 = vshrl.u32 2475754826, %v1629
      %v1633 = vor.u32 %v1631, %v1632
      %v1634 = vshll.u32 2475754826, %v1628
      %v1635 = vshrl.u32 2131351028, %v1629
      %v1636 = vor.u32 %v1634, %v1635
      %v1637 = vshll.u32 2131351028, %v1628
      %v1638 = vshrl.u32 2102212464, %v1629
      %v1639 = vor.u32 %v1637, %v1638
      %v1640 = vshll.u32 2102212464, %v1628
      %v1641 = vshrl.u32 920167782, %v1629
      %v1642 = vor.u32 %v1640, %v1641
      %v1643 = vshll.u32 920167782, %v1628
      %v1644 = vshrl.u32 1326507024, %v1629
      %v1645 = vor.u32 %v1643, %v1644
      %vm1646 = vcmp.lt.s32.totalorder %v1627, 1
      %vm1647 = vcmp.lt.s32.totalorder %v1627, 2
      %vm1648 = vcmp.lt.s32.totalorder %v1627, 3
      %vm1649 = vcmp.lt.s32.totalorder %v1627, 4
      %v1650 = vsel %vm1646, %v1630, %v1633
      %v1651 = vsel %vm1649, %v1639, 2102212464
      %v1652 = vsel %vm1648, %v1636, %v1651
      %v1653 = vsel %vm1647, %v1650, %v1652
      %v1654 = vsel %vm1646, %v1633, %v1636
      %v1655 = vsel %vm1649, %v1642, 920167782
      %v1656 = vsel %vm1648, %v1639, %v1655
      %v1657 = vsel %vm1647, %v1654, %v1656
      %v1658 = vsel %vm1646, %v1636, %v1639
      %v1659 = vsel %vm1649, %v1645, 1326507024
      %v1660 = vsel %vm1648, %v1642, %v1659
      %v1661 = vsel %vm1647, %v1658, %v1660
      %v1662 = vshll.u32 %v1622, 8
      %v1663 = vmul.u32.u64.compose %v1662, %v1661
      %v1664 = vextract.low.u32 %v1663
      %v1665 = vextract.high.u32 %v1663
      %v1666 = vmul.u32.u64.compose %v1662, %v1657
      %v1667 = vextract.low.u32 %v1666
      %v1668 = vextract.high.u32 %v1666
      %v1669 = vmul.u32 %v1662, %v1653
      %v1670 = vadd.s32 %v1665, %v1667
      %vm1671 = vc.u32 %v1665, %v1667
      %v1672 = vadd.s32 %v1668, 1
      %v1673 = vsel %vm1671, %v1672, %v1668
      %v1674 = vadd.s32 %v1669, %v1673
      %v1675 = vadd.s32 %v1674, 536870912
      %v1676 = vshrl.u32 %v1675, 30
      %v1677 = vshll.u32 %v1676, 30
      %v1678 = vsub.s32 %v1674, %v1677
      %vm1679 = vcmp.lt.s32.totalorder %v1678, 0
      %v1680 = vsub.s32 0, %v1678
      %v1681 = vsel %vm1679, %v1680, %v1678
      %v1682 = vclz %v1681
      %v1683 = vsub.s32 %v1682, 2
      %vm1684 = vcmp.gt.s32.totalorder 0, %v1683
      %v1685 = vsel %vm1684, 0, %v1683
      %v1686 = vsub.s32 32, %v1685
      %v1687 = vshll.u32 %v1678, %v1685
      %v1688 = vshrl.u32 %v1670, %v1686
      %v1689 = vor.u32 %v1687, %v1688
      %v1690 = vsub.s32 4294967266, %v1685
      %v1691 = vadd.s32 %v1690, 127
      %v1692 = vshll.u32 %v1691, 23
      %v1693 = vor.u32 4788187, %v1692
      %v1694 = vand.u32 2147483647, %v1693
      %v1696 = vcvt.s32.f32 %v1689
      %v1697 = vmul.f32 %v1696, %v1694
      %v1698 = vxor.u32 %v1697, 2147483648
      %v1699 = vsel %vm1616, %v1698, %v1697
      %v1700 = vsub.s32 4, %v1676
      %v1701 = vsel %vm1616, %v1700, %v1676
      %v1702 = vsel %vm1615, %v763, %v1699
      %v1703 = vsel %vm1615, 0, %v1701
      %v1704 = vcosq.f32.pop %v1702
      %v1705 = vsinq.f32.pop %v1702
      %vm1706 = vweird.f32 %v763
      %v1707 = vadd.s32 %v1703, 3
      %v1708 = vand.u32 %v1707, 3
      %vm1709 = vcmp.lt.s32.totalorder %v1708, 2
      %vm1710 = vcmp.eq.s32.totalorder %v1708, 0
      %v1711 = vxor.u32 %v1705, 2147483648
      %v1712 = vsel %vm1710, %v1704, %v1711
      %vm1713 = vcmp.eq.s32.totalorder %v1708, 2
      %v1714 = vxor.u32 %v1704, 2147483648
      %v1715 = vsel %vm1713, %v1714, %v1705
      %v1716 = vsel %vm1709, %v1712, %v1715
      %v1717 = vsel %vm1706, nan, %v1716
      %v1718 = vand.u32 2147483647, %v768
      %vm1719 = vcmp.le.f32.partialorder %v1718, 0.7853982
      %vm1720 = vcmp.lt.s32.totalorder %v768, 0
      %v1721 = vand.u32 %v768, 2139095040
      %v1722 = vshrl.u32 %v1721, 23
      %v1723 = vsub.s32 %v1722, 127
      %v1724 = vand.u32 2147483647, %v768
      %v1725 = vand.u32 %v1724, 8388607
      %v1726 = vor.u32 %v1725, 8388608
      %v1727 = vsub.s32 0, %v1726
      %v1728 = vadd.s32 %v1723, 1
      %vm1729 = vcmp.gt.s32.totalorder %v1728, 0
      %v1730 = vsel %vm1729, %v1728, 0
      %v1731 = vshrl.u32 %v1730, 5
      %v1732 = vand.u32 %v1730, 31
      %v1733 = vsub.s32 32, %v1732
      %v1734 = vshrl.u32 683565275, %v1733
      %v1735 = vshll.u32 683565275, %v1732
      %v1736 = vshrl.u32 2475754826, %v1733
      %v1737 = vor.u32 %v1735, %v1736
      %v1738 = vshll.u32 2475754826, %v1732
      %v1739 = vshrl.u32 2131351028, %v1733
      %v1740 = vor.u32 %v1738, %v1739
      %v1741 = vshll.u32 2131351028, %v1732
      %v1742 = vshrl.u32 2102212464, %v1733
      %v1743 = vor.u32 %v1741, %v1742
      %v1744 = vshll.u32 2102212464, %v1732
      %v1745 = vshrl.u32 920167782, %v1733
      %v1746 = vor.u32 %v1744, %v1745
      %v1747 = vshll.u32 920167782, %v1732
      %v1748 = vshrl.u32 1326507024, %v1733
      %v1749 = vor.u32 %v1747, %v1748
      %vm1750 = vcmp.lt.s32.totalorder %v1731, 1
      %vm1751 = vcmp.lt.s32.totalorder %v1731, 2
      %vm1752 = vcmp.lt.s32.totalorder %v1731, 3
      %vm1753 = vcmp.lt.s32.totalorder %v1731, 4
      %v1754 = vsel %vm1750, %v1734, %v1737
      %v1755 = vsel %vm1753, %v1743, 2102212464
      %v1756 = vsel %vm1752, %v1740, %v1755
      %v1757 = vsel %vm1751, %v1754, %v1756
      %v1758 = vsel %vm1750, %v1737, %v1740
      %v1759 = vsel %vm1753, %v1746, 920167782
      %v1760 = vsel %vm1752, %v1743, %v1759
      %v1761 = vsel %vm1751, %v1758, %v1760
      %v1762 = vsel %vm1750, %v1740, %v1743
      %v1763 = vsel %vm1753, %v1749, 1326507024
      %v1764 = vsel %vm1752, %v1746, %v1763
      %v1765 = vsel %vm1751, %v1762, %v1764
      %v1766 = vshll.u32 %v1726, 8
      %v1767 = vmul.u32.u64.compose %v1766, %v1765
      %v1768 = vextract.low.u32 %v1767
      %v1769 = vextract.high.u32 %v1767
      %v1770 = vmul.u32.u64.compose %v1766, %v1761
      %v1771 = vextract.low.u32 %v1770
      %v1772 = vextract.high.u32 %v1770
      %v1773 = vmul.u32 %v1766, %v1757
      %v1774 = vadd.s32 %v1769, %v1771
      %vm1775 = vc.u32 %v1769, %v1771
      %v1776 = vadd.s32 %v1772, 1
      %v1777 = vsel %vm1775, %v1776, %v1772
      %v1778 = vadd.s32 %v1773, %v1777
      %v1779 = vadd.s32 %v1778, 536870912
      %v1780 = vshrl.u32 %v1779, 30
      %v1781 = vshll.u32 %v1780, 30
      %v1782 = vsub.s32 %v1778, %v1781
      %vm1783 = vcmp.lt.s32.totalorder %v1782, 0
      %v1784 = vsub.s32 0, %v1782
      %v1785 = vsel %vm1783, %v1784, %v1782
      %v1786 = vclz %v1785
      %v1787 = vsub.s32 %v1786, 2
      %vm1788 = vcmp.gt.s32.totalorder 0, %v1787
      %v1789 = vsel %vm1788, 0, %v1787
      %v1790 = vsub.s32 32, %v1789
      %v1791 = vshll.u32 %v1782, %v1789
      %v1792 = vshrl.u32 %v1774, %v1790
      %v1793 = vor.u32 %v1791, %v1792
      %v1794 = vsub.s32 4294967266, %v1789
      %v1795 = vadd.s32 %v1794, 127
      %v1796 = vshll.u32 %v1795, 23
      %v1797 = vor.u32 4788187, %v1796
      %v1798 = vand.u32 2147483647, %v1797
      %v1800 = vcvt.s32.f32 %v1793
      %v1801 = vmul.f32 %v1800, %v1798
      %v1802 = vxor.u32 %v1801, 2147483648
      %v1803 = vsel %vm1720, %v1802, %v1801
      %v1804 = vsub.s32 4, %v1780
      %v1805 = vsel %vm1720, %v1804, %v1780
      %v1806 = vsel %vm1719, %v768, %v1803
      %v1807 = vsel %vm1719, 0, %v1805
      %v1808 = vcosq.f32.pop %v1806
      %v1809 = vsinq.f32.pop %v1806
      %vm1810 = vweird.f32 %v768
      %v1811 = vadd.s32 %v1807, 3
      %v1812 = vand.u32 %v1811, 3
      %vm1813 = vcmp.lt.s32.totalorder %v1812, 2
      %vm1814 = vcmp.eq.s32.totalorder %v1812, 0
      %v1815 = vxor.u32 %v1809, 2147483648
      %v1816 = vsel %vm1814, %v1808, %v1815
      %vm1817 = vcmp.eq.s32.totalorder %v1812, 2
      %v1818 = vxor.u32 %v1808, 2147483648
      %v1819 = vsel %vm1817, %v1818, %v1809
      %v1820 = vsel %vm1813, %v1816, %v1819
      %v1821 = vsel %vm1810, nan, %v1820
      %v1822 = vand.u32 2147483647, %v773
      %vm1823 = vcmp.le.f32.partialorder %v1822, 0.7853982
      %vm1824 = vcmp.lt.s32.totalorder %v773, 0
      %v1825 = vand.u32 %v773, 2139095040
      %v1826 = vshrl.u32 %v1825, 23
      %v1827 = vsub.s32 %v1826, 127
      %v1828 = vand.u32 2147483647, %v773
      %v1829 = vand.u32 %v1828, 8388607
      %v1830 = vor.u32 %v1829, 8388608
      %v1831 = vsub.s32 0, %v1830
      %v1832 = vadd.s32 %v1827, 1
      %vm1833 = vcmp.gt.s32.totalorder %v1832, 0
      %v1834 = vsel %vm1833, %v1832, 0
      %v1835 = vshrl.u32 %v1834, 5
      %v1836 = vand.u32 %v1834, 31
      %v1837 = vsub.s32 32, %v1836
      %v1838 = vshrl.u32 683565275, %v1837
      %v1839 = vshll.u32 683565275, %v1836
      %v1840 = vshrl.u32 2475754826, %v1837
      %v1841 = vor.u32 %v1839, %v1840
      %v1842 = vshll.u32 2475754826, %v1836
      %v1843 = vshrl.u32 2131351028, %v1837
      %v1844 = vor.u32 %v1842, %v1843
      %v1845 = vshll.u32 2131351028, %v1836
      %v1846 = vshrl.u32 2102212464, %v1837
      %v1847 = vor.u32 %v1845, %v1846
      %v1848 = vshll.u32 2102212464, %v1836
      %v1849 = vshrl.u32 920167782, %v1837
      %v1850 = vor.u32 %v1848, %v1849
      %v1851 = vshll.u32 920167782, %v1836
      %v1852 = vshrl.u32 1326507024, %v1837
      %v1853 = vor.u32 %v1851, %v1852
      %vm1854 = vcmp.lt.s32.totalorder %v1835, 1
      %vm1855 = vcmp.lt.s32.totalorder %v1835, 2
      %vm1856 = vcmp.lt.s32.totalorder %v1835, 3
      %vm1857 = vcmp.lt.s32.totalorder %v1835, 4
      %v1858 = vsel %vm1854, %v1838, %v1841
      %v1859 = vsel %vm1857, %v1847, 2102212464
      %v1860 = vsel %vm1856, %v1844, %v1859
      %v1861 = vsel %vm1855, %v1858, %v1860
      %v1862 = vsel %vm1854, %v1841, %v1844
      %v1863 = vsel %vm1857, %v1850, 920167782
      %v1864 = vsel %vm1856, %v1847, %v1863
      %v1865 = vsel %vm1855, %v1862, %v1864
      %v1866 = vsel %vm1854, %v1844, %v1847
      %v1867 = vsel %vm1857, %v1853, 1326507024
      %v1868 = vsel %vm1856, %v1850, %v1867
      %v1869 = vsel %vm1855, %v1866, %v1868
      %v1870 = vshll.u32 %v1830, 8
      %v1871 = vmul.u32.u64.compose %v1870, %v1869
      %v1872 = vextract.low.u32 %v1871
      %v1873 = vextract.high.u32 %v1871
      %v1874 = vmul.u32.u64.compose %v1870, %v1865
      %v1875 = vextract.low.u32 %v1874
      %v1876 = vextract.high.u32 %v1874
      %v1877 = vmul.u32 %v1870, %v1861
      %v1878 = vadd.s32 %v1873, %v1875
      %vm1879 = vc.u32 %v1873, %v1875
      %v1880 = vadd.s32 %v1876, 1
      %v1881 = vsel %vm1879, %v1880, %v1876
      %v1882 = vadd.s32 %v1877, %v1881
      %v1883 = vadd.s32 %v1882, 536870912
      %v1884 = vshrl.u32 %v1883, 30
      %v1885 = vshll.u32 %v1884, 30
      %v1886 = vsub.s32 %v1882, %v1885
      %vm1887 = vcmp.lt.s32.totalorder %v1886, 0
      %v1888 = vsub.s32 0, %v1886
      %v1889 = vsel %vm1887, %v1888, %v1886
      %v1890 = vclz %v1889
      %v1891 = vsub.s32 %v1890, 2
      %vm1892 = vcmp.gt.s32.totalorder 0, %v1891
      %v1893 = vsel %vm1892, 0, %v1891
      %v1894 = vsub.s32 32, %v1893
      %v1895 = vshll.u32 %v1886, %v1893
      %v1896 = vshrl.u32 %v1878, %v1894
      %v1897 = vor.u32 %v1895, %v1896
      %v1898 = vsub.s32 4294967266, %v1893
      %v1899 = vadd.s32 %v1898, 127
      %v1900 = vshll.u32 %v1899, 23
      %v1901 = vor.u32 4788187, %v1900
      %v1902 = vand.u32 2147483647, %v1901
      %v1904 = vcvt.s32.f32 %v1897
      %v1905 = vmul.f32 %v1904, %v1902
      %v1906 = vxor.u32 %v1905, 2147483648
      %v1907 = vsel %vm1824, %v1906, %v1905
      %v1908 = vsub.s32 4, %v1884
      %v1909 = vsel %vm1824, %v1908, %v1884
      %v1910 = vsel %vm1823, %v773, %v1907
      %v1911 = vsel %vm1823, 0, %v1909
      %v1912 = vcosq.f32.pop %v1910
      %v1913 = vsinq.f32.pop %v1910
      %vm1914 = vweird.f32 %v773
      %v1915 = vadd.s32 %v1911, 3
      %v1916 = vand.u32 %v1915, 3
      %vm1917 = vcmp.lt.s32.totalorder %v1916, 2
      %vm1918 = vcmp.eq.s32.totalorder %v1916, 0
      %v1919 = vxor.u32 %v1913, 2147483648
      %v1920 = vsel %vm1918, %v1912, %v1919
      %vm1921 = vcmp.eq.s32.totalorder %v1916, 2
      %v1922 = vxor.u32 %v1912, 2147483648
      %v1923 = vsel %vm1921, %v1922, %v1913
      %v1924 = vsel %vm1917, %v1920, %v1923
      %v1925 = vsel %vm1914, nan, %v1924
      %v1926 = vand.u32 2147483647, %v778
      %vm1927 = vcmp.le.f32.partialorder %v1926, 0.7853982
      %vm1928 = vcmp.lt.s32.totalorder %v778, 0
      %v1929 = vand.u32 %v778, 2139095040
      %v1930 = vshrl.u32 %v1929, 23
      %v1931 = vsub.s32 %v1930, 127
      %v1932 = vand.u32 2147483647, %v778
      %v1933 = vand.u32 %v1932, 8388607
      %v1934 = vor.u32 %v1933, 8388608
      %v1935 = vsub.s32 0, %v1934
      %v1936 = vadd.s32 %v1931, 1
      %vm1937 = vcmp.gt.s32.totalorder %v1936, 0
      %v1938 = vsel %vm1937, %v1936, 0
      %v1939 = vshrl.u32 %v1938, 5
      %v1940 = vand.u32 %v1938, 31
      %v1941 = vsub.s32 32, %v1940
      %v1942 = vshrl.u32 683565275, %v1941
      %v1943 = vshll.u32 683565275, %v1940
      %v1944 = vshrl.u32 2475754826, %v1941
      %v1945 = vor.u32 %v1943, %v1944
      %v1946 = vshll.u32 2475754826, %v1940
      %v1947 = vshrl.u32 2131351028, %v1941
      %v1948 = vor.u32 %v1946, %v1947
      %v1949 = vshll.u32 2131351028, %v1940
      %v1950 = vshrl.u32 2102212464, %v1941
      %v1951 = vor.u32 %v1949, %v1950
      %v1952 = vshll.u32 2102212464, %v1940
      %v1953 = vshrl.u32 920167782, %v1941
      %v1954 = vor.u32 %v1952, %v1953
      %v1955 = vshll.u32 920167782, %v1940
      %v1956 = vshrl.u32 1326507024, %v1941
      %v1957 = vor.u32 %v1955, %v1956
      %vm1958 = vcmp.lt.s32.totalorder %v1939, 1
      %vm1959 = vcmp.lt.s32.totalorder %v1939, 2
      %vm1960 = vcmp.lt.s32.totalorder %v1939, 3
      %vm1961 = vcmp.lt.s32.totalorder %v1939, 4
      %v1962 = vsel %vm1958, %v1942, %v1945
      %v1963 = vsel %vm1961, %v1951, 2102212464
      %v1964 = vsel %vm1960, %v1948, %v1963
      %v1965 = vsel %vm1959, %v1962, %v1964
      %v1966 = vsel %vm1958, %v1945, %v1948
      %v1967 = vsel %vm1961, %v1954, 920167782
      %v1968 = vsel %vm1960, %v1951, %v1967
      %v1969 = vsel %vm1959, %v1966, %v1968
      %v1970 = vsel %vm1958, %v1948, %v1951
      %v1971 = vsel %vm1961, %v1957, 1326507024
      %v1972 = vsel %vm1960, %v1954, %v1971
      %v1973 = vsel %vm1959, %v1970, %v1972
      %v1974 = vshll.u32 %v1934, 8
      %v1975 = vmul.u32.u64.compose %v1974, %v1973
      %v1976 = vextract.low.u32 %v1975
      %v1977 = vextract.high.u32 %v1975
      %v1978 = vmul.u32.u64.compose %v1974, %v1969
      %v1979 = vextract.low.u32 %v1978
      %v1980 = vextract.high.u32 %v1978
      %v1981 = vmul.u32 %v1974, %v1965
      %v1982 = vadd.s32 %v1977, %v1979
      %vm1983 = vc.u32 %v1977, %v1979
      %v1984 = vadd.s32 %v1980, 1
      %v1985 = vsel %vm1983, %v1984, %v1980
      %v1986 = vadd.s32 %v1981, %v1985
      %v1987 = vadd.s32 %v1986, 536870912
      %v1988 = vshrl.u32 %v1987, 30
      %v1989 = vshll.u32 %v1988, 30
      %v1990 = vsub.s32 %v1986, %v1989
      %vm1991 = vcmp.lt.s32.totalorder %v1990, 0
      %v1992 = vsub.s32 0, %v1990
      %v1993 = vsel %vm1991, %v1992, %v1990
      %v1994 = vclz %v1993
      %v1995 = vsub.s32 %v1994, 2
      %vm1996 = vcmp.gt.s32.totalorder 0, %v1995
      %v1997 = vsel %vm1996, 0, %v1995
      %v1998 = vsub.s32 32, %v1997
      %v1999 = vshll.u32 %v1990, %v1997
      %v2000 = vshrl.u32 %v1982, %v1998
      %v2001 = vor.u32 %v1999, %v2000
      %v2002 = vsub.s32 4294967266, %v1997
      %v2003 = vadd.s32 %v2002, 127
      %v2004 = vshll.u32 %v2003, 23
      %v2005 = vor.u32 4788187, %v2004
      %v2006 = vand.u32 2147483647, %v2005
      %v2008 = vcvt.s32.f32 %v2001
      %v2009 = vmul.f32 %v2008, %v2006
      %v2010 = vxor.u32 %v2009, 2147483648
      %v2011 = vsel %vm1928, %v2010, %v2009
      %v2012 = vsub.s32 4, %v1988
      %v2013 = vsel %vm1928, %v2012, %v1988
      %v2014 = vsel %vm1927, %v778, %v2011
      %v2015 = vsel %vm1927, 0, %v2013
      %v2016 = vcosq.f32.pop %v2014
      %v2017 = vsinq.f32.pop %v2014
      %vm2018 = vweird.f32 %v778
      %v2019 = vadd.s32 %v2015, 3
      %v2020 = vand.u32 %v2019, 3
      %vm2021 = vcmp.lt.s32.totalorder %v2020, 2
      %vm2022 = vcmp.eq.s32.totalorder %v2020, 0
      %v2023 = vxor.u32 %v2017, 2147483648
      %v2024 = vsel %vm2022, %v2016, %v2023
      %vm2025 = vcmp.eq.s32.totalorder %v2020, 2
      %v2026 = vxor.u32 %v2016, 2147483648
      %v2027 = vsel %vm2025, %v2026, %v2017
      %v2028 = vsel %vm2021, %v2024, %v2027
      %v2029 = vsel %vm2018, nan, %v2028
      %v2030 = vand.u32 2147483647, %v783
      %vm2031 = vcmp.le.f32.partialorder %v2030, 0.7853982
      %vm2032 = vcmp.lt.s32.totalorder %v783, 0
      %v2033 = vand.u32 %v783, 2139095040
      %v2034 = vshrl.u32 %v2033, 23
      %v2035 = vsub.s32 %v2034, 127
      %v2036 = vand.u32 2147483647, %v783
      %v2037 = vand.u32 %v2036, 8388607
      %v2038 = vor.u32 %v2037, 8388608
      %v2039 = vsub.s32 0, %v2038
      %v2040 = vadd.s32 %v2035, 1
      %vm2041 = vcmp.gt.s32.totalorder %v2040, 0
      %v2042 = vsel %vm2041, %v2040, 0
      %v2043 = vshrl.u32 %v2042, 5
      %v2044 = vand.u32 %v2042, 31
      %v2045 = vsub.s32 32, %v2044
      %v2046 = vshrl.u32 683565275, %v2045
      %v2047 = vshll.u32 683565275, %v2044
      %v2048 = vshrl.u32 2475754826, %v2045
      %v2049 = vor.u32 %v2047, %v2048
      %v2050 = vshll.u32 2475754826, %v2044
      %v2051 = vshrl.u32 2131351028, %v2045
      %v2052 = vor.u32 %v2050, %v2051
      %v2053 = vshll.u32 2131351028, %v2044
      %v2054 = vshrl.u32 2102212464, %v2045
      %v2055 = vor.u32 %v2053, %v2054
      %v2056 = vshll.u32 2102212464, %v2044
      %v2057 = vshrl.u32 920167782, %v2045
      %v2058 = vor.u32 %v2056, %v2057
      %v2059 = vshll.u32 920167782, %v2044
      %v2060 = vshrl.u32 1326507024, %v2045
      %v2061 = vor.u32 %v2059, %v2060
      %vm2062 = vcmp.lt.s32.totalorder %v2043, 1
      %vm2063 = vcmp.lt.s32.totalorder %v2043, 2
      %vm2064 = vcmp.lt.s32.totalorder %v2043, 3
      %vm2065 = vcmp.lt.s32.totalorder %v2043, 4
      %v2066 = vsel %vm2062, %v2046, %v2049
      %v2067 = vsel %vm2065, %v2055, 2102212464
      %v2068 = vsel %vm2064, %v2052, %v2067
      %v2069 = vsel %vm2063, %v2066, %v2068
      %v2070 = vsel %vm2062, %v2049, %v2052
      %v2071 = vsel %vm2065, %v2058, 920167782
      %v2072 = vsel %vm2064, %v2055, %v2071
      %v2073 = vsel %vm2063, %v2070, %v2072
      %v2074 = vsel %vm2062, %v2052, %v2055
      %v2075 = vsel %vm2065, %v2061, 1326507024
      %v2076 = vsel %vm2064, %v2058, %v2075
      %v2077 = vsel %vm2063, %v2074, %v2076
      %v2078 = vshll.u32 %v2038, 8
      %v2079 = vmul.u32.u64.compose %v2078, %v2077
      %v2080 = vextract.low.u32 %v2079
      %v2081 = vextract.high.u32 %v2079
      %v2082 = vmul.u32.u64.compose %v2078, %v2073
      %v2083 = vextract.low.u32 %v2082
      %v2084 = vextract.high.u32 %v2082
      %v2085 = vmul.u32 %v2078, %v2069
      %v2086 = vadd.s32 %v2081, %v2083
      %vm2087 = vc.u32 %v2081, %v2083
      %v2088 = vadd.s32 %v2084, 1
      %v2089 = vsel %vm2087, %v2088, %v2084
      %v2090 = vadd.s32 %v2085, %v2089
      %v2091 = vadd.s32 %v2090, 536870912
      %v2092 = vshrl.u32 %v2091, 30
      %v2093 = vshll.u32 %v2092, 30
      %v2094 = vsub.s32 %v2090, %v2093
      %vm2095 = vcmp.lt.s32.totalorder %v2094, 0
      %v2096 = vsub.s32 0, %v2094
      %v2097 = vsel %vm2095, %v2096, %v2094
      %v2098 = vclz %v2097
      %v2099 = vsub.s32 %v2098, 2
      %vm2100 = vcmp.gt.s32.totalorder 0, %v2099
      %v2101 = vsel %vm2100, 0, %v2099
      %v2102 = vsub.s32 32, %v2101
      %v2103 = vshll.u32 %v2094, %v2101
      %v2104 = vshrl.u32 %v2086, %v2102
      %v2105 = vor.u32 %v2103, %v2104
      %v2106 = vsub.s32 4294967266, %v2101
      %v2107 = vadd.s32 %v2106, 127
      %v2108 = vshll.u32 %v2107, 23
      %v2109 = vor.u32 4788187, %v2108
      %v2110 = vand.u32 2147483647, %v2109
      %v2112 = vcvt.s32.f32 %v2105
      %v2113 = vmul.f32 %v2112, %v2110
      %v2114 = vxor.u32 %v2113, 2147483648
      %v2115 = vsel %vm2032, %v2114, %v2113
      %v2116 = vsub.s32 4, %v2092
      %v2117 = vsel %vm2032, %v2116, %v2092
      %v2118 = vsel %vm2031, %v783, %v2115
      %v2119 = vsel %vm2031, 0, %v2117
      %v2120 = vcosq.f32.pop %v2118
      %v2121 = vsinq.f32.pop %v2118
      %vm2122 = vweird.f32 %v783
      %v2123 = vadd.s32 %v2119, 3
      %v2124 = vand.u32 %v2123, 3
      %vm2125 = vcmp.lt.s32.totalorder %v2124, 2
      %vm2126 = vcmp.eq.s32.totalorder %v2124, 0
      %v2127 = vxor.u32 %v2121, 2147483648
      %v2128 = vsel %vm2126, %v2120, %v2127
      %vm2129 = vcmp.eq.s32.totalorder %v2124, 2
      %v2130 = vxor.u32 %v2120, 2147483648
      %v2131 = vsel %vm2129, %v2130, %v2121
      %v2132 = vsel %vm2125, %v2128, %v2131
      %v2133 = vsel %vm2122, nan, %v2132
      %v2134 = vand.u32 2147483647, %v788
      %vm2135 = vcmp.le.f32.partialorder %v2134, 0.7853982
      %vm2136 = vcmp.lt.s32.totalorder %v788, 0
      %v2137 = vand.u32 %v788, 2139095040
      %v2138 = vshrl.u32 %v2137, 23
      %v2139 = vsub.s32 %v2138, 127
      %v2140 = vand.u32 2147483647, %v788
      %v2141 = vand.u32 %v2140, 8388607
      %v2142 = vor.u32 %v2141, 8388608
      %v2143 = vsub.s32 0, %v2142
      %v2144 = vadd.s32 %v2139, 1
      %vm2145 = vcmp.gt.s32.totalorder %v2144, 0
      %v2146 = vsel %vm2145, %v2144, 0
      %v2147 = vshrl.u32 %v2146, 5
      %v2148 = vand.u32 %v2146, 31
      %v2149 = vsub.s32 32, %v2148
      %v2150 = vshrl.u32 683565275, %v2149
      %v2151 = vshll.u32 683565275, %v2148
      %v2152 = vshrl.u32 2475754826, %v2149
      %v2153 = vor.u32 %v2151, %v2152
      %v2154 = vshll.u32 2475754826, %v2148
      %v2155 = vshrl.u32 2131351028, %v2149
      %v2156 = vor.u32 %v2154, %v2155
      %v2157 = vshll.u32 2131351028, %v2148
      %v2158 = vshrl.u32 2102212464, %v2149
      %v2159 = vor.u32 %v2157, %v2158
      %v2160 = vshll.u32 2102212464, %v2148
      %v2161 = vshrl.u32 920167782, %v2149
      %v2162 = vor.u32 %v2160, %v2161
      %v2163 = vshll.u32 920167782, %v2148
      %v2164 = vshrl.u32 1326507024, %v2149
      %v2165 = vor.u32 %v2163, %v2164
      %vm2166 = vcmp.lt.s32.totalorder %v2147, 1
      %vm2167 = vcmp.lt.s32.totalorder %v2147, 2
      %vm2168 = vcmp.lt.s32.totalorder %v2147, 3
      %vm2169 = vcmp.lt.s32.totalorder %v2147, 4
      %v2170 = vsel %vm2166, %v2150, %v2153
      %v2171 = vsel %vm2169, %v2159, 2102212464
      %v2172 = vsel %vm2168, %v2156, %v2171
      %v2173 = vsel %vm2167, %v2170, %v2172
      %v2174 = vsel %vm2166, %v2153, %v2156
      %v2175 = vsel %vm2169, %v2162, 920167782
      %v2176 = vsel %vm2168, %v2159, %v2175
      %v2177 = vsel %vm2167, %v2174, %v2176
      %v2178 = vsel %vm2166, %v2156, %v2159
      %v2179 = vsel %vm2169, %v2165, 1326507024
      %v2180 = vsel %vm2168, %v2162, %v2179
      %v2181 = vsel %vm2167, %v2178, %v2180
      %v2182 = vshll.u32 %v2142, 8
      %v2183 = vmul.u32.u64.compose %v2182, %v2181
      %v2184 = vextract.low.u32 %v2183
      %v2185 = vextract.high.u32 %v2183
      %v2186 = vmul.u32.u64.compose %v2182, %v2177
      %v2187 = vextract.low.u32 %v2186
      %v2188 = vextract.high.u32 %v2186
      %v2189 = vmul.u32 %v2182, %v2173
      %v2190 = vadd.s32 %v2185, %v2187
      %vm2191 = vc.u32 %v2185, %v2187
      %v2192 = vadd.s32 %v2188, 1
      %v2193 = vsel %vm2191, %v2192, %v2188
      %v2194 = vadd.s32 %v2189, %v2193
      %v2195 = vadd.s32 %v2194, 536870912
      %v2196 = vshrl.u32 %v2195, 30
      %v2197 = vshll.u32 %v2196, 30
      %v2198 = vsub.s32 %v2194, %v2197
      %vm2199 = vcmp.lt.s32.totalorder %v2198, 0
      %v2200 = vsub.s32 0, %v2198
      %v2201 = vsel %vm2199, %v2200, %v2198
      %v2202 = vclz %v2201
      %v2203 = vsub.s32 %v2202, 2
      %vm2204 = vcmp.gt.s32.totalorder 0, %v2203
      %v2205 = vsel %vm2204, 0, %v2203
      %v2206 = vsub.s32 32, %v2205
      %v2207 = vshll.u32 %v2198, %v2205
      %v2208 = vshrl.u32 %v2190, %v2206
      %v2209 = vor.u32 %v2207, %v2208
      %v2210 = vsub.s32 4294967266, %v2205
      %v2211 = vadd.s32 %v2210, 127
      %v2212 = vshll.u32 %v2211, 23
      %v2213 = vor.u32 4788187, %v2212
      %v2214 = vand.u32 2147483647, %v2213
      %v2216 = vcvt.s32.f32 %v2209
      %v2217 = vmul.f32 %v2216, %v2214
      %v2218 = vxor.u32 %v2217, 2147483648
      %v2219 = vsel %vm2136, %v2218, %v2217
      %v2220 = vsub.s32 4, %v2196
      %v2221 = vsel %vm2136, %v2220, %v2196
      %v2222 = vsel %vm2135, %v788, %v2219
      %v2223 = vsel %vm2135, 0, %v2221
      %v2224 = vcosq.f32.pop %v2222
      %v2225 = vsinq.f32.pop %v2222
      %vm2226 = vweird.f32 %v788
      %v2227 = vadd.s32 %v2223, 3
      %v2228 = vand.u32 %v2227, 3
      %vm2229 = vcmp.lt.s32.totalorder %v2228, 2
      %vm2230 = vcmp.eq.s32.totalorder %v2228, 0
      %v2231 = vxor.u32 %v2225, 2147483648
      %v2232 = vsel %vm2230, %v2224, %v2231
      %vm2233 = vcmp.eq.s32.totalorder %v2228, 2
      %v2234 = vxor.u32 %v2224, 2147483648
      %v2235 = vsel %vm2233, %v2234, %v2225
      %v2236 = vsel %vm2229, %v2232, %v2235
      %v2237 = vsel %vm2226, nan, %v2236
      %v2238 = vand.u32 2147483647, %v793
      %vm2239 = vcmp.le.f32.partialorder %v2238, 0.7853982
      %vm2240 = vcmp.lt.s32.totalorder %v793, 0
      %v2241 = vand.u32 %v793, 2139095040
      %v2242 = vshrl.u32 %v2241, 23
      %v2243 = vsub.s32 %v2242, 127
      %v2244 = vand.u32 2147483647, %v793
      %v2245 = vand.u32 %v2244, 8388607
      %v2246 = vor.u32 %v2245, 8388608
      %v2247 = vsub.s32 0, %v2246
      %v2248 = vadd.s32 %v2243, 1
      %vm2249 = vcmp.gt.s32.totalorder %v2248, 0
      %v2250 = vsel %vm2249, %v2248, 0
      %v2251 = vshrl.u32 %v2250, 5
      %v2252 = vand.u32 %v2250, 31
      %v2253 = vsub.s32 32, %v2252
      %v2254 = vshrl.u32 683565275, %v2253
      %v2255 = vshll.u32 683565275, %v2252
      %v2256 = vshrl.u32 2475754826, %v2253
      %v2257 = vor.u32 %v2255, %v2256
      %v2258 = vshll.u32 2475754826, %v2252
      %v2259 = vshrl.u32 2131351028, %v2253
      %v2260 = vor.u32 %v2258, %v2259
      %v2261 = vshll.u32 2131351028, %v2252
      %v2262 = vshrl.u32 2102212464, %v2253
      %v2263 = vor.u32 %v2261, %v2262
      %v2264 = vshll.u32 2102212464, %v2252
      %v2265 = vshrl.u32 920167782, %v2253
      %v2266 = vor.u32 %v2264, %v2265
      %v2267 = vshll.u32 920167782, %v2252
      %v2268 = vshrl.u32 1326507024, %v2253
      %v2269 = vor.u32 %v2267, %v2268
      %vm2270 = vcmp.lt.s32.totalorder %v2251, 1
      %vm2271 = vcmp.lt.s32.totalorder %v2251, 2
      %vm2272 = vcmp.lt.s32.totalorder %v2251, 3
      %vm2273 = vcmp.lt.s32.totalorder %v2251, 4
      %v2274 = vsel %vm2270, %v2254, %v2257
      %v2275 = vsel %vm2273, %v2263, 2102212464
      %v2276 = vsel %vm2272, %v2260, %v2275
      %v2277 = vsel %vm2271, %v2274, %v2276
      %v2278 = vsel %vm2270, %v2257, %v2260
      %v2279 = vsel %vm2273, %v2266, 920167782
      %v2280 = vsel %vm2272, %v2263, %v2279
      %v2281 = vsel %vm2271, %v2278, %v2280
      %v2282 = vsel %vm2270, %v2260, %v2263
      %v2283 = vsel %vm2273, %v2269, 1326507024
      %v2284 = vsel %vm2272, %v2266, %v2283
      %v2285 = vsel %vm2271, %v2282, %v2284
      %v2286 = vshll.u32 %v2246, 8
      %v2287 = vmul.u32.u64.compose %v2286, %v2285
      %v2288 = vextract.low.u32 %v2287
      %v2289 = vextract.high.u32 %v2287
      %v2290 = vmul.u32.u64.compose %v2286, %v2281
      %v2291 = vextract.low.u32 %v2290
      %v2292 = vextract.high.u32 %v2290
      %v2293 = vmul.u32 %v2286, %v2277
      %v2294 = vadd.s32 %v2289, %v2291
      %vm2295 = vc.u32 %v2289, %v2291
      %v2296 = vadd.s32 %v2292, 1
      %v2297 = vsel %vm2295, %v2296, %v2292
      %v2298 = vadd.s32 %v2293, %v2297
      %v2299 = vadd.s32 %v2298, 536870912
      %v2300 = vshrl.u32 %v2299, 30
      %v2301 = vshll.u32 %v2300, 30
      %v2302 = vsub.s32 %v2298, %v2301
      %vm2303 = vcmp.lt.s32.totalorder %v2302, 0
      %v2304 = vsub.s32 0, %v2302
      %v2305 = vsel %vm2303, %v2304, %v2302
      %v2306 = vclz %v2305
      %v2307 = vsub.s32 %v2306, 2
      %vm2308 = vcmp.gt.s32.totalorder 0, %v2307
      %v2309 = vsel %vm2308, 0, %v2307
      %v2310 = vsub.s32 32, %v2309
      %v2311 = vshll.u32 %v2302, %v2309
      %v2312 = vshrl.u32 %v2294, %v2310
      %v2313 = vor.u32 %v2311, %v2312
      %v2314 = vsub.s32 4294967266, %v2309
      %v2315 = vadd.s32 %v2314, 127
      %v2316 = vshll.u32 %v2315, 23
      %v2317 = vor.u32 4788187, %v2316
      %v2318 = vand.u32 2147483647, %v2317
      %v2320 = vcvt.s32.f32 %v2313
      %v2321 = vmul.f32 %v2320, %v2318
      %v2322 = vxor.u32 %v2321, 2147483648
      %v2323 = vsel %vm2240, %v2322, %v2321
      %v2324 = vsub.s32 4, %v2300
      %v2325 = vsel %vm2240, %v2324, %v2300
      %v2326 = vsel %vm2239, %v793, %v2323
      %v2327 = vsel %vm2239, 0, %v2325
      %v2328 = vcosq.f32.pop %v2326
      %v2329 = vsinq.f32.pop %v2326
      %vm2330 = vweird.f32 %v793
      %v2331 = vadd.s32 %v2327, 3
      %v2332 = vand.u32 %v2331, 3
      %vm2333 = vcmp.lt.s32.totalorder %v2332, 2
      %vm2334 = vcmp.eq.s32.totalorder %v2332, 0
      %v2335 = vxor.u32 %v2329, 2147483648
      %v2336 = vsel %vm2334, %v2328, %v2335
      %vm2337 = vcmp.eq.s32.totalorder %v2332, 2
      %v2338 = vxor.u32 %v2328, 2147483648
      %v2339 = vsel %vm2337, %v2338, %v2329
      %v2340 = vsel %vm2333, %v2336, %v2339
      %v2341 = vsel %vm2330, nan, %v2340
      %v2342 = vand.u32 2147483647, %v798
      %vm2343 = vcmp.le.f32.partialorder %v2342, 0.7853982
      %vm2344 = vcmp.lt.s32.totalorder %v798, 0
      %v2345 = vand.u32 %v798, 2139095040
      %v2346 = vshrl.u32 %v2345, 23
      %v2347 = vsub.s32 %v2346, 127
      %v2348 = vand.u32 2147483647, %v798
      %v2349 = vand.u32 %v2348, 8388607
      %v2350 = vor.u32 %v2349, 8388608
      %v2351 = vsub.s32 0, %v2350
      %v2352 = vadd.s32 %v2347, 1
      %vm2353 = vcmp.gt.s32.totalorder %v2352, 0
      %v2354 = vsel %vm2353, %v2352, 0
      %v2355 = vshrl.u32 %v2354, 5
      %v2356 = vand.u32 %v2354, 31
      %v2357 = vsub.s32 32, %v2356
      %v2358 = vshrl.u32 683565275, %v2357
      %v2359 = vshll.u32 683565275, %v2356
      %v2360 = vshrl.u32 2475754826, %v2357
      %v2361 = vor.u32 %v2359, %v2360
      %v2362 = vshll.u32 2475754826, %v2356
      %v2363 = vshrl.u32 2131351028, %v2357
      %v2364 = vor.u32 %v2362, %v2363
      %v2365 = vshll.u32 2131351028, %v2356
      %v2366 = vshrl.u32 2102212464, %v2357
      %v2367 = vor.u32 %v2365, %v2366
      %v2368 = vshll.u32 2102212464, %v2356
      %v2369 = vshrl.u32 920167782, %v2357
      %v2370 = vor.u32 %v2368, %v2369
      %v2371 = vshll.u32 920167782, %v2356
      %v2372 = vshrl.u32 1326507024, %v2357
      %v2373 = vor.u32 %v2371, %v2372
      %vm2374 = vcmp.lt.s32.totalorder %v2355, 1
      %vm2375 = vcmp.lt.s32.totalorder %v2355, 2
      %vm2376 = vcmp.lt.s32.totalorder %v2355, 3
      %vm2377 = vcmp.lt.s32.totalorder %v2355, 4
      %v2378 = vsel %vm2374, %v2358, %v2361
      %v2379 = vsel %vm2377, %v2367, 2102212464
      %v2380 = vsel %vm2376, %v2364, %v2379
      %v2381 = vsel %vm2375, %v2378, %v2380
      %v2382 = vsel %vm2374, %v2361, %v2364
      %v2383 = vsel %vm2377, %v2370, 920167782
      %v2384 = vsel %vm2376, %v2367, %v2383
      %v2385 = vsel %vm2375, %v2382, %v2384
      %v2386 = vsel %vm2374, %v2364, %v2367
      %v2387 = vsel %vm2377, %v2373, 1326507024
      %v2388 = vsel %vm2376, %v2370, %v2387
      %v2389 = vsel %vm2375, %v2386, %v2388
      %v2390 = vshll.u32 %v2350, 8
      %v2391 = vmul.u32.u64.compose %v2390, %v2389
      %v2392 = vextract.low.u32 %v2391
      %v2393 = vextract.high.u32 %v2391
      %v2394 = vmul.u32.u64.compose %v2390, %v2385
      %v2395 = vextract.low.u32 %v2394
      %v2396 = vextract.high.u32 %v2394
      %v2397 = vmul.u32 %v2390, %v2381
      %v2398 = vadd.s32 %v2393, %v2395
      %vm2399 = vc.u32 %v2393, %v2395
      %v2400 = vadd.s32 %v2396, 1
      %v2401 = vsel %vm2399, %v2400, %v2396
      %v2402 = vadd.s32 %v2397, %v2401
      %v2403 = vadd.s32 %v2402, 536870912
      %v2404 = vshrl.u32 %v2403, 30
      %v2405 = vshll.u32 %v2404, 30
      %v2406 = vsub.s32 %v2402, %v2405
      %vm2407 = vcmp.lt.s32.totalorder %v2406, 0
      %v2408 = vsub.s32 0, %v2406
      %v2409 = vsel %vm2407, %v2408, %v2406
      %v2410 = vclz %v2409
      %v2411 = vsub.s32 %v2410, 2
      %vm2412 = vcmp.gt.s32.totalorder 0, %v2411
      %v2413 = vsel %vm2412, 0, %v2411
      %v2414 = vsub.s32 32, %v2413
      %v2415 = vshll.u32 %v2406, %v2413
      %v2416 = vshrl.u32 %v2398, %v2414
      %v2417 = vor.u32 %v2415, %v2416
      %v2418 = vsub.s32 4294967266, %v2413
      %v2419 = vadd.s32 %v2418, 127
      %v2420 = vshll.u32 %v2419, 23
      %v2421 = vor.u32 4788187, %v2420
      %v2422 = vand.u32 2147483647, %v2421
      %v2424 = vcvt.s32.f32 %v2417
      %v2425 = vmul.f32 %v2424, %v2422
      %v2426 = vxor.u32 %v2425, 2147483648
      %v2427 = vsel %vm2344, %v2426, %v2425
      %v2428 = vsub.s32 4, %v2404
      %v2429 = vsel %vm2344, %v2428, %v2404
      %v2430 = vsel %vm2343, %v798, %v2427
      %v2431 = vsel %vm2343, 0, %v2429
      %v2432 = vcosq.f32.pop %v2430
      %v2433 = vsinq.f32.pop %v2430
      %vm2434 = vweird.f32 %v798
      %v2435 = vadd.s32 %v2431, 3
      %v2436 = vand.u32 %v2435, 3
      %vm2437 = vcmp.lt.s32.totalorder %v2436, 2
      %vm2438 = vcmp.eq.s32.totalorder %v2436, 0
      %v2439 = vxor.u32 %v2433, 2147483648
      %v2440 = vsel %vm2438, %v2432, %v2439
      %vm2441 = vcmp.eq.s32.totalorder %v2436, 2
      %v2442 = vxor.u32 %v2432, 2147483648
      %v2443 = vsel %vm2441, %v2442, %v2433
      %v2444 = vsel %vm2437, %v2440, %v2443
      %v2445 = vsel %vm2434, nan, %v2444
      %v2446 = vand.u32 2147483647, %v803
      %vm2447 = vcmp.le.f32.partialorder %v2446, 0.7853982
      %vm2448 = vcmp.lt.s32.totalorder %v803, 0
      %v2449 = vand.u32 %v803, 2139095040
      %v2450 = vshrl.u32 %v2449, 23
      %v2451 = vsub.s32 %v2450, 127
      %v2452 = vand.u32 2147483647, %v803
      %v2453 = vand.u32 %v2452, 8388607
      %v2454 = vor.u32 %v2453, 8388608
      %v2455 = vsub.s32 0, %v2454
      %v2456 = vadd.s32 %v2451, 1
      %vm2457 = vcmp.gt.s32.totalorder %v2456, 0
      %v2458 = vsel %vm2457, %v2456, 0
      %v2459 = vshrl.u32 %v2458, 5
      %v2460 = vand.u32 %v2458, 31
      %v2461 = vsub.s32 32, %v2460
      %v2462 = vshrl.u32 683565275, %v2461
      %v2463 = vshll.u32 683565275, %v2460
      %v2464 = vshrl.u32 2475754826, %v2461
      %v2465 = vor.u32 %v2463, %v2464
      %v2466 = vshll.u32 2475754826, %v2460
      %v2467 = vshrl.u32 2131351028, %v2461
      %v2468 = vor.u32 %v2466, %v2467
      %v2469 = vshll.u32 2131351028, %v2460
      %v2470 = vshrl.u32 2102212464, %v2461
      %v2471 = vor.u32 %v2469, %v2470
      %v2472 = vshll.u32 2102212464, %v2460
      %v2473 = vshrl.u32 920167782, %v2461
      %v2474 = vor.u32 %v2472, %v2473
      %v2475 = vshll.u32 920167782, %v2460
      %v2476 = vshrl.u32 1326507024, %v2461
      %v2477 = vor.u32 %v2475, %v2476
      %vm2478 = vcmp.lt.s32.totalorder %v2459, 1
      %vm2479 = vcmp.lt.s32.totalorder %v2459, 2
      %vm2480 = vcmp.lt.s32.totalorder %v2459, 3
      %vm2481 = vcmp.lt.s32.totalorder %v2459, 4
      %v2482 = vsel %vm2478, %v2462, %v2465
      %v2483 = vsel %vm2481, %v2471, 2102212464
      %v2484 = vsel %vm2480, %v2468, %v2483
      %v2485 = vsel %vm2479, %v2482, %v2484
      %v2486 = vsel %vm2478, %v2465, %v2468
      %v2487 = vsel %vm2481, %v2474, 920167782
      %v2488 = vsel %vm2480, %v2471, %v2487
      %v2489 = vsel %vm2479, %v2486, %v2488
      %v2490 = vsel %vm2478, %v2468, %v2471
      %v2491 = vsel %vm2481, %v2477, 1326507024
      %v2492 = vsel %vm2480, %v2474, %v2491
      %v2493 = vsel %vm2479, %v2490, %v2492
      %v2494 = vshll.u32 %v2454, 8
      %v2495 = vmul.u32.u64.compose %v2494, %v2493
      %v2496 = vextract.low.u32 %v2495
      %v2497 = vextract.high.u32 %v2495
      %v2498 = vmul.u32.u64.compose %v2494, %v2489
      %v2499 = vextract.low.u32 %v2498
      %v2500 = vextract.high.u32 %v2498
      %v2501 = vmul.u32 %v2494, %v2485
      %v2502 = vadd.s32 %v2497, %v2499
      %vm2503 = vc.u32 %v2497, %v2499
      %v2504 = vadd.s32 %v2500, 1
      %v2505 = vsel %vm2503, %v2504, %v2500
      %v2506 = vadd.s32 %v2501, %v2505
      %v2507 = vadd.s32 %v2506, 536870912
      %v2508 = vshrl.u32 %v2507, 30
      %v2509 = vshll.u32 %v2508, 30
      %v2510 = vsub.s32 %v2506, %v2509
      %vm2511 = vcmp.lt.s32.totalorder %v2510, 0
      %v2512 = vsub.s32 0, %v2510
      %v2513 = vsel %vm2511, %v2512, %v2510
      %v2514 = vclz %v2513
      %v2515 = vsub.s32 %v2514, 2
      %vm2516 = vcmp.gt.s32.totalorder 0, %v2515
      %v2517 = vsel %vm2516, 0, %v2515
      %v2518 = vsub.s32 32, %v2517
      %v2519 = vshll.u32 %v2510, %v2517
      %v2520 = vshrl.u32 %v2502, %v2518
      %v2521 = vor.u32 %v2519, %v2520
      %v2522 = vsub.s32 4294967266, %v2517
      %v2523 = vadd.s32 %v2522, 127
      %v2524 = vshll.u32 %v2523, 23
      %v2525 = vor.u32 4788187, %v2524
      %v2526 = vand.u32 2147483647, %v2525
      %v2528 = vcvt.s32.f32 %v2521
      %v2529 = vmul.f32 %v2528, %v2526
      %v2530 = vxor.u32 %v2529, 2147483648
      %v2531 = vsel %vm2448, %v2530, %v2529
      %v2532 = vsub.s32 4, %v2508
      %v2533 = vsel %vm2448, %v2532, %v2508
      %v2534 = vsel %vm2447, %v803, %v2531
      %v2535 = vsel %vm2447, 0, %v2533
      %v2536 = vcosq.f32.pop %v2534
      %v2537 = vsinq.f32.pop %v2534
      %vm2538 = vweird.f32 %v803
      %v2539 = vadd.s32 %v2535, 3
      %v2540 = vand.u32 %v2539, 3
      %vm2541 = vcmp.lt.s32.totalorder %v2540, 2
      %vm2542 = vcmp.eq.s32.totalorder %v2540, 0
      %v2543 = vxor.u32 %v2537, 2147483648
      %v2544 = vsel %vm2542, %v2536, %v2543
      %vm2545 = vcmp.eq.s32.totalorder %v2540, 2
      %v2546 = vxor.u32 %v2536, 2147483648
      %v2547 = vsel %vm2545, %v2546, %v2537
      %v2548 = vsel %vm2541, %v2544, %v2547
      %v2549 = vsel %vm2538, nan, %v2548
      %v2550 = vand.u32 2147483647, %v808
      %vm2551 = vcmp.le.f32.partialorder %v2550, 0.7853982
      %vm2552 = vcmp.lt.s32.totalorder %v808, 0
      %v2553 = vand.u32 %v808, 2139095040
      %v2554 = vshrl.u32 %v2553, 23
      %v2555 = vsub.s32 %v2554, 127
      %v2556 = vand.u32 2147483647, %v808
      %v2557 = vand.u32 %v2556, 8388607
      %v2558 = vor.u32 %v2557, 8388608
      %v2559 = vsub.s32 0, %v2558
      %v2560 = vadd.s32 %v2555, 1
      %vm2561 = vcmp.gt.s32.totalorder %v2560, 0
      %v2562 = vsel %vm2561, %v2560, 0
      %v2563 = vshrl.u32 %v2562, 5
      %v2564 = vand.u32 %v2562, 31
      %v2565 = vsub.s32 32, %v2564
      %v2566 = vshrl.u32 683565275, %v2565
      %v2567 = vshll.u32 683565275, %v2564
      %v2568 = vshrl.u32 2475754826, %v2565
      %v2569 = vor.u32 %v2567, %v2568
      %v2570 = vshll.u32 2475754826, %v2564
      %v2571 = vshrl.u32 2131351028, %v2565
      %v2572 = vor.u32 %v2570, %v2571
      %v2573 = vshll.u32 2131351028, %v2564
      %v2574 = vshrl.u32 2102212464, %v2565
      %v2575 = vor.u32 %v2573, %v2574
      %v2576 = vshll.u32 2102212464, %v2564
      %v2577 = vshrl.u32 920167782, %v2565
      %v2578 = vor.u32 %v2576, %v2577
      %v2579 = vshll.u32 920167782, %v2564
      %v2580 = vshrl.u32 1326507024, %v2565
      %v2581 = vor.u32 %v2579, %v2580
      %vm2582 = vcmp.lt.s32.totalorder %v2563, 1
      %vm2583 = vcmp.lt.s32.totalorder %v2563, 2
      %vm2584 = vcmp.lt.s32.totalorder %v2563, 3
      %vm2585 = vcmp.lt.s32.totalorder %v2563, 4
      %v2586 = vsel %vm2582, %v2566, %v2569
      %v2587 = vsel %vm2585, %v2575, 2102212464
      %v2588 = vsel %vm2584, %v2572, %v2587
      %v2589 = vsel %vm2583, %v2586, %v2588
      %v2590 = vsel %vm2582, %v2569, %v2572
      %v2591 = vsel %vm2585, %v2578, 920167782
      %v2592 = vsel %vm2584, %v2575, %v2591
      %v2593 = vsel %vm2583, %v2590, %v2592
      %v2594 = vsel %vm2582, %v2572, %v2575
      %v2595 = vsel %vm2585, %v2581, 1326507024
      %v2596 = vsel %vm2584, %v2578, %v2595
      %v2597 = vsel %vm2583, %v2594, %v2596
      %v2598 = vshll.u32 %v2558, 8
      %v2599 = vmul.u32.u64.compose %v2598, %v2597
      %v2600 = vextract.low.u32 %v2599
      %v2601 = vextract.high.u32 %v2599
      %v2602 = vmul.u32.u64.compose %v2598, %v2593
      %v2603 = vextract.low.u32 %v2602
      %v2604 = vextract.high.u32 %v2602
      %v2605 = vmul.u32 %v2598, %v2589
      %v2606 = vadd.s32 %v2601, %v2603
      %vm2607 = vc.u32 %v2601, %v2603
      %v2608 = vadd.s32 %v2604, 1
      %v2609 = vsel %vm2607, %v2608, %v2604
      %v2610 = vadd.s32 %v2605, %v2609
      %v2611 = vadd.s32 %v2610, 536870912
      %v2612 = vshrl.u32 %v2611, 30
      %v2613 = vshll.u32 %v2612, 30
      %v2614 = vsub.s32 %v2610, %v2613
      %vm2615 = vcmp.lt.s32.totalorder %v2614, 0
      %v2616 = vsub.s32 0, %v2614
      %v2617 = vsel %vm2615, %v2616, %v2614
      %v2618 = vclz %v2617
      %v2619 = vsub.s32 %v2618, 2
      %vm2620 = vcmp.gt.s32.totalorder 0, %v2619
      %v2621 = vsel %vm2620, 0, %v2619
      %v2622 = vsub.s32 32, %v2621
      %v2623 = vshll.u32 %v2614, %v2621
      %v2624 = vshrl.u32 %v2606, %v2622
      %v2625 = vor.u32 %v2623, %v2624
      %v2626 = vsub.s32 4294967266, %v2621
      %v2627 = vadd.s32 %v2626, 127
      %v2628 = vshll.u32 %v2627, 23
      %v2629 = vor.u32 4788187, %v2628
      %v2630 = vand.u32 2147483647, %v2629
      %v2632 = vcvt.s32.f32 %v2625
      %v2633 = vmul.f32 %v2632, %v2630
      %v2634 = vxor.u32 %v2633, 2147483648
      %v2635 = vsel %vm2552, %v2634, %v2633
      %v2636 = vsub.s32 4, %v2612
      %v2637 = vsel %vm2552, %v2636, %v2612
      %v2638 = vsel %vm2551, %v808, %v2635
      %v2639 = vsel %vm2551, 0, %v2637
      %v2640 = vcosq.f32.pop %v2638
      %v2641 = vsinq.f32.pop %v2638
      %vm2642 = vweird.f32 %v808
      %v2643 = vadd.s32 %v2639, 3
      %v2644 = vand.u32 %v2643, 3
      %vm2645 = vcmp.lt.s32.totalorder %v2644, 2
      %vm2646 = vcmp.eq.s32.totalorder %v2644, 0
      %v2647 = vxor.u32 %v2641, 2147483648
      %v2648 = vsel %vm2646, %v2640, %v2647
      %vm2649 = vcmp.eq.s32.totalorder %v2644, 2
      %v2650 = vxor.u32 %v2640, 2147483648
      %v2651 = vsel %vm2649, %v2650, %v2641
      %v2652 = vsel %vm2645, %v2648, %v2651
      %v2653 = vsel %vm2642, nan, %v2652
      %v2654 = vand.u32 2147483647, %v813
      %vm2655 = vcmp.le.f32.partialorder %v2654, 0.7853982
      %vm2656 = vcmp.lt.s32.totalorder %v813, 0
      %v2657 = vand.u32 %v813, 2139095040
      %v2658 = vshrl.u32 %v2657, 23
      %v2659 = vsub.s32 %v2658, 127
      %v2660 = vand.u32 2147483647, %v813
      %v2661 = vand.u32 %v2660, 8388607
      %v2662 = vor.u32 %v2661, 8388608
      %v2663 = vsub.s32 0, %v2662
      %v2664 = vadd.s32 %v2659, 1
      %vm2665 = vcmp.gt.s32.totalorder %v2664, 0
      %v2666 = vsel %vm2665, %v2664, 0
      %v2667 = vshrl.u32 %v2666, 5
      %v2668 = vand.u32 %v2666, 31
      %v2669 = vsub.s32 32, %v2668
      %v2670 = vshrl.u32 683565275, %v2669
      %v2671 = vshll.u32 683565275, %v2668
      %v2672 = vshrl.u32 2475754826, %v2669
      %v2673 = vor.u32 %v2671, %v2672
      %v2674 = vshll.u32 2475754826, %v2668
      %v2675 = vshrl.u32 2131351028, %v2669
      %v2676 = vor.u32 %v2674, %v2675
      %v2677 = vshll.u32 2131351028, %v2668
      %v2678 = vshrl.u32 2102212464, %v2669
      %v2679 = vor.u32 %v2677, %v2678
      %v2680 = vshll.u32 2102212464, %v2668
      %v2681 = vshrl.u32 920167782, %v2669
      %v2682 = vor.u32 %v2680, %v2681
      %v2683 = vshll.u32 920167782, %v2668
      %v2684 = vshrl.u32 1326507024, %v2669
      %v2685 = vor.u32 %v2683, %v2684
      %vm2686 = vcmp.lt.s32.totalorder %v2667, 1
      %vm2687 = vcmp.lt.s32.totalorder %v2667, 2
      %vm2688 = vcmp.lt.s32.totalorder %v2667, 3
      %vm2689 = vcmp.lt.s32.totalorder %v2667, 4
      %v2690 = vsel %vm2686, %v2670, %v2673
      %v2691 = vsel %vm2689, %v2679, 2102212464
      %v2692 = vsel %vm2688, %v2676, %v2691
      %v2693 = vsel %vm2687, %v2690, %v2692
      %v2694 = vsel %vm2686, %v2673, %v2676
      %v2695 = vsel %vm2689, %v2682, 920167782
      %v2696 = vsel %vm2688, %v2679, %v2695
      %v2697 = vsel %vm2687, %v2694, %v2696
      %v2698 = vsel %vm2686, %v2676, %v2679
      %v2699 = vsel %vm2689, %v2685, 1326507024
      %v2700 = vsel %vm2688, %v2682, %v2699
      %v2701 = vsel %vm2687, %v2698, %v2700
      %v2702 = vshll.u32 %v2662, 8
      %v2703 = vmul.u32.u64.compose %v2702, %v2701
      %v2704 = vextract.low.u32 %v2703
      %v2705 = vextract.high.u32 %v2703
      %v2706 = vmul.u32.u64.compose %v2702, %v2697
      %v2707 = vextract.low.u32 %v2706
      %v2708 = vextract.high.u32 %v2706
      %v2709 = vmul.u32 %v2702, %v2693
      %v2710 = vadd.s32 %v2705, %v2707
      %vm2711 = vc.u32 %v2705, %v2707
      %v2712 = vadd.s32 %v2708, 1
      %v2713 = vsel %vm2711, %v2712, %v2708
      %v2714 = vadd.s32 %v2709, %v2713
      %v2715 = vadd.s32 %v2714, 536870912
      %v2716 = vshrl.u32 %v2715, 30
      %v2717 = vshll.u32 %v2716, 30
      %v2718 = vsub.s32 %v2714, %v2717
      %vm2719 = vcmp.lt.s32.totalorder %v2718, 0
      %v2720 = vsub.s32 0, %v2718
      %v2721 = vsel %vm2719, %v2720, %v2718
      %v2722 = vclz %v2721
      %v2723 = vsub.s32 %v2722, 2
      %vm2724 = vcmp.gt.s32.totalorder 0, %v2723
      %v2725 = vsel %vm2724, 0, %v2723
      %v2726 = vsub.s32 32, %v2725
      %v2727 = vshll.u32 %v2718, %v2725
      %v2728 = vshrl.u32 %v2710, %v2726
      %v2729 = vor.u32 %v2727, %v2728
      %v2730 = vsub.s32 4294967266, %v2725
      %v2731 = vadd.s32 %v2730, 127
      %v2732 = vshll.u32 %v2731, 23
      %v2733 = vor.u32 4788187, %v2732
      %v2734 = vand.u32 2147483647, %v2733
      %v2736 = vcvt.s32.f32 %v2729
      %v2737 = vmul.f32 %v2736, %v2734
      %v2738 = vxor.u32 %v2737, 2147483648
      %v2739 = vsel %vm2656, %v2738, %v2737
      %v2740 = vsub.s32 4, %v2716
      %v2741 = vsel %vm2656, %v2740, %v2716
      %v2742 = vsel %vm2655, %v813, %v2739
      %v2743 = vsel %vm2655, 0, %v2741
      %v2744 = vcosq.f32.pop %v2742
      %v2745 = vsinq.f32.pop %v2742
      %vm2746 = vweird.f32 %v813
      %v2747 = vadd.s32 %v2743, 3
      %v2748 = vand.u32 %v2747, 3
      %vm2749 = vcmp.lt.s32.totalorder %v2748, 2
      %vm2750 = vcmp.eq.s32.totalorder %v2748, 0
      %v2751 = vxor.u32 %v2745, 2147483648
      %v2752 = vsel %vm2750, %v2744, %v2751
      %vm2753 = vcmp.eq.s32.totalorder %v2748, 2
      %v2754 = vxor.u32 %v2744, 2147483648
      %v2755 = vsel %vm2753, %v2754, %v2745
      %v2756 = vsel %vm2749, %v2752, %v2755
      %v2757 = vsel %vm2746, nan, %v2756
      %v2758 = vand.u32 2147483647, %v818
      %vm2759 = vcmp.le.f32.partialorder %v2758, 0.7853982
      %vm2760 = vcmp.lt.s32.totalorder %v818, 0
      %v2761 = vand.u32 %v818, 2139095040
      %v2762 = vshrl.u32 %v2761, 23
      %v2763 = vsub.s32 %v2762, 127
      %v2764 = vand.u32 2147483647, %v818
      %v2765 = vand.u32 %v2764, 8388607
      %v2766 = vor.u32 %v2765, 8388608
      %v2767 = vsub.s32 0, %v2766
      %v2768 = vadd.s32 %v2763, 1
      %vm2769 = vcmp.gt.s32.totalorder %v2768, 0
      %v2770 = vsel %vm2769, %v2768, 0
      %v2771 = vshrl.u32 %v2770, 5
      %v2772 = vand.u32 %v2770, 31
      %v2773 = vsub.s32 32, %v2772
      %v2774 = vshrl.u32 683565275, %v2773
      %v2775 = vshll.u32 683565275, %v2772
      %v2776 = vshrl.u32 2475754826, %v2773
      %v2777 = vor.u32 %v2775, %v2776
      %v2778 = vshll.u32 2475754826, %v2772
      %v2779 = vshrl.u32 2131351028, %v2773
      %v2780 = vor.u32 %v2778, %v2779
      %v2781 = vshll.u32 2131351028, %v2772
      %v2782 = vshrl.u32 2102212464, %v2773
      %v2783 = vor.u32 %v2781, %v2782
      %v2784 = vshll.u32 2102212464, %v2772
      %v2785 = vshrl.u32 920167782, %v2773
      %v2786 = vor.u32 %v2784, %v2785
      %v2787 = vshll.u32 920167782, %v2772
      %v2788 = vshrl.u32 1326507024, %v2773
      %v2789 = vor.u32 %v2787, %v2788
      %vm2790 = vcmp.lt.s32.totalorder %v2771, 1
      %vm2791 = vcmp.lt.s32.totalorder %v2771, 2
      %vm2792 = vcmp.lt.s32.totalorder %v2771, 3
      %vm2793 = vcmp.lt.s32.totalorder %v2771, 4
      %v2794 = vsel %vm2790, %v2774, %v2777
      %v2795 = vsel %vm2793, %v2783, 2102212464
      %v2796 = vsel %vm2792, %v2780, %v2795
      %v2797 = vsel %vm2791, %v2794, %v2796
      %v2798 = vsel %vm2790, %v2777, %v2780
      %v2799 = vsel %vm2793, %v2786, 920167782
      %v2800 = vsel %vm2792, %v2783, %v2799
      %v2801 = vsel %vm2791, %v2798, %v2800
      %v2802 = vsel %vm2790, %v2780, %v2783
      %v2803 = vsel %vm2793, %v2789, 1326507024
      %v2804 = vsel %vm2792, %v2786, %v2803
      %v2805 = vsel %vm2791, %v2802, %v2804
      %v2806 = vshll.u32 %v2766, 8
      %v2807 = vmul.u32.u64.compose %v2806, %v2805
      %v2808 = vextract.low.u32 %v2807
      %v2809 = vextract.high.u32 %v2807
      %v2810 = vmul.u32.u64.compose %v2806, %v2801
      %v2811 = vextract.low.u32 %v2810
      %v2812 = vextract.high.u32 %v2810
      %v2813 = vmul.u32 %v2806, %v2797
      %v2814 = vadd.s32 %v2809, %v2811
      %vm2815 = vc.u32 %v2809, %v2811
      %v2816 = vadd.s32 %v2812, 1
      %v2817 = vsel %vm2815, %v2816, %v2812
      %v2818 = vadd.s32 %v2813, %v2817
      %v2819 = vadd.s32 %v2818, 536870912
      %v2820 = vshrl.u32 %v2819, 30
      %v2821 = vshll.u32 %v2820, 30
      %v2822 = vsub.s32 %v2818, %v2821
      %vm2823 = vcmp.lt.s32.totalorder %v2822, 0
      %v2824 = vsub.s32 0, %v2822
      %v2825 = vsel %vm2823, %v2824, %v2822
      %v2826 = vclz %v2825
      %v2827 = vsub.s32 %v2826, 2
      %vm2828 = vcmp.gt.s32.totalorder 0, %v2827
      %v2829 = vsel %vm2828, 0, %v2827
      %v2830 = vsub.s32 32, %v2829
      %v2831 = vshll.u32 %v2822, %v2829
      %v2832 = vshrl.u32 %v2814, %v2830
      %v2833 = vor.u32 %v2831, %v2832
      %v2834 = vsub.s32 4294967266, %v2829
      %v2835 = vadd.s32 %v2834, 127
      %v2836 = vshll.u32 %v2835, 23
      %v2837 = vor.u32 4788187, %v2836
      %v2838 = vand.u32 2147483647, %v2837
      %v2840 = vcvt.s32.f32 %v2833
      %v2841 = vmul.f32 %v2840, %v2838
      %v2842 = vxor.u32 %v2841, 2147483648
      %v2843 = vsel %vm2760, %v2842, %v2841
      %v2844 = vsub.s32 4, %v2820
      %v2845 = vsel %vm2760, %v2844, %v2820
      %v2846 = vsel %vm2759, %v818, %v2843
      %v2847 = vsel %vm2759, 0, %v2845
      %v2848 = vcosq.f32.pop %v2846
      %v2849 = vsinq.f32.pop %v2846
      %vm2850 = vweird.f32 %v818
      %v2851 = vadd.s32 %v2847, 3
      %v2852 = vand.u32 %v2851, 3
      %vm2853 = vcmp.lt.s32.totalorder %v2852, 2
      %vm2854 = vcmp.eq.s32.totalorder %v2852, 0
      %v2855 = vxor.u32 %v2849, 2147483648
      %v2856 = vsel %vm2854, %v2848, %v2855
      %vm2857 = vcmp.eq.s32.totalorder %v2852, 2
      %v2858 = vxor.u32 %v2848, 2147483648
      %v2859 = vsel %vm2857, %v2858, %v2849
      %v2860 = vsel %vm2853, %v2856, %v2859
      %v2861 = vsel %vm2850, nan, %v2860
      %v2862 = vand.u32 2147483647, %v823
      %vm2863 = vcmp.le.f32.partialorder %v2862, 0.7853982
      %vm2864 = vcmp.lt.s32.totalorder %v823, 0
      %v2865 = vand.u32 %v823, 2139095040
      %v2866 = vshrl.u32 %v2865, 23
      %v2867 = vsub.s32 %v2866, 127
      %v2868 = vand.u32 2147483647, %v823
      %v2869 = vand.u32 %v2868, 8388607
      %v2870 = vor.u32 %v2869, 8388608
      %v2871 = vsub.s32 0, %v2870
      %v2872 = vadd.s32 %v2867, 1
      %vm2873 = vcmp.gt.s32.totalorder %v2872, 0
      %v2874 = vsel %vm2873, %v2872, 0
      %v2875 = vshrl.u32 %v2874, 5
      %v2876 = vand.u32 %v2874, 31
      %v2877 = vsub.s32 32, %v2876
      %v2878 = vshrl.u32 683565275, %v2877
      %v2879 = vshll.u32 683565275, %v2876
      %v2880 = vshrl.u32 2475754826, %v2877
      %v2881 = vor.u32 %v2879, %v2880
      %v2882 = vshll.u32 2475754826, %v2876
      %v2883 = vshrl.u32 2131351028, %v2877
      %v2884 = vor.u32 %v2882, %v2883
      %v2885 = vshll.u32 2131351028, %v2876
      %v2886 = vshrl.u32 2102212464, %v2877
      %v2887 = vor.u32 %v2885, %v2886
      %v2888 = vshll.u32 2102212464, %v2876
      %v2889 = vshrl.u32 920167782, %v2877
      %v2890 = vor.u32 %v2888, %v2889
      %v2891 = vshll.u32 920167782, %v2876
      %v2892 = vshrl.u32 1326507024, %v2877
      %v2893 = vor.u32 %v2891, %v2892
      %vm2894 = vcmp.lt.s32.totalorder %v2875, 1
      %vm2895 = vcmp.lt.s32.totalorder %v2875, 2
      %vm2896 = vcmp.lt.s32.totalorder %v2875, 3
      %vm2897 = vcmp.lt.s32.totalorder %v2875, 4
      %v2898 = vsel %vm2894, %v2878, %v2881
      %v2899 = vsel %vm2897, %v2887, 2102212464
      %v2900 = vsel %vm2896, %v2884, %v2899
      %v2901 = vsel %vm2895, %v2898, %v2900
      %v2902 = vsel %vm2894, %v2881, %v2884
      %v2903 = vsel %vm2897, %v2890, 920167782
      %v2904 = vsel %vm2896, %v2887, %v2903
      %v2905 = vsel %vm2895, %v2902, %v2904
      %v2906 = vsel %vm2894, %v2884, %v2887
      %v2907 = vsel %vm2897, %v2893, 1326507024
      %v2908 = vsel %vm2896, %v2890, %v2907
      %v2909 = vsel %vm2895, %v2906, %v2908
      %v2910 = vshll.u32 %v2870, 8
      %v2911 = vmul.u32.u64.compose %v2910, %v2909
      %v2912 = vextract.low.u32 %v2911
      %v2913 = vextract.high.u32 %v2911
      %v2914 = vmul.u32.u64.compose %v2910, %v2905
      %v2915 = vextract.low.u32 %v2914
      %v2916 = vextract.high.u32 %v2914
      %v2917 = vmul.u32 %v2910, %v2901
      %v2918 = vadd.s32 %v2913, %v2915
      %vm2919 = vc.u32 %v2913, %v2915
      %v2920 = vadd.s32 %v2916, 1
      %v2921 = vsel %vm2919, %v2920, %v2916
      %v2922 = vadd.s32 %v2917, %v2921
      %v2923 = vadd.s32 %v2922, 536870912
      %v2924 = vshrl.u32 %v2923, 30
      %v2925 = vshll.u32 %v2924, 30
      %v2926 = vsub.s32 %v2922, %v2925
      %vm2927 = vcmp.lt.s32.totalorder %v2926, 0
      %v2928 = vsub.s32 0, %v2926
      %v2929 = vsel %vm2927, %v2928, %v2926
      %v2930 = vclz %v2929
      %v2931 = vsub.s32 %v2930, 2
      %vm2932 = vcmp.gt.s32.totalorder 0, %v2931
      %v2933 = vsel %vm2932, 0, %v2931
      %v2934 = vsub.s32 32, %v2933
      %v2935 = vshll.u32 %v2926, %v2933
      %v2936 = vshrl.u32 %v2918, %v2934
      %v2937 = vor.u32 %v2935, %v2936
      %v2938 = vsub.s32 4294967266, %v2933
      %v2939 = vadd.s32 %v2938, 127
      %v2940 = vshll.u32 %v2939, 23
      %v2941 = vor.u32 4788187, %v2940
      %v2942 = vand.u32 2147483647, %v2941
      %v2944 = vcvt.s32.f32 %v2937
      %v2945 = vmul.f32 %v2944, %v2942
      %v2946 = vxor.u32 %v2945, 2147483648
      %v2947 = vsel %vm2864, %v2946, %v2945
      %v2948 = vsub.s32 4, %v2924
      %v2949 = vsel %vm2864, %v2948, %v2924
      %v2950 = vsel %vm2863, %v823, %v2947
      %v2951 = vsel %vm2863, 0, %v2949
      %v2952 = vcosq.f32.pop %v2950
      %v2953 = vsinq.f32.pop %v2950
      %vm2954 = vweird.f32 %v823
      %v2955 = vadd.s32 %v2951, 3
      %v2956 = vand.u32 %v2955, 3
      %vm2957 = vcmp.lt.s32.totalorder %v2956, 2
      %vm2958 = vcmp.eq.s32.totalorder %v2956, 0
      %v2959 = vxor.u32 %v2953, 2147483648
      %v2960 = vsel %vm2958, %v2952, %v2959
      %vm2961 = vcmp.eq.s32.totalorder %v2956, 2
      %v2962 = vxor.u32 %v2952, 2147483648
      %v2963 = vsel %vm2961, %v2962, %v2953
      %v2964 = vsel %vm2957, %v2960, %v2963
      %v2965 = vsel %vm2954, nan, %v2964
      %v2966 = vand.u32 2147483647, %v828
      %vm2967 = vcmp.le.f32.partialorder %v2966, 0.7853982
      %vm2968 = vcmp.lt.s32.totalorder %v828, 0
      %v2969 = vand.u32 %v828, 2139095040
      %v2970 = vshrl.u32 %v2969, 23
      %v2971 = vsub.s32 %v2970, 127
      %v2972 = vand.u32 2147483647, %v828
      %v2973 = vand.u32 %v2972, 8388607
      %v2974 = vor.u32 %v2973, 8388608
      %v2975 = vsub.s32 0, %v2974
      %v2976 = vadd.s32 %v2971, 1
      %vm2977 = vcmp.gt.s32.totalorder %v2976, 0
      %v2978 = vsel %vm2977, %v2976, 0
      %v2979 = vshrl.u32 %v2978, 5
      %v2980 = vand.u32 %v2978, 31
      %v2981 = vsub.s32 32, %v2980
      %v2982 = vshrl.u32 683565275, %v2981
      %v2983 = vshll.u32 683565275, %v2980
      %v2984 = vshrl.u32 2475754826, %v2981
      %v2985 = vor.u32 %v2983, %v2984
      %v2986 = vshll.u32 2475754826, %v2980
      %v2987 = vshrl.u32 2131351028, %v2981
      %v2988 = vor.u32 %v2986, %v2987
      %v2989 = vshll.u32 2131351028, %v2980
      %v2990 = vshrl.u32 2102212464, %v2981
      %v2991 = vor.u32 %v2989, %v2990
      %v2992 = vshll.u32 2102212464, %v2980
      %v2993 = vshrl.u32 920167782, %v2981
      %v2994 = vor.u32 %v2992, %v2993
      %v2995 = vshll.u32 920167782, %v2980
      %v2996 = vshrl.u32 1326507024, %v2981
      %v2997 = vor.u32 %v2995, %v2996
      %vm2998 = vcmp.lt.s32.totalorder %v2979, 1
      %vm2999 = vcmp.lt.s32.totalorder %v2979, 2
      %vm3000 = vcmp.lt.s32.totalorder %v2979, 3
      %vm3001 = vcmp.lt.s32.totalorder %v2979, 4
      %v3002 = vsel %vm2998, %v2982, %v2985
      %v3003 = vsel %vm3001, %v2991, 2102212464
      %v3004 = vsel %vm3000, %v2988, %v3003
      %v3005 = vsel %vm2999, %v3002, %v3004
      %v3006 = vsel %vm2998, %v2985, %v2988
      %v3007 = vsel %vm3001, %v2994, 920167782
      %v3008 = vsel %vm3000, %v2991, %v3007
      %v3009 = vsel %vm2999, %v3006, %v3008
      %v3010 = vsel %vm2998, %v2988, %v2991
      %v3011 = vsel %vm3001, %v2997, 1326507024
      %v3012 = vsel %vm3000, %v2994, %v3011
      %v3013 = vsel %vm2999, %v3010, %v3012
      %v3014 = vshll.u32 %v2974, 8
      %v3015 = vmul.u32.u64.compose %v3014, %v3013
      %v3016 = vextract.low.u32 %v3015
      %v3017 = vextract.high.u32 %v3015
      %v3018 = vmul.u32.u64.compose %v3014, %v3009
      %v3019 = vextract.low.u32 %v3018
      %v3020 = vextract.high.u32 %v3018
      %v3021 = vmul.u32 %v3014, %v3005
      %v3022 = vadd.s32 %v3017, %v3019
      %vm3023 = vc.u32 %v3017, %v3019
      %v3024 = vadd.s32 %v3020, 1
      %v3025 = vsel %vm3023, %v3024, %v3020
      %v3026 = vadd.s32 %v3021, %v3025
      %v3027 = vadd.s32 %v3026, 536870912
      %v3028 = vshrl.u32 %v3027, 30
      %v3029 = vshll.u32 %v3028, 30
      %v3030 = vsub.s32 %v3026, %v3029
      %vm3031 = vcmp.lt.s32.totalorder %v3030, 0
      %v3032 = vsub.s32 0, %v3030
      %v3033 = vsel %vm3031, %v3032, %v3030
      %v3034 = vclz %v3033
      %v3035 = vsub.s32 %v3034, 2
      %vm3036 = vcmp.gt.s32.totalorder 0, %v3035
      %v3037 = vsel %vm3036, 0, %v3035
      %v3038 = vsub.s32 32, %v3037
      %v3039 = vshll.u32 %v3030, %v3037
      %v3040 = vshrl.u32 %v3022, %v3038
      %v3041 = vor.u32 %v3039, %v3040
      %v3042 = vsub.s32 4294967266, %v3037
      %v3043 = vadd.s32 %v3042, 127
      %v3044 = vshll.u32 %v3043, 23
      %v3045 = vor.u32 4788187, %v3044
      %v3046 = vand.u32 2147483647, %v3045
      %v3048 = vcvt.s32.f32 %v3041
      %v3049 = vmul.f32 %v3048, %v3046
      %v3050 = vxor.u32 %v3049, 2147483648
      %v3051 = vsel %vm2968, %v3050, %v3049
      %v3052 = vsub.s32 4, %v3028
      %v3053 = vsel %vm2968, %v3052, %v3028
      %v3054 = vsel %vm2967, %v828, %v3051
      %v3055 = vsel %vm2967, 0, %v3053
      %v3056 = vcosq.f32.pop %v3054
      %v3057 = vsinq.f32.pop %v3054
      %vm3058 = vweird.f32 %v828
      %v3059 = vadd.s32 %v3055, 3
      %v3060 = vand.u32 %v3059, 3
      %vm3061 = vcmp.lt.s32.totalorder %v3060, 2
      %vm3062 = vcmp.eq.s32.totalorder %v3060, 0
      %v3063 = vxor.u32 %v3057, 2147483648
      %v3064 = vsel %vm3062, %v3056, %v3063
      %vm3065 = vcmp.eq.s32.totalorder %v3060, 2
      %v3066 = vxor.u32 %v3056, 2147483648
      %v3067 = vsel %vm3065, %v3066, %v3057
      %v3068 = vsel %vm3061, %v3064, %v3067
      %v3069 = vsel %vm3058, nan, %v3068
      %v3070 = vand.u32 2147483647, %v833
      %vm3071 = vcmp.le.f32.partialorder %v3070, 0.7853982
      %vm3072 = vcmp.lt.s32.totalorder %v833, 0
      %v3073 = vand.u32 %v833, 2139095040
      %v3074 = vshrl.u32 %v3073, 23
      %v3075 = vsub.s32 %v3074, 127
      %v3076 = vand.u32 2147483647, %v833
      %v3077 = vand.u32 %v3076, 8388607
      %v3078 = vor.u32 %v3077, 8388608
      %v3079 = vsub.s32 0, %v3078
      %v3080 = vadd.s32 %v3075, 1
      %vm3081 = vcmp.gt.s32.totalorder %v3080, 0
      %v3082 = vsel %vm3081, %v3080, 0
      %v3083 = vshrl.u32 %v3082, 5
      %v3084 = vand.u32 %v3082, 31
      %v3085 = vsub.s32 32, %v3084
      %v3086 = vshrl.u32 683565275, %v3085
      %v3087 = vshll.u32 683565275, %v3084
      %v3088 = vshrl.u32 2475754826, %v3085
      %v3089 = vor.u32 %v3087, %v3088
      %v3090 = vshll.u32 2475754826, %v3084
      %v3091 = vshrl.u32 2131351028, %v3085
      %v3092 = vor.u32 %v3090, %v3091
      %v3093 = vshll.u32 2131351028, %v3084
      %v3094 = vshrl.u32 2102212464, %v3085
      %v3095 = vor.u32 %v3093, %v3094
      %v3096 = vshll.u32 2102212464, %v3084
      %v3097 = vshrl.u32 920167782, %v3085
      %v3098 = vor.u32 %v3096, %v3097
      %v3099 = vshll.u32 920167782, %v3084
      %v3100 = vshrl.u32 1326507024, %v3085
      %v3101 = vor.u32 %v3099, %v3100
      %vm3102 = vcmp.lt.s32.totalorder %v3083, 1
      %vm3103 = vcmp.lt.s32.totalorder %v3083, 2
      %vm3104 = vcmp.lt.s32.totalorder %v3083, 3
      %vm3105 = vcmp.lt.s32.totalorder %v3083, 4
      %v3106 = vsel %vm3102, %v3086, %v3089
      %v3107 = vsel %vm3105, %v3095, 2102212464
      %v3108 = vsel %vm3104, %v3092, %v3107
      %v3109 = vsel %vm3103, %v3106, %v3108
      %v3110 = vsel %vm3102, %v3089, %v3092
      %v3111 = vsel %vm3105, %v3098, 920167782
      %v3112 = vsel %vm3104, %v3095, %v3111
      %v3113 = vsel %vm3103, %v3110, %v3112
      %v3114 = vsel %vm3102, %v3092, %v3095
      %v3115 = vsel %vm3105, %v3101, 1326507024
      %v3116 = vsel %vm3104, %v3098, %v3115
      %v3117 = vsel %vm3103, %v3114, %v3116
      %v3118 = vshll.u32 %v3078, 8
      %v3119 = vmul.u32.u64.compose %v3118, %v3117
      %v3120 = vextract.low.u32 %v3119
      %v3121 = vextract.high.u32 %v3119
      %v3122 = vmul.u32.u64.compose %v3118, %v3113
      %v3123 = vextract.low.u32 %v3122
      %v3124 = vextract.high.u32 %v3122
      %v3125 = vmul.u32 %v3118, %v3109
      %v3126 = vadd.s32 %v3121, %v3123
      %vm3127 = vc.u32 %v3121, %v3123
      %v3128 = vadd.s32 %v3124, 1
      %v3129 = vsel %vm3127, %v3128, %v3124
      %v3130 = vadd.s32 %v3125, %v3129
      %v3131 = vadd.s32 %v3130, 536870912
      %v3132 = vshrl.u32 %v3131, 30
      %v3133 = vshll.u32 %v3132, 30
      %v3134 = vsub.s32 %v3130, %v3133
      %vm3135 = vcmp.lt.s32.totalorder %v3134, 0
      %v3136 = vsub.s32 0, %v3134
      %v3137 = vsel %vm3135, %v3136, %v3134
      %v3138 = vclz %v3137
      %v3139 = vsub.s32 %v3138, 2
      %vm3140 = vcmp.gt.s32.totalorder 0, %v3139
      %v3141 = vsel %vm3140, 0, %v3139
      %v3142 = vsub.s32 32, %v3141
      %v3143 = vshll.u32 %v3134, %v3141
      %v3144 = vshrl.u32 %v3126, %v3142
      %v3145 = vor.u32 %v3143, %v3144
      %v3146 = vsub.s32 4294967266, %v3141
      %v3147 = vadd.s32 %v3146, 127
      %v3148 = vshll.u32 %v3147, 23
      %v3149 = vor.u32 4788187, %v3148
      %v3150 = vand.u32 2147483647, %v3149
      %v3152 = vcvt.s32.f32 %v3145
      %v3153 = vmul.f32 %v3152, %v3150
      %v3154 = vxor.u32 %v3153, 2147483648
      %v3155 = vsel %vm3072, %v3154, %v3153
      %v3156 = vsub.s32 4, %v3132
      %v3157 = vsel %vm3072, %v3156, %v3132
      %v3158 = vsel %vm3071, %v833, %v3155
      %v3159 = vsel %vm3071, 0, %v3157
      %v3160 = vcosq.f32.pop %v3158
      %v3161 = vsinq.f32.pop %v3158
      %vm3162 = vweird.f32 %v833
      %v3163 = vadd.s32 %v3159, 3
      %v3164 = vand.u32 %v3163, 3
      %vm3165 = vcmp.lt.s32.totalorder %v3164, 2
      %vm3166 = vcmp.eq.s32.totalorder %v3164, 0
      %v3167 = vxor.u32 %v3161, 2147483648
      %v3168 = vsel %vm3166, %v3160, %v3167
      %vm3169 = vcmp.eq.s32.totalorder %v3164, 2
      %v3170 = vxor.u32 %v3160, 2147483648
      %v3171 = vsel %vm3169, %v3170, %v3161
      %v3172 = vsel %vm3165, %v3168, %v3171
      %v3173 = vsel %vm3162, nan, %v3172
      %v3174 = vand.u32 2147483647, %v838
      %vm3175 = vcmp.le.f32.partialorder %v3174, 0.7853982
      %vm3176 = vcmp.lt.s32.totalorder %v838, 0
      %v3177 = vand.u32 %v838, 2139095040
      %v3178 = vshrl.u32 %v3177, 23
      %v3179 = vsub.s32 %v3178, 127
      %v3180 = vand.u32 2147483647, %v838
      %v3181 = vand.u32 %v3180, 8388607
      %v3182 = vor.u32 %v3181, 8388608
      %v3183 = vsub.s32 0, %v3182
      %v3184 = vadd.s32 %v3179, 1
      %vm3185 = vcmp.gt.s32.totalorder %v3184, 0
      %v3186 = vsel %vm3185, %v3184, 0
      %v3187 = vshrl.u32 %v3186, 5
      %v3188 = vand.u32 %v3186, 31
      %v3189 = vsub.s32 32, %v3188
      %v3190 = vshrl.u32 683565275, %v3189
      %v3191 = vshll.u32 683565275, %v3188
      %v3192 = vshrl.u32 2475754826, %v3189
      %v3193 = vor.u32 %v3191, %v3192
      %v3194 = vshll.u32 2475754826, %v3188
      %v3195 = vshrl.u32 2131351028, %v3189
      %v3196 = vor.u32 %v3194, %v3195
      %v3197 = vshll.u32 2131351028, %v3188
      %v3198 = vshrl.u32 2102212464, %v3189
      %v3199 = vor.u32 %v3197, %v3198
      %v3200 = vshll.u32 2102212464, %v3188
      %v3201 = vshrl.u32 920167782, %v3189
      %v3202 = vor.u32 %v3200, %v3201
      %v3203 = vshll.u32 920167782, %v3188
      %v3204 = vshrl.u32 1326507024, %v3189
      %v3205 = vor.u32 %v3203, %v3204
      %vm3206 = vcmp.lt.s32.totalorder %v3187, 1
      %vm3207 = vcmp.lt.s32.totalorder %v3187, 2
      %vm3208 = vcmp.lt.s32.totalorder %v3187, 3
      %vm3209 = vcmp.lt.s32.totalorder %v3187, 4
      %v3210 = vsel %vm3206, %v3190, %v3193
      %v3211 = vsel %vm3209, %v3199, 2102212464
      %v3212 = vsel %vm3208, %v3196, %v3211
      %v3213 = vsel %vm3207, %v3210, %v3212
      %v3214 = vsel %vm3206, %v3193, %v3196
      %v3215 = vsel %vm3209, %v3202, 920167782
      %v3216 = vsel %vm3208, %v3199, %v3215
      %v3217 = vsel %vm3207, %v3214, %v3216
      %v3218 = vsel %vm3206, %v3196, %v3199
      %v3219 = vsel %vm3209, %v3205, 1326507024
      %v3220 = vsel %vm3208, %v3202, %v3219
      %v3221 = vsel %vm3207, %v3218, %v3220
      %v3222 = vshll.u32 %v3182, 8
      %v3223 = vmul.u32.u64.compose %v3222, %v3221
      %v3224 = vextract.low.u32 %v3223
      %v3225 = vextract.high.u32 %v3223
      %v3226 = vmul.u32.u64.compose %v3222, %v3217
      %v3227 = vextract.low.u32 %v3226
      %v3228 = vextract.high.u32 %v3226
      %v3229 = vmul.u32 %v3222, %v3213
      %v3230 = vadd.s32 %v3225, %v3227
      %vm3231 = vc.u32 %v3225, %v3227
      %v3232 = vadd.s32 %v3228, 1
      %v3233 = vsel %vm3231, %v3232, %v3228
      %v3234 = vadd.s32 %v3229, %v3233
      %v3235 = vadd.s32 %v3234, 536870912
      %v3236 = vshrl.u32 %v3235, 30
      %v3237 = vshll.u32 %v3236, 30
      %v3238 = vsub.s32 %v3234, %v3237
      %vm3239 = vcmp.lt.s32.totalorder %v3238, 0
      %v3240 = vsub.s32 0, %v3238
      %v3241 = vsel %vm3239, %v3240, %v3238
      %v3242 = vclz %v3241
      %v3243 = vsub.s32 %v3242, 2
      %vm3244 = vcmp.gt.s32.totalorder 0, %v3243
      %v3245 = vsel %vm3244, 0, %v3243
      %v3246 = vsub.s32 32, %v3245
      %v3247 = vshll.u32 %v3238, %v3245
      %v3248 = vshrl.u32 %v3230, %v3246
      %v3249 = vor.u32 %v3247, %v3248
      %v3250 = vsub.s32 4294967266, %v3245
      %v3251 = vadd.s32 %v3250, 127
      %v3252 = vshll.u32 %v3251, 23
      %v3253 = vor.u32 4788187, %v3252
      %v3254 = vand.u32 2147483647, %v3253
      %v3256 = vcvt.s32.f32 %v3249
      %v3257 = vmul.f32 %v3256, %v3254
      %v3258 = vxor.u32 %v3257, 2147483648
      %v3259 = vsel %vm3176, %v3258, %v3257
      %v3260 = vsub.s32 4, %v3236
      %v3261 = vsel %vm3176, %v3260, %v3236
      %v3262 = vsel %vm3175, %v838, %v3259
      %v3263 = vsel %vm3175, 0, %v3261
      %v3264 = vcosq.f32.pop %v3262
      %v3265 = vsinq.f32.pop %v3262
      %vm3266 = vweird.f32 %v838
      %v3267 = vadd.s32 %v3263, 3
      %v3268 = vand.u32 %v3267, 3
      %vm3269 = vcmp.lt.s32.totalorder %v3268, 2
      %vm3270 = vcmp.eq.s32.totalorder %v3268, 0
      %v3271 = vxor.u32 %v3265, 2147483648
      %v3272 = vsel %vm3270, %v3264, %v3271
      %vm3273 = vcmp.eq.s32.totalorder %v3268, 2
      %v3274 = vxor.u32 %v3264, 2147483648
      %v3275 = vsel %vm3273, %v3274, %v3265
      %v3276 = vsel %vm3269, %v3272, %v3275
      %v3277 = vsel %vm3266, nan, %v3276
      %v3278 = vand.u32 2147483647, %v843
      %vm3279 = vcmp.le.f32.partialorder %v3278, 0.7853982
      %vm3280 = vcmp.lt.s32.totalorder %v843, 0
      %v3281 = vand.u32 %v843, 2139095040
      %v3282 = vshrl.u32 %v3281, 23
      %v3283 = vsub.s32 %v3282, 127
      %v3284 = vand.u32 2147483647, %v843
      %v3285 = vand.u32 %v3284, 8388607
      %v3286 = vor.u32 %v3285, 8388608
      %v3287 = vsub.s32 0, %v3286
      %v3288 = vadd.s32 %v3283, 1
      %vm3289 = vcmp.gt.s32.totalorder %v3288, 0
      %v3290 = vsel %vm3289, %v3288, 0
      %v3291 = vshrl.u32 %v3290, 5
      %v3292 = vand.u32 %v3290, 31
      %v3293 = vsub.s32 32, %v3292
      %v3294 = vshrl.u32 683565275, %v3293
      %v3295 = vshll.u32 683565275, %v3292
      %v3296 = vshrl.u32 2475754826, %v3293
      %v3297 = vor.u32 %v3295, %v3296
      %v3298 = vshll.u32 2475754826, %v3292
      %v3299 = vshrl.u32 2131351028, %v3293
      %v3300 = vor.u32 %v3298, %v3299
      %v3301 = vshll.u32 2131351028, %v3292
      %v3302 = vshrl.u32 2102212464, %v3293
      %v3303 = vor.u32 %v3301, %v3302
      %v3304 = vshll.u32 2102212464, %v3292
      %v3305 = vshrl.u32 920167782, %v3293
      %v3306 = vor.u32 %v3304, %v3305
      %v3307 = vshll.u32 920167782, %v3292
      %v3308 = vshrl.u32 1326507024, %v3293
      %v3309 = vor.u32 %v3307, %v3308
      %vm3310 = vcmp.lt.s32.totalorder %v3291, 1
      %vm3311 = vcmp.lt.s32.totalorder %v3291, 2
      %vm3312 = vcmp.lt.s32.totalorder %v3291, 3
      %vm3313 = vcmp.lt.s32.totalorder %v3291, 4
      %v3314 = vsel %vm3310, %v3294, %v3297
      %v3315 = vsel %vm3313, %v3303, 2102212464
      %v3316 = vsel %vm3312, %v3300, %v3315
      %v3317 = vsel %vm3311, %v3314, %v3316
      %v3318 = vsel %vm3310, %v3297, %v3300
      %v3319 = vsel %vm3313, %v3306, 920167782
      %v3320 = vsel %vm3312, %v3303, %v3319
      %v3321 = vsel %vm3311, %v3318, %v3320
      %v3322 = vsel %vm3310, %v3300, %v3303
      %v3323 = vsel %vm3313, %v3309, 1326507024
      %v3324 = vsel %vm3312, %v3306, %v3323
      %v3325 = vsel %vm3311, %v3322, %v3324
      %v3326 = vshll.u32 %v3286, 8
      %v3327 = vmul.u32.u64.compose %v3326, %v3325
      %v3328 = vextract.low.u32 %v3327
      %v3329 = vextract.high.u32 %v3327
      %v3330 = vmul.u32.u64.compose %v3326, %v3321
      %v3331 = vextract.low.u32 %v3330
      %v3332 = vextract.high.u32 %v3330
      %v3333 = vmul.u32 %v3326, %v3317
      %v3334 = vadd.s32 %v3329, %v3331
      %vm3335 = vc.u32 %v3329, %v3331
      %v3336 = vadd.s32 %v3332, 1
      %v3337 = vsel %vm3335, %v3336, %v3332
      %v3338 = vadd.s32 %v3333, %v3337
      %v3339 = vadd.s32 %v3338, 536870912
      %v3340 = vshrl.u32 %v3339, 30
      %v3341 = vshll.u32 %v3340, 30
      %v3342 = vsub.s32 %v3338, %v3341
      %vm3343 = vcmp.lt.s32.totalorder %v3342, 0
      %v3344 = vsub.s32 0, %v3342
      %v3345 = vsel %vm3343, %v3344, %v3342
      %v3346 = vclz %v3345
      %v3347 = vsub.s32 %v3346, 2
      %vm3348 = vcmp.gt.s32.totalorder 0, %v3347
      %v3349 = vsel %vm3348, 0, %v3347
      %v3350 = vsub.s32 32, %v3349
      %v3351 = vshll.u32 %v3342, %v3349
      %v3352 = vshrl.u32 %v3334, %v3350
      %v3353 = vor.u32 %v3351, %v3352
      %v3354 = vsub.s32 4294967266, %v3349
      %v3355 = vadd.s32 %v3354, 127
      %v3356 = vshll.u32 %v3355, 23
      %v3357 = vor.u32 4788187, %v3356
      %v3358 = vand.u32 2147483647, %v3357
      %v3360 = vcvt.s32.f32 %v3353
      %v3361 = vmul.f32 %v3360, %v3358
      %v3362 = vxor.u32 %v3361, 2147483648
      %v3363 = vsel %vm3280, %v3362, %v3361
      %v3364 = vsub.s32 4, %v3340
      %v3365 = vsel %vm3280, %v3364, %v3340
      %v3366 = vsel %vm3279, %v843, %v3363
      %v3367 = vsel %vm3279, 0, %v3365
      %v3368 = vcosq.f32.pop %v3366
      %v3369 = vsinq.f32.pop %v3366
      %vm3370 = vweird.f32 %v843
      %v3371 = vadd.s32 %v3367, 3
      %v3372 = vand.u32 %v3371, 3
      %vm3373 = vcmp.lt.s32.totalorder %v3372, 2
      %vm3374 = vcmp.eq.s32.totalorder %v3372, 0
      %v3375 = vxor.u32 %v3369, 2147483648
      %v3376 = vsel %vm3374, %v3368, %v3375
      %vm3377 = vcmp.eq.s32.totalorder %v3372, 2
      %v3378 = vxor.u32 %v3368, 2147483648
      %v3379 = vsel %vm3377, %v3378, %v3369
      %v3380 = vsel %vm3373, %v3376, %v3379
      %v3381 = vsel %vm3370, nan, %v3380
      %v3382 = vand.u32 2147483647, %v848
      %vm3383 = vcmp.le.f32.partialorder %v3382, 0.7853982
      %vm3384 = vcmp.lt.s32.totalorder %v848, 0
      %v3385 = vand.u32 %v848, 2139095040
      %v3386 = vshrl.u32 %v3385, 23
      %v3387 = vsub.s32 %v3386, 127
      %v3388 = vand.u32 2147483647, %v848
      %v3389 = vand.u32 %v3388, 8388607
      %v3390 = vor.u32 %v3389, 8388608
      %v3391 = vsub.s32 0, %v3390
      %v3392 = vadd.s32 %v3387, 1
      %vm3393 = vcmp.gt.s32.totalorder %v3392, 0
      %v3394 = vsel %vm3393, %v3392, 0
      %v3395 = vshrl.u32 %v3394, 5
      %v3396 = vand.u32 %v3394, 31
      %v3397 = vsub.s32 32, %v3396
      %v3398 = vshrl.u32 683565275, %v3397
      %v3399 = vshll.u32 683565275, %v3396
      %v3400 = vshrl.u32 2475754826, %v3397
      %v3401 = vor.u32 %v3399, %v3400
      %v3402 = vshll.u32 2475754826, %v3396
      %v3403 = vshrl.u32 2131351028, %v3397
      %v3404 = vor.u32 %v3402, %v3403
      %v3405 = vshll.u32 2131351028, %v3396
      %v3406 = vshrl.u32 2102212464, %v3397
      %v3407 = vor.u32 %v3405, %v3406
      %v3408 = vshll.u32 2102212464, %v3396
      %v3409 = vshrl.u32 920167782, %v3397
      %v3410 = vor.u32 %v3408, %v3409
      %v3411 = vshll.u32 920167782, %v3396
      %v3412 = vshrl.u32 1326507024, %v3397
      %v3413 = vor.u32 %v3411, %v3412
      %vm3414 = vcmp.lt.s32.totalorder %v3395, 1
      %vm3415 = vcmp.lt.s32.totalorder %v3395, 2
      %vm3416 = vcmp.lt.s32.totalorder %v3395, 3
      %vm3417 = vcmp.lt.s32.totalorder %v3395, 4
      %v3418 = vsel %vm3414, %v3398, %v3401
      %v3419 = vsel %vm3417, %v3407, 2102212464
      %v3420 = vsel %vm3416, %v3404, %v3419
      %v3421 = vsel %vm3415, %v3418, %v3420
      %v3422 = vsel %vm3414, %v3401, %v3404
      %v3423 = vsel %vm3417, %v3410, 920167782
      %v3424 = vsel %vm3416, %v3407, %v3423
      %v3425 = vsel %vm3415, %v3422, %v3424
      %v3426 = vsel %vm3414, %v3404, %v3407
      %v3427 = vsel %vm3417, %v3413, 1326507024
      %v3428 = vsel %vm3416, %v3410, %v3427
      %v3429 = vsel %vm3415, %v3426, %v3428
      %v3430 = vshll.u32 %v3390, 8
      %v3431 = vmul.u32.u64.compose %v3430, %v3429
      %v3432 = vextract.low.u32 %v3431
      %v3433 = vextract.high.u32 %v3431
      %v3434 = vmul.u32.u64.compose %v3430, %v3425
      %v3435 = vextract.low.u32 %v3434
      %v3436 = vextract.high.u32 %v3434
      %v3437 = vmul.u32 %v3430, %v3421
      %v3438 = vadd.s32 %v3433, %v3435
      %vm3439 = vc.u32 %v3433, %v3435
      %v3440 = vadd.s32 %v3436, 1
      %v3441 = vsel %vm3439, %v3440, %v3436
      %v3442 = vadd.s32 %v3437, %v3441
      %v3443 = vadd.s32 %v3442, 536870912
      %v3444 = vshrl.u32 %v3443, 30
      %v3445 = vshll.u32 %v3444, 30
      %v3446 = vsub.s32 %v3442, %v3445
      %vm3447 = vcmp.lt.s32.totalorder %v3446, 0
      %v3448 = vsub.s32 0, %v3446
      %v3449 = vsel %vm3447, %v3448, %v3446
      %v3450 = vclz %v3449
      %v3451 = vsub.s32 %v3450, 2
      %vm3452 = vcmp.gt.s32.totalorder 0, %v3451
      %v3453 = vsel %vm3452, 0, %v3451
      %v3454 = vsub.s32 32, %v3453
      %v3455 = vshll.u32 %v3446, %v3453
      %v3456 = vshrl.u32 %v3438, %v3454
      %v3457 = vor.u32 %v3455, %v3456
      %v3458 = vsub.s32 4294967266, %v3453
      %v3459 = vadd.s32 %v3458, 127
      %v3460 = vshll.u32 %v3459, 23
      %v3461 = vor.u32 4788187, %v3460
      %v3462 = vand.u32 2147483647, %v3461
      %v3464 = vcvt.s32.f32 %v3457
      %v3465 = vmul.f32 %v3464, %v3462
      %v3466 = vxor.u32 %v3465, 2147483648
      %v3467 = vsel %vm3384, %v3466, %v3465
      %v3468 = vsub.s32 4, %v3444
      %v3469 = vsel %vm3384, %v3468, %v3444
      %v3470 = vsel %vm3383, %v848, %v3467
      %v3471 = vsel %vm3383, 0, %v3469
      %v3472 = vcosq.f32.pop %v3470
      %v3473 = vsinq.f32.pop %v3470
      %vm3474 = vweird.f32 %v848
      %v3475 = vadd.s32 %v3471, 3
      %v3476 = vand.u32 %v3475, 3
      %vm3477 = vcmp.lt.s32.totalorder %v3476, 2
      %vm3478 = vcmp.eq.s32.totalorder %v3476, 0
      %v3479 = vxor.u32 %v3473, 2147483648
      %v3480 = vsel %vm3478, %v3472, %v3479
      %vm3481 = vcmp.eq.s32.totalorder %v3476, 2
      %v3482 = vxor.u32 %v3472, 2147483648
      %v3483 = vsel %vm3481, %v3482, %v3473
      %v3484 = vsel %vm3477, %v3480, %v3483
      %v3485 = vsel %vm3474, nan, %v3484
      %v3486 = vand.u32 2147483647, %v853
      %vm3487 = vcmp.le.f32.partialorder %v3486, 0.7853982
      %vm3488 = vcmp.lt.s32.totalorder %v853, 0
      %v3489 = vand.u32 %v853, 2139095040
      %v3490 = vshrl.u32 %v3489, 23
      %v3491 = vsub.s32 %v3490, 127
      %v3492 = vand.u32 2147483647, %v853
      %v3493 = vand.u32 %v3492, 8388607
      %v3494 = vor.u32 %v3493, 8388608
      %v3495 = vsub.s32 0, %v3494
      %v3496 = vadd.s32 %v3491, 1
      %vm3497 = vcmp.gt.s32.totalorder %v3496, 0
      %v3498 = vsel %vm3497, %v3496, 0
      %v3499 = vshrl.u32 %v3498, 5
      %v3500 = vand.u32 %v3498, 31
      %v3501 = vsub.s32 32, %v3500
      %v3502 = vshrl.u32 683565275, %v3501
      %v3503 = vshll.u32 683565275, %v3500
      %v3504 = vshrl.u32 2475754826, %v3501
      %v3505 = vor.u32 %v3503, %v3504
      %v3506 = vshll.u32 2475754826, %v3500
      %v3507 = vshrl.u32 2131351028, %v3501
      %v3508 = vor.u32 %v3506, %v3507
      %v3509 = vshll.u32 2131351028, %v3500
      %v3510 = vshrl.u32 2102212464, %v3501
      %v3511 = vor.u32 %v3509, %v3510
      %v3512 = vshll.u32 2102212464, %v3500
      %v3513 = vshrl.u32 920167782, %v3501
      %v3514 = vor.u32 %v3512, %v3513
      %v3515 = vshll.u32 920167782, %v3500
      %v3516 = vshrl.u32 1326507024, %v3501
      %v3517 = vor.u32 %v3515, %v3516
      %vm3518 = vcmp.lt.s32.totalorder %v3499, 1
      %vm3519 = vcmp.lt.s32.totalorder %v3499, 2
      %vm3520 = vcmp.lt.s32.totalorder %v3499, 3
      %vm3521 = vcmp.lt.s32.totalorder %v3499, 4
      %v3522 = vsel %vm3518, %v3502, %v3505
      %v3523 = vsel %vm3521, %v3511, 2102212464
      %v3524 = vsel %vm3520, %v3508, %v3523
      %v3525 = vsel %vm3519, %v3522, %v3524
      %v3526 = vsel %vm3518, %v3505, %v3508
      %v3527 = vsel %vm3521, %v3514, 920167782
      %v3528 = vsel %vm3520, %v3511, %v3527
      %v3529 = vsel %vm3519, %v3526, %v3528
      %v3530 = vsel %vm3518, %v3508, %v3511
      %v3531 = vsel %vm3521, %v3517, 1326507024
      %v3532 = vsel %vm3520, %v3514, %v3531
      %v3533 = vsel %vm3519, %v3530, %v3532
      %v3534 = vshll.u32 %v3494, 8
      %v3535 = vmul.u32.u64.compose %v3534, %v3533
      %v3536 = vextract.low.u32 %v3535
      %v3537 = vextract.high.u32 %v3535
      %v3538 = vmul.u32.u64.compose %v3534, %v3529
      %v3539 = vextract.low.u32 %v3538
      %v3540 = vextract.high.u32 %v3538
      %v3541 = vmul.u32 %v3534, %v3525
      %v3542 = vadd.s32 %v3537, %v3539
      %vm3543 = vc.u32 %v3537, %v3539
      %v3544 = vadd.s32 %v3540, 1
      %v3545 = vsel %vm3543, %v3544, %v3540
      %v3546 = vadd.s32 %v3541, %v3545
      %v3547 = vadd.s32 %v3546, 536870912
      %v3548 = vshrl.u32 %v3547, 30
      %v3549 = vshll.u32 %v3548, 30
      %v3550 = vsub.s32 %v3546, %v3549
      %vm3551 = vcmp.lt.s32.totalorder %v3550, 0
      %v3552 = vsub.s32 0, %v3550
      %v3553 = vsel %vm3551, %v3552, %v3550
      %v3554 = vclz %v3553
      %v3555 = vsub.s32 %v3554, 2
      %vm3556 = vcmp.gt.s32.totalorder 0, %v3555
      %v3557 = vsel %vm3556, 0, %v3555
      %v3558 = vsub.s32 32, %v3557
      %v3559 = vshll.u32 %v3550, %v3557
      %v3560 = vshrl.u32 %v3542, %v3558
      %v3561 = vor.u32 %v3559, %v3560
      %v3562 = vsub.s32 4294967266, %v3557
      %v3563 = vadd.s32 %v3562, 127
      %v3564 = vshll.u32 %v3563, 23
      %v3565 = vor.u32 4788187, %v3564
      %v3566 = vand.u32 2147483647, %v3565
      %v3568 = vcvt.s32.f32 %v3561
      %v3569 = vmul.f32 %v3568, %v3566
      %v3570 = vxor.u32 %v3569, 2147483648
      %v3571 = vsel %vm3488, %v3570, %v3569
      %v3572 = vsub.s32 4, %v3548
      %v3573 = vsel %vm3488, %v3572, %v3548
      %v3574 = vsel %vm3487, %v853, %v3571
      %v3575 = vsel %vm3487, 0, %v3573
      %v3576 = vcosq.f32.pop %v3574
      %v3577 = vsinq.f32.pop %v3574
      %vm3578 = vweird.f32 %v853
      %v3579 = vadd.s32 %v3575, 3
      %v3580 = vand.u32 %v3579, 3
      %vm3581 = vcmp.lt.s32.totalorder %v3580, 2
      %vm3582 = vcmp.eq.s32.totalorder %v3580, 0
      %v3583 = vxor.u32 %v3577, 2147483648
      %v3584 = vsel %vm3582, %v3576, %v3583
      %vm3585 = vcmp.eq.s32.totalorder %v3580, 2
      %v3586 = vxor.u32 %v3576, 2147483648
      %v3587 = vsel %vm3585, %v3586, %v3577
      %v3588 = vsel %vm3581, %v3584, %v3587
      %v3589 = vsel %vm3578, nan, %v3588
      %v3590 = vand.u32 2147483647, %v858
      %vm3591 = vcmp.le.f32.partialorder %v3590, 0.7853982
      %vm3592 = vcmp.lt.s32.totalorder %v858, 0
      %v3593 = vand.u32 %v858, 2139095040
      %v3594 = vshrl.u32 %v3593, 23
      %v3595 = vsub.s32 %v3594, 127
      %v3596 = vand.u32 2147483647, %v858
      %v3597 = vand.u32 %v3596, 8388607
      %v3598 = vor.u32 %v3597, 8388608
      %v3599 = vsub.s32 0, %v3598
      %v3600 = vadd.s32 %v3595, 1
      %vm3601 = vcmp.gt.s32.totalorder %v3600, 0
      %v3602 = vsel %vm3601, %v3600, 0
      %v3603 = vshrl.u32 %v3602, 5
      %v3604 = vand.u32 %v3602, 31
      %v3605 = vsub.s32 32, %v3604
      %v3606 = vshrl.u32 683565275, %v3605
      %v3607 = vshll.u32 683565275, %v3604
      %v3608 = vshrl.u32 2475754826, %v3605
      %v3609 = vor.u32 %v3607, %v3608
      %v3610 = vshll.u32 2475754826, %v3604
      %v3611 = vshrl.u32 2131351028, %v3605
      %v3612 = vor.u32 %v3610, %v3611
      %v3613 = vshll.u32 2131351028, %v3604
      %v3614 = vshrl.u32 2102212464, %v3605
      %v3615 = vor.u32 %v3613, %v3614
      %v3616 = vshll.u32 2102212464, %v3604
      %v3617 = vshrl.u32 920167782, %v3605
      %v3618 = vor.u32 %v3616, %v3617
      %v3619 = vshll.u32 920167782, %v3604
      %v3620 = vshrl.u32 1326507024, %v3605
      %v3621 = vor.u32 %v3619, %v3620
      %vm3622 = vcmp.lt.s32.totalorder %v3603, 1
      %vm3623 = vcmp.lt.s32.totalorder %v3603, 2
      %vm3624 = vcmp.lt.s32.totalorder %v3603, 3
      %vm3625 = vcmp.lt.s32.totalorder %v3603, 4
      %v3626 = vsel %vm3622, %v3606, %v3609
      %v3627 = vsel %vm3625, %v3615, 2102212464
      %v3628 = vsel %vm3624, %v3612, %v3627
      %v3629 = vsel %vm3623, %v3626, %v3628
      %v3630 = vsel %vm3622, %v3609, %v3612
      %v3631 = vsel %vm3625, %v3618, 920167782
      %v3632 = vsel %vm3624, %v3615, %v3631
      %v3633 = vsel %vm3623, %v3630, %v3632
      %v3634 = vsel %vm3622, %v3612, %v3615
      %v3635 = vsel %vm3625, %v3621, 1326507024
      %v3636 = vsel %vm3624, %v3618, %v3635
      %v3637 = vsel %vm3623, %v3634, %v3636
      %v3638 = vshll.u32 %v3598, 8
      %v3639 = vmul.u32.u64.compose %v3638, %v3637
      %v3640 = vextract.low.u32 %v3639
      %v3641 = vextract.high.u32 %v3639
      %v3642 = vmul.u32.u64.compose %v3638, %v3633
      %v3643 = vextract.low.u32 %v3642
      %v3644 = vextract.high.u32 %v3642
      %v3645 = vmul.u32 %v3638, %v3629
      %v3646 = vadd.s32 %v3641, %v3643
      %vm3647 = vc.u32 %v3641, %v3643
      %v3648 = vadd.s32 %v3644, 1
      %v3649 = vsel %vm3647, %v3648, %v3644
      %v3650 = vadd.s32 %v3645, %v3649
      %v3651 = vadd.s32 %v3650, 536870912
      %v3652 = vshrl.u32 %v3651, 30
      %v3653 = vshll.u32 %v3652, 30
      %v3654 = vsub.s32 %v3650, %v3653
      %vm3655 = vcmp.lt.s32.totalorder %v3654, 0
      %v3656 = vsub.s32 0, %v3654
      %v3657 = vsel %vm3655, %v3656, %v3654
      %v3658 = vclz %v3657
      %v3659 = vsub.s32 %v3658, 2
      %vm3660 = vcmp.gt.s32.totalorder 0, %v3659
      %v3661 = vsel %vm3660, 0, %v3659
      %v3662 = vsub.s32 32, %v3661
      %v3663 = vshll.u32 %v3654, %v3661
      %v3664 = vshrl.u32 %v3646, %v3662
      %v3665 = vor.u32 %v3663, %v3664
      %v3666 = vsub.s32 4294967266, %v3661
      %v3667 = vadd.s32 %v3666, 127
      %v3668 = vshll.u32 %v3667, 23
      %v3669 = vor.u32 4788187, %v3668
      %v3670 = vand.u32 2147483647, %v3669
      %v3672 = vcvt.s32.f32 %v3665
      %v3673 = vmul.f32 %v3672, %v3670
      %v3674 = vxor.u32 %v3673, 2147483648
      %v3675 = vsel %vm3592, %v3674, %v3673
      %v3676 = vsub.s32 4, %v3652
      %v3677 = vsel %vm3592, %v3676, %v3652
      %v3678 = vsel %vm3591, %v858, %v3675
      %v3679 = vsel %vm3591, 0, %v3677
      %v3680 = vcosq.f32.pop %v3678
      %v3681 = vsinq.f32.pop %v3678
      %vm3682 = vweird.f32 %v858
      %v3683 = vadd.s32 %v3679, 3
      %v3684 = vand.u32 %v3683, 3
      %vm3685 = vcmp.lt.s32.totalorder %v3684, 2
      %vm3686 = vcmp.eq.s32.totalorder %v3684, 0
      %v3687 = vxor.u32 %v3681, 2147483648
      %v3688 = vsel %vm3686, %v3680, %v3687
      %vm3689 = vcmp.eq.s32.totalorder %v3684, 2
      %v3690 = vxor.u32 %v3680, 2147483648
      %v3691 = vsel %vm3689, %v3690, %v3681
      %v3692 = vsel %vm3685, %v3688, %v3691
      %v3693 = vsel %vm3682, nan, %v3692
      %v3694 = vand.u32 2147483647, %v863
      %vm3695 = vcmp.le.f32.partialorder %v3694, 0.7853982
      %vm3696 = vcmp.lt.s32.totalorder %v863, 0
      %v3697 = vand.u32 %v863, 2139095040
      %v3698 = vshrl.u32 %v3697, 23
      %v3699 = vsub.s32 %v3698, 127
      %v3700 = vand.u32 2147483647, %v863
      %v3701 = vand.u32 %v3700, 8388607
      %v3702 = vor.u32 %v3701, 8388608
      %v3703 = vsub.s32 0, %v3702
      %v3704 = vadd.s32 %v3699, 1
      %vm3705 = vcmp.gt.s32.totalorder %v3704, 0
      %v3706 = vsel %vm3705, %v3704, 0
      %v3707 = vshrl.u32 %v3706, 5
      %v3708 = vand.u32 %v3706, 31
      %v3709 = vsub.s32 32, %v3708
      %v3710 = vshrl.u32 683565275, %v3709
      %v3711 = vshll.u32 683565275, %v3708
      %v3712 = vshrl.u32 2475754826, %v3709
      %v3713 = vor.u32 %v3711, %v3712
      %v3714 = vshll.u32 2475754826, %v3708
      %v3715 = vshrl.u32 2131351028, %v3709
      %v3716 = vor.u32 %v3714, %v3715
      %v3717 = vshll.u32 2131351028, %v3708
      %v3718 = vshrl.u32 2102212464, %v3709
      %v3719 = vor.u32 %v3717, %v3718
      %v3720 = vshll.u32 2102212464, %v3708
      %v3721 = vshrl.u32 920167782, %v3709
      %v3722 = vor.u32 %v3720, %v3721
      %v3723 = vshll.u32 920167782, %v3708
      %v3724 = vshrl.u32 1326507024, %v3709
      %v3725 = vor.u32 %v3723, %v3724
      %vm3726 = vcmp.lt.s32.totalorder %v3707, 1
      %vm3727 = vcmp.lt.s32.totalorder %v3707, 2
      %vm3728 = vcmp.lt.s32.totalorder %v3707, 3
      %vm3729 = vcmp.lt.s32.totalorder %v3707, 4
      %v3730 = vsel %vm3726, %v3710, %v3713
      %v3731 = vsel %vm3729, %v3719, 2102212464
      %v3732 = vsel %vm3728, %v3716, %v3731
      %v3733 = vsel %vm3727, %v3730, %v3732
      %v3734 = vsel %vm3726, %v3713, %v3716
      %v3735 = vsel %vm3729, %v3722, 920167782
      %v3736 = vsel %vm3728, %v3719, %v3735
      %v3737 = vsel %vm3727, %v3734, %v3736
      %v3738 = vsel %vm3726, %v3716, %v3719
      %v3739 = vsel %vm3729, %v3725, 1326507024
      %v3740 = vsel %vm3728, %v3722, %v3739
      %v3741 = vsel %vm3727, %v3738, %v3740
      %v3742 = vshll.u32 %v3702, 8
      %v3743 = vmul.u32.u64.compose %v3742, %v3741
      %v3744 = vextract.low.u32 %v3743
      %v3745 = vextract.high.u32 %v3743
      %v3746 = vmul.u32.u64.compose %v3742, %v3737
      %v3747 = vextract.low.u32 %v3746
      %v3748 = vextract.high.u32 %v3746
      %v3749 = vmul.u32 %v3742, %v3733
      %v3750 = vadd.s32 %v3745, %v3747
      %vm3751 = vc.u32 %v3745, %v3747
      %v3752 = vadd.s32 %v3748, 1
      %v3753 = vsel %vm3751, %v3752, %v3748
      %v3754 = vadd.s32 %v3749, %v3753
      %v3755 = vadd.s32 %v3754, 536870912
      %v3756 = vshrl.u32 %v3755, 30
      %v3757 = vshll.u32 %v3756, 30
      %v3758 = vsub.s32 %v3754, %v3757
      %vm3759 = vcmp.lt.s32.totalorder %v3758, 0
      %v3760 = vsub.s32 0, %v3758
      %v3761 = vsel %vm3759, %v3760, %v3758
      %v3762 = vclz %v3761
      %v3763 = vsub.s32 %v3762, 2
      %vm3764 = vcmp.gt.s32.totalorder 0, %v3763
      %v3765 = vsel %vm3764, 0, %v3763
      %v3766 = vsub.s32 32, %v3765
      %v3767 = vshll.u32 %v3758, %v3765
      %v3768 = vshrl.u32 %v3750, %v3766
      %v3769 = vor.u32 %v3767, %v3768
      %v3770 = vsub.s32 4294967266, %v3765
      %v3771 = vadd.s32 %v3770, 127
      %v3772 = vshll.u32 %v3771, 23
      %v3773 = vor.u32 4788187, %v3772
      %v3774 = vand.u32 2147483647, %v3773
      %v3776 = vcvt.s32.f32 %v3769
      %v3777 = vmul.f32 %v3776, %v3774
      %v3778 = vxor.u32 %v3777, 2147483648
      %v3779 = vsel %vm3696, %v3778, %v3777
      %v3780 = vsub.s32 4, %v3756
      %v3781 = vsel %vm3696, %v3780, %v3756
      %v3782 = vsel %vm3695, %v863, %v3779
      %v3783 = vsel %vm3695, 0, %v3781
      %v3784 = vcosq.f32.pop %v3782
      %v3785 = vsinq.f32.pop %v3782
      %vm3786 = vweird.f32 %v863
      %v3787 = vadd.s32 %v3783, 3
      %v3788 = vand.u32 %v3787, 3
      %vm3789 = vcmp.lt.s32.totalorder %v3788, 2
      %vm3790 = vcmp.eq.s32.totalorder %v3788, 0
      %v3791 = vxor.u32 %v3785, 2147483648
      %v3792 = vsel %vm3790, %v3784, %v3791
      %vm3793 = vcmp.eq.s32.totalorder %v3788, 2
      %v3794 = vxor.u32 %v3784, 2147483648
      %v3795 = vsel %vm3793, %v3794, %v3785
      %v3796 = vsel %vm3789, %v3792, %v3795
      %v3797 = vsel %vm3786, nan, %v3796
      %v3798 = vand.u32 2147483647, %v868
      %vm3799 = vcmp.le.f32.partialorder %v3798, 0.7853982
      %vm3800 = vcmp.lt.s32.totalorder %v868, 0
      %v3801 = vand.u32 %v868, 2139095040
      %v3802 = vshrl.u32 %v3801, 23
      %v3803 = vsub.s32 %v3802, 127
      %v3804 = vand.u32 2147483647, %v868
      %v3805 = vand.u32 %v3804, 8388607
      %v3806 = vor.u32 %v3805, 8388608
      %v3807 = vsub.s32 0, %v3806
      %v3808 = vadd.s32 %v3803, 1
      %vm3809 = vcmp.gt.s32.totalorder %v3808, 0
      %v3810 = vsel %vm3809, %v3808, 0
      %v3811 = vshrl.u32 %v3810, 5
      %v3812 = vand.u32 %v3810, 31
      %v3813 = vsub.s32 32, %v3812
      %v3814 = vshrl.u32 683565275, %v3813
      %v3815 = vshll.u32 683565275, %v3812
      %v3816 = vshrl.u32 2475754826, %v3813
      %v3817 = vor.u32 %v3815, %v3816
      %v3818 = vshll.u32 2475754826, %v3812
      %v3819 = vshrl.u32 2131351028, %v3813
      %v3820 = vor.u32 %v3818, %v3819
      %v3821 = vshll.u32 2131351028, %v3812
      %v3822 = vshrl.u32 2102212464, %v3813
      %v3823 = vor.u32 %v3821, %v3822
      %v3824 = vshll.u32 2102212464, %v3812
      %v3825 = vshrl.u32 920167782, %v3813
      %v3826 = vor.u32 %v3824, %v3825
      %v3827 = vshll.u32 920167782, %v3812
      %v3828 = vshrl.u32 1326507024, %v3813
      %v3829 = vor.u32 %v3827, %v3828
      %vm3830 = vcmp.lt.s32.totalorder %v3811, 1
      %vm3831 = vcmp.lt.s32.totalorder %v3811, 2
      %vm3832 = vcmp.lt.s32.totalorder %v3811, 3
      %vm3833 = vcmp.lt.s32.totalorder %v3811, 4
      %v3834 = vsel %vm3830, %v3814, %v3817
      %v3835 = vsel %vm3833, %v3823, 2102212464
      %v3836 = vsel %vm3832, %v3820, %v3835
      %v3837 = vsel %vm3831, %v3834, %v3836
      %v3838 = vsel %vm3830, %v3817, %v3820
      %v3839 = vsel %vm3833, %v3826, 920167782
      %v3840 = vsel %vm3832, %v3823, %v3839
      %v3841 = vsel %vm3831, %v3838, %v3840
      %v3842 = vsel %vm3830, %v3820, %v3823
      %v3843 = vsel %vm3833, %v3829, 1326507024
      %v3844 = vsel %vm3832, %v3826, %v3843
      %v3845 = vsel %vm3831, %v3842, %v3844
      %v3846 = vshll.u32 %v3806, 8
      %v3847 = vmul.u32.u64.compose %v3846, %v3845
      %v3848 = vextract.low.u32 %v3847
      %v3849 = vextract.high.u32 %v3847
      %v3850 = vmul.u32.u64.compose %v3846, %v3841
      %v3851 = vextract.low.u32 %v3850
      %v3852 = vextract.high.u32 %v3850
      %v3853 = vmul.u32 %v3846, %v3837
      %v3854 = vadd.s32 %v3849, %v3851
      %vm3855 = vc.u32 %v3849, %v3851
      %v3856 = vadd.s32 %v3852, 1
      %v3857 = vsel %vm3855, %v3856, %v3852
      %v3858 = vadd.s32 %v3853, %v3857
      %v3859 = vadd.s32 %v3858, 536870912
      %v3860 = vshrl.u32 %v3859, 30
      %v3861 = vshll.u32 %v3860, 30
      %v3862 = vsub.s32 %v3858, %v3861
      %vm3863 = vcmp.lt.s32.totalorder %v3862, 0
      %v3864 = vsub.s32 0, %v3862
      %v3865 = vsel %vm3863, %v3864, %v3862
      %v3866 = vclz %v3865
      %v3867 = vsub.s32 %v3866, 2
      %vm3868 = vcmp.gt.s32.totalorder 0, %v3867
      %v3869 = vsel %vm3868, 0, %v3867
      %v3870 = vsub.s32 32, %v3869
      %v3871 = vshll.u32 %v3862, %v3869
      %v3872 = vshrl.u32 %v3854, %v3870
      %v3873 = vor.u32 %v3871, %v3872
      %v3874 = vsub.s32 4294967266, %v3869
      %v3875 = vadd.s32 %v3874, 127
      %v3876 = vshll.u32 %v3875, 23
      %v3877 = vor.u32 4788187, %v3876
      %v3878 = vand.u32 2147483647, %v3877
      %v3880 = vcvt.s32.f32 %v3873
      %v3881 = vmul.f32 %v3880, %v3878
      %v3882 = vxor.u32 %v3881, 2147483648
      %v3883 = vsel %vm3800, %v3882, %v3881
      %v3884 = vsub.s32 4, %v3860
      %v3885 = vsel %vm3800, %v3884, %v3860
      %v3886 = vsel %vm3799, %v868, %v3883
      %v3887 = vsel %vm3799, 0, %v3885
      %v3888 = vcosq.f32.pop %v3886
      %v3889 = vsinq.f32.pop %v3886
      %vm3890 = vweird.f32 %v868
      %v3891 = vadd.s32 %v3887, 3
      %v3892 = vand.u32 %v3891, 3
      %vm3893 = vcmp.lt.s32.totalorder %v3892, 2
      %vm3894 = vcmp.eq.s32.totalorder %v3892, 0
      %v3895 = vxor.u32 %v3889, 2147483648
      %v3896 = vsel %vm3894, %v3888, %v3895
      %vm3897 = vcmp.eq.s32.totalorder %v3892, 2
      %v3898 = vxor.u32 %v3888, 2147483648
      %v3899 = vsel %vm3897, %v3898, %v3889
      %v3900 = vsel %vm3893, %v3896, %v3899
      %v3901 = vsel %vm3890, nan, %v3900
      %v3902 = vand.u32 2147483647, %v873
      %vm3903 = vcmp.le.f32.partialorder %v3902, 0.7853982
      %vm3904 = vcmp.lt.s32.totalorder %v873, 0
      %v3905 = vand.u32 %v873, 2139095040
      %v3906 = vshrl.u32 %v3905, 23
      %v3907 = vsub.s32 %v3906, 127
      %v3908 = vand.u32 2147483647, %v873
      %v3909 = vand.u32 %v3908, 8388607
      %v3910 = vor.u32 %v3909, 8388608
      %v3911 = vsub.s32 0, %v3910
      %v3912 = vadd.s32 %v3907, 1
      %vm3913 = vcmp.gt.s32.totalorder %v3912, 0
      %v3914 = vsel %vm3913, %v3912, 0
      %v3915 = vshrl.u32 %v3914, 5
      %v3916 = vand.u32 %v3914, 31
      %v3917 = vsub.s32 32, %v3916
      %v3918 = vshrl.u32 683565275, %v3917
      %v3919 = vshll.u32 683565275, %v3916
      %v3920 = vshrl.u32 2475754826, %v3917
      %v3921 = vor.u32 %v3919, %v3920
      %v3922 = vshll.u32 2475754826, %v3916
      %v3923 = vshrl.u32 2131351028, %v3917
      %v3924 = vor.u32 %v3922, %v3923
      %v3925 = vshll.u32 2131351028, %v3916
      %v3926 = vshrl.u32 2102212464, %v3917
      %v3927 = vor.u32 %v3925, %v3926
      %v3928 = vshll.u32 2102212464, %v3916
      %v3929 = vshrl.u32 920167782, %v3917
      %v3930 = vor.u32 %v3928, %v3929
      %v3931 = vshll.u32 920167782, %v3916
      %v3932 = vshrl.u32 1326507024, %v3917
      %v3933 = vor.u32 %v3931, %v3932
      %vm3934 = vcmp.lt.s32.totalorder %v3915, 1
      %vm3935 = vcmp.lt.s32.totalorder %v3915, 2
      %vm3936 = vcmp.lt.s32.totalorder %v3915, 3
      %vm3937 = vcmp.lt.s32.totalorder %v3915, 4
      %v3938 = vsel %vm3934, %v3918, %v3921
      %v3939 = vsel %vm3937, %v3927, 2102212464
      %v3940 = vsel %vm3936, %v3924, %v3939
      %v3941 = vsel %vm3935, %v3938, %v3940
      %v3942 = vsel %vm3934, %v3921, %v3924
      %v3943 = vsel %vm3937, %v3930, 920167782
      %v3944 = vsel %vm3936, %v3927, %v3943
      %v3945 = vsel %vm3935, %v3942, %v3944
      %v3946 = vsel %vm3934, %v3924, %v3927
      %v3947 = vsel %vm3937, %v3933, 1326507024
      %v3948 = vsel %vm3936, %v3930, %v3947
      %v3949 = vsel %vm3935, %v3946, %v3948
      %v3950 = vshll.u32 %v3910, 8
      %v3951 = vmul.u32.u64.compose %v3950, %v3949
      %v3952 = vextract.low.u32 %v3951
      %v3953 = vextract.high.u32 %v3951
      %v3954 = vmul.u32.u64.compose %v3950, %v3945
      %v3955 = vextract.low.u32 %v3954
      %v3956 = vextract.high.u32 %v3954
      %v3957 = vmul.u32 %v3950, %v3941
      %v3958 = vadd.s32 %v3953, %v3955
      %vm3959 = vc.u32 %v3953, %v3955
      %v3960 = vadd.s32 %v3956, 1
      %v3961 = vsel %vm3959, %v3960, %v3956
      %v3962 = vadd.s32 %v3957, %v3961
      %v3963 = vadd.s32 %v3962, 536870912
      %v3964 = vshrl.u32 %v3963, 30
      %v3965 = vshll.u32 %v3964, 30
      %v3966 = vsub.s32 %v3962, %v3965
      %vm3967 = vcmp.lt.s32.totalorder %v3966, 0
      %v3968 = vsub.s32 0, %v3966
      %v3969 = vsel %vm3967, %v3968, %v3966
      %v3970 = vclz %v3969
      %v3971 = vsub.s32 %v3970, 2
      %vm3972 = vcmp.gt.s32.totalorder 0, %v3971
      %v3973 = vsel %vm3972, 0, %v3971
      %v3974 = vsub.s32 32, %v3973
      %v3975 = vshll.u32 %v3966, %v3973
      %v3976 = vshrl.u32 %v3958, %v3974
      %v3977 = vor.u32 %v3975, %v3976
      %v3978 = vsub.s32 4294967266, %v3973
      %v3979 = vadd.s32 %v3978, 127
      %v3980 = vshll.u32 %v3979, 23
      %v3981 = vor.u32 4788187, %v3980
      %v3982 = vand.u32 2147483647, %v3981
      %v3984 = vcvt.s32.f32 %v3977
      %v3985 = vmul.f32 %v3984, %v3982
      %v3986 = vxor.u32 %v3985, 2147483648
      %v3987 = vsel %vm3904, %v3986, %v3985
      %v3988 = vsub.s32 4, %v3964
      %v3989 = vsel %vm3904, %v3988, %v3964
      %v3990 = vsel %vm3903, %v873, %v3987
      %v3991 = vsel %vm3903, 0, %v3989
      %v3992 = vcosq.f32.pop %v3990
      %v3993 = vsinq.f32.pop %v3990
      %vm3994 = vweird.f32 %v873
      %v3995 = vadd.s32 %v3991, 3
      %v3996 = vand.u32 %v3995, 3
      %vm3997 = vcmp.lt.s32.totalorder %v3996, 2
      %vm3998 = vcmp.eq.s32.totalorder %v3996, 0
      %v3999 = vxor.u32 %v3993, 2147483648
      %v4000 = vsel %vm3998, %v3992, %v3999
      %vm4001 = vcmp.eq.s32.totalorder %v3996, 2
      %v4002 = vxor.u32 %v3992, 2147483648
      %v4003 = vsel %vm4001, %v4002, %v3993
      %v4004 = vsel %vm3997, %v4000, %v4003
      %v4005 = vsel %vm3994, nan, %v4004
      %v4006 = vand.u32 2147483647, %v878
      %vm4007 = vcmp.le.f32.partialorder %v4006, 0.7853982
      %vm4008 = vcmp.lt.s32.totalorder %v878, 0
      %v4009 = vand.u32 %v878, 2139095040
      %v4010 = vshrl.u32 %v4009, 23
      %v4011 = vsub.s32 %v4010, 127
      %v4012 = vand.u32 2147483647, %v878
      %v4013 = vand.u32 %v4012, 8388607
      %v4014 = vor.u32 %v4013, 8388608
      %v4015 = vsub.s32 0, %v4014
      %v4016 = vadd.s32 %v4011, 1
      %vm4017 = vcmp.gt.s32.totalorder %v4016, 0
      %v4018 = vsel %vm4017, %v4016, 0
      %v4019 = vshrl.u32 %v4018, 5
      %v4020 = vand.u32 %v4018, 31
      %v4021 = vsub.s32 32, %v4020
      %v4022 = vshrl.u32 683565275, %v4021
      %v4023 = vshll.u32 683565275, %v4020
      %v4024 = vshrl.u32 2475754826, %v4021
      %v4025 = vor.u32 %v4023, %v4024
      %v4026 = vshll.u32 2475754826, %v4020
      %v4027 = vshrl.u32 2131351028, %v4021
      %v4028 = vor.u32 %v4026, %v4027
      %v4029 = vshll.u32 2131351028, %v4020
      %v4030 = vshrl.u32 2102212464, %v4021
      %v4031 = vor.u32 %v4029, %v4030
      %v4032 = vshll.u32 2102212464, %v4020
      %v4033 = vshrl.u32 920167782, %v4021
      %v4034 = vor.u32 %v4032, %v4033
      %v4035 = vshll.u32 920167782, %v4020
      %v4036 = vshrl.u32 1326507024, %v4021
      %v4037 = vor.u32 %v4035, %v4036
      %vm4038 = vcmp.lt.s32.totalorder %v4019, 1
      %vm4039 = vcmp.lt.s32.totalorder %v4019, 2
      %vm4040 = vcmp.lt.s32.totalorder %v4019, 3
      %vm4041 = vcmp.lt.s32.totalorder %v4019, 4
      %v4042 = vsel %vm4038, %v4022, %v4025
      %v4043 = vsel %vm4041, %v4031, 2102212464
      %v4044 = vsel %vm4040, %v4028, %v4043
      %v4045 = vsel %vm4039, %v4042, %v4044
      %v4046 = vsel %vm4038, %v4025, %v4028
      %v4047 = vsel %vm4041, %v4034, 920167782
      %v4048 = vsel %vm4040, %v4031, %v4047
      %v4049 = vsel %vm4039, %v4046, %v4048
      %v4050 = vsel %vm4038, %v4028, %v4031
      %v4051 = vsel %vm4041, %v4037, 1326507024
      %v4052 = vsel %vm4040, %v4034, %v4051
      %v4053 = vsel %vm4039, %v4050, %v4052
      %v4054 = vshll.u32 %v4014, 8
      %v4055 = vmul.u32.u64.compose %v4054, %v4053
      %v4056 = vextract.low.u32 %v4055
      %v4057 = vextract.high.u32 %v4055
      %v4058 = vmul.u32.u64.compose %v4054, %v4049
      %v4059 = vextract.low.u32 %v4058
      %v4060 = vextract.high.u32 %v4058
      %v4061 = vmul.u32 %v4054, %v4045
      %v4062 = vadd.s32 %v4057, %v4059
      %vm4063 = vc.u32 %v4057, %v4059
      %v4064 = vadd.s32 %v4060, 1
      %v4065 = vsel %vm4063, %v4064, %v4060
      %v4066 = vadd.s32 %v4061, %v4065
      %v4067 = vadd.s32 %v4066, 536870912
      %v4068 = vshrl.u32 %v4067, 30
      %v4069 = vshll.u32 %v4068, 30
      %v4070 = vsub.s32 %v4066, %v4069
      %vm4071 = vcmp.lt.s32.totalorder %v4070, 0
      %v4072 = vsub.s32 0, %v4070
      %v4073 = vsel %vm4071, %v4072, %v4070
      %v4074 = vclz %v4073
      %v4075 = vsub.s32 %v4074, 2
      %vm4076 = vcmp.gt.s32.totalorder 0, %v4075
      %v4077 = vsel %vm4076, 0, %v4075
      %v4078 = vsub.s32 32, %v4077
      %v4079 = vshll.u32 %v4070, %v4077
      %v4080 = vshrl.u32 %v4062, %v4078
      %v4081 = vor.u32 %v4079, %v4080
      %v4082 = vsub.s32 4294967266, %v4077
      %v4083 = vadd.s32 %v4082, 127
      %v4084 = vshll.u32 %v4083, 23
      %v4085 = vor.u32 4788187, %v4084
      %v4086 = vand.u32 2147483647, %v4085
      %v4088 = vcvt.s32.f32 %v4081
      %v4089 = vmul.f32 %v4088, %v4086
      %v4090 = vxor.u32 %v4089, 2147483648
      %v4091 = vsel %vm4008, %v4090, %v4089
      %v4092 = vsub.s32 4, %v4068
      %v4093 = vsel %vm4008, %v4092, %v4068
      %v4094 = vsel %vm4007, %v878, %v4091
      %v4095 = vsel %vm4007, 0, %v4093
      %v4096 = vcosq.f32.pop %v4094
      %v4097 = vsinq.f32.pop %v4094
      %vm4098 = vweird.f32 %v878
      %v4099 = vadd.s32 %v4095, 3
      %v4100 = vand.u32 %v4099, 3
      %vm4101 = vcmp.lt.s32.totalorder %v4100, 2
      %vm4102 = vcmp.eq.s32.totalorder %v4100, 0
      %v4103 = vxor.u32 %v4097, 2147483648
      %v4104 = vsel %vm4102, %v4096, %v4103
      %vm4105 = vcmp.eq.s32.totalorder %v4100, 2
      %v4106 = vxor.u32 %v4096, 2147483648
      %v4107 = vsel %vm4105, %v4106, %v4097
      %v4108 = vsel %vm4101, %v4104, %v4107
      %v4109 = vsel %vm4098, nan, %v4108
      %v4110 = vand.u32 2147483647, %v883
      %vm4111 = vcmp.le.f32.partialorder %v4110, 0.7853982
      %vm4112 = vcmp.lt.s32.totalorder %v883, 0
      %v4113 = vand.u32 %v883, 2139095040
      %v4114 = vshrl.u32 %v4113, 23
      %v4115 = vsub.s32 %v4114, 127
      %v4116 = vand.u32 2147483647, %v883
      %v4117 = vand.u32 %v4116, 8388607
      %v4118 = vor.u32 %v4117, 8388608
      %v4119 = vsub.s32 0, %v4118
      %v4120 = vadd.s32 %v4115, 1
      %vm4121 = vcmp.gt.s32.totalorder %v4120, 0
      %v4122 = vsel %vm4121, %v4120, 0
      %v4123 = vshrl.u32 %v4122, 5
      %v4124 = vand.u32 %v4122, 31
      %v4125 = vsub.s32 32, %v4124
      %v4126 = vshrl.u32 683565275, %v4125
      %v4127 = vshll.u32 683565275, %v4124
      %v4128 = vshrl.u32 2475754826, %v4125
      %v4129 = vor.u32 %v4127, %v4128
      %v4130 = vshll.u32 2475754826, %v4124
      %v4131 = vshrl.u32 2131351028, %v4125
      %v4132 = vor.u32 %v4130, %v4131
      %v4133 = vshll.u32 2131351028, %v4124
      %v4134 = vshrl.u32 2102212464, %v4125
      %v4135 = vor.u32 %v4133, %v4134
      %v4136 = vshll.u32 2102212464, %v4124
      %v4137 = vshrl.u32 920167782, %v4125
      %v4138 = vor.u32 %v4136, %v4137
      %v4139 = vshll.u32 920167782, %v4124
      %v4140 = vshrl.u32 1326507024, %v4125
      %v4141 = vor.u32 %v4139, %v4140
      %vm4142 = vcmp.lt.s32.totalorder %v4123, 1
      %vm4143 = vcmp.lt.s32.totalorder %v4123, 2
      %vm4144 = vcmp.lt.s32.totalorder %v4123, 3
      %vm4145 = vcmp.lt.s32.totalorder %v4123, 4
      %v4146 = vsel %vm4142, %v4126, %v4129
      %v4147 = vsel %vm4145, %v4135, 2102212464
      %v4148 = vsel %vm4144, %v4132, %v4147
      %v4149 = vsel %vm4143, %v4146, %v4148
      %v4150 = vsel %vm4142, %v4129, %v4132
      %v4151 = vsel %vm4145, %v4138, 920167782
      %v4152 = vsel %vm4144, %v4135, %v4151
      %v4153 = vsel %vm4143, %v4150, %v4152
      %v4154 = vsel %vm4142, %v4132, %v4135
      %v4155 = vsel %vm4145, %v4141, 1326507024
      %v4156 = vsel %vm4144, %v4138, %v4155
      %v4157 = vsel %vm4143, %v4154, %v4156
      %v4158 = vshll.u32 %v4118, 8
      %v4159 = vmul.u32.u64.compose %v4158, %v4157
      %v4160 = vextract.low.u32 %v4159
      %v4161 = vextract.high.u32 %v4159
      %v4162 = vmul.u32.u64.compose %v4158, %v4153
      %v4163 = vextract.low.u32 %v4162
      %v4164 = vextract.high.u32 %v4162
      %v4165 = vmul.u32 %v4158, %v4149
      %v4166 = vadd.s32 %v4161, %v4163
      %vm4167 = vc.u32 %v4161, %v4163
      %v4168 = vadd.s32 %v4164, 1
      %v4169 = vsel %vm4167, %v4168, %v4164
      %v4170 = vadd.s32 %v4165, %v4169
      %v4171 = vadd.s32 %v4170, 536870912
      %v4172 = vshrl.u32 %v4171, 30
      %v4173 = vshll.u32 %v4172, 30
      %v4174 = vsub.s32 %v4170, %v4173
      %vm4175 = vcmp.lt.s32.totalorder %v4174, 0
      %v4176 = vsub.s32 0, %v4174
      %v4177 = vsel %vm4175, %v4176, %v4174
      %v4178 = vclz %v4177
      %v4179 = vsub.s32 %v4178, 2
      %vm4180 = vcmp.gt.s32.totalorder 0, %v4179
      %v4181 = vsel %vm4180, 0, %v4179
      %v4182 = vsub.s32 32, %v4181
      %v4183 = vshll.u32 %v4174, %v4181
      %v4184 = vshrl.u32 %v4166, %v4182
      %v4185 = vor.u32 %v4183, %v4184
      %v4186 = vsub.s32 4294967266, %v4181
      %v4187 = vadd.s32 %v4186, 127
      %v4188 = vshll.u32 %v4187, 23
      %v4189 = vor.u32 4788187, %v4188
      %v4190 = vand.u32 2147483647, %v4189
      %v4192 = vcvt.s32.f32 %v4185
      %v4193 = vmul.f32 %v4192, %v4190
      %v4194 = vxor.u32 %v4193, 2147483648
      %v4195 = vsel %vm4112, %v4194, %v4193
      %v4196 = vsub.s32 4, %v4172
      %v4197 = vsel %vm4112, %v4196, %v4172
      %v4198 = vsel %vm4111, %v883, %v4195
      %v4199 = vsel %vm4111, 0, %v4197
      %v4200 = vcosq.f32.pop %v4198
      %v4201 = vsinq.f32.pop %v4198
      %vm4202 = vweird.f32 %v883
      %v4203 = vadd.s32 %v4199, 3
      %v4204 = vand.u32 %v4203, 3
      %vm4205 = vcmp.lt.s32.totalorder %v4204, 2
      %vm4206 = vcmp.eq.s32.totalorder %v4204, 0
      %v4207 = vxor.u32 %v4201, 2147483648
      %v4208 = vsel %vm4206, %v4200, %v4207
      %vm4209 = vcmp.eq.s32.totalorder %v4204, 2
      %v4210 = vxor.u32 %v4200, 2147483648
      %v4211 = vsel %vm4209, %v4210, %v4201
      %v4212 = vsel %vm4205, %v4208, %v4211
      %v4213 = vsel %vm4202, nan, %v4212
      %v4214 = vld [vmem:[%s3] sm:$0xff]
      %v4215 = vld [vmem:[%s3 + $0x8] sm:$0xff]
      %v4216 = vld [vmem:[%s3 + $0x10] sm:$0xff]
      %v4217 = vld [vmem:[%s3 + $0x18] sm:$0xff]
      %v4218 = vld [vmem:[%s3 + $0x20] sm:$0xff]
      %v4219 = vld [vmem:[%s3 + $0x28] sm:$0xff]
      %v4220 = vld [vmem:[%s3 + $0x30] sm:$0xff]
      %v4221 = vld [vmem:[%s3 + $0x38] sm:$0xff]
      %v4222 = vld [vmem:[%s3 + $0x40] sm:$0xff]
      %v4223 = vld [vmem:[%s3 + $0x48] sm:$0xff]
      %v4224 = vld [vmem:[%s3 + $0x50] sm:$0xff]
      %v4225 = vld [vmem:[%s3 + $0x58] sm:$0x1f]
      %v4226 = vld [vmem:[%s9] sm:$0x1]
      %v4228 = vlaneseq
      %v4229 = vshrl.u32 %v4228, 7
      %v4230 = vsub.s32 0, %v4229
      %v4231 = vrot.slane %v4226, %v4230
      %vm4233 = vcmask 760832
      %v4235 = vsel %vm4233, %v989, 0
      %v4238 = vsel %vm4233, %v1093, 0
      %v4241 = vsel %vm4233, %v1197, 0
      %v4244 = vsel %vm4233, %v1301, 0
      %v4247 = vsel %vm4233, %v1405, 0
      %v4250 = vsel %vm4233, %v1509, 0
      %v4253 = vsel %vm4233, %v1613, 0
      %v4256 = vsel %vm4233, %v1717, 0
      %v4259 = vsel %vm4233, %v1821, 0
      %v4262 = vsel %vm4233, %v1925, 0
      %v4265 = vsel %vm4233, %v2029, 0
      %v4268 = vsel %vm4233, %v2133, 0
      %v4271 = vsel %vm4233, %v2237, 0
      %v4274 = vsel %vm4233, %v2341, 0
      %v4277 = vsel %vm4233, %v2445, 0
      %v4280 = vsel %vm4233, %v2549, 0
      %v4283 = vsel %vm4233, %v2653, 0
      %v4286 = vsel %vm4233, %v2757, 0
      %v4289 = vsel %vm4233, %v2861, 0
      %v4292 = vsel %vm4233, %v2965, 0
      %v4295 = vsel %vm4233, %v3069, 0
      %v4298 = vsel %vm4233, %v3173, 0
      %v4301 = vsel %vm4233, %v3277, 0
      %v4304 = vsel %vm4233, %v3381, 0
      %v4307 = vsel %vm4233, %v3485, 0
      %v4310 = vsel %vm4233, %v3589, 0
      %v4313 = vsel %vm4233, %v3693, 0
      %v4316 = vsel %vm4233, %v3797, 0
      %v4319 = vsel %vm4233, %v3901, 0
      %v4322 = vsel %vm4233, %v4005, 0
      %v4325 = vsel %vm4233, %v4109, 0
      %v4328 = vsel %vm4233, %v4213, 0
      %vm4330 = vcmask 1044480
      %v4332 = vsel %vm4330, %v4225, 0
      %4334 = vmatprep.subr.mxu0 0.0
      %4335 = vmatpush1.msra.mxu0 %v4214
      %4336 = vmatprep.subr.mxu0 0.0
      %4337 = vmatpush1.msra.mxu0 %v4215
      %4338 = vmatprep.subr.mxu0 0.0
      %4339 = vmatpush1.msra.mxu0 %v4216
      %4340 = vmatprep.subr.mxu0 0.0
      %4341 = vmatpush1.msra.mxu0 %v4217
      %4342 = vmatprep.subr.mxu0 0.0
      %4343 = vmatpush1.msra.mxu0 %v4218
      %4344 = vmatprep.subr.mxu0 0.0
      %4345 = vmatpush1.msra.mxu0 %v4219
      %4346 = vmatprep.subr.mxu0 0.0
      %4347 = vmatpush1.msra.mxu0 %v4220
      %4348 = vmatprep.subr.mxu0 0.0
      %4349 = vmatpush1.msra.mxu0 %v4221
      %4350 = vmatprep.subr.mxu0 0.0
      %4351 = vmatpush1.msra.mxu0 %v4222
      %4352 = vmatprep.subr.mxu0 0.0
      %4353 = vmatpush1.msra.mxu0 %v4223
      %4354 = vmatprep.subr.mxu0 0.0
      %4355 = vmatpush1.msra.mxu0 %v4224
      %4356 = vmatprep.subr.mxu0 0.0
      %4357 = vmatpush1.msra.mxu0 %v4332
      %4358 = vmatprep.subr.mxu0 0.0
      %4359 = vmatpush1.msra.mxu0 0.0
      %4360 = vmatprep.subr.mxu0 0.0
      %4361 = vmatpush1.msra.mxu0 0.0
      %4362 = vmatprep.subr.mxu0 0.0
      %4363 = vmatpush1.msra.mxu0 0.0
      %4364 = vmatprep.subr.mxu0 0.0
      %4365 = vmatpush1.msra.mxu0 0.0
      %4366 = vmatprep.subr.mxu0 0.0
      %4367 = vmatpush1.msra.mxu0 0.0
      %4368 = vmatprep.subr.mxu0 0.0
      %4369 = vmatpush1.msra.mxu0 0.0
      %4370 = vmatprep.subr.mxu0 0.0
      %4371 = vmatpush1.msra.mxu0 0.0
      %4372 = vmatprep.subr.mxu0 0.0
      %4373 = vmatpush1.msra.mxu0 0.0
      %4374 = vmatprep.subr.mxu0 0.0
      %4375 = vmatpush1.msra.mxu0 0.0
      %4376 = vmatprep.subr.mxu0 0.0
      %4377 = vmatpush1.msra.mxu0 0.0
      %4378 = vmatprep.subr.mxu0 0.0
      %4379 = vmatpush1.msra.mxu0 0.0
      %4380 = vmatprep.subr.mxu0 0.0
      %4381 = vmatpush1.msra.mxu0 0.0
      %4382 = vmatprep.subr.mxu0 0.0
      %4383 = vmatpush1.msra.mxu0 0.0
      %4384 = vmatprep.subr.mxu0 0.0
      %4385 = vmatpush1.msra.mxu0 0.0
      %4386 = vmatprep.subr.mxu0 0.0
      %4387 = vmatpush1.msra.mxu0 0.0
      %4388 = vmatprep.subr.mxu0 0.0
      %4389 = vmatpush1.msra.mxu0 0.0
      %4390 = vmatprep.subr.mxu0 0.0
      %4391 = vmatpush1.msra.mxu0 0.0
      %4392 = vmatprep.subr.mxu0 0.0
      %4393 = vmatpush1.msra.mxu0 0.0
      %4394 = vmatprep.subr.mxu0 0.0
      %4395 = vmatpush1.msra.mxu0 0.0
      %4396 = vmatprep.subr.mxu0 0.0
      %4397 = vmatpush1.msra.mxu0 0.0
      %4398 = vmatprep.mubr.f32.mxu0 0.0
      %4399 = vmatmul.mubr.f32.gmra.mrb[0].mxu0 %v4235
      %v4400 = vpop.f32.mrb[0].mxu0
      %v4401 = vadd.f32 %v4231, %v4400
      %v4402 = vpop.f32.mrb[0].mxu0
      %4403 = vmatprep.mubr.f32.mxu0 0.0
      %4404 = vmatmul.mubr.f32.gmra.mrb[0].mxu0 %v4238
      %v4405 = vpop.f32.mrb[0].mxu0
      %v4406 = vadd.f32 %v4231, %v4405
      %v4407 = vpop.f32.mrb[0].mxu0
      %4408 = vmatprep.mubr.f32.mxu0 0.0
      %4409 = vmatmul.mubr.f32.gmra.mrb[0].mxu0 %v4241
      %v4410 = vpop.f32.mrb[0].mxu0
      %v4411 = vadd.f32 %v4231, %v4410
      %v4412 = vpop.f32.mrb[0].mxu0
      %4413 = vmatprep.mubr.f32.mxu0 0.0
      %4414 = vmatmul.mubr.f32.gmra.mrb[0].mxu0 %v4244
      %v4415 = vpop.f32.mrb[0].mxu0
      %v4416 = vadd.f32 %v4231, %v4415
      %v4417 = vpop.f32.mrb[0].mxu0
      %4418 = vmatprep.mubr.f32.mxu0 0.0
      %4419 = vmatmul.mubr.f32.gmra.mrb[0].mxu0 %v4247
      %v4420 = vpop.f32.mrb[0].mxu0
      %v4421 = vadd.f32 %v4231, %v4420
      %v4422 = vpop.f32.mrb[0].mxu0
      %4423 = vmatprep.mubr.f32.mxu0 0.0
      %4424 = vmatmul.mubr.f32.gmra.mrb[0].mxu0 %v4250
      %v4425 = vpop.f32.mrb[0].mxu0
      %v4426 = vadd.f32 %v4231, %v4425
      %v4427 = vpop.f32.mrb[0].mxu0
      %4428 = vmatprep.mubr.f32.mxu0 0.0
      %4429 = vmatmul.mubr.f32.gmra.mrb[0].mxu0 %v4253
      %v4430 = vpop.f32.mrb[0].mxu0
      %v4431 = vadd.f32 %v4231, %v4430
      %v4432 = vpop.f32.mrb[0].mxu0
      %4433 = vmatprep.mubr.f32.mxu0 0.0
      %4434 = vmatmul.mubr.f32.gmra.mrb[0].mxu0 %v4256
      %v4435 = vpop.f32.mrb[0].mxu0
      %v4436 = vadd.f32 %v4231, %v4435
      %v4437 = vpop.f32.mrb[0].mxu0
      %4438 = vmatprep.mubr.f32.mxu0 0.0
      %4439 = vmatmul.mubr.f32.gmra.mrb[0].mxu0 %v4259
      %v4440 = vpop.f32.mrb[0].mxu0
      %v4441 = vadd.f32 %v4231, %v4440
      %v4442 = vpop.f32.mrb[0].mxu0
      %4443 = vmatprep.mubr.f32.mxu0 0.0
      %4444 = vmatmul.mubr.f32.gmra.mrb[0].mxu0 %v4262
      %v4445 = vpop.f32.mrb[0].mxu0
      %v4446 = vadd.f32 %v4231, %v4445
      %v4447 = vpop.f32.mrb[0].mxu0
      %4448 = vmatprep.mubr.f32.mxu0 0.0
      %4449 = vmatmul.mubr.f32.gmra.mrb[0].mxu0 %v4265
      %v4450 = vpop.f32.mrb[0].mxu0
      %v4451 = vadd.f32 %v4231, %v4450
      %v4452 = vpop.f32.mrb[0].mxu0
      %4453 = vmatprep.mubr.f32.mxu0 0.0
      %4454 = vmatmul.mubr.f32.gmra.mrb[0].mxu0 %v4268
      %v4455 = vpop.f32.mrb[0].mxu0
      %v4456 = vadd.f32 %v4231, %v4455
      %v4457 = vpop.f32.mrb[0].mxu0
      %4458 = vmatprep.mubr.f32.mxu0 0.0
      %4459 = vmatmul.mubr.f32.gmra.mrb[0].mxu0 %v4271
      %v4460 = vpop.f32.mrb[0].mxu0
      %v4461 = vadd.f32 %v4231, %v4460
      %v4462 = vpop.f32.mrb[0].mxu0
      %4463 = vmatprep.mubr.f32.mxu0 0.0
      %4464 = vmatmul.mubr.f32.gmra.mrb[0].mxu0 %v4274
      %v4465 = vpop.f32.mrb[0].mxu0
      %v4466 = vadd.f32 %v4231, %v4465
      %v4467 = vpop.f32.mrb[0].mxu0
      %4468 = vmatprep.mubr.f32.mxu0 0.0
      %4469 = vmatmul.mubr.f32.gmra.mrb[0].mxu0 %v4277
      %v4470 = vpop.f32.mrb[0].mxu0
      %v4471 = vadd.f32 %v4231, %v4470
      %v4472 = vpop.f32.mrb[0].mxu0
      %4473 = vmatprep.mubr.f32.mxu0 0.0
      %4474 = vmatmul.mubr.f32.gmra.mrb[0].mxu0 %v4280
      %v4475 = vpop.f32.mrb[0].mxu0
      %v4476 = vadd.f32 %v4231, %v4475
      %v4477 = vpop.f32.mrb[0].mxu0
      %4478 = vmatprep.mubr.f32.mxu0 0.0
      %4479 = vmatmul.mubr.f32.gmra.mrb[0].mxu0 %v4283
      %v4480 = vpop.f32.mrb[0].mxu0
      %v4481 = vadd.f32 %v4231, %v4480
      %v4482 = vpop.f32.mrb[0].mxu0
      %4483 = vmatprep.mubr.f32.mxu0 0.0
      %4484 = vmatmul.mubr.f32.gmra.mrb[0].mxu0 %v4286
      %v4485 = vpop.f32.mrb[0].mxu0
      %v4486 = vadd.f32 %v4231, %v4485
      %v4487 = vpop.f32.mrb[0].mxu0
      %4488 = vmatprep.mubr.f32.mxu0 0.0
      %4489 = vmatmul.mubr.f32.gmra.mrb[0].mxu0 %v4289
      %v4490 = vpop.f32.mrb[0].mxu0
      %v4491 = vadd.f32 %v4231, %v4490
      %v4492 = vpop.f32.mrb[0].mxu0
      %4493 = vmatprep.mubr.f32.mxu0 0.0
      %4494 = vmatmul.mubr.f32.gmra.mrb[0].mxu0 %v4292
      %v4495 = vpop.f32.mrb[0].mxu0
      %v4496 = vadd.f32 %v4231, %v4495
      %v4497 = vpop.f32.mrb[0].mxu0
      %4498 = vmatprep.mubr.f32.mxu0 0.0
      %4499 = vmatmul.mubr.f32.gmra.mrb[0].mxu0 %v4295
      %v4500 = vpop.f32.mrb[0].mxu0
      %v4501 = vadd.f32 %v4231, %v4500
      %v4502 = vpop.f32.mrb[0].mxu0
      %4503 = vmatprep.mubr.f32.mxu0 0.0
      %4504 = vmatmul.mubr.f32.gmra.mrb[0].mxu0 %v4298
      %v4505 = vpop.f32.mrb[0].mxu0
      %v4506 = vadd.f32 %v4231, %v4505
      %v4507 = vpop.f32.mrb[0].mxu0
      %4508 = vmatprep.mubr.f32.mxu0 0.0
      %4509 = vmatmul.mubr.f32.gmra.mrb[0].mxu0 %v4301
      %v4510 = vpop.f32.mrb[0].mxu0
      %v4511 = vadd.f32 %v4231, %v4510
      %v4512 = vpop.f32.mrb[0].mxu0
      %4513 = vmatprep.mubr.f32.mxu0 0.0
      %4514 = vmatmul.mubr.f32.gmra.mrb[0].mxu0 %v4304
      %v4515 = vpop.f32.mrb[0].mxu0
      %v4516 = vadd.f32 %v4231, %v4515
      %v4517 = vpop.f32.mrb[0].mxu0
      %4518 = vmatprep.mubr.f32.mxu0 0.0
      %4519 = vmatmul.mubr.f32.gmra.mrb[0].mxu0 %v4307
      %v4520 = vpop.f32.mrb[0].mxu0
      %v4521 = vadd.f32 %v4231, %v4520
      %v4522 = vpop.f32.mrb[0].mxu0
      %4523 = vmatprep.mubr.f32.mxu0 0.0
      %4524 = vmatmul.mubr.f32.gmra.mrb[0].mxu0 %v4310
      %v4525 = vpop.f32.mrb[0].mxu0
      %v4526 = vadd.f32 %v4231, %v4525
      %v4527 = vpop.f32.mrb[0].mxu0
      %4528 = vmatprep.mubr.f32.mxu0 0.0
      %4529 = vmatmul.mubr.f32.gmra.mrb[0].mxu0 %v4313
      %v4530 = vpop.f32.mrb[0].mxu0
      %v4531 = vadd.f32 %v4231, %v4530
      %v4532 = vpop.f32.mrb[0].mxu0
      %4533 = vmatprep.mubr.f32.mxu0 0.0
      %4534 = vmatmul.mubr.f32.gmra.mrb[0].mxu0 %v4316
      %v4535 = vpop.f32.mrb[0].mxu0
      %v4536 = vadd.f32 %v4231, %v4535
      %v4537 = vpop.f32.mrb[0].mxu0
      %4538 = vmatprep.mubr.f32.mxu0 0.0
      %4539 = vmatmul.mubr.f32.gmra.mrb[0].mxu0 %v4319
      %v4540 = vpop.f32.mrb[0].mxu0
      %v4541 = vadd.f32 %v4231, %v4540
      %v4542 = vpop.f32.mrb[0].mxu0
      %4543 = vmatprep.mubr.f32.mxu0 0.0
      %4544 = vmatmul.mubr.f32.gmra.mrb[0].mxu0 %v4322
      %v4545 = vpop.f32.mrb[0].mxu0
      %v4546 = vadd.f32 %v4231, %v4545
      %v4547 = vpop.f32.mrb[0].mxu0
      %4548 = vmatprep.mubr.f32.mxu0 0.0
      %4549 = vmatmul.mubr.f32.gmra.mrb[0].mxu0 %v4325
      %v4550 = vpop.f32.mrb[0].mxu0
      %v4551 = vadd.f32 %v4231, %v4550
      %v4552 = vpop.f32.mrb[0].mxu0
      %4553 = vmatprep.mubr.f32.mxu0 0.0
      %4554 = vmatmul.mubr.f32.gmra.mrb[0].mxu0 %v4328
      %v4555 = vpop.f32.mrb[0].mxu0
      %v4556 = vadd.f32 %v4231, %v4555
      %v4557 = vpop.f32.mrb[0].mxu0
      %4558 = vdwg.mxu0
      %v4559 = vmax.f32 %v4401, 0.0
      %v4560 = vmax.f32 %v4406, 0.0
      %v4561 = vmax.f32 %v4411, 0.0
      %v4562 = vmax.f32 %v4416, 0.0
      %v4563 = vmax.f32 %v4421, 0.0
      %v4564 = vmax.f32 %v4426, 0.0
      %v4565 = vmax.f32 %v4431, 0.0
      %v4566 = vmax.f32 %v4436, 0.0
      %v4567 = vmax.f32 %v4441, 0.0
      %v4568 = vmax.f32 %v4446, 0.0
      %v4569 = vmax.f32 %v4451, 0.0
      %v4570 = vmax.f32 %v4456, 0.0
      %v4571 = vmax.f32 %v4461, 0.0
      %v4572 = vmax.f32 %v4466, 0.0
      %v4573 = vmax.f32 %v4471, 0.0
      %v4574 = vmax.f32 %v4476, 0.0
      %v4575 = vmax.f32 %v4481, 0.0
      %v4576 = vmax.f32 %v4486, 0.0
      %v4577 = vmax.f32 %v4491, 0.0
      %v4578 = vmax.f32 %v4496, 0.0
      %v4579 = vmax.f32 %v4501, 0.0
      %v4580 = vmax.f32 %v4506, 0.0
      %v4581 = vmax.f32 %v4511, 0.0
      %v4582 = vmax.f32 %v4516, 0.0
      %v4583 = vmax.f32 %v4521, 0.0
      %v4584 = vmax.f32 %v4526, 0.0
      %v4585 = vmax.f32 %v4531, 0.0
      %v4586 = vmax.f32 %v4536, 0.0
      %v4587 = vmax.f32 %v4541, 0.0
      %v4588 = vmax.f32 %v4546, 0.0
      %v4589 = vmax.f32 %v4551, 0.0
      %v4590 = vmax.f32 %v4556, 0.0
      %v4591 = vld [vmem:[%s10] sm:$0xff]
      %v4592 = vld [vmem:[%s10 + $0x8] sm:$0xff]
      %v4593 = vld [vmem:[%s10 + $0x10] sm:$0xff]
      %v4594 = vld [vmem:[%s10 + $0x18] sm:$0xff]
      %v4595 = vld [vmem:[%s11] sm:$0x1]
      %v4597 = vlaneseq
      %v4598 = vshrl.u32 %v4597, 7
      %v4599 = vsub.s32 0, %v4598
      %v4600 = vrot.slane %v4595, %v4599
      %vm4602 = vcmask 261120
      %v4604 = vsel %vm4602, %v527, 0
      %v4607 = vsel %vm4602, %v528, 0
      %v4610 = vsel %vm4602, %v529, 0
      %v4613 = vsel %vm4602, %v530, 0
      %v4616 = vsel %vm4602, %v531, 0
      %v4619 = vsel %vm4602, %v532, 0
      %v4622 = vsel %vm4602, %v533, 0
      %v4625 = vsel %vm4602, %v534, 0
      %v4628 = vsel %vm4602, %v535, 0
      %v4631 = vsel %vm4602, %v536, 0
      %v4634 = vsel %vm4602, %v537, 0
      %v4637 = vsel %vm4602, %v538, 0
      %v4640 = vsel %vm4602, %v539, 0
      %v4643 = vsel %vm4602, %v540, 0
      %v4646 = vsel %vm4602, %v541, 0
      %v4649 = vsel %vm4602, %v542, 0
      %v4652 = vsel %vm4602, %v543, 0
      %v4655 = vsel %vm4602, %v544, 0
      %v4658 = vsel %vm4602, %v545, 0
      %v4661 = vsel %vm4602, %v546, 0
      %v4664 = vsel %vm4602, %v547, 0
      %v4667 = vsel %vm4602, %v548, 0
      %v4670 = vsel %vm4602, %v549, 0
      %v4673 = vsel %vm4602, %v550, 0
      %v4676 = vsel %vm4602, %v551, 0
      %v4679 = vsel %vm4602, %v552, 0
      %v4682 = vsel %vm4602, %v553, 0
      %v4685 = vsel %vm4602, %v554, 0
      %v4688 = vsel %vm4602, %v555, 0
      %v4691 = vsel %vm4602, %v556, 0
      %v4694 = vsel %vm4602, %v557, 0
      %v4697 = vsel %vm4602, %v558, 0
      %4699 = vmatprep.subr.mxu0 0.0
      %4700 = vmatpush1.msra.mxu0 %v4591
      %4701 = vmatprep.subr.mxu0 0.0
      %4702 = vmatpush1.msra.mxu0 %v4592
      %4703 = vmatprep.subr.mxu0 0.0
      %4704 = vmatpush1.msra.mxu0 %v4593
      %4705 = vmatprep.subr.mxu0 0.0
      %4706 = vmatpush1.msra.mxu0 %v4594
      %4707 = vmatprep.subr.mxu0 0.0
      %4708 = vmatpush1.msra.mxu0 0.0
      %4709 = vmatprep.subr.mxu0 0.0
      %4710 = vmatpush1.msra.mxu0 0.0
      %4711 = vmatprep.subr.mxu0 0.0
      %4712 = vmatpush1.msra.mxu0 0.0
      %4713 = vmatprep.subr.mxu0 0.0
      %4714 = vmatpush1.msra.mxu0 0.0
      %4715 = vmatprep.subr.mxu0 0.0
      %4716 = vmatpush1.msra.mxu0 0.0
      %4717 = vmatprep.subr.mxu0 0.0
      %4718 = vmatpush1.msra.mxu0 0.0
      %4719 = vmatprep.subr.mxu0 0.0
      %4720 = vmatpush1.msra.mxu0 0.0
      %4721 = vmatprep.subr.mxu0 0.0
      %4722 = vmatpush1.msra.mxu0 0.0
      %4723 = vmatprep.subr.mxu0 0.0
      %4724 = vmatpush1.msra.mxu0 0.0
      %4725 = vmatprep.subr.mxu0 0.0
      %4726 = vmatpush1.msra.mxu0 0.0
      %4727 = vmatprep.subr.mxu0 0.0
      %4728 = vmatpush1.msra.mxu0 0.0
      %4729 = vmatprep.subr.mxu0 0.0
      %4730 = vmatpush1.msra.mxu0 0.0
      %4731 = vmatprep.subr.mxu0 0.0
      %4732 = vmatpush1.msra.mxu0 0.0
      %4733 = vmatprep.subr.mxu0 0.0
      %4734 = vmatpush1.msra.mxu0 0.0
      %4735 = vmatprep.subr.mxu0 0.0
      %4736 = vmatpush1.msra.mxu0 0.0
      %4737 = vmatprep.subr.mxu0 0.0
      %4738 = vmatpush1.msra.mxu0 0.0
      %4739 = vmatprep.subr.mxu0 0.0
      %4740 = vmatpush1.msra.mxu0 0.0
      %4741 = vmatprep.subr.mxu0 0.0
      %4742 = vmatpush1.msra.mxu0 0.0
      %4743 = vmatprep.subr.mxu0 0.0
      %4744 = vmatpush1.msra.mxu0 0.0
      %4745 = vmatprep.subr.mxu0 0.0
      %4746 = vmatpush1.msra.mxu0 0.0
      %4747 = vmatprep.subr.mxu0 0.0
      %4748 = vmatpush1.msra.mxu0 0.0
      %4749 = vmatprep.subr.mxu0 0.0
      %4750 = vmatpush1.msra.mxu0 0.0
      %4751 = vmatprep.subr.mxu0 0.0
      %4752 = vmatpush1.msra.mxu0 0.0
      %4753 = vmatprep.subr.mxu0 0.0
      %4754 = vmatpush1.msra.mxu0 0.0
      %4755 = vmatprep.subr.mxu0 0.0
      %4756 = vmatpush1.msra.mxu0 0.0
      %4757 = vmatprep.subr.mxu0 0.0
      %4758 = vmatpush1.msra.mxu0 0.0
      %4759 = vmatprep.subr.mxu0 0.0
      %4760 = vmatpush1.msra.mxu0 0.0
      %4761 = vmatprep.subr.mxu0 0.0
      %4762 = vmatpush1.msra.mxu0 0.0
      %4763 = vmatprep.mubr.f32.mxu0 0.0
      %4764 = vmatmul.mubr.f32.gmra.mrb[0].mxu0 %v4604
      %v4765 = vpop.f32.mrb[0].mxu0
      %v4766 = vadd.f32 %v4600, %v4765
      %v4767 = vpop.f32.mrb[0].mxu0
      %4768 = vmatprep.mubr.f32.mxu0 0.0
      %4769 = vmatmul.mubr.f32.gmra.mrb[0].mxu0 %v4607
      %v4770 = vpop.f32.mrb[0].mxu0
      %v4771 = vadd.f32 %v4600, %v4770
      %v4772 = vpop.f32.mrb[0].mxu0
      %4773 = vmatprep.mubr.f32.mxu0 0.0
      %4774 = vmatmul.mubr.f32.gmra.mrb[0].mxu0 %v4610
      %v4775 = vpop.f32.mrb[0].mxu0
      %v4776 = vadd.f32 %v4600, %v4775
      %v4777 = vpop.f32.mrb[0].mxu0
      %4778 = vmatprep.mubr.f32.mxu0 0.0
      %4779 = vmatmul.mubr.f32.gmra.mrb[0].mxu0 %v4613
      %v4780 = vpop.f32.mrb[0].mxu0
      %v4781 = vadd.f32 %v4600, %v4780
      %v4782 = vpop.f32.mrb[0].mxu0
      %4783 = vmatprep.mubr.f32.mxu0 0.0
      %4784 = vmatmul.mubr.f32.gmra.mrb[0].mxu0 %v4616
      %v4785 = vpop.f32.mrb[0].mxu0
      %v4786 = vadd.f32 %v4600, %v4785
      %v4787 = vpop.f32.mrb[0].mxu0
      %4788 = vmatprep.mubr.f32.mxu0 0.0
      %4789 = vmatmul.mubr.f32.gmra.mrb[0].mxu0 %v4619
      %v4790 = vpop.f32.mrb[0].mxu0
      %v4791 = vadd.f32 %v4600, %v4790
      %v4792 = vpop.f32.mrb[0].mxu0
      %4793 = vmatprep.mubr.f32.mxu0 0.0
      %4794 = vmatmul.mubr.f32.gmra.mrb[0].mxu0 %v4622
      %v4795 = vpop.f32.mrb[0].mxu0
      %v4796 = vadd.f32 %v4600, %v4795
      %v4797 = vpop.f32.mrb[0].mxu0
      %4798 = vmatprep.mubr.f32.mxu0 0.0
      %4799 = vmatmul.mubr.f32.gmra.mrb[0].mxu0 %v4625
      %v4800 = vpop.f32.mrb[0].mxu0
      %v4801 = vadd.f32 %v4600, %v4800
      %v4802 = vpop.f32.mrb[0].mxu0
      %4803 = vmatprep.mubr.f32.mxu0 0.0
      %4804 = vmatmul.mubr.f32.gmra.mrb[0].mxu0 %v4628
      %v4805 = vpop.f32.mrb[0].mxu0
      %v4806 = vadd.f32 %v4600, %v4805
      %v4807 = vpop.f32.mrb[0].mxu0
      %4808 = vmatprep.mubr.f32.mxu0 0.0
      %4809 = vmatmul.mubr.f32.gmra.mrb[0].mxu0 %v4631
      %v4810 = vpop.f32.mrb[0].mxu0
      %v4811 = vadd.f32 %v4600, %v4810
      %v4812 = vpop.f32.mrb[0].mxu0
      %4813 = vmatprep.mubr.f32.mxu0 0.0
      %4814 = vmatmul.mubr.f32.gmra.mrb[0].mxu0 %v4634
      %v4815 = vpop.f32.mrb[0].mxu0
      %v4816 = vadd.f32 %v4600, %v4815
      %v4817 = vpop.f32.mrb[0].mxu0
      %4818 = vmatprep.mubr.f32.mxu0 0.0
      %4819 = vmatmul.mubr.f32.gmra.mrb[0].mxu0 %v4637
      %v4820 = vpop.f32.mrb[0].mxu0
      %v4821 = vadd.f32 %v4600, %v4820
      %v4822 = vpop.f32.mrb[0].mxu0
      %4823 = vmatprep.mubr.f32.mxu0 0.0
      %4824 = vmatmul.mubr.f32.gmra.mrb[0].mxu0 %v4640
      %v4825 = vpop.f32.mrb[0].mxu0
      %v4826 = vadd.f32 %v4600, %v4825
      %v4827 = vpop.f32.mrb[0].mxu0
      %4828 = vmatprep.mubr.f32.mxu0 0.0
      %4829 = vmatmul.mubr.f32.gmra.mrb[0].mxu0 %v4643
      %v4830 = vpop.f32.mrb[0].mxu0
      %v4831 = vadd.f32 %v4600, %v4830
      %v4832 = vpop.f32.mrb[0].mxu0
      %4833 = vmatprep.mubr.f32.mxu0 0.0
      %4834 = vmatmul.mubr.f32.gmra.mrb[0].mxu0 %v4646
      %v4835 = vpop.f32.mrb[0].mxu0
      %v4836 = vadd.f32 %v4600, %v4835
      %v4837 = vpop.f32.mrb[0].mxu0
      %4838 = vmatprep.mubr.f32.mxu0 0.0
      %4839 = vmatmul.mubr.f32.gmra.mrb[0].mxu0 %v4649
      %v4840 = vpop.f32.mrb[0].mxu0
      %v4841 = vadd.f32 %v4600, %v4840
      %v4842 = vpop.f32.mrb[0].mxu0
      %4843 = vmatprep.mubr.f32.mxu0 0.0
      %4844 = vmatmul.mubr.f32.gmra.mrb[0].mxu0 %v4652
      %v4845 = vpop.f32.mrb[0].mxu0
      %v4846 = vadd.f32 %v4600, %v4845
      %v4847 = vpop.f32.mrb[0].mxu0
      %4848 = vmatprep.mubr.f32.mxu0 0.0
      %4849 = vmatmul.mubr.f32.gmra.mrb[0].mxu0 %v4655
      %v4850 = vpop.f32.mrb[0].mxu0
      %v4851 = vadd.f32 %v4600, %v4850
      %v4852 = vpop.f32.mrb[0].mxu0
      %4853 = vmatprep.mubr.f32.mxu0 0.0
      %4854 = vmatmul.mubr.f32.gmra.mrb[0].mxu0 %v4658
      %v4855 = vpop.f32.mrb[0].mxu0
      %v4856 = vadd.f32 %v4600, %v4855
      %v4857 = vpop.f32.mrb[0].mxu0
      %4858 = vmatprep.mubr.f32.mxu0 0.0
      %4859 = vmatmul.mubr.f32.gmra.mrb[0].mxu0 %v4661
      %v4860 = vpop.f32.mrb[0].mxu0
      %v4861 = vadd.f32 %v4600, %v4860
      %v4862 = vpop.f32.mrb[0].mxu0
      %4863 = vmatprep.mubr.f32.mxu0 0.0
      %4864 = vmatmul.mubr.f32.gmra.mrb[0].mxu0 %v4664
      %v4865 = vpop.f32.mrb[0].mxu0
      %v4866 = vadd.f32 %v4600, %v4865
      %v4867 = vpop.f32.mrb[0].mxu0
      %4868 = vmatprep.mubr.f32.mxu0 0.0
      %4869 = vmatmul.mubr.f32.gmra.mrb[0].mxu0 %v4667
      %v4870 = vpop.f32.mrb[0].mxu0
      %v4871 = vadd.f32 %v4600, %v4870
      %v4872 = vpop.f32.mrb[0].mxu0
      %4873 = vmatprep.mubr.f32.mxu0 0.0
      %4874 = vmatmul.mubr.f32.gmra.mrb[0].mxu0 %v4670
      %v4875 = vpop.f32.mrb[0].mxu0
      %v4876 = vadd.f32 %v4600, %v4875
      %v4877 = vpop.f32.mrb[0].mxu0
      %4878 = vmatprep.mubr.f32.mxu0 0.0
      %4879 = vmatmul.mubr.f32.gmra.mrb[0].mxu0 %v4673
      %v4880 = vpop.f32.mrb[0].mxu0
      %v4881 = vadd.f32 %v4600, %v4880
      %v4882 = vpop.f32.mrb[0].mxu0
      %4883 = vmatprep.mubr.f32.mxu0 0.0
      %4884 = vmatmul.mubr.f32.gmra.mrb[0].mxu0 %v4676
      %v4885 = vpop.f32.mrb[0].mxu0
      %v4886 = vadd.f32 %v4600, %v4885
      %v4887 = vpop.f32.mrb[0].mxu0
      %4888 = vmatprep.mubr.f32.mxu0 0.0
      %4889 = vmatmul.mubr.f32.gmra.mrb[0].mxu0 %v4679
      %v4890 = vpop.f32.mrb[0].mxu0
      %v4891 = vadd.f32 %v4600, %v4890
      %v4892 = vpop.f32.mrb[0].mxu0
      %4893 = vmatprep.mubr.f32.mxu0 0.0
      %4894 = vmatmul.mubr.f32.gmra.mrb[0].mxu0 %v4682
      %v4895 = vpop.f32.mrb[0].mxu0
      %v4896 = vadd.f32 %v4600, %v4895
      %v4897 = vpop.f32.mrb[0].mxu0
      %4898 = vmatprep.mubr.f32.mxu0 0.0
      %4899 = vmatmul.mubr.f32.gmra.mrb[0].mxu0 %v4685
      %v4900 = vpop.f32.mrb[0].mxu0
      %v4901 = vadd.f32 %v4600, %v4900
      %v4902 = vpop.f32.mrb[0].mxu0
      %4903 = vmatprep.mubr.f32.mxu0 0.0
      %4904 = vmatmul.mubr.f32.gmra.mrb[0].mxu0 %v4688
      %v4905 = vpop.f32.mrb[0].mxu0
      %v4906 = vadd.f32 %v4600, %v4905
      %v4907 = vpop.f32.mrb[0].mxu0
      %4908 = vmatprep.mubr.f32.mxu0 0.0
      %4909 = vmatmul.mubr.f32.gmra.mrb[0].mxu0 %v4691
      %v4910 = vpop.f32.mrb[0].mxu0
      %v4911 = vadd.f32 %v4600, %v4910
      %v4912 = vpop.f32.mrb[0].mxu0
      %4913 = vmatprep.mubr.f32.mxu0 0.0
      %4914 = vmatmul.mubr.f32.gmra.mrb[0].mxu0 %v4694
      %v4915 = vpop.f32.mrb[0].mxu0
      %v4916 = vadd.f32 %v4600, %v4915
      %v4917 = vpop.f32.mrb[0].mxu0
      %4918 = vmatprep.mubr.f32.mxu0 0.0
      %4919 = vmatmul.mubr.f32.gmra.mrb[0].mxu0 %v4697
      %v4920 = vpop.f32.mrb[0].mxu0
      %v4921 = vadd.f32 %v4600, %v4920
      %v4922 = vpop.f32.mrb[0].mxu0
      %4923 = vdwg.mxu0
      %v4924 = vadd.f32 %v4559, %v4766
      %v4925 = vadd.f32 %v4560, %v4771
      %v4926 = vadd.f32 %v4561, %v4776
      %v4927 = vadd.f32 %v4562, %v4781
      %v4928 = vadd.f32 %v4563, %v4786
      %v4929 = vadd.f32 %v4564, %v4791
      %v4930 = vadd.f32 %v4565, %v4796
      %v4931 = vadd.f32 %v4566, %v4801
      %v4932 = vadd.f32 %v4567, %v4806
      %v4933 = vadd.f32 %v4568, %v4811
      %v4934 = vadd.f32 %v4569, %v4816
      %v4935 = vadd.f32 %v4570, %v4821
      %v4936 = vadd.f32 %v4571, %v4826
      %v4937 = vadd.f32 %v4572, %v4831
      %v4938 = vadd.f32 %v4573, %v4836
      %v4939 = vadd.f32 %v4574, %v4841
      %v4940 = vadd.f32 %v4575, %v4846
      %v4941 = vadd.f32 %v4576, %v4851
      %v4942 = vadd.f32 %v4577, %v4856
      %v4943 = vadd.f32 %v4578, %v4861
      %v4944 = vadd.f32 %v4579, %v4866
      %v4945 = vadd.f32 %v4580, %v4871
      %v4946 = vadd.f32 %v4581, %v4876
      %v4947 = vadd.f32 %v4582, %v4881
      %v4948 = vadd.f32 %v4583, %v4886
      %v4949 = vadd.f32 %v4584, %v4891
      %v4950 = vadd.f32 %v4585, %v4896
      %v4951 = vadd.f32 %v4586, %v4901
      %v4952 = vadd.f32 %v4587, %v4906
      %v4953 = vadd.f32 %v4588, %v4911
      %v4954 = vadd.f32 %v4589, %v4916
      %v4955 = vadd.f32 %v4590, %v4921
      %v4956 = vld [vmem:[%s4] sm:$0xff]
      %v4957 = vld [vmem:[%s4 + $0x8] sm:$0xff]
      %v4958 = vld [vmem:[%s4 + $0x10] sm:$0xff]
      %v4959 = vld [vmem:[%s4 + $0x18] sm:$0xff]
      %s4960 = scalar_lea.vmem %s9, 1
      %v4961 = vld [vmem:[%s4960] sm:$0x1]
      %v4963 = vlaneseq
      %v4964 = vshrl.u32 %v4963, 7
      %v4965 = vsub.s32 0, %v4964
      %v4966 = vrot.slane %v4961, %v4965
      %v4969 = vsel %vm4602, %v4924, 0
      %v4972 = vsel %vm4602, %v4925, 0
      %v4975 = vsel %vm4602, %v4926, 0
      %v4978 = vsel %vm4602, %v4927, 0
      %v4981 = vsel %vm4602, %v4928, 0
      %v4984 = vsel %vm4602, %v4929, 0
      %v4987 = vsel %vm4602, %v4930, 0
      %v4990 = vsel %vm4602, %v4931, 0
      %v4993 = vsel %vm4602, %v4932, 0
      %v4996 = vsel %vm4602, %v4933, 0
      %v4999 = vsel %vm4602, %v4934, 0
      %v5002 = vsel %vm4602, %v4935, 0
      %v5005 = vsel %vm4602, %v4936, 0
      %v5008 = vsel %vm4602, %v4937, 0
      %v5011 = vsel %vm4602, %v4938, 0
      %v5014 = vsel %vm4602, %v4939, 0
      %v5017 = vsel %vm4602, %v4940, 0
      %v5020 = vsel %vm4602, %v4941, 0
      %v5023 = vsel %vm4602, %v4942, 0
      %v5026 = vsel %vm4602, %v4943, 0
      %v5029 = vsel %vm4602, %v4944, 0
      %v5032 = vsel %vm4602, %v4945, 0
      %v5035 = vsel %vm4602, %v4946, 0
      %v5038 = vsel %vm4602, %v4947, 0
      %v5041 = vsel %vm4602, %v4948, 0
      %v5044 = vsel %vm4602, %v4949, 0
      %v5047 = vsel %vm4602, %v4950, 0
      %v5050 = vsel %vm4602, %v4951, 0
      %v5053 = vsel %vm4602, %v4952, 0
      %v5056 = vsel %vm4602, %v4953, 0
      %v5059 = vsel %vm4602, %v4954, 0
      %v5062 = vsel %vm4602, %v4955, 0
      %5064 = vmatprep.subr.mxu0 0.0
      %5065 = vmatpush1.msra.mxu0 %v4956
      %5066 = vmatprep.subr.mxu0 0.0
      %5067 = vmatpush1.msra.mxu0 %v4957
      %5068 = vmatprep.subr.mxu0 0.0
      %5069 = vmatpush1.msra.mxu0 %v4958
      %5070 = vmatprep.subr.mxu0 0.0
      %5071 = vmatpush1.msra.mxu0 %v4959
      %5072 = vmatprep.subr.mxu0 0.0
      %5073 = vmatpush1.msra.mxu0 0.0
      %5074 = vmatprep.subr.mxu0 0.0
      %5075 = vmatpush1.msra.mxu0 0.0
      %5076 = vmatprep.subr.mxu0 0.0
      %5077 = vmatpush1.msra.mxu0 0.0
      %5078 = vmatprep.subr.mxu0 0.0
      %5079 = vmatpush1.msra.mxu0 0.0
      %5080 = vmatprep.subr.mxu0 0.0
      %5081 = vmatpush1.msra.mxu0 0.0
      %5082 = vmatprep.subr.mxu0 0.0
      %5083 = vmatpush1.msra.mxu0 0.0
      %5084 = vmatprep.subr.mxu0 0.0
      %5085 = vmatpush1.msra.mxu0 0.0
      %5086 = vmatprep.subr.mxu0 0.0
      %5087 = vmatpush1.msra.mxu0 0.0
      %5088 = vmatprep.subr.mxu0 0.0
      %5089 = vmatpush1.msra.mxu0 0.0
      %5090 = vmatprep.subr.mxu0 0.0
      %5091 = vmatpush1.msra.mxu0 0.0
      %5092 = vmatprep.subr.mxu0 0.0
      %5093 = vmatpush1.msra.mxu0 0.0
      %5094 = vmatprep.subr.mxu0 0.0
      %5095 = vmatpush1.msra.mxu0 0.0
      %5096 = vmatprep.subr.mxu0 0.0
      %5097 = vmatpush1.msra.mxu0 0.0
      %5098 = vmatprep.subr.mxu0 0.0
      %5099 = vmatpush1.msra.mxu0 0.0
      %5100 = vmatprep.subr.mxu0 0.0
      %5101 = vmatpush1.msra.mxu0 0.0
      %5102 = vmatprep.subr.mxu0 0.0
      %5103 = vmatpush1.msra.mxu0 0.0
      %5104 = vmatprep.subr.mxu0 0.0
      %5105 = vmatpush1.msra.mxu0 0.0
      %5106 = vmatprep.subr.mxu0 0.0
      %5107 = vmatpush1.msra.mxu0 0.0
      %5108 = vmatprep.subr.mxu0 0.0
      %5109 = vmatpush1.msra.mxu0 0.0
      %5110 = vmatprep.subr.mxu0 0.0
      %5111 = vmatpush1.msra.mxu0 0.0
      %5112 = vmatprep.subr.mxu0 0.0
      %5113 = vmatpush1.msra.mxu0 0.0
      %5114 = vmatprep.subr.mxu0 0.0
      %5115 = vmatpush1.msra.mxu0 0.0
      %5116 = vmatprep.subr.mxu0 0.0
      %5117 = vmatpush1.msra.mxu0 0.0
      %5118 = vmatprep.subr.mxu0 0.0
      %5119 = vmatpush1.msra.mxu0 0.0
      %5120 = vmatprep.subr.mxu0 0.0
      %5121 = vmatpush1.msra.mxu0 0.0
      %5122 = vmatprep.subr.mxu0 0.0
      %5123 = vmatpush1.msra.mxu0 0.0
      %5124 = vmatprep.subr.mxu0 0.0
      %5125 = vmatpush1.msra.mxu0 0.0
      %5126 = vmatprep.subr.mxu0 0.0
      %5127 = vmatpush1.msra.mxu0 0.0
      %5128 = vmatprep.mubr.f32.mxu0 0.0
      %5129 = vmatmul.mubr.f32.gmra.mrb[0].mxu0 %v4969
      %v5130 = vpop.f32.mrb[0].mxu0
      %v5131 = vadd.f32 %v4966, %v5130
      %v5132 = vpop.f32.mrb[0].mxu0
      %5133 = vmatprep.mubr.f32.mxu0 0.0
      %5134 = vmatmul.mubr.f32.gmra.mrb[0].mxu0 %v4972
      %v5135 = vpop.f32.mrb[0].mxu0
      %v5136 = vadd.f32 %v4966, %v5135
      %v5137 = vpop.f32.mrb[0].mxu0
      %5138 = vmatprep.mubr.f32.mxu0 0.0
      %5139 = vmatmul.mubr.f32.gmra.mrb[0].mxu0 %v4975
      %v5140 = vpop.f32.mrb[0].mxu0
      %v5141 = vadd.f32 %v4966, %v5140
      %v5142 = vpop.f32.mrb[0].mxu0
      %5143 = vmatprep.mubr.f32.mxu0 0.0
      %5144 = vmatmul.mubr.f32.gmra.mrb[0].mxu0 %v4978
      %v5145 = vpop.f32.mrb[0].mxu0
      %v5146 = vadd.f32 %v4966, %v5145
      %v5147 = vpop.f32.mrb[0].mxu0
      %5148 = vmatprep.mubr.f32.mxu0 0.0
      %5149 = vmatmul.mubr.f32.gmra.mrb[0].mxu0 %v4981
      %v5150 = vpop.f32.mrb[0].mxu0
      %v5151 = vadd.f32 %v4966, %v5150
      %v5152 = vpop.f32.mrb[0].mxu0
      %5153 = vmatprep.mubr.f32.mxu0 0.0
      %5154 = vmatmul.mubr.f32.gmra.mrb[0].mxu0 %v4984
      %v5155 = vpop.f32.mrb[0].mxu0
      %v5156 = vadd.f32 %v4966, %v5155
      %v5157 = vpop.f32.mrb[0].mxu0
      %5158 = vmatprep.mubr.f32.mxu0 0.0
      %5159 = vmatmul.mubr.f32.gmra.mrb[0].mxu0 %v4987
      %v5160 = vpop.f32.mrb[0].mxu0
      %v5161 = vadd.f32 %v4966, %v5160
      %v5162 = vpop.f32.mrb[0].mxu0
      %5163 = vmatprep.mubr.f32.mxu0 0.0
      %5164 = vmatmul.mubr.f32.gmra.mrb[0].mxu0 %v4990
      %v5165 = vpop.f32.mrb[0].mxu0
      %v5166 = vadd.f32 %v4966, %v5165
      %v5167 = vpop.f32.mrb[0].mxu0
      %5168 = vmatprep.mubr.f32.mxu0 0.0
      %5169 = vmatmul.mubr.f32.gmra.mrb[0].mxu0 %v4993
      %v5170 = vpop.f32.mrb[0].mxu0
      %v5171 = vadd.f32 %v4966, %v5170
      %v5172 = vpop.f32.mrb[0].mxu0
      %5173 = vmatprep.mubr.f32.mxu0 0.0
      %5174 = vmatmul.mubr.f32.gmra.mrb[0].mxu0 %v4996
      %v5175 = vpop.f32.mrb[0].mxu0
      %v5176 = vadd.f32 %v4966, %v5175
      %v5177 = vpop.f32.mrb[0].mxu0
      %5178 = vmatprep.mubr.f32.mxu0 0.0
      %5179 = vmatmul.mubr.f32.gmra.mrb[0].mxu0 %v4999
      %v5180 = vpop.f32.mrb[0].mxu0
      %v5181 = vadd.f32 %v4966, %v5180
      %v5182 = vpop.f32.mrb[0].mxu0
      %5183 = vmatprep.mubr.f32.mxu0 0.0
      %5184 = vmatmul.mubr.f32.gmra.mrb[0].mxu0 %v5002
      %v5185 = vpop.f32.mrb[0].mxu0
      %v5186 = vadd.f32 %v4966, %v5185
      %v5187 = vpop.f32.mrb[0].mxu0
      %5188 = vmatprep.mubr.f32.mxu0 0.0
      %5189 = vmatmul.mubr.f32.gmra.mrb[0].mxu0 %v5005
      %v5190 = vpop.f32.mrb[0].mxu0
      %v5191 = vadd.f32 %v4966, %v5190
      %v5192 = vpop.f32.mrb[0].mxu0
      %5193 = vmatprep.mubr.f32.mxu0 0.0
      %5194 = vmatmul.mubr.f32.gmra.mrb[0].mxu0 %v5008
      %v5195 = vpop.f32.mrb[0].mxu0
      %v5196 = vadd.f32 %v4966, %v5195
      %v5197 = vpop.f32.mrb[0].mxu0
      %5198 = vmatprep.mubr.f32.mxu0 0.0
      %5199 = vmatmul.mubr.f32.gmra.mrb[0].mxu0 %v5011
      %v5200 = vpop.f32.mrb[0].mxu0
      %v5201 = vadd.f32 %v4966, %v5200
      %v5202 = vpop.f32.mrb[0].mxu0
      %5203 = vmatprep.mubr.f32.mxu0 0.0
      %5204 = vmatmul.mubr.f32.gmra.mrb[0].mxu0 %v5014
      %v5205 = vpop.f32.mrb[0].mxu0
      %v5206 = vadd.f32 %v4966, %v5205
      %v5207 = vpop.f32.mrb[0].mxu0
      %5208 = vmatprep.mubr.f32.mxu0 0.0
      %5209 = vmatmul.mubr.f32.gmra.mrb[0].mxu0 %v5017
      %v5210 = vpop.f32.mrb[0].mxu0
      %v5211 = vadd.f32 %v4966, %v5210
      %v5212 = vpop.f32.mrb[0].mxu0
      %5213 = vmatprep.mubr.f32.mxu0 0.0
      %5214 = vmatmul.mubr.f32.gmra.mrb[0].mxu0 %v5020
      %v5215 = vpop.f32.mrb[0].mxu0
      %v5216 = vadd.f32 %v4966, %v5215
      %v5217 = vpop.f32.mrb[0].mxu0
      %5218 = vmatprep.mubr.f32.mxu0 0.0
      %5219 = vmatmul.mubr.f32.gmra.mrb[0].mxu0 %v5023
      %v5220 = vpop.f32.mrb[0].mxu0
      %v5221 = vadd.f32 %v4966, %v5220
      %v5222 = vpop.f32.mrb[0].mxu0
      %5223 = vmatprep.mubr.f32.mxu0 0.0
      %5224 = vmatmul.mubr.f32.gmra.mrb[0].mxu0 %v5026
      %v5225 = vpop.f32.mrb[0].mxu0
      %v5226 = vadd.f32 %v4966, %v5225
      %v5227 = vpop.f32.mrb[0].mxu0
      %5228 = vmatprep.mubr.f32.mxu0 0.0
      %5229 = vmatmul.mubr.f32.gmra.mrb[0].mxu0 %v5029
      %v5230 = vpop.f32.mrb[0].mxu0
      %v5231 = vadd.f32 %v4966, %v5230
      %v5232 = vpop.f32.mrb[0].mxu0
      %5233 = vmatprep.mubr.f32.mxu0 0.0
      %5234 = vmatmul.mubr.f32.gmra.mrb[0].mxu0 %v5032
      %v5235 = vpop.f32.mrb[0].mxu0
      %v5236 = vadd.f32 %v4966, %v5235
      %v5237 = vpop.f32.mrb[0].mxu0
      %5238 = vmatprep.mubr.f32.mxu0 0.0
      %5239 = vmatmul.mubr.f32.gmra.mrb[0].mxu0 %v5035
      %v5240 = vpop.f32.mrb[0].mxu0
      %v5241 = vadd.f32 %v4966, %v5240
      %v5242 = vpop.f32.mrb[0].mxu0
      %5243 = vmatprep.mubr.f32.mxu0 0.0
      %5244 = vmatmul.mubr.f32.gmra.mrb[0].mxu0 %v5038
      %v5245 = vpop.f32.mrb[0].mxu0
      %v5246 = vadd.f32 %v4966, %v5245
      %v5247 = vpop.f32.mrb[0].mxu0
      %5248 = vmatprep.mubr.f32.mxu0 0.0
      %5249 = vmatmul.mubr.f32.gmra.mrb[0].mxu0 %v5041
      %v5250 = vpop.f32.mrb[0].mxu0
      %v5251 = vadd.f32 %v4966, %v5250
      %v5252 = vpop.f32.mrb[0].mxu0
      %5253 = vmatprep.mubr.f32.mxu0 0.0
      %5254 = vmatmul.mubr.f32.gmra.mrb[0].mxu0 %v5044
      %v5255 = vpop.f32.mrb[0].mxu0
      %v5256 = vadd.f32 %v4966, %v5255
      %v5257 = vpop.f32.mrb[0].mxu0
      %5258 = vmatprep.mubr.f32.mxu0 0.0
      %5259 = vmatmul.mubr.f32.gmra.mrb[0].mxu0 %v5047
      %v5260 = vpop.f32.mrb[0].mxu0
      %v5261 = vadd.f32 %v4966, %v5260
      %v5262 = vpop.f32.mrb[0].mxu0
      %5263 = vmatprep.mubr.f32.mxu0 0.0
      %5264 = vmatmul.mubr.f32.gmra.mrb[0].mxu0 %v5050
      %v5265 = vpop.f32.mrb[0].mxu0
      %v5266 = vadd.f32 %v4966, %v5265
      %v5267 = vpop.f32.mrb[0].mxu0
      %5268 = vmatprep.mubr.f32.mxu0 0.0
      %5269 = vmatmul.mubr.f32.gmra.mrb[0].mxu0 %v5053
      %v5270 = vpop.f32.mrb[0].mxu0
      %v5271 = vadd.f32 %v4966, %v5270
      %v5272 = vpop.f32.mrb[0].mxu0
      %5273 = vmatprep.mubr.f32.mxu0 0.0
      %5274 = vmatmul.mubr.f32.gmra.mrb[0].mxu0 %v5056
      %v5275 = vpop.f32.mrb[0].mxu0
      %v5276 = vadd.f32 %v4966, %v5275
      %v5277 = vpop.f32.mrb[0].mxu0
      %5278 = vmatprep.mubr.f32.mxu0 0.0
      %5279 = vmatmul.mubr.f32.gmra.mrb[0].mxu0 %v5059
      %v5280 = vpop.f32.mrb[0].mxu0
      %v5281 = vadd.f32 %v4966, %v5280
      %v5282 = vpop.f32.mrb[0].mxu0
      %5283 = vmatprep.mubr.f32.mxu0 0.0
      %5284 = vmatmul.mubr.f32.gmra.mrb[0].mxu0 %v5062
      %v5285 = vpop.f32.mrb[0].mxu0
      %v5286 = vadd.f32 %v4966, %v5285
      %v5287 = vpop.f32.mrb[0].mxu0
      %5288 = vdwg.mxu0
      %v5289 = vmax.f32 %v5131, 0.0
      %v5290 = vmax.f32 %v5136, 0.0
      %v5291 = vmax.f32 %v5141, 0.0
      %v5292 = vmax.f32 %v5146, 0.0
      %v5293 = vmax.f32 %v5151, 0.0
      %v5294 = vmax.f32 %v5156, 0.0
      %v5295 = vmax.f32 %v5161, 0.0
      %v5296 = vmax.f32 %v5166, 0.0
      %v5297 = vmax.f32 %v5171, 0.0
      %v5298 = vmax.f32 %v5176, 0.0
      %v5299 = vmax.f32 %v5181, 0.0
      %v5300 = vmax.f32 %v5186, 0.0
      %v5301 = vmax.f32 %v5191, 0.0
      %v5302 = vmax.f32 %v5196, 0.0
      %v5303 = vmax.f32 %v5201, 0.0
      %v5304 = vmax.f32 %v5206, 0.0
      %v5305 = vmax.f32 %v5211, 0.0
      %v5306 = vmax.f32 %v5216, 0.0
      %v5307 = vmax.f32 %v5221, 0.0
      %v5308 = vmax.f32 %v5226, 0.0
      %v5309 = vmax.f32 %v5231, 0.0
      %v5310 = vmax.f32 %v5236, 0.0
      %v5311 = vmax.f32 %v5241, 0.0
      %v5312 = vmax.f32 %v5246, 0.0
      %v5313 = vmax.f32 %v5251, 0.0
      %v5314 = vmax.f32 %v5256, 0.0
      %v5315 = vmax.f32 %v5261, 0.0
      %v5316 = vmax.f32 %v5266, 0.0
      %v5317 = vmax.f32 %v5271, 0.0
      %v5318 = vmax.f32 %v5276, 0.0
      %v5319 = vmax.f32 %v5281, 0.0
      %v5320 = vmax.f32 %v5286, 0.0
      %s5321 = scalar_lea.vmem %s10, 32
      %v5322 = vld [vmem:[%s5321] sm:$0xff]
      %v5323 = vld [vmem:[%s5321 + $0x8] sm:$0xff]
      %v5324 = vld [vmem:[%s5321 + $0x10] sm:$0xff]
      %v5325 = vld [vmem:[%s5321 + $0x18] sm:$0xff]
      %s5326 = scalar_lea.vmem %s11, 1
      %v5327 = vld [vmem:[%s5326] sm:$0x1]
      %v5329 = vlaneseq
      %v5330 = vshrl.u32 %v5329, 7
      %v5331 = vsub.s32 0, %v5330
      %v5332 = vrot.slane %v5327, %v5331
      %5334 = vmatprep.subr.mxu0 0.0
      %5335 = vmatpush1.msra.mxu0 %v5322
      %5336 = vmatprep.subr.mxu0 0.0
      %5337 = vmatpush1.msra.mxu0 %v5323
      %5338 = vmatprep.subr.mxu0 0.0
      %5339 = vmatpush1.msra.mxu0 %v5324
      %5340 = vmatprep.subr.mxu0 0.0
      %5341 = vmatpush1.msra.mxu0 %v5325
      %5342 = vmatprep.subr.mxu0 0.0
      %5343 = vmatpush1.msra.mxu0 0.0
      %5344 = vmatprep.subr.mxu0 0.0
      %5345 = vmatpush1.msra.mxu0 0.0
      %5346 = vmatprep.subr.mxu0 0.0
      %5347 = vmatpush1.msra.mxu0 0.0
      %5348 = vmatprep.subr.mxu0 0.0
      %5349 = vmatpush1.msra.mxu0 0.0
      %5350 = vmatprep.subr.mxu0 0.0
      %5351 = vmatpush1.msra.mxu0 0.0
      %5352 = vmatprep.subr.mxu0 0.0
      %5353 = vmatpush1.msra.mxu0 0.0
      %5354 = vmatprep.subr.mxu0 0.0
      %5355 = vmatpush1.msra.mxu0 0.0
      %5356 = vmatprep.subr.mxu0 0.0
      %5357 = vmatpush1.msra.mxu0 0.0
      %5358 = vmatprep.subr.mxu0 0.0
      %5359 = vmatpush1.msra.mxu0 0.0
      %5360 = vmatprep.subr.mxu0 0.0
      %5361 = vmatpush1.msra.mxu0 0.0
      %5362 = vmatprep.subr.mxu0 0.0
      %5363 = vmatpush1.msra.mxu0 0.0
      %5364 = vmatprep.subr.mxu0 0.0
      %5365 = vmatpush1.msra.mxu0 0.0
      %5366 = vmatprep.subr.mxu0 0.0
      %5367 = vmatpush1.msra.mxu0 0.0
      %5368 = vmatprep.subr.mxu0 0.0
      %5369 = vmatpush1.msra.mxu0 0.0
      %5370 = vmatprep.subr.mxu0 0.0
      %5371 = vmatpush1.msra.mxu0 0.0
      %5372 = vmatprep.subr.mxu0 0.0
      %5373 = vmatpush1.msra.mxu0 0.0
      %5374 = vmatprep.subr.mxu0 0.0
      %5375 = vmatpush1.msra.mxu0 0.0
      %5376 = vmatprep.subr.mxu0 0.0
      %5377 = vmatpush1.msra.mxu0 0.0
      %5378 = vmatprep.subr.mxu0 0.0
      %5379 = vmatpush1.msra.mxu0 0.0
      %5380 = vmatprep.subr.mxu0 0.0
      %5381 = vmatpush1.msra.mxu0 0.0
      %5382 = vmatprep.subr.mxu0 0.0
      %5383 = vmatpush1.msra.mxu0 0.0
      %5384 = vmatprep.subr.mxu0 0.0
      %5385 = vmatpush1.msra.mxu0 0.0
      %5386 = vmatprep.subr.mxu0 0.0
      %5387 = vmatpush1.msra.mxu0 0.0
      %5388 = vmatprep.subr.mxu0 0.0
      %5389 = vmatpush1.msra.mxu0 0.0
      %5390 = vmatprep.subr.mxu0 0.0
      %5391 = vmatpush1.msra.mxu0 0.0
      %5392 = vmatprep.subr.mxu0 0.0
      %5393 = vmatpush1.msra.mxu0 0.0
      %5394 = vmatprep.subr.mxu0 0.0
      %5395 = vmatpush1.msra.mxu0 0.0
      %5396 = vmatprep.subr.mxu0 0.0
      %5397 = vmatpush1.msra.mxu0 0.0
      %5398 = vmatprep.mubr.f32.mxu0 0.0
      %5399 = vmatmul.mubr.f32.gmra.mrb[0].mxu0 %v4604
      %v5400 = vpop.f32.mrb[0].mxu0
      %v5401 = vadd.f32 %v5332, %v5400
      %v5402 = vpop.f32.mrb[0].mxu0
      %5403 = vmatprep.mubr.f32.mxu0 0.0
      %5404 = vmatmul.mubr.f32.gmra.mrb[0].mxu0 %v4607
      %v5405 = vpop.f32.mrb[0].mxu0
      %v5406 = vadd.f32 %v5332, %v5405
      %v5407 = vpop.f32.mrb[0].mxu0
      %5408 = vmatprep.mubr.f32.mxu0 0.0
      %5409 = vmatmul.mubr.f32.gmra.mrb[0].mxu0 %v4610
      %v5410 = vpop.f32.mrb[0].mxu0
      %v5411 = vadd.f32 %v5332, %v5410
      %v5412 = vpop.f32.mrb[0].mxu0
      %5413 = vmatprep.mubr.f32.mxu0 0.0
      %5414 = vmatmul.mubr.f32.gmra.mrb[0].mxu0 %v4613
      %v5415 = vpop.f32.mrb[0].mxu0
      %v5416 = vadd.f32 %v5332, %v5415
      %v5417 = vpop.f32.mrb[0].mxu0
      %5418 = vmatprep.mubr.f32.mxu0 0.0
      %5419 = vmatmul.mubr.f32.gmra.mrb[0].mxu0 %v4616
      %v5420 = vpop.f32.mrb[0].mxu0
      %v5421 = vadd.f32 %v5332, %v5420
      %v5422 = vpop.f32.mrb[0].mxu0
      %5423 = vmatprep.mubr.f32.mxu0 0.0
      %5424 = vmatmul.mubr.f32.gmra.mrb[0].mxu0 %v4619
      %v5425 = vpop.f32.mrb[0].mxu0
      %v5426 = vadd.f32 %v5332, %v5425
      %v5427 = vpop.f32.mrb[0].mxu0
      %5428 = vmatprep.mubr.f32.mxu0 0.0
      %5429 = vmatmul.mubr.f32.gmra.mrb[0].mxu0 %v4622
      %v5430 = vpop.f32.mrb[0].mxu0
      %v5431 = vadd.f32 %v5332, %v5430
      %v5432 = vpop.f32.mrb[0].mxu0
      %5433 = vmatprep.mubr.f32.mxu0 0.0
      %5434 = vmatmul.mubr.f32.gmra.mrb[0].mxu0 %v4625
      %v5435 = vpop.f32.mrb[0].mxu0
      %v5436 = vadd.f32 %v5332, %v5435
      %v5437 = vpop.f32.mrb[0].mxu0
      %5438 = vmatprep.mubr.f32.mxu0 0.0
      %5439 = vmatmul.mubr.f32.gmra.mrb[0].mxu0 %v4628
      %v5440 = vpop.f32.mrb[0].mxu0
      %v5441 = vadd.f32 %v5332, %v5440
      %v5442 = vpop.f32.mrb[0].mxu0
      %5443 = vmatprep.mubr.f32.mxu0 0.0
      %5444 = vmatmul.mubr.f32.gmra.mrb[0].mxu0 %v4631
      %v5445 = vpop.f32.mrb[0].mxu0
      %v5446 = vadd.f32 %v5332, %v5445
      %v5447 = vpop.f32.mrb[0].mxu0
      %5448 = vmatprep.mubr.f32.mxu0 0.0
      %5449 = vmatmul.mubr.f32.gmra.mrb[0].mxu0 %v4634
      %v5450 = vpop.f32.mrb[0].mxu0
      %v5451 = vadd.f32 %v5332, %v5450
      %v5452 = vpop.f32.mrb[0].mxu0
      %5453 = vmatprep.mubr.f32.mxu0 0.0
      %5454 = vmatmul.mubr.f32.gmra.mrb[0].mxu0 %v4637
      %v5455 = vpop.f32.mrb[0].mxu0
      %v5456 = vadd.f32 %v5332, %v5455
      %v5457 = vpop.f32.mrb[0].mxu0
      %5458 = vmatprep.mubr.f32.mxu0 0.0
      %5459 = vmatmul.mubr.f32.gmra.mrb[0].mxu0 %v4640
      %v5460 = vpop.f32.mrb[0].mxu0
      %v5461 = vadd.f32 %v5332, %v5460
      %v5462 = vpop.f32.mrb[0].mxu0
      %5463 = vmatprep.mubr.f32.mxu0 0.0
      %5464 = vmatmul.mubr.f32.gmra.mrb[0].mxu0 %v4643
      %v5465 = vpop.f32.mrb[0].mxu0
      %v5466 = vadd.f32 %v5332, %v5465
      %v5467 = vpop.f32.mrb[0].mxu0
      %5468 = vmatprep.mubr.f32.mxu0 0.0
      %5469 = vmatmul.mubr.f32.gmra.mrb[0].mxu0 %v4646
      %v5470 = vpop.f32.mrb[0].mxu0
      %v5471 = vadd.f32 %v5332, %v5470
      %v5472 = vpop.f32.mrb[0].mxu0
      %5473 = vmatprep.mubr.f32.mxu0 0.0
      %5474 = vmatmul.mubr.f32.gmra.mrb[0].mxu0 %v4649
      %v5475 = vpop.f32.mrb[0].mxu0
      %v5476 = vadd.f32 %v5332, %v5475
      %v5477 = vpop.f32.mrb[0].mxu0
      %5478 = vmatprep.mubr.f32.mxu0 0.0
      %5479 = vmatmul.mubr.f32.gmra.mrb[0].mxu0 %v4652
      %v5480 = vpop.f32.mrb[0].mxu0
      %v5481 = vadd.f32 %v5332, %v5480
      %v5482 = vpop.f32.mrb[0].mxu0
      %5483 = vmatprep.mubr.f32.mxu0 0.0
      %5484 = vmatmul.mubr.f32.gmra.mrb[0].mxu0 %v4655
      %v5485 = vpop.f32.mrb[0].mxu0
      %v5486 = vadd.f32 %v5332, %v5485
      %v5487 = vpop.f32.mrb[0].mxu0
      %5488 = vmatprep.mubr.f32.mxu0 0.0
      %5489 = vmatmul.mubr.f32.gmra.mrb[0].mxu0 %v4658
      %v5490 = vpop.f32.mrb[0].mxu0
      %v5491 = vadd.f32 %v5332, %v5490
      %v5492 = vpop.f32.mrb[0].mxu0
      %5493 = vmatprep.mubr.f32.mxu0 0.0
      %5494 = vmatmul.mubr.f32.gmra.mrb[0].mxu0 %v4661
      %v5495 = vpop.f32.mrb[0].mxu0
      %v5496 = vadd.f32 %v5332, %v5495
      %v5497 = vpop.f32.mrb[0].mxu0
      %5498 = vmatprep.mubr.f32.mxu0 0.0
      %5499 = vmatmul.mubr.f32.gmra.mrb[0].mxu0 %v4664
      %v5500 = vpop.f32.mrb[0].mxu0
      %v5501 = vadd.f32 %v5332, %v5500
      %v5502 = vpop.f32.mrb[0].mxu0
      %5503 = vmatprep.mubr.f32.mxu0 0.0
      %5504 = vmatmul.mubr.f32.gmra.mrb[0].mxu0 %v4667
      %v5505 = vpop.f32.mrb[0].mxu0
      %v5506 = vadd.f32 %v5332, %v5505
      %v5507 = vpop.f32.mrb[0].mxu0
      %5508 = vmatprep.mubr.f32.mxu0 0.0
      %5509 = vmatmul.mubr.f32.gmra.mrb[0].mxu0 %v4670
      %v5510 = vpop.f32.mrb[0].mxu0
      %v5511 = vadd.f32 %v5332, %v5510
      %v5512 = vpop.f32.mrb[0].mxu0
      %5513 = vmatprep.mubr.f32.mxu0 0.0
      %5514 = vmatmul.mubr.f32.gmra.mrb[0].mxu0 %v4673
      %v5515 = vpop.f32.mrb[0].mxu0
      %v5516 = vadd.f32 %v5332, %v5515
      %v5517 = vpop.f32.mrb[0].mxu0
      %5518 = vmatprep.mubr.f32.mxu0 0.0
      %5519 = vmatmul.mubr.f32.gmra.mrb[0].mxu0 %v4676
      %v5520 = vpop.f32.mrb[0].mxu0
      %v5521 = vadd.f32 %v5332, %v5520
      %v5522 = vpop.f32.mrb[0].mxu0
      %5523 = vmatprep.mubr.f32.mxu0 0.0
      %5524 = vmatmul.mubr.f32.gmra.mrb[0].mxu0 %v4679
      %v5525 = vpop.f32.mrb[0].mxu0
      %v5526 = vadd.f32 %v5332, %v5525
      %v5527 = vpop.f32.mrb[0].mxu0
      %5528 = vmatprep.mubr.f32.mxu0 0.0
      %5529 = vmatmul.mubr.f32.gmra.mrb[0].mxu0 %v4682
      %v5530 = vpop.f32.mrb[0].mxu0
      %v5531 = vadd.f32 %v5332, %v5530
      %v5532 = vpop.f32.mrb[0].mxu0
      %5533 = vmatprep.mubr.f32.mxu0 0.0
      %5534 = vmatmul.mubr.f32.gmra.mrb[0].mxu0 %v4685
      %v5535 = vpop.f32.mrb[0].mxu0
      %v5536 = vadd.f32 %v5332, %v5535
      %v5537 = vpop.f32.mrb[0].mxu0
      %5538 = vmatprep.mubr.f32.mxu0 0.0
      %5539 = vmatmul.mubr.f32.gmra.mrb[0].mxu0 %v4688
      %v5540 = vpop.f32.mrb[0].mxu0
      %v5541 = vadd.f32 %v5332, %v5540
      %v5542 = vpop.f32.mrb[0].mxu0
      %5543 = vmatprep.mubr.f32.mxu0 0.0
      %5544 = vmatmul.mubr.f32.gmra.mrb[0].mxu0 %v4691
      %v5545 = vpop.f32.mrb[0].mxu0
      %v5546 = vadd.f32 %v5332, %v5545
      %v5547 = vpop.f32.mrb[0].mxu0
      %5548 = vmatprep.mubr.f32.mxu0 0.0
      %5549 = vmatmul.mubr.f32.gmra.mrb[0].mxu0 %v4694
      %v5550 = vpop.f32.mrb[0].mxu0
      %v5551 = vadd.f32 %v5332, %v5550
      %v5552 = vpop.f32.mrb[0].mxu0
      %5553 = vmatprep.mubr.f32.mxu0 0.0
      %5554 = vmatmul.mubr.f32.gmra.mrb[0].mxu0 %v4697
      %v5555 = vpop.f32.mrb[0].mxu0
      %v5556 = vadd.f32 %v5332, %v5555
      %v5557 = vpop.f32.mrb[0].mxu0
      %5558 = vdwg.mxu0
      %v5559 = vadd.f32 %v5289, %v5401
      %v5560 = vadd.f32 %v5290, %v5406
      %v5561 = vadd.f32 %v5291, %v5411
      %v5562 = vadd.f32 %v5292, %v5416
      %v5563 = vadd.f32 %v5293, %v5421
      %v5564 = vadd.f32 %v5294, %v5426
      %v5565 = vadd.f32 %v5295, %v5431
      %v5566 = vadd.f32 %v5296, %v5436
      %v5567 = vadd.f32 %v5297, %v5441
      %v5568 = vadd.f32 %v5298, %v5446
      %v5569 = vadd.f32 %v5299, %v5451
      %v5570 = vadd.f32 %v5300, %v5456
      %v5571 = vadd.f32 %v5301, %v5461
      %v5572 = vadd.f32 %v5302, %v5466
      %v5573 = vadd.f32 %v5303, %v5471
      %v5574 = vadd.f32 %v5304, %v5476
      %v5575 = vadd.f32 %v5305, %v5481
      %v5576 = vadd.f32 %v5306, %v5486
      %v5577 = vadd.f32 %v5307, %v5491
      %v5578 = vadd.f32 %v5308, %v5496
      %v5579 = vadd.f32 %v5309, %v5501
      %v5580 = vadd.f32 %v5310, %v5506
      %v5581 = vadd.f32 %v5311, %v5511
      %v5582 = vadd.f32 %v5312, %v5516
      %v5583 = vadd.f32 %v5313, %v5521
      %v5584 = vadd.f32 %v5314, %v5526
      %v5585 = vadd.f32 %v5315, %v5531
      %v5586 = vadd.f32 %v5316, %v5536
      %v5587 = vadd.f32 %v5317, %v5541
      %v5588 = vadd.f32 %v5318, %v5546
      %v5589 = vadd.f32 %v5319, %v5551
      %v5590 = vadd.f32 %v5320, %v5556
      %v5591 = vld [vmem:[%s5] sm:$0xff]
      %v5592 = vld [vmem:[%s5 + $0x8] sm:$0xff]
      %v5593 = vld [vmem:[%s5 + $0x10] sm:$0xff]
      %v5594 = vld [vmem:[%s5 + $0x18] sm:$0xff]
      %s5595 = scalar_lea.vmem %s9, 2
      %v5596 = vld [vmem:[%s5595] sm:$0x1]
      %v5598 = vlaneseq
      %v5599 = vshrl.u32 %v5598, 7
      %v5600 = vsub.s32 0, %v5599
      %v5601 = vrot.slane %v5596, %v5600
      %v5604 = vsel %vm4602, %v5559, 0
      %v5607 = vsel %vm4602, %v5560, 0
      %v5610 = vsel %vm4602, %v5561, 0
      %v5613 = vsel %vm4602, %v5562, 0
      %v5616 = vsel %vm4602, %v5563, 0
      %v5619 = vsel %vm4602, %v5564, 0
      %v5622 = vsel %vm4602, %v5565, 0
      %v5625 = vsel %vm4602, %v5566, 0
      %v5628 = vsel %vm4602, %v5567, 0
      %v5631 = vsel %vm4602, %v5568, 0
      %v5634 = vsel %vm4602, %v5569, 0
      %v5637 = vsel %vm4602, %v5570, 0
      %v5640 = vsel %vm4602, %v5571, 0
      %v5643 = vsel %vm4602, %v5572, 0
      %v5646 = vsel %vm4602, %v5573, 0
      %v5649 = vsel %vm4602, %v5574, 0
      %v5652 = vsel %vm4602, %v5575, 0
      %v5655 = vsel %vm4602, %v5576, 0
      %v5658 = vsel %vm4602, %v5577, 0
      %v5661 = vsel %vm4602, %v5578, 0
      %v5664 = vsel %vm4602, %v5579, 0
      %v5667 = vsel %vm4602, %v5580, 0
      %v5670 = vsel %vm4602, %v5581, 0
      %v5673 = vsel %vm4602, %v5582, 0
      %v5676 = vsel %vm4602, %v5583, 0
      %v5679 = vsel %vm4602, %v5584, 0
      %v5682 = vsel %vm4602, %v5585, 0
      %v5685 = vsel %vm4602, %v5586, 0
      %v5688 = vsel %vm4602, %v5587, 0
      %v5691 = vsel %vm4602, %v5588, 0
      %v5694 = vsel %vm4602, %v5589, 0
      %v5697 = vsel %vm4602, %v5590, 0
      %5699 = vmatprep.subr.mxu0 0.0
      %5700 = vmatpush1.msra.mxu0 %v5591
      %5701 = vmatprep.subr.mxu0 0.0
      %5702 = vmatpush1.msra.mxu0 %v5592
      %5703 = vmatprep.subr.mxu0 0.0
      %5704 = vmatpush1.msra.mxu0 %v5593
      %5705 = vmatprep.subr.mxu0 0.0
      %5706 = vmatpush1.msra.mxu0 %v5594
      %5707 = vmatprep.subr.mxu0 0.0
      %5708 = vmatpush1.msra.mxu0 0.0
      %5709 = vmatprep.subr.mxu0 0.0
      %5710 = vmatpush1.msra.mxu0 0.0
      %5711 = vmatprep.subr.mxu0 0.0
      %5712 = vmatpush1.msra.mxu0 0.0
      %5713 = vmatprep.subr.mxu0 0.0
      %5714 = vmatpush1.msra.mxu0 0.0
      %5715 = vmatprep.subr.mxu0 0.0
      %5716 = vmatpush1.msra.mxu0 0.0
      %5717 = vmatprep.subr.mxu0 0.0
      %5718 = vmatpush1.msra.mxu0 0.0
      %5719 = vmatprep.subr.mxu0 0.0
      %5720 = vmatpush1.msra.mxu0 0.0
      %5721 = vmatprep.subr.mxu0 0.0
      %5722 = vmatpush1.msra.mxu0 0.0
      %5723 = vmatprep.subr.mxu0 0.0
      %5724 = vmatpush1.msra.mxu0 0.0
      %5725 = vmatprep.subr.mxu0 0.0
      %5726 = vmatpush1.msra.mxu0 0.0
      %5727 = vmatprep.subr.mxu0 0.0
      %5728 = vmatpush1.msra.mxu0 0.0
      %5729 = vmatprep.subr.mxu0 0.0
      %5730 = vmatpush1.msra.mxu0 0.0
      %5731 = vmatprep.subr.mxu0 0.0
      %5732 = vmatpush1.msra.mxu0 0.0
      %5733 = vmatprep.subr.mxu0 0.0
      %5734 = vmatpush1.msra.mxu0 0.0
      %5735 = vmatprep.subr.mxu0 0.0
      %5736 = vmatpush1.msra.mxu0 0.0
      %5737 = vmatprep.subr.mxu0 0.0
      %5738 = vmatpush1.msra.mxu0 0.0
      %5739 = vmatprep.subr.mxu0 0.0
      %5740 = vmatpush1.msra.mxu0 0.0
      %5741 = vmatprep.subr.mxu0 0.0
      %5742 = vmatpush1.msra.mxu0 0.0
      %5743 = vmatprep.subr.mxu0 0.0
      %5744 = vmatpush1.msra.mxu0 0.0
      %5745 = vmatprep.subr.mxu0 0.0
      %5746 = vmatpush1.msra.mxu0 0.0
      %5747 = vmatprep.subr.mxu0 0.0
      %5748 = vmatpush1.msra.mxu0 0.0
      %5749 = vmatprep.subr.mxu0 0.0
      %5750 = vmatpush1.msra.mxu0 0.0
      %5751 = vmatprep.subr.mxu0 0.0
      %5752 = vmatpush1.msra.mxu0 0.0
      %5753 = vmatprep.subr.mxu0 0.0
      %5754 = vmatpush1.msra.mxu0 0.0
      %5755 = vmatprep.subr.mxu0 0.0
      %5756 = vmatpush1.msra.mxu0 0.0
      %5757 = vmatprep.subr.mxu0 0.0
      %5758 = vmatpush1.msra.mxu0 0.0
      %5759 = vmatprep.subr.mxu0 0.0
      %5760 = vmatpush1.msra.mxu0 0.0
      %5761 = vmatprep.subr.mxu0 0.0
      %5762 = vmatpush1.msra.mxu0 0.0
      %5763 = vmatprep.mubr.f32.mxu0 0.0
      %5764 = vmatmul.mubr.f32.gmra.mrb[0].mxu0 %v5604
      %v5765 = vpop.f32.mrb[0].mxu0
      %v5766 = vadd.f32 %v5601, %v5765
      %v5767 = vpop.f32.mrb[0].mxu0
      %5768 = vmatprep.mubr.f32.mxu0 0.0
      %5769 = vmatmul.mubr.f32.gmra.mrb[0].mxu0 %v5607
      %v5770 = vpop.f32.mrb[0].mxu0
      %v5771 = vadd.f32 %v5601, %v5770
      %v5772 = vpop.f32.mrb[0].mxu0
      %5773 = vmatprep.mubr.f32.mxu0 0.0
      %5774 = vmatmul.mubr.f32.gmra.mrb[0].mxu0 %v5610
      %v5775 = vpop.f32.mrb[0].mxu0
      %v5776 = vadd.f32 %v5601, %v5775
      %v5777 = vpop.f32.mrb[0].mxu0
      %5778 = vmatprep.mubr.f32.mxu0 0.0
      %5779 = vmatmul.mubr.f32.gmra.mrb[0].mxu0 %v5613
      %v5780 = vpop.f32.mrb[0].mxu0
      %v5781 = vadd.f32 %v5601, %v5780
      %v5782 = vpop.f32.mrb[0].mxu0
      %5783 = vmatprep.mubr.f32.mxu0 0.0
      %5784 = vmatmul.mubr.f32.gmra.mrb[0].mxu0 %v5616
      %v5785 = vpop.f32.mrb[0].mxu0
      %v5786 = vadd.f32 %v5601, %v5785
      %v5787 = vpop.f32.mrb[0].mxu0
      %5788 = vmatprep.mubr.f32.mxu0 0.0
      %5789 = vmatmul.mubr.f32.gmra.mrb[0].mxu0 %v5619
      %v5790 = vpop.f32.mrb[0].mxu0
      %v5791 = vadd.f32 %v5601, %v5790
      %v5792 = vpop.f32.mrb[0].mxu0
      %5793 = vmatprep.mubr.f32.mxu0 0.0
      %5794 = vmatmul.mubr.f32.gmra.mrb[0].mxu0 %v5622
      %v5795 = vpop.f32.mrb[0].mxu0
      %v5796 = vadd.f32 %v5601, %v5795
      %v5797 = vpop.f32.mrb[0].mxu0
      %5798 = vmatprep.mubr.f32.mxu0 0.0
      %5799 = vmatmul.mubr.f32.gmra.mrb[0].mxu0 %v5625
      %v5800 = vpop.f32.mrb[0].mxu0
      %v5801 = vadd.f32 %v5601, %v5800
      %v5802 = vpop.f32.mrb[0].mxu0
      %5803 = vmatprep.mubr.f32.mxu0 0.0
      %5804 = vmatmul.mubr.f32.gmra.mrb[0].mxu0 %v5628
      %v5805 = vpop.f32.mrb[0].mxu0
      %v5806 = vadd.f32 %v5601, %v5805
      %v5807 = vpop.f32.mrb[0].mxu0
      %5808 = vmatprep.mubr.f32.mxu0 0.0
      %5809 = vmatmul.mubr.f32.gmra.mrb[0].mxu0 %v5631
      %v5810 = vpop.f32.mrb[0].mxu0
      %v5811 = vadd.f32 %v5601, %v5810
      %v5812 = vpop.f32.mrb[0].mxu0
      %5813 = vmatprep.mubr.f32.mxu0 0.0
      %5814 = vmatmul.mubr.f32.gmra.mrb[0].mxu0 %v5634
      %v5815 = vpop.f32.mrb[0].mxu0
      %v5816 = vadd.f32 %v5601, %v5815
      %v5817 = vpop.f32.mrb[0].mxu0
      %5818 = vmatprep.mubr.f32.mxu0 0.0
      %5819 = vmatmul.mubr.f32.gmra.mrb[0].mxu0 %v5637
      %v5820 = vpop.f32.mrb[0].mxu0
      %v5821 = vadd.f32 %v5601, %v5820
      %v5822 = vpop.f32.mrb[0].mxu0
      %5823 = vmatprep.mubr.f32.mxu0 0.0
      %5824 = vmatmul.mubr.f32.gmra.mrb[0].mxu0 %v5640
      %v5825 = vpop.f32.mrb[0].mxu0
      %v5826 = vadd.f32 %v5601, %v5825
      %v5827 = vpop.f32.mrb[0].mxu0
      %5828 = vmatprep.mubr.f32.mxu0 0.0
      %5829 = vmatmul.mubr.f32.gmra.mrb[0].mxu0 %v5643
      %v5830 = vpop.f32.mrb[0].mxu0
      %v5831 = vadd.f32 %v5601, %v5830
      %v5832 = vpop.f32.mrb[0].mxu0
      %5833 = vmatprep.mubr.f32.mxu0 0.0
      %5834 = vmatmul.mubr.f32.gmra.mrb[0].mxu0 %v5646
      %v5835 = vpop.f32.mrb[0].mxu0
      %v5836 = vadd.f32 %v5601, %v5835
      %v5837 = vpop.f32.mrb[0].mxu0
      %5838 = vmatprep.mubr.f32.mxu0 0.0
      %5839 = vmatmul.mubr.f32.gmra.mrb[0].mxu0 %v5649
      %v5840 = vpop.f32.mrb[0].mxu0
      %v5841 = vadd.f32 %v5601, %v5840
      %v5842 = vpop.f32.mrb[0].mxu0
      %5843 = vmatprep.mubr.f32.mxu0 0.0
      %5844 = vmatmul.mubr.f32.gmra.mrb[0].mxu0 %v5652
      %v5845 = vpop.f32.mrb[0].mxu0
      %v5846 = vadd.f32 %v5601, %v5845
      %v5847 = vpop.f32.mrb[0].mxu0
      %5848 = vmatprep.mubr.f32.mxu0 0.0
      %5849 = vmatmul.mubr.f32.gmra.mrb[0].mxu0 %v5655
      %v5850 = vpop.f32.mrb[0].mxu0
      %v5851 = vadd.f32 %v5601, %v5850
      %v5852 = vpop.f32.mrb[0].mxu0
      %5853 = vmatprep.mubr.f32.mxu0 0.0
      %5854 = vmatmul.mubr.f32.gmra.mrb[0].mxu0 %v5658
      %v5855 = vpop.f32.mrb[0].mxu0
      %v5856 = vadd.f32 %v5601, %v5855
      %v5857 = vpop.f32.mrb[0].mxu0
      %5858 = vmatprep.mubr.f32.mxu0 0.0
      %5859 = vmatmul.mubr.f32.gmra.mrb[0].mxu0 %v5661
      %v5860 = vpop.f32.mrb[0].mxu0
      %v5861 = vadd.f32 %v5601, %v5860
      %v5862 = vpop.f32.mrb[0].mxu0
      %5863 = vmatprep.mubr.f32.mxu0 0.0
      %5864 = vmatmul.mubr.f32.gmra.mrb[0].mxu0 %v5664
      %v5865 = vpop.f32.mrb[0].mxu0
      %v5866 = vadd.f32 %v5601, %v5865
      %v5867 = vpop.f32.mrb[0].mxu0
      %5868 = vmatprep.mubr.f32.mxu0 0.0
      %5869 = vmatmul.mubr.f32.gmra.mrb[0].mxu0 %v5667
      %v5870 = vpop.f32.mrb[0].mxu0
      %v5871 = vadd.f32 %v5601, %v5870
      %v5872 = vpop.f32.mrb[0].mxu0
      %5873 = vmatprep.mubr.f32.mxu0 0.0
      %5874 = vmatmul.mubr.f32.gmra.mrb[0].mxu0 %v5670
      %v5875 = vpop.f32.mrb[0].mxu0
      %v5876 = vadd.f32 %v5601, %v5875
      %v5877 = vpop.f32.mrb[0].mxu0
      %5878 = vmatprep.mubr.f32.mxu0 0.0
      %5879 = vmatmul.mubr.f32.gmra.mrb[0].mxu0 %v5673
      %v5880 = vpop.f32.mrb[0].mxu0
      %v5881 = vadd.f32 %v5601, %v5880
      %v5882 = vpop.f32.mrb[0].mxu0
      %5883 = vmatprep.mubr.f32.mxu0 0.0
      %5884 = vmatmul.mubr.f32.gmra.mrb[0].mxu0 %v5676
      %v5885 = vpop.f32.mrb[0].mxu0
      %v5886 = vadd.f32 %v5601, %v5885
      %v5887 = vpop.f32.mrb[0].mxu0
      %5888 = vmatprep.mubr.f32.mxu0 0.0
      %5889 = vmatmul.mubr.f32.gmra.mrb[0].mxu0 %v5679
      %v5890 = vpop.f32.mrb[0].mxu0
      %v5891 = vadd.f32 %v5601, %v5890
      %v5892 = vpop.f32.mrb[0].mxu0
      %5893 = vmatprep.mubr.f32.mxu0 0.0
      %5894 = vmatmul.mubr.f32.gmra.mrb[0].mxu0 %v5682
      %v5895 = vpop.f32.mrb[0].mxu0
      %v5896 = vadd.f32 %v5601, %v5895
      %v5897 = vpop.f32.mrb[0].mxu0
      %5898 = vmatprep.mubr.f32.mxu0 0.0
      %5899 = vmatmul.mubr.f32.gmra.mrb[0].mxu0 %v5685
      %v5900 = vpop.f32.mrb[0].mxu0
      %v5901 = vadd.f32 %v5601, %v5900
      %v5902 = vpop.f32.mrb[0].mxu0
      %5903 = vmatprep.mubr.f32.mxu0 0.0
      %5904 = vmatmul.mubr.f32.gmra.mrb[0].mxu0 %v5688
      %v5905 = vpop.f32.mrb[0].mxu0
      %v5906 = vadd.f32 %v5601, %v5905
      %v5907 = vpop.f32.mrb[0].mxu0
      %5908 = vmatprep.mubr.f32.mxu0 0.0
      %5909 = vmatmul.mubr.f32.gmra.mrb[0].mxu0 %v5691
      %v5910 = vpop.f32.mrb[0].mxu0
      %v5911 = vadd.f32 %v5601, %v5910
      %v5912 = vpop.f32.mrb[0].mxu0
      %5913 = vmatprep.mubr.f32.mxu0 0.0
      %5914 = vmatmul.mubr.f32.gmra.mrb[0].mxu0 %v5694
      %v5915 = vpop.f32.mrb[0].mxu0
      %v5916 = vadd.f32 %v5601, %v5915
      %v5917 = vpop.f32.mrb[0].mxu0
      %5918 = vmatprep.mubr.f32.mxu0 0.0
      %5919 = vmatmul.mubr.f32.gmra.mrb[0].mxu0 %v5697
      %v5920 = vpop.f32.mrb[0].mxu0
      %v5921 = vadd.f32 %v5601, %v5920
      %v5922 = vpop.f32.mrb[0].mxu0
      %5923 = vdwg.mxu0
      %v5924 = vmax.f32 %v5766, 0.0
      %v5925 = vmax.f32 %v5771, 0.0
      %v5926 = vmax.f32 %v5776, 0.0
      %v5927 = vmax.f32 %v5781, 0.0
      %v5928 = vmax.f32 %v5786, 0.0
      %v5929 = vmax.f32 %v5791, 0.0
      %v5930 = vmax.f32 %v5796, 0.0
      %v5931 = vmax.f32 %v5801, 0.0
      %v5932 = vmax.f32 %v5806, 0.0
      %v5933 = vmax.f32 %v5811, 0.0
      %v5934 = vmax.f32 %v5816, 0.0
      %v5935 = vmax.f32 %v5821, 0.0
      %v5936 = vmax.f32 %v5826, 0.0
      %v5937 = vmax.f32 %v5831, 0.0
      %v5938 = vmax.f32 %v5836, 0.0
      %v5939 = vmax.f32 %v5841, 0.0
      %v5940 = vmax.f32 %v5846, 0.0
      %v5941 = vmax.f32 %v5851, 0.0
      %v5942 = vmax.f32 %v5856, 0.0
      %v5943 = vmax.f32 %v5861, 0.0
      %v5944 = vmax.f32 %v5866, 0.0
      %v5945 = vmax.f32 %v5871, 0.0
      %v5946 = vmax.f32 %v5876, 0.0
      %v5947 = vmax.f32 %v5881, 0.0
      %v5948 = vmax.f32 %v5886, 0.0
      %v5949 = vmax.f32 %v5891, 0.0
      %v5950 = vmax.f32 %v5896, 0.0
      %v5951 = vmax.f32 %v5901, 0.0
      %v5952 = vmax.f32 %v5906, 0.0
      %v5953 = vmax.f32 %v5911, 0.0
      %v5954 = vmax.f32 %v5916, 0.0
      %v5955 = vmax.f32 %v5921, 0.0
      %s5956 = scalar_lea.vmem %s10, 64
      %v5957 = vld [vmem:[%s5956] sm:$0xff]
      %v5958 = vld [vmem:[%s5956 + $0x8] sm:$0xff]
      %v5959 = vld [vmem:[%s5956 + $0x10] sm:$0xff]
      %v5960 = vld [vmem:[%s5956 + $0x18] sm:$0xff]
      %s5961 = scalar_lea.vmem %s11, 2
      %v5962 = vld [vmem:[%s5961] sm:$0x1]
      %v5964 = vlaneseq
      %v5965 = vshrl.u32 %v5964, 7
      %v5966 = vsub.s32 0, %v5965
      %v5967 = vrot.slane %v5962, %v5966
      %5969 = vmatprep.subr.mxu0 0.0
      %5970 = vmatpush1.msra.mxu0 %v5957
      %5971 = vmatprep.subr.mxu0 0.0
      %5972 = vmatpush1.msra.mxu0 %v5958
      %5973 = vmatprep.subr.mxu0 0.0
      %5974 = vmatpush1.msra.mxu0 %v5959
      %5975 = vmatprep.subr.mxu0 0.0
      %5976 = vmatpush1.msra.mxu0 %v5960
      %5977 = vmatprep.subr.mxu0 0.0
      %5978 = vmatpush1.msra.mxu0 0.0
      %5979 = vmatprep.subr.mxu0 0.0
      %5980 = vmatpush1.msra.mxu0 0.0
      %5981 = vmatprep.subr.mxu0 0.0
      %5982 = vmatpush1.msra.mxu0 0.0
      %5983 = vmatprep.subr.mxu0 0.0
      %5984 = vmatpush1.msra.mxu0 0.0
      %5985 = vmatprep.subr.mxu0 0.0
      %5986 = vmatpush1.msra.mxu0 0.0
      %5987 = vmatprep.subr.mxu0 0.0
      %5988 = vmatpush1.msra.mxu0 0.0
      %5989 = vmatprep.subr.mxu0 0.0
      %5990 = vmatpush1.msra.mxu0 0.0
      %5991 = vmatprep.subr.mxu0 0.0
      %5992 = vmatpush1.msra.mxu0 0.0
      %5993 = vmatprep.subr.mxu0 0.0
      %5994 = vmatpush1.msra.mxu0 0.0
      %5995 = vmatprep.subr.mxu0 0.0
      %5996 = vmatpush1.msra.mxu0 0.0
      %5997 = vmatprep.subr.mxu0 0.0
      %5998 = vmatpush1.msra.mxu0 0.0
      %5999 = vmatprep.subr.mxu0 0.0
      %6000 = vmatpush1.msra.mxu0 0.0
      %6001 = vmatprep.subr.mxu0 0.0
      %6002 = vmatpush1.msra.mxu0 0.0
      %6003 = vmatprep.subr.mxu0 0.0
      %6004 = vmatpush1.msra.mxu0 0.0
      %6005 = vmatprep.subr.mxu0 0.0
      %6006 = vmatpush1.msra.mxu0 0.0
      %6007 = vmatprep.subr.mxu0 0.0
      %6008 = vmatpush1.msra.mxu0 0.0
      %6009 = vmatprep.subr.mxu0 0.0
      %6010 = vmatpush1.msra.mxu0 0.0
      %6011 = vmatprep.subr.mxu0 0.0
      %6012 = vmatpush1.msra.mxu0 0.0
      %6013 = vmatprep.subr.mxu0 0.0
      %6014 = vmatpush1.msra.mxu0 0.0
      %6015 = vmatprep.subr.mxu0 0.0
      %6016 = vmatpush1.msra.mxu0 0.0
      %6017 = vmatprep.subr.mxu0 0.0
      %6018 = vmatpush1.msra.mxu0 0.0
      %6019 = vmatprep.subr.mxu0 0.0
      %6020 = vmatpush1.msra.mxu0 0.0
      %6021 = vmatprep.subr.mxu0 0.0
      %6022 = vmatpush1.msra.mxu0 0.0
      %6023 = vmatprep.subr.mxu0 0.0
      %6024 = vmatpush1.msra.mxu0 0.0
      %6025 = vmatprep.subr.mxu0 0.0
      %6026 = vmatpush1.msra.mxu0 0.0
      %6027 = vmatprep.subr.mxu0 0.0
      %6028 = vmatpush1.msra.mxu0 0.0
      %6029 = vmatprep.subr.mxu0 0.0
      %6030 = vmatpush1.msra.mxu0 0.0
      %6031 = vmatprep.subr.mxu0 0.0
      %6032 = vmatpush1.msra.mxu0 0.0
      %6033 = vmatprep.mubr.f32.mxu0 0.0
      %6034 = vmatmul.mubr.f32.gmra.mrb[0].mxu0 %v4604
      %v6035 = vpop.f32.mrb[0].mxu0
      %v6036 = vadd.f32 %v5967, %v6035
      %v6037 = vpop.f32.mrb[0].mxu0
      %6038 = vmatprep.mubr.f32.mxu0 0.0
      %6039 = vmatmul.mubr.f32.gmra.mrb[0].mxu0 %v4607
      %v6040 = vpop.f32.mrb[0].mxu0
      %v6041 = vadd.f32 %v5967, %v6040
      %v6042 = vpop.f32.mrb[0].mxu0
      %6043 = vmatprep.mubr.f32.mxu0 0.0
      %6044 = vmatmul.mubr.f32.gmra.mrb[0].mxu0 %v4610
      %v6045 = vpop.f32.mrb[0].mxu0
      %v6046 = vadd.f32 %v5967, %v6045
      %v6047 = vpop.f32.mrb[0].mxu0
      %6048 = vmatprep.mubr.f32.mxu0 0.0
      %6049 = vmatmul.mubr.f32.gmra.mrb[0].mxu0 %v4613
      %v6050 = vpop.f32.mrb[0].mxu0
      %v6051 = vadd.f32 %v5967, %v6050
      %v6052 = vpop.f32.mrb[0].mxu0
      %6053 = vmatprep.mubr.f32.mxu0 0.0
      %6054 = vmatmul.mubr.f32.gmra.mrb[0].mxu0 %v4616
      %v6055 = vpop.f32.mrb[0].mxu0
      %v6056 = vadd.f32 %v5967, %v6055
      %v6057 = vpop.f32.mrb[0].mxu0
      %6058 = vmatprep.mubr.f32.mxu0 0.0
      %6059 = vmatmul.mubr.f32.gmra.mrb[0].mxu0 %v4619
      %v6060 = vpop.f32.mrb[0].mxu0
      %v6061 = vadd.f32 %v5967, %v6060
      %v6062 = vpop.f32.mrb[0].mxu0
      %6063 = vmatprep.mubr.f32.mxu0 0.0
      %6064 = vmatmul.mubr.f32.gmra.mrb[0].mxu0 %v4622
      %v6065 = vpop.f32.mrb[0].mxu0
      %v6066 = vadd.f32 %v5967, %v6065
      %v6067 = vpop.f32.mrb[0].mxu0
      %6068 = vmatprep.mubr.f32.mxu0 0.0
      %6069 = vmatmul.mubr.f32.gmra.mrb[0].mxu0 %v4625
      %v6070 = vpop.f32.mrb[0].mxu0
      %v6071 = vadd.f32 %v5967, %v6070
      %v6072 = vpop.f32.mrb[0].mxu0
      %6073 = vmatprep.mubr.f32.mxu0 0.0
      %6074 = vmatmul.mubr.f32.gmra.mrb[0].mxu0 %v4628
      %v6075 = vpop.f32.mrb[0].mxu0
      %v6076 = vadd.f32 %v5967, %v6075
      %v6077 = vpop.f32.mrb[0].mxu0
      %6078 = vmatprep.mubr.f32.mxu0 0.0
      %6079 = vmatmul.mubr.f32.gmra.mrb[0].mxu0 %v4631
      %v6080 = vpop.f32.mrb[0].mxu0
      %v6081 = vadd.f32 %v5967, %v6080
      %v6082 = vpop.f32.mrb[0].mxu0
      %6083 = vmatprep.mubr.f32.mxu0 0.0
      %6084 = vmatmul.mubr.f32.gmra.mrb[0].mxu0 %v4634
      %v6085 = vpop.f32.mrb[0].mxu0
      %v6086 = vadd.f32 %v5967, %v6085
      %v6087 = vpop.f32.mrb[0].mxu0
      %6088 = vmatprep.mubr.f32.mxu0 0.0
      %6089 = vmatmul.mubr.f32.gmra.mrb[0].mxu0 %v4637
      %v6090 = vpop.f32.mrb[0].mxu0
      %v6091 = vadd.f32 %v5967, %v6090
      %v6092 = vpop.f32.mrb[0].mxu0
      %6093 = vmatprep.mubr.f32.mxu0 0.0
      %6094 = vmatmul.mubr.f32.gmra.mrb[0].mxu0 %v4640
      %v6095 = vpop.f32.mrb[0].mxu0
      %v6096 = vadd.f32 %v5967, %v6095
      %v6097 = vpop.f32.mrb[0].mxu0
      %6098 = vmatprep.mubr.f32.mxu0 0.0
      %6099 = vmatmul.mubr.f32.gmra.mrb[0].mxu0 %v4643
      %v6100 = vpop.f32.mrb[0].mxu0
      %v6101 = vadd.f32 %v5967, %v6100
      %v6102 = vpop.f32.mrb[0].mxu0
      %6103 = vmatprep.mubr.f32.mxu0 0.0
      %6104 = vmatmul.mubr.f32.gmra.mrb[0].mxu0 %v4646
      %v6105 = vpop.f32.mrb[0].mxu0
      %v6106 = vadd.f32 %v5967, %v6105
      %v6107 = vpop.f32.mrb[0].mxu0
      %6108 = vmatprep.mubr.f32.mxu0 0.0
      %6109 = vmatmul.mubr.f32.gmra.mrb[0].mxu0 %v4649
      %v6110 = vpop.f32.mrb[0].mxu0
      %v6111 = vadd.f32 %v5967, %v6110
      %v6112 = vpop.f32.mrb[0].mxu0
      %6113 = vmatprep.mubr.f32.mxu0 0.0
      %6114 = vmatmul.mubr.f32.gmra.mrb[0].mxu0 %v4652
      %v6115 = vpop.f32.mrb[0].mxu0
      %v6116 = vadd.f32 %v5967, %v6115
      %v6117 = vpop.f32.mrb[0].mxu0
      %6118 = vmatprep.mubr.f32.mxu0 0.0
      %6119 = vmatmul.mubr.f32.gmra.mrb[0].mxu0 %v4655
      %v6120 = vpop.f32.mrb[0].mxu0
      %v6121 = vadd.f32 %v5967, %v6120
      %v6122 = vpop.f32.mrb[0].mxu0
      %6123 = vmatprep.mubr.f32.mxu0 0.0
      %6124 = vmatmul.mubr.f32.gmra.mrb[0].mxu0 %v4658
      %v6125 = vpop.f32.mrb[0].mxu0
      %v6126 = vadd.f32 %v5967, %v6125
      %v6127 = vpop.f32.mrb[0].mxu0
      %6128 = vmatprep.mubr.f32.mxu0 0.0
      %6129 = vmatmul.mubr.f32.gmra.mrb[0].mxu0 %v4661
      %v6130 = vpop.f32.mrb[0].mxu0
      %v6131 = vadd.f32 %v5967, %v6130
      %v6132 = vpop.f32.mrb[0].mxu0
      %6133 = vmatprep.mubr.f32.mxu0 0.0
      %6134 = vmatmul.mubr.f32.gmra.mrb[0].mxu0 %v4664
      %v6135 = vpop.f32.mrb[0].mxu0
      %v6136 = vadd.f32 %v5967, %v6135
      %v6137 = vpop.f32.mrb[0].mxu0
      %6138 = vmatprep.mubr.f32.mxu0 0.0
      %6139 = vmatmul.mubr.f32.gmra.mrb[0].mxu0 %v4667
      %v6140 = vpop.f32.mrb[0].mxu0
      %v6141 = vadd.f32 %v5967, %v6140
      %v6142 = vpop.f32.mrb[0].mxu0
      %6143 = vmatprep.mubr.f32.mxu0 0.0
      %6144 = vmatmul.mubr.f32.gmra.mrb[0].mxu0 %v4670
      %v6145 = vpop.f32.mrb[0].mxu0
      %v6146 = vadd.f32 %v5967, %v6145
      %v6147 = vpop.f32.mrb[0].mxu0
      %6148 = vmatprep.mubr.f32.mxu0 0.0
      %6149 = vmatmul.mubr.f32.gmra.mrb[0].mxu0 %v4673
      %v6150 = vpop.f32.mrb[0].mxu0
      %v6151 = vadd.f32 %v5967, %v6150
      %v6152 = vpop.f32.mrb[0].mxu0
      %6153 = vmatprep.mubr.f32.mxu0 0.0
      %6154 = vmatmul.mubr.f32.gmra.mrb[0].mxu0 %v4676
      %v6155 = vpop.f32.mrb[0].mxu0
      %v6156 = vadd.f32 %v5967, %v6155
      %v6157 = vpop.f32.mrb[0].mxu0
      %6158 = vmatprep.mubr.f32.mxu0 0.0
      %6159 = vmatmul.mubr.f32.gmra.mrb[0].mxu0 %v4679
      %v6160 = vpop.f32.mrb[0].mxu0
      %v6161 = vadd.f32 %v5967, %v6160
      %v6162 = vpop.f32.mrb[0].mxu0
      %6163 = vmatprep.mubr.f32.mxu0 0.0
      %6164 = vmatmul.mubr.f32.gmra.mrb[0].mxu0 %v4682
      %v6165 = vpop.f32.mrb[0].mxu0
      %v6166 = vadd.f32 %v5967, %v6165
      %v6167 = vpop.f32.mrb[0].mxu0
      %6168 = vmatprep.mubr.f32.mxu0 0.0
      %6169 = vmatmul.mubr.f32.gmra.mrb[0].mxu0 %v4685
      %v6170 = vpop.f32.mrb[0].mxu0
      %v6171 = vadd.f32 %v5967, %v6170
      %v6172 = vpop.f32.mrb[0].mxu0
      %6173 = vmatprep.mubr.f32.mxu0 0.0
      %6174 = vmatmul.mubr.f32.gmra.mrb[0].mxu0 %v4688
      %v6175 = vpop.f32.mrb[0].mxu0
      %v6176 = vadd.f32 %v5967, %v6175
      %v6177 = vpop.f32.mrb[0].mxu0
      %6178 = vmatprep.mubr.f32.mxu0 0.0
      %6179 = vmatmul.mubr.f32.gmra.mrb[0].mxu0 %v4691
      %v6180 = vpop.f32.mrb[0].mxu0
      %v6181 = vadd.f32 %v5967, %v6180
      %v6182 = vpop.f32.mrb[0].mxu0
      %6183 = vmatprep.mubr.f32.mxu0 0.0
      %6184 = vmatmul.mubr.f32.gmra.mrb[0].mxu0 %v4694
      %v6185 = vpop.f32.mrb[0].mxu0
      %v6186 = vadd.f32 %v5967, %v6185
      %v6187 = vpop.f32.mrb[0].mxu0
      %6188 = vmatprep.mubr.f32.mxu0 0.0
      %6189 = vmatmul.mubr.f32.gmra.mrb[0].mxu0 %v4697
      %v6190 = vpop.f32.mrb[0].mxu0
      %v6191 = vadd.f32 %v5967, %v6190
      %v6192 = vpop.f32.mrb[0].mxu0
      %6193 = vdwg.mxu0
      %v6194 = vadd.f32 %v5924, %v6036
      %v6195 = vadd.f32 %v5925, %v6041
      %v6196 = vadd.f32 %v5926, %v6046
      %v6197 = vadd.f32 %v5927, %v6051
      %v6198 = vadd.f32 %v5928, %v6056
      %v6199 = vadd.f32 %v5929, %v6061
      %v6200 = vadd.f32 %v5930, %v6066
      %v6201 = vadd.f32 %v5931, %v6071
      %v6202 = vadd.f32 %v5932, %v6076
      %v6203 = vadd.f32 %v5933, %v6081
      %v6204 = vadd.f32 %v5934, %v6086
      %v6205 = vadd.f32 %v5935, %v6091
      %v6206 = vadd.f32 %v5936, %v6096
      %v6207 = vadd.f32 %v5937, %v6101
      %v6208 = vadd.f32 %v5938, %v6106
      %v6209 = vadd.f32 %v5939, %v6111
      %v6210 = vadd.f32 %v5940, %v6116
      %v6211 = vadd.f32 %v5941, %v6121
      %v6212 = vadd.f32 %v5942, %v6126
      %v6213 = vadd.f32 %v5943, %v6131
      %v6214 = vadd.f32 %v5944, %v6136
      %v6215 = vadd.f32 %v5945, %v6141
      %v6216 = vadd.f32 %v5946, %v6146
      %v6217 = vadd.f32 %v5947, %v6151
      %v6218 = vadd.f32 %v5948, %v6156
      %v6219 = vadd.f32 %v5949, %v6161
      %v6220 = vadd.f32 %v5950, %v6166
      %v6221 = vadd.f32 %v5951, %v6171
      %v6222 = vadd.f32 %v5952, %v6176
      %v6223 = vadd.f32 %v5953, %v6181
      %v6224 = vadd.f32 %v5954, %v6186
      %v6225 = vadd.f32 %v5955, %v6191
      %v6226 = vld [vmem:[%s6] sm:$0xff]
      %v6227 = vld [vmem:[%s6 + $0x8] sm:$0xff]
      %v6228 = vld [vmem:[%s6 + $0x10] sm:$0xff]
      %v6229 = vld [vmem:[%s6 + $0x18] sm:$0xff]
      %v6230 = vld [vmem:[%s6 + $0x20] sm:$0xff]
      %v6231 = vld [vmem:[%s6 + $0x28] sm:$0xff]
      %v6232 = vld [vmem:[%s6 + $0x30] sm:$0xff]
      %v6233 = vld [vmem:[%s6 + $0x38] sm:$0xff]
      %v6234 = vld [vmem:[%s6 + $0x40] sm:$0xff]
      %v6235 = vld [vmem:[%s6 + $0x48] sm:$0xff]
      %v6236 = vld [vmem:[%s6 + $0x50] sm:$0xff]
      %v6237 = vld [vmem:[%s6 + $0x58] sm:$0x1f]
      %v6238 = vld [vmem:[%s7] sm:$0xff]
      %v6239 = vld [vmem:[%s7 + $0x8] sm:$0xff]
      %v6240 = vld [vmem:[%s7 + $0x10] sm:$0xff]
      %v6241 = vld [vmem:[%s7 + $0x18] sm:$0xff]
      %v6243 = vsel %vm4602, %v6194, 0
      %v6246 = vsel %vm4602, %v6195, 0
      %v6249 = vsel %vm4602, %v6196, 0
      %v6252 = vsel %vm4602, %v6197, 0
      %v6255 = vsel %vm4602, %v6198, 0
      %v6258 = vsel %vm4602, %v6199, 0
      %v6261 = vsel %vm4602, %v6200, 0
      %v6264 = vsel %vm4602, %v6201, 0
      %v6267 = vsel %vm4602, %v6202, 0
      %v6270 = vsel %vm4602, %v6203, 0
      %v6273 = vsel %vm4602, %v6204, 0
      %v6276 = vsel %vm4602, %v6205, 0
      %v6279 = vsel %vm4602, %v6206, 0
      %v6282 = vsel %vm4602, %v6207, 0
      %v6285 = vsel %vm4602, %v6208, 0
      %v6288 = vsel %vm4602, %v6209, 0
      %v6291 = vsel %vm4602, %v6210, 0
      %v6294 = vsel %vm4602, %v6211, 0
      %v6297 = vsel %vm4602, %v6212, 0
      %v6300 = vsel %vm4602, %v6213, 0
      %v6303 = vsel %vm4602, %v6214, 0
      %v6306 = vsel %vm4602, %v6215, 0
      %v6309 = vsel %vm4602, %v6216, 0
      %v6312 = vsel %vm4602, %v6217, 0
      %v6315 = vsel %vm4602, %v6218, 0
      %v6318 = vsel %vm4602, %v6219, 0
      %v6321 = vsel %vm4602, %v6220, 0
      %v6324 = vsel %vm4602, %v6221, 0
      %v6327 = vsel %vm4602, %v6222, 0
      %v6330 = vsel %vm4602, %v6223, 0
      %v6333 = vsel %vm4602, %v6224, 0
      %v6336 = vsel %vm4602, %v6225, 0
      %6338 = vmatprep.subr.mxu0 0.0
      %6339 = vmatpush1.msra.mxu0 %v6238
      %6340 = vmatprep.subr.mxu0 0.0
      %6341 = vmatpush1.msra.mxu0 %v6239
      %6342 = vmatprep.subr.mxu0 0.0
      %6343 = vmatpush1.msra.mxu0 %v6240
      %6344 = vmatprep.subr.mxu0 0.0
      %6345 = vmatpush1.msra.mxu0 %v6241
      %6346 = vmatprep.subr.mxu0 0.0
      %6347 = vmatpush1.msra.mxu0 0.0
      %6348 = vmatprep.subr.mxu0 0.0
      %6349 = vmatpush1.msra.mxu0 0.0
      %6350 = vmatprep.subr.mxu0 0.0
      %6351 = vmatpush1.msra.mxu0 0.0
      %6352 = vmatprep.subr.mxu0 0.0
      %6353 = vmatpush1.msra.mxu0 0.0
      %6354 = vmatprep.subr.mxu0 0.0
      %6355 = vmatpush1.msra.mxu0 0.0
      %6356 = vmatprep.subr.mxu0 0.0
      %6357 = vmatpush1.msra.mxu0 0.0
      %6358 = vmatprep.subr.mxu0 0.0
      %6359 = vmatpush1.msra.mxu0 0.0
      %6360 = vmatprep.subr.mxu0 0.0
      %6361 = vmatpush1.msra.mxu0 0.0
      %6362 = vmatprep.subr.mxu0 0.0
      %6363 = vmatpush1.msra.mxu0 0.0
      %6364 = vmatprep.subr.mxu0 0.0
      %6365 = vmatpush1.msra.mxu0 0.0
      %6366 = vmatprep.subr.mxu0 0.0
      %6367 = vmatpush1.msra.mxu0 0.0
      %6368 = vmatprep.subr.mxu0 0.0
      %6369 = vmatpush1.msra.mxu0 0.0
      %6370 = vmatprep.subr.mxu0 0.0
      %6371 = vmatpush1.msra.mxu0 0.0
      %6372 = vmatprep.subr.mxu0 0.0
      %6373 = vmatpush1.msra.mxu0 0.0
      %6374 = vmatprep.subr.mxu0 0.0
      %6375 = vmatpush1.msra.mxu0 0.0
      %6376 = vmatprep.subr.mxu0 0.0
      %6377 = vmatpush1.msra.mxu0 0.0
      %6378 = vmatprep.subr.mxu0 0.0
      %6379 = vmatpush1.msra.mxu0 0.0
      %6380 = vmatprep.subr.mxu0 0.0
      %6381 = vmatpush1.msra.mxu0 0.0
      %6382 = vmatprep.subr.mxu0 0.0
      %6383 = vmatpush1.msra.mxu0 0.0
      %6384 = vmatprep.subr.mxu0 0.0
      %6385 = vmatpush1.msra.mxu0 0.0
      %6386 = vmatprep.subr.mxu0 0.0
      %6387 = vmatpush1.msra.mxu0 0.0
      %6388 = vmatprep.subr.mxu0 0.0
      %6389 = vmatpush1.msra.mxu0 0.0
      %6390 = vmatprep.subr.mxu0 0.0
      %6391 = vmatpush1.msra.mxu0 0.0
      %6392 = vmatprep.subr.mxu0 0.0
      %6393 = vmatpush1.msra.mxu0 0.0
      %6394 = vmatprep.subr.mxu0 0.0
      %6395 = vmatpush1.msra.mxu0 0.0
      %6396 = vmatprep.subr.mxu0 0.0
      %6397 = vmatpush1.msra.mxu0 0.0
      %6398 = vmatprep.subr.mxu0 0.0
      %6399 = vmatpush1.msra.mxu0 0.0
      %6400 = vmatprep.subr.mxu0 0.0
      %6401 = vmatpush1.msra.mxu0 0.0
      %6402 = vmatprep.mubr.f32.mxu0 0.0
      %6403 = vmatmul.mubr.f32.gmra.mrb[0].mxu0 %v6243
      %v6404 = vpop.f32.mrb[0].mxu0
      %v6405 = vadd.f32 0.0, %v6404
      %v6406 = vpop.f32.mrb[0].mxu0
      %6407 = vmatprep.mubr.f32.mxu0 0.0
      %6408 = vmatmul.mubr.f32.gmra.mrb[0].mxu0 %v6246
      %v6409 = vpop.f32.mrb[0].mxu0
      %v6410 = vadd.f32 0.0, %v6409
      %v6411 = vpop.f32.mrb[0].mxu0
      %6412 = vmatprep.mubr.f32.mxu0 0.0
      %6413 = vmatmul.mubr.f32.gmra.mrb[0].mxu0 %v6249
      %v6414 = vpop.f32.mrb[0].mxu0
      %v6415 = vadd.f32 0.0, %v6414
      %v6416 = vpop.f32.mrb[0].mxu0
      %6417 = vmatprep.mubr.f32.mxu0 0.0
      %6418 = vmatmul.mubr.f32.gmra.mrb[0].mxu0 %v6252
      %v6419 = vpop.f32.mrb[0].mxu0
      %v6420 = vadd.f32 0.0, %v6419
      %v6421 = vpop.f32.mrb[0].mxu0
      %6422 = vmatprep.mubr.f32.mxu0 0.0
      %6423 = vmatmul.mubr.f32.gmra.mrb[0].mxu0 %v6255
      %v6424 = vpop.f32.mrb[0].mxu0
      %v6425 = vadd.f32 0.0, %v6424
      %v6426 = vpop.f32.mrb[0].mxu0
      %6427 = vmatprep.mubr.f32.mxu0 0.0
      %6428 = vmatmul.mubr.f32.gmra.mrb[0].mxu0 %v6258
      %v6429 = vpop.f32.mrb[0].mxu0
      %v6430 = vadd.f32 0.0, %v6429
      %v6431 = vpop.f32.mrb[0].mxu0
      %6432 = vmatprep.mubr.f32.mxu0 0.0
      %6433 = vmatmul.mubr.f32.gmra.mrb[0].mxu0 %v6261
      %v6434 = vpop.f32.mrb[0].mxu0
      %v6435 = vadd.f32 0.0, %v6434
      %v6436 = vpop.f32.mrb[0].mxu0
      %6437 = vmatprep.mubr.f32.mxu0 0.0
      %6438 = vmatmul.mubr.f32.gmra.mrb[0].mxu0 %v6264
      %v6439 = vpop.f32.mrb[0].mxu0
      %v6440 = vadd.f32 0.0, %v6439
      %v6441 = vpop.f32.mrb[0].mxu0
      %6442 = vmatprep.mubr.f32.mxu0 0.0
      %6443 = vmatmul.mubr.f32.gmra.mrb[0].mxu0 %v6267
      %v6444 = vpop.f32.mrb[0].mxu0
      %v6445 = vadd.f32 0.0, %v6444
      %v6446 = vpop.f32.mrb[0].mxu0
      %6447 = vmatprep.mubr.f32.mxu0 0.0
      %6448 = vmatmul.mubr.f32.gmra.mrb[0].mxu0 %v6270
      %v6449 = vpop.f32.mrb[0].mxu0
      %v6450 = vadd.f32 0.0, %v6449
      %v6451 = vpop.f32.mrb[0].mxu0
      %6452 = vmatprep.mubr.f32.mxu0 0.0
      %6453 = vmatmul.mubr.f32.gmra.mrb[0].mxu0 %v6273
      %v6454 = vpop.f32.mrb[0].mxu0
      %v6455 = vadd.f32 0.0, %v6454
      %v6456 = vpop.f32.mrb[0].mxu0
      %6457 = vmatprep.mubr.f32.mxu0 0.0
      %6458 = vmatmul.mubr.f32.gmra.mrb[0].mxu0 %v6276
      %v6459 = vpop.f32.mrb[0].mxu0
      %v6460 = vadd.f32 0.0, %v6459
      %v6461 = vpop.f32.mrb[0].mxu0
      %6462 = vmatprep.mubr.f32.mxu0 0.0
      %6463 = vmatmul.mubr.f32.gmra.mrb[0].mxu0 %v6279
      %v6464 = vpop.f32.mrb[0].mxu0
      %v6465 = vadd.f32 0.0, %v6464
      %v6466 = vpop.f32.mrb[0].mxu0
      %6467 = vmatprep.mubr.f32.mxu0 0.0
      %6468 = vmatmul.mubr.f32.gmra.mrb[0].mxu0 %v6282
      %v6469 = vpop.f32.mrb[0].mxu0
      %v6470 = vadd.f32 0.0, %v6469
      %v6471 = vpop.f32.mrb[0].mxu0
      %6472 = vmatprep.mubr.f32.mxu0 0.0
      %6473 = vmatmul.mubr.f32.gmra.mrb[0].mxu0 %v6285
      %v6474 = vpop.f32.mrb[0].mxu0
      %v6475 = vadd.f32 0.0, %v6474
      %v6476 = vpop.f32.mrb[0].mxu0
      %6477 = vmatprep.mubr.f32.mxu0 0.0
      %6478 = vmatmul.mubr.f32.gmra.mrb[0].mxu0 %v6288
      %v6479 = vpop.f32.mrb[0].mxu0
      %v6480 = vadd.f32 0.0, %v6479
      %v6481 = vpop.f32.mrb[0].mxu0
      %6482 = vmatprep.mubr.f32.mxu0 0.0
      %6483 = vmatmul.mubr.f32.gmra.mrb[0].mxu0 %v6291
      %v6484 = vpop.f32.mrb[0].mxu0
      %v6485 = vadd.f32 0.0, %v6484
      %v6486 = vpop.f32.mrb[0].mxu0
      %6487 = vmatprep.mubr.f32.mxu0 0.0
      %6488 = vmatmul.mubr.f32.gmra.mrb[0].mxu0 %v6294
      %v6489 = vpop.f32.mrb[0].mxu0
      %v6490 = vadd.f32 0.0, %v6489
      %v6491 = vpop.f32.mrb[0].mxu0
      %6492 = vmatprep.mubr.f32.mxu0 0.0
      %6493 = vmatmul.mubr.f32.gmra.mrb[0].mxu0 %v6297
      %v6494 = vpop.f32.mrb[0].mxu0
      %v6495 = vadd.f32 0.0, %v6494
      %v6496 = vpop.f32.mrb[0].mxu0
      %6497 = vmatprep.mubr.f32.mxu0 0.0
      %6498 = vmatmul.mubr.f32.gmra.mrb[0].mxu0 %v6300
      %v6499 = vpop.f32.mrb[0].mxu0
      %v6500 = vadd.f32 0.0, %v6499
      %v6501 = vpop.f32.mrb[0].mxu0
      %6502 = vmatprep.mubr.f32.mxu0 0.0
      %6503 = vmatmul.mubr.f32.gmra.mrb[0].mxu0 %v6303
      %v6504 = vpop.f32.mrb[0].mxu0
      %v6505 = vadd.f32 0.0, %v6504
      %v6506 = vpop.f32.mrb[0].mxu0
      %6507 = vmatprep.mubr.f32.mxu0 0.0
      %6508 = vmatmul.mubr.f32.gmra.mrb[0].mxu0 %v6306
      %v6509 = vpop.f32.mrb[0].mxu0
      %v6510 = vadd.f32 0.0, %v6509
      %v6511 = vpop.f32.mrb[0].mxu0
      %6512 = vmatprep.mubr.f32.mxu0 0.0
      %6513 = vmatmul.mubr.f32.gmra.mrb[0].mxu0 %v6309
      %v6514 = vpop.f32.mrb[0].mxu0
      %v6515 = vadd.f32 0.0, %v6514
      %v6516 = vpop.f32.mrb[0].mxu0
      %6517 = vmatprep.mubr.f32.mxu0 0.0
      %6518 = vmatmul.mubr.f32.gmra.mrb[0].mxu0 %v6312
      %v6519 = vpop.f32.mrb[0].mxu0
      %v6520 = vadd.f32 0.0, %v6519
      %v6521 = vpop.f32.mrb[0].mxu0
      %6522 = vmatprep.mubr.f32.mxu0 0.0
      %6523 = vmatmul.mubr.f32.gmra.mrb[0].mxu0 %v6315
      %v6524 = vpop.f32.mrb[0].mxu0
      %v6525 = vadd.f32 0.0, %v6524
      %v6526 = vpop.f32.mrb[0].mxu0
      %6527 = vmatprep.mubr.f32.mxu0 0.0
      %6528 = vmatmul.mubr.f32.gmra.mrb[0].mxu0 %v6318
      %v6529 = vpop.f32.mrb[0].mxu0
      %v6530 = vadd.f32 0.0, %v6529
      %v6531 = vpop.f32.mrb[0].mxu0
      %6532 = vmatprep.mubr.f32.mxu0 0.0
      %6533 = vmatmul.mubr.f32.gmra.mrb[0].mxu0 %v6321
      %v6534 = vpop.f32.mrb[0].mxu0
      %v6535 = vadd.f32 0.0, %v6534
      %v6536 = vpop.f32.mrb[0].mxu0
      %6537 = vmatprep.mubr.f32.mxu0 0.0
      %6538 = vmatmul.mubr.f32.gmra.mrb[0].mxu0 %v6324
      %v6539 = vpop.f32.mrb[0].mxu0
      %v6540 = vadd.f32 0.0, %v6539
      %v6541 = vpop.f32.mrb[0].mxu0
      %6542 = vmatprep.mubr.f32.mxu0 0.0
      %6543 = vmatmul.mubr.f32.gmra.mrb[0].mxu0 %v6327
      %v6544 = vpop.f32.mrb[0].mxu0
      %v6545 = vadd.f32 0.0, %v6544
      %v6546 = vpop.f32.mrb[0].mxu0
      %6547 = vmatprep.mubr.f32.mxu0 0.0
      %6548 = vmatmul.mubr.f32.gmra.mrb[0].mxu0 %v6330
      %v6549 = vpop.f32.mrb[0].mxu0
      %v6550 = vadd.f32 0.0, %v6549
      %v6551 = vpop.f32.mrb[0].mxu0
      %6552 = vmatprep.mubr.f32.mxu0 0.0
      %6553 = vmatmul.mubr.f32.gmra.mrb[0].mxu0 %v6333
      %v6554 = vpop.f32.mrb[0].mxu0
      %v6555 = vadd.f32 0.0, %v6554
      %v6556 = vpop.f32.mrb[0].mxu0
      %6557 = vmatprep.mubr.f32.mxu0 0.0
      %6558 = vmatmul.mubr.f32.gmra.mrb[0].mxu0 %v6336
      %v6559 = vpop.f32.mrb[0].mxu0
      %v6560 = vadd.f32 0.0, %v6559
      %v6561 = vpop.f32.mrb[0].mxu0
      %6562 = vdwg.mxu0
      %v6564 = vsel %vm4330, %v6237, 0
      %6566 = vmatprep.subr.mxu0 0.0
      %6567 = vmatpush1.msra.mxu0 %v6226
      %6568 = vmatprep.subr.mxu0 0.0
      %6569 = vmatpush1.msra.mxu0 %v6227
      %6570 = vmatprep.subr.mxu0 0.0
      %6571 = vmatpush1.msra.mxu0 %v6228
      %6572 = vmatprep.subr.mxu0 0.0
      %6573 = vmatpush1.msra.mxu0 %v6229
      %6574 = vmatprep.subr.mxu0 0.0
      %6575 = vmatpush1.msra.mxu0 %v6230
      %6576 = vmatprep.subr.mxu0 0.0
      %6577 = vmatpush1.msra.mxu0 %v6231
      %6578 = vmatprep.subr.mxu0 0.0
      %6579 = vmatpush1.msra.mxu0 %v6232
      %6580 = vmatprep.subr.mxu0 0.0
      %6581 = vmatpush1.msra.mxu0 %v6233
      %6582 = vmatprep.subr.mxu0 0.0
      %6583 = vmatpush1.msra.mxu0 %v6234
      %6584 = vmatprep.subr.mxu0 0.0
      %6585 = vmatpush1.msra.mxu0 %v6235
      %6586 = vmatprep.subr.mxu0 0.0
      %6587 = vmatpush1.msra.mxu0 %v6236
      %6588 = vmatprep.subr.mxu0 0.0
      %6589 = vmatpush1.msra.mxu0 %v6564
      %6590 = vmatprep.subr.mxu0 0.0
      %6591 = vmatpush1.msra.mxu0 0.0
      %6592 = vmatprep.subr.mxu0 0.0
      %6593 = vmatpush1.msra.mxu0 0.0
      %6594 = vmatprep.subr.mxu0 0.0
      %6595 = vmatpush1.msra.mxu0 0.0
      %6596 = vmatprep.subr.mxu0 0.0
      %6597 = vmatpush1.msra.mxu0 0.0
      %6598 = vmatprep.subr.mxu0 0.0
      %6599 = vmatpush1.msra.mxu0 0.0
      %6600 = vmatprep.subr.mxu0 0.0
      %6601 = vmatpush1.msra.mxu0 0.0
      %6602 = vmatprep.subr.mxu0 0.0
      %6603 = vmatpush1.msra.mxu0 0.0
      %6604 = vmatprep.subr.mxu0 0.0
      %6605 = vmatpush1.msra.mxu0 0.0
      %6606 = vmatprep.subr.mxu0 0.0
      %6607 = vmatpush1.msra.mxu0 0.0
      %6608 = vmatprep.subr.mxu0 0.0
      %6609 = vmatpush1.msra.mxu0 0.0
      %6610 = vmatprep.subr.mxu0 0.0
      %6611 = vmatpush1.msra.mxu0 0.0
      %6612 = vmatprep.subr.mxu0 0.0
      %6613 = vmatpush1.msra.mxu0 0.0
      %6614 = vmatprep.subr.mxu0 0.0
      %6615 = vmatpush1.msra.mxu0 0.0
      %6616 = vmatprep.subr.mxu0 0.0
      %6617 = vmatpush1.msra.mxu0 0.0
      %6618 = vmatprep.subr.mxu0 0.0
      %6619 = vmatpush1.msra.mxu0 0.0
      %6620 = vmatprep.subr.mxu0 0.0
      %6621 = vmatpush1.msra.mxu0 0.0
      %6622 = vmatprep.subr.mxu0 0.0
      %6623 = vmatpush1.msra.mxu0 0.0
      %6624 = vmatprep.subr.mxu0 0.0
      %6625 = vmatpush1.msra.mxu0 0.0
      %6626 = vmatprep.subr.mxu0 0.0
      %6627 = vmatpush1.msra.mxu0 0.0
      %6628 = vmatprep.subr.mxu0 0.0
      %6629 = vmatpush1.msra.mxu0 0.0
      %6630 = vmatprep.mubr.f32.mxu0 0.0
      %6631 = vmatmul.mubr.f32.gmra.mrb[0].mxu0 %v4235
      %v6632 = vpop.f32.mrb[0].mxu0
      %v6633 = vadd.f32 %v6405, %v6632
      %v6634 = vpop.f32.mrb[0].mxu0
      %6635 = vmatprep.mubr.f32.mxu0 0.0
      %6636 = vmatmul.mubr.f32.gmra.mrb[0].mxu0 %v4238
      %v6637 = vpop.f32.mrb[0].mxu0
      %v6638 = vadd.f32 %v6410, %v6637
      %v6639 = vpop.f32.mrb[0].mxu0
      %6640 = vmatprep.mubr.f32.mxu0 0.0
      %6641 = vmatmul.mubr.f32.gmra.mrb[0].mxu0 %v4241
      %v6642 = vpop.f32.mrb[0].mxu0
      %v6643 = vadd.f32 %v6415, %v6642
      %v6644 = vpop.f32.mrb[0].mxu0
      %6645 = vmatprep.mubr.f32.mxu0 0.0
      %6646 = vmatmul.mubr.f32.gmra.mrb[0].mxu0 %v4244
      %v6647 = vpop.f32.mrb[0].mxu0
      %v6648 = vadd.f32 %v6420, %v6647
      %v6649 = vpop.f32.mrb[0].mxu0
      %6650 = vmatprep.mubr.f32.mxu0 0.0
      %6651 = vmatmul.mubr.f32.gmra.mrb[0].mxu0 %v4247
      %v6652 = vpop.f32.mrb[0].mxu0
      %v6653 = vadd.f32 %v6425, %v6652
      %v6654 = vpop.f32.mrb[0].mxu0
      %6655 = vmatprep.mubr.f32.mxu0 0.0
      %6656 = vmatmul.mubr.f32.gmra.mrb[0].mxu0 %v4250
      %v6657 = vpop.f32.mrb[0].mxu0
      %v6658 = vadd.f32 %v6430, %v6657
      %v6659 = vpop.f32.mrb[0].mxu0
      %6660 = vmatprep.mubr.f32.mxu0 0.0
      %6661 = vmatmul.mubr.f32.gmra.mrb[0].mxu0 %v4253
      %v6662 = vpop.f32.mrb[0].mxu0
      %v6663 = vadd.f32 %v6435, %v6662
      %v6664 = vpop.f32.mrb[0].mxu0
      %6665 = vmatprep.mubr.f32.mxu0 0.0
      %6666 = vmatmul.mubr.f32.gmra.mrb[0].mxu0 %v4256
      %v6667 = vpop.f32.mrb[0].mxu0
      %v6668 = vadd.f32 %v6440, %v6667
      %v6669 = vpop.f32.mrb[0].mxu0
      %6670 = vmatprep.mubr.f32.mxu0 0.0
      %6671 = vmatmul.mubr.f32.gmra.mrb[0].mxu0 %v4259
      %v6672 = vpop.f32.mrb[0].mxu0
      %v6673 = vadd.f32 %v6445, %v6672
      %v6674 = vpop.f32.mrb[0].mxu0
      %6675 = vmatprep.mubr.f32.mxu0 0.0
      %6676 = vmatmul.mubr.f32.gmra.mrb[0].mxu0 %v4262
      %v6677 = vpop.f32.mrb[0].mxu0
      %v6678 = vadd.f32 %v6450, %v6677
      %v6679 = vpop.f32.mrb[0].mxu0
      %6680 = vmatprep.mubr.f32.mxu0 0.0
      %6681 = vmatmul.mubr.f32.gmra.mrb[0].mxu0 %v4265
      %v6682 = vpop.f32.mrb[0].mxu0
      %v6683 = vadd.f32 %v6455, %v6682
      %v6684 = vpop.f32.mrb[0].mxu0
      %6685 = vmatprep.mubr.f32.mxu0 0.0
      %6686 = vmatmul.mubr.f32.gmra.mrb[0].mxu0 %v4268
      %v6687 = vpop.f32.mrb[0].mxu0
      %v6688 = vadd.f32 %v6460, %v6687
      %v6689 = vpop.f32.mrb[0].mxu0
      %6690 = vmatprep.mubr.f32.mxu0 0.0
      %6691 = vmatmul.mubr.f32.gmra.mrb[0].mxu0 %v4271
      %v6692 = vpop.f32.mrb[0].mxu0
      %v6693 = vadd.f32 %v6465, %v6692
      %v6694 = vpop.f32.mrb[0].mxu0
      %6695 = vmatprep.mubr.f32.mxu0 0.0
      %6696 = vmatmul.mubr.f32.gmra.mrb[0].mxu0 %v4274
      %v6697 = vpop.f32.mrb[0].mxu0
      %v6698 = vadd.f32 %v6470, %v6697
      %v6699 = vpop.f32.mrb[0].mxu0
      %6700 = vmatprep.mubr.f32.mxu0 0.0
      %6701 = vmatmul.mubr.f32.gmra.mrb[0].mxu0 %v4277
      %v6702 = vpop.f32.mrb[0].mxu0
      %v6703 = vadd.f32 %v6475, %v6702
      %v6704 = vpop.f32.mrb[0].mxu0
      %6705 = vmatprep.mubr.f32.mxu0 0.0
      %6706 = vmatmul.mubr.f32.gmra.mrb[0].mxu0 %v4280
      %v6707 = vpop.f32.mrb[0].mxu0
      %v6708 = vadd.f32 %v6480, %v6707
      %v6709 = vpop.f32.mrb[0].mxu0
      %6710 = vmatprep.mubr.f32.mxu0 0.0
      %6711 = vmatmul.mubr.f32.gmra.mrb[0].mxu0 %v4283
      %v6712 = vpop.f32.mrb[0].mxu0
      %v6713 = vadd.f32 %v6485, %v6712
      %v6714 = vpop.f32.mrb[0].mxu0
      %6715 = vmatprep.mubr.f32.mxu0 0.0
      %6716 = vmatmul.mubr.f32.gmra.mrb[0].mxu0 %v4286
      %v6717 = vpop.f32.mrb[0].mxu0
      %v6718 = vadd.f32 %v6490, %v6717
      %v6719 = vpop.f32.mrb[0].mxu0
      %6720 = vmatprep.mubr.f32.mxu0 0.0
      %6721 = vmatmul.mubr.f32.gmra.mrb[0].mxu0 %v4289
      %v6722 = vpop.f32.mrb[0].mxu0
      %v6723 = vadd.f32 %v6495, %v6722
      %v6724 = vpop.f32.mrb[0].mxu0
      %6725 = vmatprep.mubr.f32.mxu0 0.0
      %6726 = vmatmul.mubr.f32.gmra.mrb[0].mxu0 %v4292
      %v6727 = vpop.f32.mrb[0].mxu0
      %v6728 = vadd.f32 %v6500, %v6727
      %v6729 = vpop.f32.mrb[0].mxu0
      %6730 = vmatprep.mubr.f32.mxu0 0.0
      %6731 = vmatmul.mubr.f32.gmra.mrb[0].mxu0 %v4295
      %v6732 = vpop.f32.mrb[0].mxu0
      %v6733 = vadd.f32 %v6505, %v6732
      %v6734 = vpop.f32.mrb[0].mxu0
      %6735 = vmatprep.mubr.f32.mxu0 0.0
      %6736 = vmatmul.mubr.f32.gmra.mrb[0].mxu0 %v4298
      %v6737 = vpop.f32.mrb[0].mxu0
      %v6738 = vadd.f32 %v6510, %v6737
      %v6739 = vpop.f32.mrb[0].mxu0
      %6740 = vmatprep.mubr.f32.mxu0 0.0
      %6741 = vmatmul.mubr.f32.gmra.mrb[0].mxu0 %v4301
      %v6742 = vpop.f32.mrb[0].mxu0
      %v6743 = vadd.f32 %v6515, %v6742
      %v6744 = vpop.f32.mrb[0].mxu0
      %6745 = vmatprep.mubr.f32.mxu0 0.0
      %6746 = vmatmul.mubr.f32.gmra.mrb[0].mxu0 %v4304
      %v6747 = vpop.f32.mrb[0].mxu0
      %v6748 = vadd.f32 %v6520, %v6747
      %v6749 = vpop.f32.mrb[0].mxu0
      %6750 = vmatprep.mubr.f32.mxu0 0.0
      %6751 = vmatmul.mubr.f32.gmra.mrb[0].mxu0 %v4307
      %v6752 = vpop.f32.mrb[0].mxu0
      %v6753 = vadd.f32 %v6525, %v6752
      %v6754 = vpop.f32.mrb[0].mxu0
      %6755 = vmatprep.mubr.f32.mxu0 0.0
      %6756 = vmatmul.mubr.f32.gmra.mrb[0].mxu0 %v4310
      %v6757 = vpop.f32.mrb[0].mxu0
      %v6758 = vadd.f32 %v6530, %v6757
      %v6759 = vpop.f32.mrb[0].mxu0
      %6760 = vmatprep.mubr.f32.mxu0 0.0
      %6761 = vmatmul.mubr.f32.gmra.mrb[0].mxu0 %v4313
      %v6762 = vpop.f32.mrb[0].mxu0
      %v6763 = vadd.f32 %v6535, %v6762
      %v6764 = vpop.f32.mrb[0].mxu0
      %6765 = vmatprep.mubr.f32.mxu0 0.0
      %6766 = vmatmul.mubr.f32.gmra.mrb[0].mxu0 %v4316
      %v6767 = vpop.f32.mrb[0].mxu0
      %v6768 = vadd.f32 %v6540, %v6767
      %v6769 = vpop.f32.mrb[0].mxu0
      %6770 = vmatprep.mubr.f32.mxu0 0.0
      %6771 = vmatmul.mubr.f32.gmra.mrb[0].mxu0 %v4319
      %v6772 = vpop.f32.mrb[0].mxu0
      %v6773 = vadd.f32 %v6545, %v6772
      %v6774 = vpop.f32.mrb[0].mxu0
      %6775 = vmatprep.mubr.f32.mxu0 0.0
      %6776 = vmatmul.mubr.f32.gmra.mrb[0].mxu0 %v4322
      %v6777 = vpop.f32.mrb[0].mxu0
      %v6778 = vadd.f32 %v6550, %v6777
      %v6779 = vpop.f32.mrb[0].mxu0
      %6780 = vmatprep.mubr.f32.mxu0 0.0
      %6781 = vmatmul.mubr.f32.gmra.mrb[0].mxu0 %v4325
      %v6782 = vpop.f32.mrb[0].mxu0
      %v6783 = vadd.f32 %v6555, %v6782
      %v6784 = vpop.f32.mrb[0].mxu0
      %6785 = vmatprep.mubr.f32.mxu0 0.0
      %6786 = vmatmul.mubr.f32.gmra.mrb[0].mxu0 %v4328
      %v6787 = vpop.f32.mrb[0].mxu0
      %v6788 = vadd.f32 %v6560, %v6787
      %v6789 = vpop.f32.mrb[0].mxu0
      %6790 = vdwg.mxu0
      %s6791 = scalar_lea.vmem %s9, 3
      %v6792 = vld [vmem:[%s6791] sm:$0x1]
      %v6794 = vlaneseq
      %v6795 = vshrl.u32 %v6794, 7
      %v6796 = vsub.s32 0, %v6795
      %v6797 = vrot.slane %v6792, %v6796
      %v6799 = vadd.f32 %v6633, %v6797
      %v6800 = vadd.f32 %v6638, %v6797
      %v6801 = vadd.f32 %v6643, %v6797
      %v6802 = vadd.f32 %v6648, %v6797
      %v6803 = vadd.f32 %v6653, %v6797
      %v6804 = vadd.f32 %v6658, %v6797
      %v6805 = vadd.f32 %v6663, %v6797
      %v6806 = vadd.f32 %v6668, %v6797
      %v6807 = vadd.f32 %v6673, %v6797
      %v6808 = vadd.f32 %v6678, %v6797
      %v6809 = vadd.f32 %v6683, %v6797
      %v6810 = vadd.f32 %v6688, %v6797
      %v6811 = vadd.f32 %v6693, %v6797
      %v6812 = vadd.f32 %v6698, %v6797
      %v6813 = vadd.f32 %v6703, %v6797
      %v6814 = vadd.f32 %v6708, %v6797
      %v6815 = vadd.f32 %v6713, %v6797
      %v6816 = vadd.f32 %v6718, %v6797
      %v6817 = vadd.f32 %v6723, %v6797
      %v6818 = vadd.f32 %v6728, %v6797
      %v6819 = vadd.f32 %v6733, %v6797
      %v6820 = vadd.f32 %v6738, %v6797
      %v6821 = vadd.f32 %v6743, %v6797
      %v6822 = vadd.f32 %v6748, %v6797
      %v6823 = vadd.f32 %v6753, %v6797
      %v6824 = vadd.f32 %v6758, %v6797
      %v6825 = vadd.f32 %v6763, %v6797
      %v6826 = vadd.f32 %v6768, %v6797
      %v6827 = vadd.f32 %v6773, %v6797
      %v6828 = vadd.f32 %v6778, %v6797
      %v6829 = vadd.f32 %v6783, %v6797
      %v6830 = vadd.f32 %v6788, %v6797
      %v6831 = vmax.f32 %v6799, 0.0
      %v6832 = vmax.f32 %v6800, 0.0
      %v6833 = vmax.f32 %v6801, 0.0
      %v6834 = vmax.f32 %v6802, 0.0
      %v6835 = vmax.f32 %v6803, 0.0
      %v6836 = vmax.f32 %v6804, 0.0
      %v6837 = vmax.f32 %v6805, 0.0
      %v6838 = vmax.f32 %v6806, 0.0
      %v6839 = vmax.f32 %v6807, 0.0
      %v6840 = vmax.f32 %v6808, 0.0
      %v6841 = vmax.f32 %v6809, 0.0
      %v6842 = vmax.f32 %v6810, 0.0
      %v6843 = vmax.f32 %v6811, 0.0
      %v6844 = vmax.f32 %v6812, 0.0
      %v6845 = vmax.f32 %v6813, 0.0
      %v6846 = vmax.f32 %v6814, 0.0
      %v6847 = vmax.f32 %v6815, 0.0
      %v6848 = vmax.f32 %v6816, 0.0
      %v6849 = vmax.f32 %v6817, 0.0
      %v6850 = vmax.f32 %v6818, 0.0
      %v6851 = vmax.f32 %v6819, 0.0
      %v6852 = vmax.f32 %v6820, 0.0
      %v6853 = vmax.f32 %v6821, 0.0
      %v6854 = vmax.f32 %v6822, 0.0
      %v6855 = vmax.f32 %v6823, 0.0
      %v6856 = vmax.f32 %v6824, 0.0
      %v6857 = vmax.f32 %v6825, 0.0
      %v6858 = vmax.f32 %v6826, 0.0
      %v6859 = vmax.f32 %v6827, 0.0
      %v6860 = vmax.f32 %v6828, 0.0
      %v6861 = vmax.f32 %v6829, 0.0
      %v6862 = vmax.f32 %v6830, 0.0
      %s6863 = scalar_lea.vmem %s10, 96
      %v6864 = vld [vmem:[%s6863] sm:$0xff]
      %v6865 = vld [vmem:[%s6863 + $0x8] sm:$0xff]
      %v6866 = vld [vmem:[%s6863 + $0x10] sm:$0xff]
      %v6867 = vld [vmem:[%s6863 + $0x18] sm:$0xff]
      %s6868 = scalar_lea.vmem %s11, 3
      %v6869 = vld [vmem:[%s6868] sm:$0x1]
      %v6871 = vlaneseq
      %v6872 = vshrl.u32 %v6871, 7
      %v6873 = vsub.s32 0, %v6872
      %v6874 = vrot.slane %v6869, %v6873
      %6876 = vmatprep.subr.mxu0 0.0
      %6877 = vmatpush1.msra.mxu0 %v6864
      %6878 = vmatprep.subr.mxu0 0.0
      %6879 = vmatpush1.msra.mxu0 %v6865
      %6880 = vmatprep.subr.mxu0 0.0
      %6881 = vmatpush1.msra.mxu0 %v6866
      %6882 = vmatprep.subr.mxu0 0.0
      %6883 = vmatpush1.msra.mxu0 %v6867
      %6884 = vmatprep.subr.mxu0 0.0
      %6885 = vmatpush1.msra.mxu0 0.0
      %6886 = vmatprep.subr.mxu0 0.0
      %6887 = vmatpush1.msra.mxu0 0.0
      %6888 = vmatprep.subr.mxu0 0.0
      %6889 = vmatpush1.msra.mxu0 0.0
      %6890 = vmatprep.subr.mxu0 0.0
      %6891 = vmatpush1.msra.mxu0 0.0
      %6892 = vmatprep.subr.mxu0 0.0
      %6893 = vmatpush1.msra.mxu0 0.0
      %6894 = vmatprep.subr.mxu0 0.0
      %6895 = vmatpush1.msra.mxu0 0.0
      %6896 = vmatprep.subr.mxu0 0.0
      %6897 = vmatpush1.msra.mxu0 0.0
      %6898 = vmatprep.subr.mxu0 0.0
      %6899 = vmatpush1.msra.mxu0 0.0
      %6900 = vmatprep.subr.mxu0 0.0
      %6901 = vmatpush1.msra.mxu0 0.0
      %6902 = vmatprep.subr.mxu0 0.0
      %6903 = vmatpush1.msra.mxu0 0.0
      %6904 = vmatprep.subr.mxu0 0.0
      %6905 = vmatpush1.msra.mxu0 0.0
      %6906 = vmatprep.subr.mxu0 0.0
      %6907 = vmatpush1.msra.mxu0 0.0
      %6908 = vmatprep.subr.mxu0 0.0
      %6909 = vmatpush1.msra.mxu0 0.0
      %6910 = vmatprep.subr.mxu0 0.0
      %6911 = vmatpush1.msra.mxu0 0.0
      %6912 = vmatprep.subr.mxu0 0.0
      %6913 = vmatpush1.msra.mxu0 0.0
      %6914 = vmatprep.subr.mxu0 0.0
      %6915 = vmatpush1.msra.mxu0 0.0
      %6916 = vmatprep.subr.mxu0 0.0
      %6917 = vmatpush1.msra.mxu0 0.0
      %6918 = vmatprep.subr.mxu0 0.0
      %6919 = vmatpush1.msra.mxu0 0.0
      %6920 = vmatprep.subr.mxu0 0.0
      %6921 = vmatpush1.msra.mxu0 0.0
      %6922 = vmatprep.subr.mxu0 0.0
      %6923 = vmatpush1.msra.mxu0 0.0
      %6924 = vmatprep.subr.mxu0 0.0
      %6925 = vmatpush1.msra.mxu0 0.0
      %6926 = vmatprep.subr.mxu0 0.0
      %6927 = vmatpush1.msra.mxu0 0.0
      %6928 = vmatprep.subr.mxu0 0.0
      %6929 = vmatpush1.msra.mxu0 0.0
      %6930 = vmatprep.subr.mxu0 0.0
      %6931 = vmatpush1.msra.mxu0 0.0
      %6932 = vmatprep.subr.mxu0 0.0
      %6933 = vmatpush1.msra.mxu0 0.0
      %6934 = vmatprep.subr.mxu0 0.0
      %6935 = vmatpush1.msra.mxu0 0.0
      %6936 = vmatprep.subr.mxu0 0.0
      %6937 = vmatpush1.msra.mxu0 0.0
      %6938 = vmatprep.subr.mxu0 0.0
      %6939 = vmatpush1.msra.mxu0 0.0
      %6940 = vmatprep.mubr.f32.mxu0 0.0
      %6941 = vmatmul.mubr.f32.gmra.mrb[0].mxu0 %v4604
      %v6942 = vpop.f32.mrb[0].mxu0
      %v6943 = vadd.f32 %v6874, %v6942
      %v6944 = vpop.f32.mrb[0].mxu0
      %6945 = vmatprep.mubr.f32.mxu0 0.0
      %6946 = vmatmul.mubr.f32.gmra.mrb[0].mxu0 %v4607
      %v6947 = vpop.f32.mrb[0].mxu0
      %v6948 = vadd.f32 %v6874, %v6947
      %v6949 = vpop.f32.mrb[0].mxu0
      %6950 = vmatprep.mubr.f32.mxu0 0.0
      %6951 = vmatmul.mubr.f32.gmra.mrb[0].mxu0 %v4610
      %v6952 = vpop.f32.mrb[0].mxu0
      %v6953 = vadd.f32 %v6874, %v6952
      %v6954 = vpop.f32.mrb[0].mxu0
      %6955 = vmatprep.mubr.f32.mxu0 0.0
      %6956 = vmatmul.mubr.f32.gmra.mrb[0].mxu0 %v4613
      %v6957 = vpop.f32.mrb[0].mxu0
      %v6958 = vadd.f32 %v6874, %v6957
      %v6959 = vpop.f32.mrb[0].mxu0
      %6960 = vmatprep.mubr.f32.mxu0 0.0
      %6961 = vmatmul.mubr.f32.gmra.mrb[0].mxu0 %v4616
      %v6962 = vpop.f32.mrb[0].mxu0
      %v6963 = vadd.f32 %v6874, %v6962
      %v6964 = vpop.f32.mrb[0].mxu0
      %6965 = vmatprep.mubr.f32.mxu0 0.0
      %6966 = vmatmul.mubr.f32.gmra.mrb[0].mxu0 %v4619
      %v6967 = vpop.f32.mrb[0].mxu0
      %v6968 = vadd.f32 %v6874, %v6967
      %v6969 = vpop.f32.mrb[0].mxu0
      %6970 = vmatprep.mubr.f32.mxu0 0.0
      %6971 = vmatmul.mubr.f32.gmra.mrb[0].mxu0 %v4622
      %v6972 = vpop.f32.mrb[0].mxu0
      %v6973 = vadd.f32 %v6874, %v6972
      %v6974 = vpop.f32.mrb[0].mxu0
      %6975 = vmatprep.mubr.f32.mxu0 0.0
      %6976 = vmatmul.mubr.f32.gmra.mrb[0].mxu0 %v4625
      %v6977 = vpop.f32.mrb[0].mxu0
      %v6978 = vadd.f32 %v6874, %v6977
      %v6979 = vpop.f32.mrb[0].mxu0
      %6980 = vmatprep.mubr.f32.mxu0 0.0
      %6981 = vmatmul.mubr.f32.gmra.mrb[0].mxu0 %v4628
      %v6982 = vpop.f32.mrb[0].mxu0
      %v6983 = vadd.f32 %v6874, %v6982
      %v6984 = vpop.f32.mrb[0].mxu0
      %6985 = vmatprep.mubr.f32.mxu0 0.0
      %6986 = vmatmul.mubr.f32.gmra.mrb[0].mxu0 %v4631
      %v6987 = vpop.f32.mrb[0].mxu0
      %v6988 = vadd.f32 %v6874, %v6987
      %v6989 = vpop.f32.mrb[0].mxu0
      %6990 = vmatprep.mubr.f32.mxu0 0.0
      %6991 = vmatmul.mubr.f32.gmra.mrb[0].mxu0 %v4634
      %v6992 = vpop.f32.mrb[0].mxu0
      %v6993 = vadd.f32 %v6874, %v6992
      %v6994 = vpop.f32.mrb[0].mxu0
      %6995 = vmatprep.mubr.f32.mxu0 0.0
      %6996 = vmatmul.mubr.f32.gmra.mrb[0].mxu0 %v4637
      %v6997 = vpop.f32.mrb[0].mxu0
      %v6998 = vadd.f32 %v6874, %v6997
      %v6999 = vpop.f32.mrb[0].mxu0
      %7000 = vmatprep.mubr.f32.mxu0 0.0
      %7001 = vmatmul.mubr.f32.gmra.mrb[0].mxu0 %v4640
      %v7002 = vpop.f32.mrb[0].mxu0
      %v7003 = vadd.f32 %v6874, %v7002
      %v7004 = vpop.f32.mrb[0].mxu0
      %7005 = vmatprep.mubr.f32.mxu0 0.0
      %7006 = vmatmul.mubr.f32.gmra.mrb[0].mxu0 %v4643
      %v7007 = vpop.f32.mrb[0].mxu0
      %v7008 = vadd.f32 %v6874, %v7007
      %v7009 = vpop.f32.mrb[0].mxu0
      %7010 = vmatprep.mubr.f32.mxu0 0.0
      %7011 = vmatmul.mubr.f32.gmra.mrb[0].mxu0 %v4646
      %v7012 = vpop.f32.mrb[0].mxu0
      %v7013 = vadd.f32 %v6874, %v7012
      %v7014 = vpop.f32.mrb[0].mxu0
      %7015 = vmatprep.mubr.f32.mxu0 0.0
      %7016 = vmatmul.mubr.f32.gmra.mrb[0].mxu0 %v4649
      %v7017 = vpop.f32.mrb[0].mxu0
      %v7018 = vadd.f32 %v6874, %v7017
      %v7019 = vpop.f32.mrb[0].mxu0
      %7020 = vmatprep.mubr.f32.mxu0 0.0
      %7021 = vmatmul.mubr.f32.gmra.mrb[0].mxu0 %v4652
      %v7022 = vpop.f32.mrb[0].mxu0
      %v7023 = vadd.f32 %v6874, %v7022
      %v7024 = vpop.f32.mrb[0].mxu0
      %7025 = vmatprep.mubr.f32.mxu0 0.0
      %7026 = vmatmul.mubr.f32.gmra.mrb[0].mxu0 %v4655
      %v7027 = vpop.f32.mrb[0].mxu0
      %v7028 = vadd.f32 %v6874, %v7027
      %v7029 = vpop.f32.mrb[0].mxu0
      %7030 = vmatprep.mubr.f32.mxu0 0.0
      %7031 = vmatmul.mubr.f32.gmra.mrb[0].mxu0 %v4658
      %v7032 = vpop.f32.mrb[0].mxu0
      %v7033 = vadd.f32 %v6874, %v7032
      %v7034 = vpop.f32.mrb[0].mxu0
      %7035 = vmatprep.mubr.f32.mxu0 0.0
      %7036 = vmatmul.mubr.f32.gmra.mrb[0].mxu0 %v4661
      %v7037 = vpop.f32.mrb[0].mxu0
      %v7038 = vadd.f32 %v6874, %v7037
      %v7039 = vpop.f32.mrb[0].mxu0
      %7040 = vmatprep.mubr.f32.mxu0 0.0
      %7041 = vmatmul.mubr.f32.gmra.mrb[0].mxu0 %v4664
      %v7042 = vpop.f32.mrb[0].mxu0
      %v7043 = vadd.f32 %v6874, %v7042
      %v7044 = vpop.f32.mrb[0].mxu0
      %7045 = vmatprep.mubr.f32.mxu0 0.0
      %7046 = vmatmul.mubr.f32.gmra.mrb[0].mxu0 %v4667
      %v7047 = vpop.f32.mrb[0].mxu0
      %v7048 = vadd.f32 %v6874, %v7047
      %v7049 = vpop.f32.mrb[0].mxu0
      %7050 = vmatprep.mubr.f32.mxu0 0.0
      %7051 = vmatmul.mubr.f32.gmra.mrb[0].mxu0 %v4670
      %v7052 = vpop.f32.mrb[0].mxu0
      %v7053 = vadd.f32 %v6874, %v7052
      %v7054 = vpop.f32.mrb[0].mxu0
      %7055 = vmatprep.mubr.f32.mxu0 0.0
      %7056 = vmatmul.mubr.f32.gmra.mrb[0].mxu0 %v4673
      %v7057 = vpop.f32.mrb[0].mxu0
      %v7058 = vadd.f32 %v6874, %v7057
      %v7059 = vpop.f32.mrb[0].mxu0
      %7060 = vmatprep.mubr.f32.mxu0 0.0
      %7061 = vmatmul.mubr.f32.gmra.mrb[0].mxu0 %v4676
      %v7062 = vpop.f32.mrb[0].mxu0
      %v7063 = vadd.f32 %v6874, %v7062
      %v7064 = vpop.f32.mrb[0].mxu0
      %7065 = vmatprep.mubr.f32.mxu0 0.0
      %7066 = vmatmul.mubr.f32.gmra.mrb[0].mxu0 %v4679
      %v7067 = vpop.f32.mrb[0].mxu0
      %v7068 = vadd.f32 %v6874, %v7067
      %v7069 = vpop.f32.mrb[0].mxu0
      %7070 = vmatprep.mubr.f32.mxu0 0.0
      %7071 = vmatmul.mubr.f32.gmra.mrb[0].mxu0 %v4682
      %v7072 = vpop.f32.mrb[0].mxu0
      %v7073 = vadd.f32 %v6874, %v7072
      %v7074 = vpop.f32.mrb[0].mxu0
      %7075 = vmatprep.mubr.f32.mxu0 0.0
      %7076 = vmatmul.mubr.f32.gmra.mrb[0].mxu0 %v4685
      %v7077 = vpop.f32.mrb[0].mxu0
      %v7078 = vadd.f32 %v6874, %v7077
      %v7079 = vpop.f32.mrb[0].mxu0
      %7080 = vmatprep.mubr.f32.mxu0 0.0
      %7081 = vmatmul.mubr.f32.gmra.mrb[0].mxu0 %v4688
      %v7082 = vpop.f32.mrb[0].mxu0
      %v7083 = vadd.f32 %v6874, %v7082
      %v7084 = vpop.f32.mrb[0].mxu0
      %7085 = vmatprep.mubr.f32.mxu0 0.0
      %7086 = vmatmul.mubr.f32.gmra.mrb[0].mxu0 %v4691
      %v7087 = vpop.f32.mrb[0].mxu0
      %v7088 = vadd.f32 %v6874, %v7087
      %v7089 = vpop.f32.mrb[0].mxu0
      %7090 = vmatprep.mubr.f32.mxu0 0.0
      %7091 = vmatmul.mubr.f32.gmra.mrb[0].mxu0 %v4694
      %v7092 = vpop.f32.mrb[0].mxu0
      %v7093 = vadd.f32 %v6874, %v7092
      %v7094 = vpop.f32.mrb[0].mxu0
      %7095 = vmatprep.mubr.f32.mxu0 0.0
      %7096 = vmatmul.mubr.f32.gmra.mrb[0].mxu0 %v4697
      %v7097 = vpop.f32.mrb[0].mxu0
      %v7098 = vadd.f32 %v6874, %v7097
      %v7099 = vpop.f32.mrb[0].mxu0
      %7100 = vdwg.mxu0
      %v7101 = vadd.f32 %v6831, %v6943
      %v7102 = vadd.f32 %v6832, %v6948
      %v7103 = vadd.f32 %v6833, %v6953
      %v7104 = vadd.f32 %v6834, %v6958
      %v7105 = vadd.f32 %v6835, %v6963
      %v7106 = vadd.f32 %v6836, %v6968
      %v7107 = vadd.f32 %v6837, %v6973
      %v7108 = vadd.f32 %v6838, %v6978
      %v7109 = vadd.f32 %v6839, %v6983
      %v7110 = vadd.f32 %v6840, %v6988
      %v7111 = vadd.f32 %v6841, %v6993
      %v7112 = vadd.f32 %v6842, %v6998
      %v7113 = vadd.f32 %v6843, %v7003
      %v7114 = vadd.f32 %v6844, %v7008
      %v7115 = vadd.f32 %v6845, %v7013
      %v7116 = vadd.f32 %v6846, %v7018
      %v7117 = vadd.f32 %v6847, %v7023
      %v7118 = vadd.f32 %v6848, %v7028
      %v7119 = vadd.f32 %v6849, %v7033
      %v7120 = vadd.f32 %v6850, %v7038
      %v7121 = vadd.f32 %v6851, %v7043
      %v7122 = vadd.f32 %v6852, %v7048
      %v7123 = vadd.f32 %v6853, %v7053
      %v7124 = vadd.f32 %v6854, %v7058
      %v7125 = vadd.f32 %v6855, %v7063
      %v7126 = vadd.f32 %v6856, %v7068
      %v7127 = vadd.f32 %v6857, %v7073
      %v7128 = vadd.f32 %v6858, %v7078
      %v7129 = vadd.f32 %v6859, %v7083
      %v7130 = vadd.f32 %v6860, %v7088
      %v7131 = vadd.f32 %v6861, %v7093
      %v7132 = vadd.f32 %v6862, %v7098
      %v7133 = vld [vmem:[%s8] sm:$0xff]
      %v7134 = vld [vmem:[%s8 + $0x8] sm:$0xff]
      %v7135 = vld [vmem:[%s8 + $0x10] sm:$0xff]
      %v7136 = vld [vmem:[%s8 + $0x18] sm:$0xff]
      %s7137 = scalar_lea.vmem %s9, 4
      %v7138 = vld [vmem:[%s7137] sm:$0x1]
      %v7140 = vlaneseq
      %v7141 = vshrl.u32 %v7140, 7
      %v7142 = vsub.s32 0, %v7141
      %v7143 = vrot.slane %v7138, %v7142
      %v7146 = vsel %vm4602, %v7101, 0
      %v7149 = vsel %vm4602, %v7102, 0
      %v7152 = vsel %vm4602, %v7103, 0
      %v7155 = vsel %vm4602, %v7104, 0
      %v7158 = vsel %vm4602, %v7105, 0
      %v7161 = vsel %vm4602, %v7106, 0
      %v7164 = vsel %vm4602, %v7107, 0
      %v7167 = vsel %vm4602, %v7108, 0
      %v7170 = vsel %vm4602, %v7109, 0
      %v7173 = vsel %vm4602, %v7110, 0
      %v7176 = vsel %vm4602, %v7111, 0
      %v7179 = vsel %vm4602, %v7112, 0
      %v7182 = vsel %vm4602, %v7113, 0
      %v7185 = vsel %vm4602, %v7114, 0
      %v7188 = vsel %vm4602, %v7115, 0
      %v7191 = vsel %vm4602, %v7116, 0
      %v7194 = vsel %vm4602, %v7117, 0
      %v7197 = vsel %vm4602, %v7118, 0
      %v7200 = vsel %vm4602, %v7119, 0
      %v7203 = vsel %vm4602, %v7120, 0
      %v7206 = vsel %vm4602, %v7121, 0
      %v7209 = vsel %vm4602, %v7122, 0
      %v7212 = vsel %vm4602, %v7123, 0
      %v7215 = vsel %vm4602, %v7124, 0
      %v7218 = vsel %vm4602, %v7125, 0
      %v7221 = vsel %vm4602, %v7126, 0
      %v7224 = vsel %vm4602, %v7127, 0
      %v7227 = vsel %vm4602, %v7128, 0
      %v7230 = vsel %vm4602, %v7129, 0
      %v7233 = vsel %vm4602, %v7130, 0
      %v7236 = vsel %vm4602, %v7131, 0
      %v7239 = vsel %vm4602, %v7132, 0
      %7241 = vmatprep.subr.mxu0 0.0
      %7242 = vmatpush1.msra.mxu0 %v7133
      %7243 = vmatprep.subr.mxu0 0.0
      %7244 = vmatpush1.msra.mxu0 %v7134
      %7245 = vmatprep.subr.mxu0 0.0
      %7246 = vmatpush1.msra.mxu0 %v7135
      %7247 = vmatprep.subr.mxu0 0.0
      %7248 = vmatpush1.msra.mxu0 %v7136
      %7249 = vmatprep.subr.mxu0 0.0
      %7250 = vmatpush1.msra.mxu0 0.0
      %7251 = vmatprep.subr.mxu0 0.0
      %7252 = vmatpush1.msra.mxu0 0.0
      %7253 = vmatprep.subr.mxu0 0.0
      %7254 = vmatpush1.msra.mxu0 0.0
      %7255 = vmatprep.subr.mxu0 0.0
      %7256 = vmatpush1.msra.mxu0 0.0
      %7257 = vmatprep.subr.mxu0 0.0
      %7258 = vmatpush1.msra.mxu0 0.0
      %7259 = vmatprep.subr.mxu0 0.0
      %7260 = vmatpush1.msra.mxu0 0.0
      %7261 = vmatprep.subr.mxu0 0.0
      %7262 = vmatpush1.msra.mxu0 0.0
      %7263 = vmatprep.subr.mxu0 0.0
      %7264 = vmatpush1.msra.mxu0 0.0
      %7265 = vmatprep.subr.mxu0 0.0
      %7266 = vmatpush1.msra.mxu0 0.0
      %7267 = vmatprep.subr.mxu0 0.0
      %7268 = vmatpush1.msra.mxu0 0.0
      %7269 = vmatprep.subr.mxu0 0.0
      %7270 = vmatpush1.msra.mxu0 0.0
      %7271 = vmatprep.subr.mxu0 0.0
      %7272 = vmatpush1.msra.mxu0 0.0
      %7273 = vmatprep.subr.mxu0 0.0
      %7274 = vmatpush1.msra.mxu0 0.0
      %7275 = vmatprep.subr.mxu0 0.0
      %7276 = vmatpush1.msra.mxu0 0.0
      %7277 = vmatprep.subr.mxu0 0.0
      %7278 = vmatpush1.msra.mxu0 0.0
      %7279 = vmatprep.subr.mxu0 0.0
      %7280 = vmatpush1.msra.mxu0 0.0
      %7281 = vmatprep.subr.mxu0 0.0
      %7282 = vmatpush1.msra.mxu0 0.0
      %7283 = vmatprep.subr.mxu0 0.0
      %7284 = vmatpush1.msra.mxu0 0.0
      %7285 = vmatprep.subr.mxu0 0.0
      %7286 = vmatpush1.msra.mxu0 0.0
      %7287 = vmatprep.subr.mxu0 0.0
      %7288 = vmatpush1.msra.mxu0 0.0
      %7289 = vmatprep.subr.mxu0 0.0
      %7290 = vmatpush1.msra.mxu0 0.0
      %7291 = vmatprep.subr.mxu0 0.0
      %7292 = vmatpush1.msra.mxu0 0.0
      %7293 = vmatprep.subr.mxu0 0.0
      %7294 = vmatpush1.msra.mxu0 0.0
      %7295 = vmatprep.subr.mxu0 0.0
      %7296 = vmatpush1.msra.mxu0 0.0
      %7297 = vmatprep.subr.mxu0 0.0
      %7298 = vmatpush1.msra.mxu0 0.0
      %7299 = vmatprep.subr.mxu0 0.0
      %7300 = vmatpush1.msra.mxu0 0.0
      %7301 = vmatprep.subr.mxu0 0.0
      %7302 = vmatpush1.msra.mxu0 0.0
      %7303 = vmatprep.subr.mxu0 0.0
      %7304 = vmatpush1.msra.mxu0 0.0
      %7305 = vmatprep.mubr.f32.mxu0 0.0
      %7306 = vmatmul.mubr.f32.gmra.mrb[0].mxu0 %v7146
      %v7307 = vpop.f32.mrb[0].mxu0
      %v7308 = vadd.f32 %v7143, %v7307
      %v7309 = vpop.f32.mrb[0].mxu0
      %7310 = vmatprep.mubr.f32.mxu0 0.0
      %7311 = vmatmul.mubr.f32.gmra.mrb[0].mxu0 %v7149
      %v7312 = vpop.f32.mrb[0].mxu0
      %v7313 = vadd.f32 %v7143, %v7312
      %v7314 = vpop.f32.mrb[0].mxu0
      %7315 = vmatprep.mubr.f32.mxu0 0.0
      %7316 = vmatmul.mubr.f32.gmra.mrb[0].mxu0 %v7152
      %v7317 = vpop.f32.mrb[0].mxu0
      %v7318 = vadd.f32 %v7143, %v7317
      %v7319 = vpop.f32.mrb[0].mxu0
      %7320 = vmatprep.mubr.f32.mxu0 0.0
      %7321 = vmatmul.mubr.f32.gmra.mrb[0].mxu0 %v7155
      %v7322 = vpop.f32.mrb[0].mxu0
      %v7323 = vadd.f32 %v7143, %v7322
      %v7324 = vpop.f32.mrb[0].mxu0
      %7325 = vmatprep.mubr.f32.mxu0 0.0
      %7326 = vmatmul.mubr.f32.gmra.mrb[0].mxu0 %v7158
      %v7327 = vpop.f32.mrb[0].mxu0
      %v7328 = vadd.f32 %v7143, %v7327
      %v7329 = vpop.f32.mrb[0].mxu0
      %7330 = vmatprep.mubr.f32.mxu0 0.0
      %7331 = vmatmul.mubr.f32.gmra.mrb[0].mxu0 %v7161
      %v7332 = vpop.f32.mrb[0].mxu0
      %v7333 = vadd.f32 %v7143, %v7332
      %v7334 = vpop.f32.mrb[0].mxu0
      %7335 = vmatprep.mubr.f32.mxu0 0.0
      %7336 = vmatmul.mubr.f32.gmra.mrb[0].mxu0 %v7164
      %v7337 = vpop.f32.mrb[0].mxu0
      %v7338 = vadd.f32 %v7143, %v7337
      %v7339 = vpop.f32.mrb[0].mxu0
      %7340 = vmatprep.mubr.f32.mxu0 0.0
      %7341 = vmatmul.mubr.f32.gmra.mrb[0].mxu0 %v7167
      %v7342 = vpop.f32.mrb[0].mxu0
      %v7343 = vadd.f32 %v7143, %v7342
      %v7344 = vpop.f32.mrb[0].mxu0
      %7345 = vmatprep.mubr.f32.mxu0 0.0
      %7346 = vmatmul.mubr.f32.gmra.mrb[0].mxu0 %v7170
      %v7347 = vpop.f32.mrb[0].mxu0
      %v7348 = vadd.f32 %v7143, %v7347
      %v7349 = vpop.f32.mrb[0].mxu0
      %7350 = vmatprep.mubr.f32.mxu0 0.0
      %7351 = vmatmul.mubr.f32.gmra.mrb[0].mxu0 %v7173
      %v7352 = vpop.f32.mrb[0].mxu0
      %v7353 = vadd.f32 %v7143, %v7352
      %v7354 = vpop.f32.mrb[0].mxu0
      %7355 = vmatprep.mubr.f32.mxu0 0.0
      %7356 = vmatmul.mubr.f32.gmra.mrb[0].mxu0 %v7176
      %v7357 = vpop.f32.mrb[0].mxu0
      %v7358 = vadd.f32 %v7143, %v7357
      %v7359 = vpop.f32.mrb[0].mxu0
      %7360 = vmatprep.mubr.f32.mxu0 0.0
      %7361 = vmatmul.mubr.f32.gmra.mrb[0].mxu0 %v7179
      %v7362 = vpop.f32.mrb[0].mxu0
      %v7363 = vadd.f32 %v7143, %v7362
      %v7364 = vpop.f32.mrb[0].mxu0
      %7365 = vmatprep.mubr.f32.mxu0 0.0
      %7366 = vmatmul.mubr.f32.gmra.mrb[0].mxu0 %v7182
      %v7367 = vpop.f32.mrb[0].mxu0
      %v7368 = vadd.f32 %v7143, %v7367
      %v7369 = vpop.f32.mrb[0].mxu0
      %7370 = vmatprep.mubr.f32.mxu0 0.0
      %7371 = vmatmul.mubr.f32.gmra.mrb[0].mxu0 %v7185
      %v7372 = vpop.f32.mrb[0].mxu0
      %v7373 = vadd.f32 %v7143, %v7372
      %v7374 = vpop.f32.mrb[0].mxu0
      %7375 = vmatprep.mubr.f32.mxu0 0.0
      %7376 = vmatmul.mubr.f32.gmra.mrb[0].mxu0 %v7188
      %v7377 = vpop.f32.mrb[0].mxu0
      %v7378 = vadd.f32 %v7143, %v7377
      %v7379 = vpop.f32.mrb[0].mxu0
      %7380 = vmatprep.mubr.f32.mxu0 0.0
      %7381 = vmatmul.mubr.f32.gmra.mrb[0].mxu0 %v7191
      %v7382 = vpop.f32.mrb[0].mxu0
      %v7383 = vadd.f32 %v7143, %v7382
      %v7384 = vpop.f32.mrb[0].mxu0
      %7385 = vmatprep.mubr.f32.mxu0 0.0
      %7386 = vmatmul.mubr.f32.gmra.mrb[0].mxu0 %v7194
      %v7387 = vpop.f32.mrb[0].mxu0
      %v7388 = vadd.f32 %v7143, %v7387
      %v7389 = vpop.f32.mrb[0].mxu0
      %7390 = vmatprep.mubr.f32.mxu0 0.0
      %7391 = vmatmul.mubr.f32.gmra.mrb[0].mxu0 %v7197
      %v7392 = vpop.f32.mrb[0].mxu0
      %v7393 = vadd.f32 %v7143, %v7392
      %v7394 = vpop.f32.mrb[0].mxu0
      %7395 = vmatprep.mubr.f32.mxu0 0.0
      %7396 = vmatmul.mubr.f32.gmra.mrb[0].mxu0 %v7200
      %v7397 = vpop.f32.mrb[0].mxu0
      %v7398 = vadd.f32 %v7143, %v7397
      %v7399 = vpop.f32.mrb[0].mxu0
      %7400 = vmatprep.mubr.f32.mxu0 0.0
      %7401 = vmatmul.mubr.f32.gmra.mrb[0].mxu0 %v7203
      %v7402 = vpop.f32.mrb[0].mxu0
      %v7403 = vadd.f32 %v7143, %v7402
      %v7404 = vpop.f32.mrb[0].mxu0
      %7405 = vmatprep.mubr.f32.mxu0 0.0
      %7406 = vmatmul.mubr.f32.gmra.mrb[0].mxu0 %v7206
      %v7407 = vpop.f32.mrb[0].mxu0
      %v7408 = vadd.f32 %v7143, %v7407
      %v7409 = vpop.f32.mrb[0].mxu0
      %7410 = vmatprep.mubr.f32.mxu0 0.0
      %7411 = vmatmul.mubr.f32.gmra.mrb[0].mxu0 %v7209
      %v7412 = vpop.f32.mrb[0].mxu0
      %v7413 = vadd.f32 %v7143, %v7412
      %v7414 = vpop.f32.mrb[0].mxu0
      %7415 = vmatprep.mubr.f32.mxu0 0.0
      %7416 = vmatmul.mubr.f32.gmra.mrb[0].mxu0 %v7212
      %v7417 = vpop.f32.mrb[0].mxu0
      %v7418 = vadd.f32 %v7143, %v7417
      %v7419 = vpop.f32.mrb[0].mxu0
      %7420 = vmatprep.mubr.f32.mxu0 0.0
      %7421 = vmatmul.mubr.f32.gmra.mrb[0].mxu0 %v7215
      %v7422 = vpop.f32.mrb[0].mxu0
      %v7423 = vadd.f32 %v7143, %v7422
      %v7424 = vpop.f32.mrb[0].mxu0
      %7425 = vmatprep.mubr.f32.mxu0 0.0
      %7426 = vmatmul.mubr.f32.gmra.mrb[0].mxu0 %v7218
      %v7427 = vpop.f32.mrb[0].mxu0
      %v7428 = vadd.f32 %v7143, %v7427
      %v7429 = vpop.f32.mrb[0].mxu0
      %7430 = vmatprep.mubr.f32.mxu0 0.0
      %7431 = vmatmul.mubr.f32.gmra.mrb[0].mxu0 %v7221
      %v7432 = vpop.f32.mrb[0].mxu0
      %v7433 = vadd.f32 %v7143, %v7432
      %v7434 = vpop.f32.mrb[0].mxu0
      %7435 = vmatprep.mubr.f32.mxu0 0.0
      %7436 = vmatmul.mubr.f32.gmra.mrb[0].mxu0 %v7224
      %v7437 = vpop.f32.mrb[0].mxu0
      %v7438 = vadd.f32 %v7143, %v7437
      %v7439 = vpop.f32.mrb[0].mxu0
      %7440 = vmatprep.mubr.f32.mxu0 0.0
      %7441 = vmatmul.mubr.f32.gmra.mrb[0].mxu0 %v7227
      %v7442 = vpop.f32.mrb[0].mxu0
      %v7443 = vadd.f32 %v7143, %v7442
      %v7444 = vpop.f32.mrb[0].mxu0
      %7445 = vmatprep.mubr.f32.mxu0 0.0
      %7446 = vmatmul.mubr.f32.gmra.mrb[0].mxu0 %v7230
      %v7447 = vpop.f32.mrb[0].mxu0
      %v7448 = vadd.f32 %v7143, %v7447
      %v7449 = vpop.f32.mrb[0].mxu0
      %7450 = vmatprep.mubr.f32.mxu0 0.0
      %7451 = vmatmul.mubr.f32.gmra.mrb[0].mxu0 %v7233
      %v7452 = vpop.f32.mrb[0].mxu0
      %v7453 = vadd.f32 %v7143, %v7452
      %v7454 = vpop.f32.mrb[0].mxu0
      %7455 = vmatprep.mubr.f32.mxu0 0.0
      %7456 = vmatmul.mubr.f32.gmra.mrb[0].mxu0 %v7236
      %v7457 = vpop.f32.mrb[0].mxu0
      %v7458 = vadd.f32 %v7143, %v7457
      %v7459 = vpop.f32.mrb[0].mxu0
      %7460 = vmatprep.mubr.f32.mxu0 0.0
      %7461 = vmatmul.mubr.f32.gmra.mrb[0].mxu0 %v7239
      %v7462 = vpop.f32.mrb[0].mxu0
      %v7463 = vadd.f32 %v7143, %v7462
      %v7464 = vpop.f32.mrb[0].mxu0
      %7465 = vdwg.mxu0
      %v7466 = vmax.f32 %v7308, 0.0
      %v7467 = vmax.f32 %v7313, 0.0
      %v7468 = vmax.f32 %v7318, 0.0
      %v7469 = vmax.f32 %v7323, 0.0
      %v7470 = vmax.f32 %v7328, 0.0
      %v7471 = vmax.f32 %v7333, 0.0
      %v7472 = vmax.f32 %v7338, 0.0
      %v7473 = vmax.f32 %v7343, 0.0
      %v7474 = vmax.f32 %v7348, 0.0
      %v7475 = vmax.f32 %v7353, 0.0
      %v7476 = vmax.f32 %v7358, 0.0
      %v7477 = vmax.f32 %v7363, 0.0
      %v7478 = vmax.f32 %v7368, 0.0
      %v7479 = vmax.f32 %v7373, 0.0
      %v7480 = vmax.f32 %v7378, 0.0
      %v7481 = vmax.f32 %v7383, 0.0
      %v7482 = vmax.f32 %v7388, 0.0
      %v7483 = vmax.f32 %v7393, 0.0
      %v7484 = vmax.f32 %v7398, 0.0
      %v7485 = vmax.f32 %v7403, 0.0
      %v7486 = vmax.f32 %v7408, 0.0
      %v7487 = vmax.f32 %v7413, 0.0
      %v7488 = vmax.f32 %v7418, 0.0
      %v7489 = vmax.f32 %v7423, 0.0
      %v7490 = vmax.f32 %v7428, 0.0
      %v7491 = vmax.f32 %v7433, 0.0
      %v7492 = vmax.f32 %v7438, 0.0
      %v7493 = vmax.f32 %v7443, 0.0
      %v7494 = vmax.f32 %v7448, 0.0
      %v7495 = vmax.f32 %v7453, 0.0
      %v7496 = vmax.f32 %v7458, 0.0
      %v7497 = vmax.f32 %v7463, 0.0
      %s7498 = scalar_lea.vmem %s10, 128
      %v7499 = vld [vmem:[%s7498] sm:$0xff]
      %v7500 = vld [vmem:[%s7498 + $0x8] sm:$0xff]
      %v7501 = vld [vmem:[%s7498 + $0x10] sm:$0xff]
      %v7502 = vld [vmem:[%s7498 + $0x18] sm:$0xff]
      %s7503 = scalar_lea.vmem %s11, 4
      %v7504 = vld [vmem:[%s7503] sm:$0x1]
      %v7506 = vlaneseq
      %v7507 = vshrl.u32 %v7506, 7
      %v7508 = vsub.s32 0, %v7507
      %v7509 = vrot.slane %v7504, %v7508
      %7511 = vmatprep.subr.mxu0 0.0
      %7512 = vmatpush1.msra.mxu0 %v7499
      %7513 = vmatprep.subr.mxu0 0.0
      %7514 = vmatpush1.msra.mxu0 %v7500
      %7515 = vmatprep.subr.mxu0 0.0
      %7516 = vmatpush1.msra.mxu0 %v7501
      %7517 = vmatprep.subr.mxu0 0.0
      %7518 = vmatpush1.msra.mxu0 %v7502
      %7519 = vmatprep.subr.mxu0 0.0
      %7520 = vmatpush1.msra.mxu0 0.0
      %7521 = vmatprep.subr.mxu0 0.0
      %7522 = vmatpush1.msra.mxu0 0.0
      %7523 = vmatprep.subr.mxu0 0.0
      %7524 = vmatpush1.msra.mxu0 0.0
      %7525 = vmatprep.subr.mxu0 0.0
      %7526 = vmatpush1.msra.mxu0 0.0
      %7527 = vmatprep.subr.mxu0 0.0
      %7528 = vmatpush1.msra.mxu0 0.0
      %7529 = vmatprep.subr.mxu0 0.0
      %7530 = vmatpush1.msra.mxu0 0.0
      %7531 = vmatprep.subr.mxu0 0.0
      %7532 = vmatpush1.msra.mxu0 0.0
      %7533 = vmatprep.subr.mxu0 0.0
      %7534 = vmatpush1.msra.mxu0 0.0
      %7535 = vmatprep.subr.mxu0 0.0
      %7536 = vmatpush1.msra.mxu0 0.0
      %7537 = vmatprep.subr.mxu0 0.0
      %7538 = vmatpush1.msra.mxu0 0.0
      %7539 = vmatprep.subr.mxu0 0.0
      %7540 = vmatpush1.msra.mxu0 0.0
      %7541 = vmatprep.subr.mxu0 0.0
      %7542 = vmatpush1.msra.mxu0 0.0
      %7543 = vmatprep.subr.mxu0 0.0
      %7544 = vmatpush1.msra.mxu0 0.0
      %7545 = vmatprep.subr.mxu0 0.0
      %7546 = vmatpush1.msra.mxu0 0.0
      %7547 = vmatprep.subr.mxu0 0.0
      %7548 = vmatpush1.msra.mxu0 0.0
      %7549 = vmatprep.subr.mxu0 0.0
      %7550 = vmatpush1.msra.mxu0 0.0
      %7551 = vmatprep.subr.mxu0 0.0
      %7552 = vmatpush1.msra.mxu0 0.0
      %7553 = vmatprep.subr.mxu0 0.0
      %7554 = vmatpush1.msra.mxu0 0.0
      %7555 = vmatprep.subr.mxu0 0.0
      %7556 = vmatpush1.msra.mxu0 0.0
      %7557 = vmatprep.subr.mxu0 0.0
      %7558 = vmatpush1.msra.mxu0 0.0
      %7559 = vmatprep.subr.mxu0 0.0
      %7560 = vmatpush1.msra.mxu0 0.0
      %7561 = vmatprep.subr.mxu0 0.0
      %7562 = vmatpush1.msra.mxu0 0.0
      %7563 = vmatprep.subr.mxu0 0.0
      %7564 = vmatpush1.msra.mxu0 0.0
      %7565 = vmatprep.subr.mxu0 0.0
      %7566 = vmatpush1.msra.mxu0 0.0
      %7567 = vmatprep.subr.mxu0 0.0
      %7568 = vmatpush1.msra.mxu0 0.0
      %7569 = vmatprep.subr.mxu0 0.0
      %7570 = vmatpush1.msra.mxu0 0.0
      %7571 = vmatprep.subr.mxu0 0.0
      %7572 = vmatpush1.msra.mxu0 0.0
      %7573 = vmatprep.subr.mxu0 0.0
      %7574 = vmatpush1.msra.mxu0 0.0
      %7575 = vmatprep.mubr.f32.mxu0 0.0
      %7576 = vmatmul.mubr.f32.gmra.mrb[0].mxu0 %v4604
      %v7577 = vpop.f32.mrb[0].mxu0
      %v7578 = vadd.f32 %v7509, %v7577
      %v7579 = vpop.f32.mrb[0].mxu0
      %7580 = vmatprep.mubr.f32.mxu0 0.0
      %7581 = vmatmul.mubr.f32.gmra.mrb[0].mxu0 %v4607
      %v7582 = vpop.f32.mrb[0].mxu0
      %v7583 = vadd.f32 %v7509, %v7582
      %v7584 = vpop.f32.mrb[0].mxu0
      %7585 = vmatprep.mubr.f32.mxu0 0.0
      %7586 = vmatmul.mubr.f32.gmra.mrb[0].mxu0 %v4610
      %v7587 = vpop.f32.mrb[0].mxu0
      %v7588 = vadd.f32 %v7509, %v7587
      %v7589 = vpop.f32.mrb[0].mxu0
      %7590 = vmatprep.mubr.f32.mxu0 0.0
      %7591 = vmatmul.mubr.f32.gmra.mrb[0].mxu0 %v4613
      %v7592 = vpop.f32.mrb[0].mxu0
      %v7593 = vadd.f32 %v7509, %v7592
      %v7594 = vpop.f32.mrb[0].mxu0
      %7595 = vmatprep.mubr.f32.mxu0 0.0
      %7596 = vmatmul.mubr.f32.gmra.mrb[0].mxu0 %v4616
      %v7597 = vpop.f32.mrb[0].mxu0
      %v7598 = vadd.f32 %v7509, %v7597
      %v7599 = vpop.f32.mrb[0].mxu0
      %7600 = vmatprep.mubr.f32.mxu0 0.0
      %7601 = vmatmul.mubr.f32.gmra.mrb[0].mxu0 %v4619
      %v7602 = vpop.f32.mrb[0].mxu0
      %v7603 = vadd.f32 %v7509, %v7602
      %v7604 = vpop.f32.mrb[0].mxu0
      %7605 = vmatprep.mubr.f32.mxu0 0.0
      %7606 = vmatmul.mubr.f32.gmra.mrb[0].mxu0 %v4622
      %v7607 = vpop.f32.mrb[0].mxu0
      %v7608 = vadd.f32 %v7509, %v7607
      %v7609 = vpop.f32.mrb[0].mxu0
      %7610 = vmatprep.mubr.f32.mxu0 0.0
      %7611 = vmatmul.mubr.f32.gmra.mrb[0].mxu0 %v4625
      %v7612 = vpop.f32.mrb[0].mxu0
      %v7613 = vadd.f32 %v7509, %v7612
      %v7614 = vpop.f32.mrb[0].mxu0
      %7615 = vmatprep.mubr.f32.mxu0 0.0
      %7616 = vmatmul.mubr.f32.gmra.mrb[0].mxu0 %v4628
      %v7617 = vpop.f32.mrb[0].mxu0
      %v7618 = vadd.f32 %v7509, %v7617
      %v7619 = vpop.f32.mrb[0].mxu0
      %7620 = vmatprep.mubr.f32.mxu0 0.0
      %7621 = vmatmul.mubr.f32.gmra.mrb[0].mxu0 %v4631
      %v7622 = vpop.f32.mrb[0].mxu0
      %v7623 = vadd.f32 %v7509, %v7622
      %v7624 = vpop.f32.mrb[0].mxu0
      %7625 = vmatprep.mubr.f32.mxu0 0.0
      %7626 = vmatmul.mubr.f32.gmra.mrb[0].mxu0 %v4634
      %v7627 = vpop.f32.mrb[0].mxu0
      %v7628 = vadd.f32 %v7509, %v7627
      %v7629 = vpop.f32.mrb[0].mxu0
      %7630 = vmatprep.mubr.f32.mxu0 0.0
      %7631 = vmatmul.mubr.f32.gmra.mrb[0].mxu0 %v4637
      %v7632 = vpop.f32.mrb[0].mxu0
      %v7633 = vadd.f32 %v7509, %v7632
      %v7634 = vpop.f32.mrb[0].mxu0
      %7635 = vmatprep.mubr.f32.mxu0 0.0
      %7636 = vmatmul.mubr.f32.gmra.mrb[0].mxu0 %v4640
      %v7637 = vpop.f32.mrb[0].mxu0
      %v7638 = vadd.f32 %v7509, %v7637
      %v7639 = vpop.f32.mrb[0].mxu0
      %7640 = vmatprep.mubr.f32.mxu0 0.0
      %7641 = vmatmul.mubr.f32.gmra.mrb[0].mxu0 %v4643
      %v7642 = vpop.f32.mrb[0].mxu0
      %v7643 = vadd.f32 %v7509, %v7642
      %v7644 = vpop.f32.mrb[0].mxu0
      %7645 = vmatprep.mubr.f32.mxu0 0.0
      %7646 = vmatmul.mubr.f32.gmra.mrb[0].mxu0 %v4646
      %v7647 = vpop.f32.mrb[0].mxu0
      %v7648 = vadd.f32 %v7509, %v7647
      %v7649 = vpop.f32.mrb[0].mxu0
      %7650 = vmatprep.mubr.f32.mxu0 0.0
      %7651 = vmatmul.mubr.f32.gmra.mrb[0].mxu0 %v4649
      %v7652 = vpop.f32.mrb[0].mxu0
      %v7653 = vadd.f32 %v7509, %v7652
      %v7654 = vpop.f32.mrb[0].mxu0
      %7655 = vmatprep.mubr.f32.mxu0 0.0
      %7656 = vmatmul.mubr.f32.gmra.mrb[0].mxu0 %v4652
      %v7657 = vpop.f32.mrb[0].mxu0
      %v7658 = vadd.f32 %v7509, %v7657
      %v7659 = vpop.f32.mrb[0].mxu0
      %7660 = vmatprep.mubr.f32.mxu0 0.0
      %7661 = vmatmul.mubr.f32.gmra.mrb[0].mxu0 %v4655
      %v7662 = vpop.f32.mrb[0].mxu0
      %v7663 = vadd.f32 %v7509, %v7662
      %v7664 = vpop.f32.mrb[0].mxu0
      %7665 = vmatprep.mubr.f32.mxu0 0.0
      %7666 = vmatmul.mubr.f32.gmra.mrb[0].mxu0 %v4658
      %v7667 = vpop.f32.mrb[0].mxu0
      %v7668 = vadd.f32 %v7509, %v7667
      %v7669 = vpop.f32.mrb[0].mxu0
      %7670 = vmatprep.mubr.f32.mxu0 0.0
      %7671 = vmatmul.mubr.f32.gmra.mrb[0].mxu0 %v4661
      %v7672 = vpop.f32.mrb[0].mxu0
      %v7673 = vadd.f32 %v7509, %v7672
      %v7674 = vpop.f32.mrb[0].mxu0
      %7675 = vmatprep.mubr.f32.mxu0 0.0
      %7676 = vmatmul.mubr.f32.gmra.mrb[0].mxu0 %v4664
      %v7677 = vpop.f32.mrb[0].mxu0
      %v7678 = vadd.f32 %v7509, %v7677
      %v7679 = vpop.f32.mrb[0].mxu0
      %7680 = vmatprep.mubr.f32.mxu0 0.0
      %7681 = vmatmul.mubr.f32.gmra.mrb[0].mxu0 %v4667
      %v7682 = vpop.f32.mrb[0].mxu0
      %v7683 = vadd.f32 %v7509, %v7682
      %v7684 = vpop.f32.mrb[0].mxu0
      %7685 = vmatprep.mubr.f32.mxu0 0.0
      %7686 = vmatmul.mubr.f32.gmra.mrb[0].mxu0 %v4670
      %v7687 = vpop.f32.mrb[0].mxu0
      %v7688 = vadd.f32 %v7509, %v7687
      %v7689 = vpop.f32.mrb[0].mxu0
      %7690 = vmatprep.mubr.f32.mxu0 0.0
      %7691 = vmatmul.mubr.f32.gmra.mrb[0].mxu0 %v4673
      %v7692 = vpop.f32.mrb[0].mxu0
      %v7693 = vadd.f32 %v7509, %v7692
      %v7694 = vpop.f32.mrb[0].mxu0
      %7695 = vmatprep.mubr.f32.mxu0 0.0
      %7696 = vmatmul.mubr.f32.gmra.mrb[0].mxu0 %v4676
      %v7697 = vpop.f32.mrb[0].mxu0
      %v7698 = vadd.f32 %v7509, %v7697
      %v7699 = vpop.f32.mrb[0].mxu0
      %7700 = vmatprep.mubr.f32.mxu0 0.0
      %7701 = vmatmul.mubr.f32.gmra.mrb[0].mxu0 %v4679
      %v7702 = vpop.f32.mrb[0].mxu0
      %v7703 = vadd.f32 %v7509, %v7702
      %v7704 = vpop.f32.mrb[0].mxu0
      %7705 = vmatprep.mubr.f32.mxu0 0.0
      %7706 = vmatmul.mubr.f32.gmra.mrb[0].mxu0 %v4682
      %v7707 = vpop.f32.mrb[0].mxu0
      %v7708 = vadd.f32 %v7509, %v7707
      %v7709 = vpop.f32.mrb[0].mxu0
      %7710 = vmatprep.mubr.f32.mxu0 0.0
      %7711 = vmatmul.mubr.f32.gmra.mrb[0].mxu0 %v4685
      %v7712 = vpop.f32.mrb[0].mxu0
      %v7713 = vadd.f32 %v7509, %v7712
      %v7714 = vpop.f32.mrb[0].mxu0
      %7715 = vmatprep.mubr.f32.mxu0 0.0
      %7716 = vmatmul.mubr.f32.gmra.mrb[0].mxu0 %v4688
      %v7717 = vpop.f32.mrb[0].mxu0
      %v7718 = vadd.f32 %v7509, %v7717
      %v7719 = vpop.f32.mrb[0].mxu0
      %7720 = vmatprep.mubr.f32.mxu0 0.0
      %7721 = vmatmul.mubr.f32.gmra.mrb[0].mxu0 %v4691
      %v7722 = vpop.f32.mrb[0].mxu0
      %v7723 = vadd.f32 %v7509, %v7722
      %v7724 = vpop.f32.mrb[0].mxu0
      %7725 = vmatprep.mubr.f32.mxu0 0.0
      %7726 = vmatmul.mubr.f32.gmra.mrb[0].mxu0 %v4694
      %v7727 = vpop.f32.mrb[0].mxu0
      %v7728 = vadd.f32 %v7509, %v7727
      %v7729 = vpop.f32.mrb[0].mxu0
      %7730 = vmatprep.mubr.f32.mxu0 0.0
      %7731 = vmatmul.mubr.f32.gmra.mrb[0].mxu0 %v4697
      %v7732 = vpop.f32.mrb[0].mxu0
      %v7733 = vadd.f32 %v7509, %v7732
      %v7734 = vpop.f32.mrb[0].mxu0
      %7735 = vdwg.mxu0
      %v7736 = vadd.f32 %v7466, %v7578
      %v7737 = vadd.f32 %v7467, %v7583
      %v7738 = vadd.f32 %v7468, %v7588
      %v7739 = vadd.f32 %v7469, %v7593
      %v7740 = vadd.f32 %v7470, %v7598
      %v7741 = vadd.f32 %v7471, %v7603
      %v7742 = vadd.f32 %v7472, %v7608
      %v7743 = vadd.f32 %v7473, %v7613
      %v7744 = vadd.f32 %v7474, %v7618
      %v7745 = vadd.f32 %v7475, %v7623
      %v7746 = vadd.f32 %v7476, %v7628
      %v7747 = vadd.f32 %v7477, %v7633
      %v7748 = vadd.f32 %v7478, %v7638
      %v7749 = vadd.f32 %v7479, %v7643
      %v7750 = vadd.f32 %v7480, %v7648
      %v7751 = vadd.f32 %v7481, %v7653
      %v7752 = vadd.f32 %v7482, %v7658
      %v7753 = vadd.f32 %v7483, %v7663
      %v7754 = vadd.f32 %v7484, %v7668
      %v7755 = vadd.f32 %v7485, %v7673
      %v7756 = vadd.f32 %v7486, %v7678
      %v7757 = vadd.f32 %v7487, %v7683
      %v7758 = vadd.f32 %v7488, %v7688
      %v7759 = vadd.f32 %v7489, %v7693
      %v7760 = vadd.f32 %v7490, %v7698
      %v7761 = vadd.f32 %v7491, %v7703
      %v7762 = vadd.f32 %v7492, %v7708
      %v7763 = vadd.f32 %v7493, %v7713
      %v7764 = vadd.f32 %v7494, %v7718
      %v7765 = vadd.f32 %v7495, %v7723
      %v7766 = vadd.f32 %v7496, %v7728
      %v7767 = vadd.f32 %v7497, %v7733
      %v7768 = vld [vmem:[%s12] sm:$0xff]
      %v7769 = vld [vmem:[%s12 + $0x8] sm:$0xff]
      %v7770 = vld [vmem:[%s12 + $0x10] sm:$0xff]
      %v7771 = vld [vmem:[%s12 + $0x18] sm:$0xff]
      %v7772 = vld [vmem:[#allocation2] sm:$0x1]
      %v7774 = vlaneseq
      %v7775 = vshrl.u32 %v7774, 7
      %v7776 = vsub.s32 0, %v7775
      %v7777 = vrot.slane %v7772, %v7776
      %v7780 = vsel %vm4602, %v7736, 0
      %v7783 = vsel %vm4602, %v7737, 0
      %v7786 = vsel %vm4602, %v7738, 0
      %v7789 = vsel %vm4602, %v7739, 0
      %v7792 = vsel %vm4602, %v7740, 0
      %v7795 = vsel %vm4602, %v7741, 0
      %v7798 = vsel %vm4602, %v7742, 0
      %v7801 = vsel %vm4602, %v7743, 0
      %v7804 = vsel %vm4602, %v7744, 0
      %v7807 = vsel %vm4602, %v7745, 0
      %v7810 = vsel %vm4602, %v7746, 0
      %v7813 = vsel %vm4602, %v7747, 0
      %v7816 = vsel %vm4602, %v7748, 0
      %v7819 = vsel %vm4602, %v7749, 0
      %v7822 = vsel %vm4602, %v7750, 0
      %v7825 = vsel %vm4602, %v7751, 0
      %v7828 = vsel %vm4602, %v7752, 0
      %v7831 = vsel %vm4602, %v7753, 0
      %v7834 = vsel %vm4602, %v7754, 0
      %v7837 = vsel %vm4602, %v7755, 0
      %v7840 = vsel %vm4602, %v7756, 0
      %v7843 = vsel %vm4602, %v7757, 0
      %v7846 = vsel %vm4602, %v7758, 0
      %v7849 = vsel %vm4602, %v7759, 0
      %v7852 = vsel %vm4602, %v7760, 0
      %v7855 = vsel %vm4602, %v7761, 0
      %v7858 = vsel %vm4602, %v7762, 0
      %v7861 = vsel %vm4602, %v7763, 0
      %v7864 = vsel %vm4602, %v7764, 0
      %v7867 = vsel %vm4602, %v7765, 0
      %v7870 = vsel %vm4602, %v7766, 0
      %v7873 = vsel %vm4602, %v7767, 0
      %7875 = vmatprep.subr.mxu0 0.0
      %7876 = vmatpush1.msra.mxu0 %v7768
      %7877 = vmatprep.subr.mxu0 0.0
      %7878 = vmatpush1.msra.mxu0 %v7769
      %7879 = vmatprep.subr.mxu0 0.0
      %7880 = vmatpush1.msra.mxu0 %v7770
      %7881 = vmatprep.subr.mxu0 0.0
      %7882 = vmatpush1.msra.mxu0 %v7771
      %7883 = vmatprep.subr.mxu0 0.0
      %7884 = vmatpush1.msra.mxu0 0.0
      %7885 = vmatprep.subr.mxu0 0.0
      %7886 = vmatpush1.msra.mxu0 0.0
      %7887 = vmatprep.subr.mxu0 0.0
      %7888 = vmatpush1.msra.mxu0 0.0
      %7889 = vmatprep.subr.mxu0 0.0
      %7890 = vmatpush1.msra.mxu0 0.0
      %7891 = vmatprep.subr.mxu0 0.0
      %7892 = vmatpush1.msra.mxu0 0.0
      %7893 = vmatprep.subr.mxu0 0.0
      %7894 = vmatpush1.msra.mxu0 0.0
      %7895 = vmatprep.subr.mxu0 0.0
      %7896 = vmatpush1.msra.mxu0 0.0
      %7897 = vmatprep.subr.mxu0 0.0
      %7898 = vmatpush1.msra.mxu0 0.0
      %7899 = vmatprep.subr.mxu0 0.0
      %7900 = vmatpush1.msra.mxu0 0.0
      %7901 = vmatprep.subr.mxu0 0.0
      %7902 = vmatpush1.msra.mxu0 0.0
      %7903 = vmatprep.subr.mxu0 0.0
      %7904 = vmatpush1.msra.mxu0 0.0
      %7905 = vmatprep.subr.mxu0 0.0
      %7906 = vmatpush1.msra.mxu0 0.0
      %7907 = vmatprep.subr.mxu0 0.0
      %7908 = vmatpush1.msra.mxu0 0.0
      %7909 = vmatprep.subr.mxu0 0.0
      %7910 = vmatpush1.msra.mxu0 0.0
      %7911 = vmatprep.subr.mxu0 0.0
      %7912 = vmatpush1.msra.mxu0 0.0
      %7913 = vmatprep.subr.mxu0 0.0
      %7914 = vmatpush1.msra.mxu0 0.0
      %7915 = vmatprep.subr.mxu0 0.0
      %7916 = vmatpush1.msra.mxu0 0.0
      %7917 = vmatprep.subr.mxu0 0.0
      %7918 = vmatpush1.msra.mxu0 0.0
      %7919 = vmatprep.subr.mxu0 0.0
      %7920 = vmatpush1.msra.mxu0 0.0
      %7921 = vmatprep.subr.mxu0 0.0
      %7922 = vmatpush1.msra.mxu0 0.0
      %7923 = vmatprep.subr.mxu0 0.0
      %7924 = vmatpush1.msra.mxu0 0.0
      %7925 = vmatprep.subr.mxu0 0.0
      %7926 = vmatpush1.msra.mxu0 0.0
      %7927 = vmatprep.subr.mxu0 0.0
      %7928 = vmatpush1.msra.mxu0 0.0
      %7929 = vmatprep.subr.mxu0 0.0
      %7930 = vmatpush1.msra.mxu0 0.0
      %7931 = vmatprep.subr.mxu0 0.0
      %7932 = vmatpush1.msra.mxu0 0.0
      %7933 = vmatprep.subr.mxu0 0.0
      %7934 = vmatpush1.msra.mxu0 0.0
      %7935 = vmatprep.subr.mxu0 0.0
      %7936 = vmatpush1.msra.mxu0 0.0
      %7937 = vmatprep.subr.mxu0 0.0
      %7938 = vmatpush1.msra.mxu0 0.0
      %7939 = vmatprep.mubr.f32.mxu0 0.0
      %7940 = vmatmul.mubr.f32.gmra.mrb[0].mxu0 %v7780
      %v7941 = vpop.f32.mrb[0].mxu0
      %v7942 = vadd.f32 %v7777, %v7941
      %v7943 = vpop.f32.mrb[0].mxu0
      %7944 = vmatprep.mubr.f32.mxu0 0.0
      %7945 = vmatmul.mubr.f32.gmra.mrb[0].mxu0 %v7783
      %v7946 = vpop.f32.mrb[0].mxu0
      %v7947 = vadd.f32 %v7777, %v7946
      %v7948 = vpop.f32.mrb[0].mxu0
      %7949 = vmatprep.mubr.f32.mxu0 0.0
      %7950 = vmatmul.mubr.f32.gmra.mrb[0].mxu0 %v7786
      %v7951 = vpop.f32.mrb[0].mxu0
      %v7952 = vadd.f32 %v7777, %v7951
      %v7953 = vpop.f32.mrb[0].mxu0
      %7954 = vmatprep.mubr.f32.mxu0 0.0
      %7955 = vmatmul.mubr.f32.gmra.mrb[0].mxu0 %v7789
      %v7956 = vpop.f32.mrb[0].mxu0
      %v7957 = vadd.f32 %v7777, %v7956
      %v7958 = vpop.f32.mrb[0].mxu0
      %7959 = vmatprep.mubr.f32.mxu0 0.0
      %7960 = vmatmul.mubr.f32.gmra.mrb[0].mxu0 %v7792
      %v7961 = vpop.f32.mrb[0].mxu0
      %v7962 = vadd.f32 %v7777, %v7961
      %v7963 = vpop.f32.mrb[0].mxu0
      %7964 = vmatprep.mubr.f32.mxu0 0.0
      %7965 = vmatmul.mubr.f32.gmra.mrb[0].mxu0 %v7795
      %v7966 = vpop.f32.mrb[0].mxu0
      %v7967 = vadd.f32 %v7777, %v7966
      %v7968 = vpop.f32.mrb[0].mxu0
      %7969 = vmatprep.mubr.f32.mxu0 0.0
      %7970 = vmatmul.mubr.f32.gmra.mrb[0].mxu0 %v7798
      %v7971 = vpop.f32.mrb[0].mxu0
      %v7972 = vadd.f32 %v7777, %v7971
      %v7973 = vpop.f32.mrb[0].mxu0
      %7974 = vmatprep.mubr.f32.mxu0 0.0
      %7975 = vmatmul.mubr.f32.gmra.mrb[0].mxu0 %v7801
      %v7976 = vpop.f32.mrb[0].mxu0
      %v7977 = vadd.f32 %v7777, %v7976
      %v7978 = vpop.f32.mrb[0].mxu0
      %7979 = vmatprep.mubr.f32.mxu0 0.0
      %7980 = vmatmul.mubr.f32.gmra.mrb[0].mxu0 %v7804
      %v7981 = vpop.f32.mrb[0].mxu0
      %v7982 = vadd.f32 %v7777, %v7981
      %v7983 = vpop.f32.mrb[0].mxu0
      %7984 = vmatprep.mubr.f32.mxu0 0.0
      %7985 = vmatmul.mubr.f32.gmra.mrb[0].mxu0 %v7807
      %v7986 = vpop.f32.mrb[0].mxu0
      %v7987 = vadd.f32 %v7777, %v7986
      %v7988 = vpop.f32.mrb[0].mxu0
      %7989 = vmatprep.mubr.f32.mxu0 0.0
      %7990 = vmatmul.mubr.f32.gmra.mrb[0].mxu0 %v7810
      %v7991 = vpop.f32.mrb[0].mxu0
      %v7992 = vadd.f32 %v7777, %v7991
      %v7993 = vpop.f32.mrb[0].mxu0
      %7994 = vmatprep.mubr.f32.mxu0 0.0
      %7995 = vmatmul.mubr.f32.gmra.mrb[0].mxu0 %v7813
      %v7996 = vpop.f32.mrb[0].mxu0
      %v7997 = vadd.f32 %v7777, %v7996
      %v7998 = vpop.f32.mrb[0].mxu0
      %7999 = vmatprep.mubr.f32.mxu0 0.0
      %8000 = vmatmul.mubr.f32.gmra.mrb[0].mxu0 %v7816
      %v8001 = vpop.f32.mrb[0].mxu0
      %v8002 = vadd.f32 %v7777, %v8001
      %v8003 = vpop.f32.mrb[0].mxu0
      %8004 = vmatprep.mubr.f32.mxu0 0.0
      %8005 = vmatmul.mubr.f32.gmra.mrb[0].mxu0 %v7819
      %v8006 = vpop.f32.mrb[0].mxu0
      %v8007 = vadd.f32 %v7777, %v8006
      %v8008 = vpop.f32.mrb[0].mxu0
      %8009 = vmatprep.mubr.f32.mxu0 0.0
      %8010 = vmatmul.mubr.f32.gmra.mrb[0].mxu0 %v7822
      %v8011 = vpop.f32.mrb[0].mxu0
      %v8012 = vadd.f32 %v7777, %v8011
      %v8013 = vpop.f32.mrb[0].mxu0
      %8014 = vmatprep.mubr.f32.mxu0 0.0
      %8015 = vmatmul.mubr.f32.gmra.mrb[0].mxu0 %v7825
      %v8016 = vpop.f32.mrb[0].mxu0
      %v8017 = vadd.f32 %v7777, %v8016
      %v8018 = vpop.f32.mrb[0].mxu0
      %8019 = vmatprep.mubr.f32.mxu0 0.0
      %8020 = vmatmul.mubr.f32.gmra.mrb[0].mxu0 %v7828
      %v8021 = vpop.f32.mrb[0].mxu0
      %v8022 = vadd.f32 %v7777, %v8021
      %v8023 = vpop.f32.mrb[0].mxu0
      %8024 = vmatprep.mubr.f32.mxu0 0.0
      %8025 = vmatmul.mubr.f32.gmra.mrb[0].mxu0 %v7831
      %v8026 = vpop.f32.mrb[0].mxu0
      %v8027 = vadd.f32 %v7777, %v8026
      %v8028 = vpop.f32.mrb[0].mxu0
      %8029 = vmatprep.mubr.f32.mxu0 0.0
      %8030 = vmatmul.mubr.f32.gmra.mrb[0].mxu0 %v7834
      %v8031 = vpop.f32.mrb[0].mxu0
      %v8032 = vadd.f32 %v7777, %v8031
      %v8033 = vpop.f32.mrb[0].mxu0
      %8034 = vmatprep.mubr.f32.mxu0 0.0
      %8035 = vmatmul.mubr.f32.gmra.mrb[0].mxu0 %v7837
      %v8036 = vpop.f32.mrb[0].mxu0
      %v8037 = vadd.f32 %v7777, %v8036
      %v8038 = vpop.f32.mrb[0].mxu0
      %8039 = vmatprep.mubr.f32.mxu0 0.0
      %8040 = vmatmul.mubr.f32.gmra.mrb[0].mxu0 %v7840
      %v8041 = vpop.f32.mrb[0].mxu0
      %v8042 = vadd.f32 %v7777, %v8041
      %v8043 = vpop.f32.mrb[0].mxu0
      %8044 = vmatprep.mubr.f32.mxu0 0.0
      %8045 = vmatmul.mubr.f32.gmra.mrb[0].mxu0 %v7843
      %v8046 = vpop.f32.mrb[0].mxu0
      %v8047 = vadd.f32 %v7777, %v8046
      %v8048 = vpop.f32.mrb[0].mxu0
      %8049 = vmatprep.mubr.f32.mxu0 0.0
      %8050 = vmatmul.mubr.f32.gmra.mrb[0].mxu0 %v7846
      %v8051 = vpop.f32.mrb[0].mxu0
      %v8052 = vadd.f32 %v7777, %v8051
      %v8053 = vpop.f32.mrb[0].mxu0
      %8054 = vmatprep.mubr.f32.mxu0 0.0
      %8055 = vmatmul.mubr.f32.gmra.mrb[0].mxu0 %v7849
      %v8056 = vpop.f32.mrb[0].mxu0
      %v8057 = vadd.f32 %v7777, %v8056
      %v8058 = vpop.f32.mrb[0].mxu0
      %8059 = vmatprep.mubr.f32.mxu0 0.0
      %8060 = vmatmul.mubr.f32.gmra.mrb[0].mxu0 %v7852
      %v8061 = vpop.f32.mrb[0].mxu0
      %v8062 = vadd.f32 %v7777, %v8061
      %v8063 = vpop.f32.mrb[0].mxu0
      %8064 = vmatprep.mubr.f32.mxu0 0.0
      %8065 = vmatmul.mubr.f32.gmra.mrb[0].mxu0 %v7855
      %v8066 = vpop.f32.mrb[0].mxu0
      %v8067 = vadd.f32 %v7777, %v8066
      %v8068 = vpop.f32.mrb[0].mxu0
      %8069 = vmatprep.mubr.f32.mxu0 0.0
      %8070 = vmatmul.mubr.f32.gmra.mrb[0].mxu0 %v7858
      %v8071 = vpop.f32.mrb[0].mxu0
      %v8072 = vadd.f32 %v7777, %v8071
      %v8073 = vpop.f32.mrb[0].mxu0
      %8074 = vmatprep.mubr.f32.mxu0 0.0
      %8075 = vmatmul.mubr.f32.gmra.mrb[0].mxu0 %v7861
      %v8076 = vpop.f32.mrb[0].mxu0
      %v8077 = vadd.f32 %v7777, %v8076
      %v8078 = vpop.f32.mrb[0].mxu0
      %8079 = vmatprep.mubr.f32.mxu0 0.0
      %8080 = vmatmul.mubr.f32.gmra.mrb[0].mxu0 %v7864
      %v8081 = vpop.f32.mrb[0].mxu0
      %v8082 = vadd.f32 %v7777, %v8081
      %v8083 = vpop.f32.mrb[0].mxu0
      %8084 = vmatprep.mubr.f32.mxu0 0.0
      %8085 = vmatmul.mubr.f32.gmra.mrb[0].mxu0 %v7867
      %v8086 = vpop.f32.mrb[0].mxu0
      %v8087 = vadd.f32 %v7777, %v8086
      %v8088 = vpop.f32.mrb[0].mxu0
      %8089 = vmatprep.mubr.f32.mxu0 0.0
      %8090 = vmatmul.mubr.f32.gmra.mrb[0].mxu0 %v7870
      %v8091 = vpop.f32.mrb[0].mxu0
      %v8092 = vadd.f32 %v7777, %v8091
      %v8093 = vpop.f32.mrb[0].mxu0
      %8094 = vmatprep.mubr.f32.mxu0 0.0
      %8095 = vmatmul.mubr.f32.gmra.mrb[0].mxu0 %v7873
      %v8096 = vpop.f32.mrb[0].mxu0
      %v8097 = vadd.f32 %v7777, %v8096
      %v8098 = vpop.f32.mrb[0].mxu0
      %8099 = vdwg.mxu0
      %v8100 = vlaneseq
      %v8101 = vand.u32 %v8100, 127
      %vm8102 = vcmp.eq.s32.totalorder %v8101, 3
      %8104 = vset.pattern.permute.xlu0 0
      %8105 = vperm.xlu0 %8104, %v7942
      %v8106 = vpop.permute.xlu0 %8105
      %8109 = vset.pattern.permute.xlu0 0
      %8110 = vperm.xlu0 %8109, %v7947
      %v8111 = vpop.permute.xlu0 %8110
      %8114 = vset.pattern.permute.xlu0 0
      %8115 = vperm.xlu0 %8114, %v7952
      %v8116 = vpop.permute.xlu0 %8115
      %8119 = vset.pattern.permute.xlu0 0
      %8120 = vperm.xlu0 %8119, %v7957
      %v8121 = vpop.permute.xlu0 %8120
      %8124 = vset.pattern.permute.xlu0 0
      %8125 = vperm.xlu0 %8124, %v7962
      %v8126 = vpop.permute.xlu0 %8125
      %8129 = vset.pattern.permute.xlu0 0
      %8130 = vperm.xlu0 %8129, %v7967
      %v8131 = vpop.permute.xlu0 %8130
      %8134 = vset.pattern.permute.xlu0 0
      %8135 = vperm.xlu0 %8134, %v7972
      %v8136 = vpop.permute.xlu0 %8135
      %8139 = vset.pattern.permute.xlu0 0
      %8140 = vperm.xlu0 %8139, %v7977
      %v8141 = vpop.permute.xlu0 %8140
      %8144 = vset.pattern.permute.xlu0 0
      %8145 = vperm.xlu0 %8144, %v7982
      %v8146 = vpop.permute.xlu0 %8145
      %8149 = vset.pattern.permute.xlu0 0
      %8150 = vperm.xlu0 %8149, %v7987
      %v8151 = vpop.permute.xlu0 %8150
      %8154 = vset.pattern.permute.xlu0 0
      %8155 = vperm.xlu0 %8154, %v7992
      %v8156 = vpop.permute.xlu0 %8155
      %8159 = vset.pattern.permute.xlu0 0
      %8160 = vperm.xlu0 %8159, %v7997
      %v8161 = vpop.permute.xlu0 %8160
      %8164 = vset.pattern.permute.xlu0 0
      %8165 = vperm.xlu0 %8164, %v8002
      %v8166 = vpop.permute.xlu0 %8165
      %8169 = vset.pattern.permute.xlu0 0
      %8170 = vperm.xlu0 %8169, %v8007
      %v8171 = vpop.permute.xlu0 %8170
      %8174 = vset.pattern.permute.xlu0 0
      %8175 = vperm.xlu0 %8174, %v8012
      %v8176 = vpop.permute.xlu0 %8175
      %8179 = vset.pattern.permute.xlu0 0
      %8180 = vperm.xlu0 %8179, %v8017
      %v8181 = vpop.permute.xlu0 %8180
      %8184 = vset.pattern.permute.xlu0 0
      %8185 = vperm.xlu0 %8184, %v8022
      %v8186 = vpop.permute.xlu0 %8185
      %8189 = vset.pattern.permute.xlu0 0
      %8190 = vperm.xlu0 %8189, %v8027
      %v8191 = vpop.permute.xlu0 %8190
      %8194 = vset.pattern.permute.xlu0 0
      %8195 = vperm.xlu0 %8194, %v8032
      %v8196 = vpop.permute.xlu0 %8195
      %8199 = vset.pattern.permute.xlu0 0
      %8200 = vperm.xlu0 %8199, %v8037
      %v8201 = vpop.permute.xlu0 %8200
      %8204 = vset.pattern.permute.xlu0 0
      %8205 = vperm.xlu0 %8204, %v8042
      %v8206 = vpop.permute.xlu0 %8205
      %8209 = vset.pattern.permute.xlu0 0
      %8210 = vperm.xlu0 %8209, %v8047
      %v8211 = vpop.permute.xlu0 %8210
      %8214 = vset.pattern.permute.xlu0 0
      %8215 = vperm.xlu0 %8214, %v8052
      %v8216 = vpop.permute.xlu0 %8215
      %8219 = vset.pattern.permute.xlu0 0
      %8220 = vperm.xlu0 %8219, %v8057
      %v8221 = vpop.permute.xlu0 %8220
      %8224 = vset.pattern.permute.xlu0 0
      %8225 = vperm.xlu0 %8224, %v8062
      %v8226 = vpop.permute.xlu0 %8225
      %8229 = vset.pattern.permute.xlu0 0
      %8230 = vperm.xlu0 %8229, %v8067
      %v8231 = vpop.permute.xlu0 %8230
      %8234 = vset.pattern.permute.xlu0 0
      %8235 = vperm.xlu0 %8234, %v8072
      %v8236 = vpop.permute.xlu0 %8235
      %8239 = vset.pattern.permute.xlu0 0
      %8240 = vperm.xlu0 %8239, %v8077
      %v8241 = vpop.permute.xlu0 %8240
      %8244 = vset.pattern.permute.xlu0 0
      %8245 = vperm.xlu0 %8244, %v8082
      %v8246 = vpop.permute.xlu0 %8245
      %8249 = vset.pattern.permute.xlu0 0
      %8250 = vperm.xlu0 %8249, %v8087
      %v8251 = vpop.permute.xlu0 %8250
      %8254 = vset.pattern.permute.xlu0 0
      %8255 = vperm.xlu0 %8254, %v8092
      %v8256 = vpop.permute.xlu0 %8255
      %8259 = vset.pattern.permute.xlu0 0
      %8260 = vperm.xlu0 %8259, %v8097
      %v8261 = vpop.permute.xlu0 %8260
      %v8263 = vsel %vm8102, %v8106, 0.0
      %v8264 = vsel %vm8102, %v8111, 0.0
      %v8265 = vsel %vm8102, %v8116, 0.0
      %v8266 = vsel %vm8102, %v8121, 0.0
      %v8267 = vsel %vm8102, %v8126, 0.0
      %v8268 = vsel %vm8102, %v8131, 0.0
      %v8269 = vsel %vm8102, %v8136, 0.0
      %v8270 = vsel %vm8102, %v8141, 0.0
      %v8271 = vsel %vm8102, %v8146, 0.0
      %v8272 = vsel %vm8102, %v8151, 0.0
      %v8273 = vsel %vm8102, %v8156, 0.0
      %v8274 = vsel %vm8102, %v8161, 0.0
      %v8275 = vsel %vm8102, %v8166, 0.0
      %v8276 = vsel %vm8102, %v8171, 0.0
      %v8277 = vsel %vm8102, %v8176, 0.0
      %v8278 = vsel %vm8102, %v8181, 0.0
      %v8279 = vsel %vm8102, %v8186, 0.0
      %v8280 = vsel %vm8102, %v8191, 0.0
      %v8281 = vsel %vm8102, %v8196, 0.0
      %v8282 = vsel %vm8102, %v8201, 0.0
      %v8283 = vsel %vm8102, %v8206, 0.0
      %v8284 = vsel %vm8102, %v8211, 0.0
      %v8285 = vsel %vm8102, %v8216, 0.0
      %v8286 = vsel %vm8102, %v8221, 0.0
      %v8287 = vsel %vm8102, %v8226, 0.0
      %v8288 = vsel %vm8102, %v8231, 0.0
      %v8289 = vsel %vm8102, %v8236, 0.0
      %v8290 = vsel %vm8102, %v8241, 0.0
      %v8291 = vsel %vm8102, %v8246, 0.0
      %v8292 = vsel %vm8102, %v8251, 0.0
      %v8293 = vsel %vm8102, %v8256, 0.0
      %v8294 = vsel %vm8102, %v8261, 0.0
      %vm8295 = vcmask 31744
      %8296 = vst.msk [vmem:[%s493] sm:$0xff] %vm8295, %v8263
      %8297 = vst.msk [vmem:[%s493 + $0x8] sm:$0xff] %vm8295, %v8264
      %8298 = vst.msk [vmem:[%s493 + $0x10] sm:$0xff] %vm8295, %v8265
      %8299 = vst.msk [vmem:[%s493 + $0x18] sm:$0xff] %vm8295, %v8266
      %8300 = vst.msk [vmem:[%s493 + $0x20] sm:$0xff] %vm8295, %v8267
      %8301 = vst.msk [vmem:[%s493 + $0x28] sm:$0xff] %vm8295, %v8268
      %8302 = vst.msk [vmem:[%s493 + $0x30] sm:$0xff] %vm8295, %v8269
      %8303 = vst.msk [vmem:[%s493 + $0x38] sm:$0xff] %vm8295, %v8270
      %8304 = vst.msk [vmem:[%s493 + $0x40] sm:$0xff] %vm8295, %v8271
      %8305 = vst.msk [vmem:[%s493 + $0x48] sm:$0xff] %vm8295, %v8272
      %8306 = vst.msk [vmem:[%s493 + $0x50] sm:$0xff] %vm8295, %v8273
      %8307 = vst.msk [vmem:[%s493 + $0x58] sm:$0xff] %vm8295, %v8274
      %8308 = vst.msk [vmem:[%s493 + $0x60] sm:$0xff] %vm8295, %v8275
      %8309 = vst.msk [vmem:[%s493 + $0x68] sm:$0xff] %vm8295, %v8276
      %8310 = vst.msk [vmem:[%s493 + $0x70] sm:$0xff] %vm8295, %v8277
      %8311 = vst.msk [vmem:[%s493 + $0x78] sm:$0xff] %vm8295, %v8278
      %8312 = vst.msk [vmem:[%s493 + $0x80] sm:$0xff] %vm8295, %v8279
      %8313 = vst.msk [vmem:[%s493 + $0x88] sm:$0xff] %vm8295, %v8280
      %8314 = vst.msk [vmem:[%s493 + $0x90] sm:$0xff] %vm8295, %v8281
      %8315 = vst.msk [vmem:[%s493 + $0x98] sm:$0xff] %vm8295, %v8282
      %8316 = vst.msk [vmem:[%s493 + $0xa0] sm:$0xff] %vm8295, %v8283
      %8317 = vst.msk [vmem:[%s493 + $0xa8] sm:$0xff] %vm8295, %v8284
      %8318 = vst.msk [vmem:[%s493 + $0xb0] sm:$0xff] %vm8295, %v8285
      %8319 = vst.msk [vmem:[%s493 + $0xb8] sm:$0xff] %vm8295, %v8286
      %8320 = vst.msk [vmem:[%s493 + $0xc0] sm:$0xff] %vm8295, %v8287
      %8321 = vst.msk [vmem:[%s493 + $0xc8] sm:$0xff] %vm8295, %v8288
      %8322 = vst.msk [vmem:[%s493 + $0xd0] sm:$0xff] %vm8295, %v8289
      %8323 = vst.msk [vmem:[%s493 + $0xd8] sm:$0xff] %vm8295, %v8290
      %8324 = vst.msk [vmem:[%s493 + $0xe0] sm:$0xff] %vm8295, %v8291
      %8325 = vst.msk [vmem:[%s493 + $0xe8] sm:$0xff] %vm8295, %v8292
      %8326 = vst.msk [vmem:[%s493 + $0xf0] sm:$0xff] %vm8295, %v8293
      %8327 = vst.msk [vmem:[%s493 + $0xf8] sm:$0xff] %vm8295, %v8294
      %s8328 = smul.u32 32, %s27
      %p8329 = scmp.lt.s32.totalorder %s8328, 63
      %s8330 = scalar_select %p8329, %s8328, 63
      %s8331 = smul.addr %s8330, 8
      %s8332 = scalar_lea.vmem %s14, %s8331
      // Predicated region
      $region77: #{tpu_custom_call.1} parent=75 // pred_check
        %p8333 = pneg %p349
      $region78: #{tpu_custom_call.1} parent=75 // pred_check_branch
        %8335 = sbr.rel (%p8333) target = $region80
      $region79: #{tpu_custom_call.1} parent=75 // pred_region
        %s8336 = smul.u32 32, %s27
      $region80: #{tpu_custom_call.1} parent=75 // pred_fallthru
        _
    $region76: #{tpu_custom_call.1} parent=5 // pred_fallthru
      _
    %p8337 = scmp.le.s32.totalorder 2, %s22
    // Predicated region
    $region81: #{tpu_custom_call.1} parent=5 // pred_check
      %p8338 = pneg %p8337
    $region82: #{tpu_custom_call.1} parent=5 // pred_check_branch
      %8340 = sbr.rel (%p8338) target = $region84
    $region83: #{tpu_custom_call.1} parent=5 // pred_region
      %s8341 = ssub.s32 %s22, 2
      // Predicated region
      $region85: #{tpu_custom_call.1} parent=83 // pred_check
        %p8342 = pneg %p355
      $region86: #{tpu_custom_call.1} parent=83 // pred_check_branch
        %8344 = sbr.rel (%p8342) target = $region88
      $region87: #{tpu_custom_call.1} parent=83 // pred_region
        %s8345 = smul.u32 32, %s28
        %p8346 = scmp.lt.s32.totalorder %s8345, 63
        %s8347 = scalar_select %p8346, %s8345, 63
        %s8348 = smul.addr %s8347, 8
        %s8349 = scalar_lea.vmem %s14, %s8348
      $region88: #{tpu_custom_call.1} parent=83 // pred_fallthru
        _
    $region84: #{tpu_custom_call.1} parent=5 // pred_fallthru
      _
  $region6: #{tpu_custom_call.1} parent=0 // loop_footer
    %s26 = sadd.s32 1, %s22
  $region7: #{tpu_custom_call.1} parent=0 // loop_footer_branch
    %21 = sbr.rel target = $region3
  $region8: #{tpu_custom_call.1} parent=0 // loop_exit
    _

</llo_original>
